<compile_context>
chip_gen: v7x
topology: tpu7x:2x2x1
jax: 0.10.0
libtpu: 0.0.40
codegen_flags: <defaults>
</compile_context>

<pallas_src>
import jax
import jax.numpy as jnp
from jax.experimental import pallas as pl
from jax.experimental.pallas import tpu as pltpu

C = 256              # channels fixed by the module (Conv2d(256, 256, kernel_size=3))
EPS = 1e-5           # nn.InstanceNorm2d default eps (affine=False)

_VMEM_LIMIT_BYTES = 48 << 20    # scoped VMEM cap: safe on v7x (64 MiB) and v5e/v6e (128 MiB)
_TILE_BUDGET_BYTES = 24 << 20   # resident-set target per stage (leaves pipelining headroom)


# ----------------------------------------------------------------------------- kernels
def _make_conv_stage_kernel(th, W, prenorm):
    """conv3x3 (9 bf16 MXU taps, f32 accumulation) over one (th+2, W+2, C) padded tile.

    prenorm=False: y = conv(x) + b
    prenorm=True : y = conv(relu((x - mean) * rstd)) + b   (per-channel mean/rstd)
    Also writes per-tile per-channel [sum, sum_sq] of the *bias-free* conv output
    (partial InstanceNorm statistics, reduced across tiles in plain JAX).
    """
    hw = th * W

    def kernel(*refs):
        if prenorm:
            x_ref, w_ref, b_ref, mean_ref, rstd_ref, y_ref, stats_ref = refs
        else:
            x_ref, w_ref, b_ref, y_ref, stats_ref = refs

        p = x_ref[0]                                     # (th+2, W+2, C) bf16
        if prenorm:
            # per-channel affine + ReLU commute with reflection padding, so they are
            # applied directly to the already-padded raw conv1 output tile (bf16 math:
            # feeds a bf16 matmul anyway).
            m = mean_ref[0].astype(jnp.bfloat16)         # (1, C)
            r = rstd_ref[0].astype(jnp.bfloat16)
            p = jnp.maximum((p - m) * r, 0)

        # conv3x3 as 9 accumulated MXU matmuls (K = C = 256), bf16 in / f32 accumulate.
        acc = None
        for dy in range(3):
            rows = p[dy:dy + th]                         # (th, W+2, C)
            for dx in range(3):
                patch = rows[:, dx:dx + W].reshape(hw, C)
                d = jnp.dot(patch, w_ref[dy * 3 + dx],
                            preferred_element_type=jnp.float32)
                acc = d if acc is None else acc + d

        # Per-tile partial InstanceNorm statistics on the BIAS-FREE accumulator
        # (shift trick: the bias is re-added to the mean outside the kernel).
        stats_ref[0] = jnp.concatenate(
            [jnp.sum(acc, axis=0, keepdims=True),
             jnp.sum(acc * acc, axis=0, keepdims=True)], axis=0)    # (2, C)

        # Bias folded in once at the end (no materialized (hw, C) broadcast up-front).
        y_ref[0] = (acc + b_ref[...]).reshape(th, W, C).astype(y_ref.dtype)

    return kernel


def _finalize_kernel(x_ref, y_ref, mean_ref, rstd_ref, o_ref):
    # out = x + InstanceNorm(conv2_out)   (bias present in both y and mean -> cancels)
    o_ref[...] = x_ref[...] + (y_ref[...] - mean_ref[0]) * rstd_ref[0]


# ----------------------------------------------------------------------------- wrappers
def _conv_stage(x_raw, w_fused, bias, th, out_dtype, mean=None, rstd=None):
    """One conv stage over a raw bf16 (N, H, W, C) activation.

    Returns (conv output (N, H, W, C) in out_dtype,
             per-tile partial stats (N, T, 2, C): bias-free per-channel [sum, sum_sq]).
    """
    N, H, W, _ = x_raw.shape
    assert H % th == 0, (H, th)
    T = H // th
    Wp = W + 2

    # Reflect-pad once; only build halo-duplicated row tiles when there is more than one
    # tile per image (bf16 + large th keeps the duplication overhead at ~(th+2)/th).
    xp = jnp.pad(x_raw, ((0, 0), (1, 1), (1, 1), (0, 0)), mode="reflect")
    if T == 1:
        xt = xp                                          # (N, H+2, Wp, C): no duplication
    else:
        xt = jnp.stack([xp[:, i * th:i * th + th + 2] for i in range(T)], axis=1)
        xt = xt.reshape(N * T, th + 2, Wp, C)

    prenorm = mean is not None
    in_specs = [
        pl.BlockSpec((1, th + 2, Wp, C), lambda n, t: (n * T + t, 0, 0, 0)),
        pl.BlockSpec((9, C, C), lambda n, t: (0, 0, 0)),   # constant block: fetched once
        pl.BlockSpec((1, C), lambda n, t: (0, 0)),
    ]
    args = [xt, w_fused, bias]
    if prenorm:
        in_specs += [pl.BlockSpec((1, 1, C), lambda n, t: (n, 0, 0)),
                     pl.BlockSpec((1, 1, C), lambda n, t: (n, 0, 0))]
        args += [mean, rstd]

    y, stats = pl.pallas_call(
        _make_conv_stage_kernel(th, W, prenorm),
        out_shape=(jax.ShapeDtypeStruct((N, H, W, C), out_dtype),
                   jax.ShapeDtypeStruct((N * T, 2, C), jnp.float32)),
        grid_spec=pltpu.PrefetchScalarGridSpec(
            num_scalar_prefetch=0,
            grid=(N, T),
            in_specs=in_specs,
            out_specs=(pl.BlockSpec((1, th, W, C), lambda n, t: (n, t, 0, 0)),
                       pl.BlockSpec((1, 2, C), lambda n, t: (n * T + t, 0, 0))),
        ),
        compiler_params=pltpu.CompilerParams(
            # per-tile partial stats -> no cross-iteration state -> both axes parallel
            # (v7x: shards across both TensorCores even when N == 1).
            dimension_semantics=("parallel", "parallel"),
            vmem_limit_bytes=_VMEM_LIMIT_BYTES),
    )(*args)
    return y, stats.reshape(N, T, 2, C)


def _finalize(x, y_raw, mean, rstd, th):
    N, H, W, _ = x.shape
    T = H // th
    return pl.pallas_call(
        _finalize_kernel,
        out_shape=jax.ShapeDtypeStruct((N, H, W, C), jnp.float32),
        grid_spec=pltpu.PrefetchScalarGridSpec(
            num_scalar_prefetch=0,
            grid=(N, T),
            in_specs=[pl.BlockSpec((1, th, W, C), lambda n, t: (n, t, 0, 0)),
                      pl.BlockSpec((1, th, W, C), lambda n, t: (n, t, 0, 0)),
                      pl.BlockSpec((1, 1, C), lambda n, t: (n, 0, 0)),
                      pl.BlockSpec((1, 1, C), lambda n, t: (n, 0, 0))],
            out_specs=pl.BlockSpec((1, th, W, C), lambda n, t: (n, t, 0, 0)),
        ),
        compiler_params=pltpu.CompilerParams(
            dimension_semantics=("parallel", "parallel"),
            vmem_limit_bytes=_VMEM_LIMIT_BYTES),
    )(x, y_raw, mean, rstd)


def _stats_to_norm(stats, bias, count):
    """Per-tile partial (bias-free) [sum, sum_sq] -> per-(N, C) mean/rstd of conv+bias."""
    s = jnp.sum(stats, axis=1)                           # reduce over row tiles: (N, 2, C)
    mean_nb = s[:, 0, :] / count                         # bias-free mean
    var = s[:, 1, :] / count - mean_nb * mean_nb         # shift-invariant variance
    rstd = jax.lax.rsqrt(jnp.maximum(var, 0.0) + EPS)
    mean = mean_nb + bias.reshape(1, C)                  # add the conv bias back
    return mean[:, None, :], rstd[:, None, :]            # (N, 1, C) each


def _largest_divisor_leq(n, cap):
    cap = int(max(1, min(n, cap)))
    while n % cap:
        cap -= 1
    return cap


def _pick_conv_tile_rows(H, W):
    """Largest divisor of H whose conv-stage resident set stays within the VMEM budget."""
    # per tile-row: 2x bf16 input buffer + 2x f32 output buffer + f32 acc + bf16 patch
    #               + bf16 prenorm temp  (all x C channels)
    per_row = C * (2 * 2 * (W + 2) + 2 * 4 * W + 4 * W + 2 * W + 2 * (W + 2))
    # fixed: double-buffered bf16 fused weights (2 x ~1.18 MiB) + 4 halo rows of input
    fixed = 2 * 9 * C * C * 2 + 2 * 2 * 2 * (W + 2) * C
    th = (_TILE_BUDGET_BYTES - fixed) // per_row
    return _largest_divisor_leq(H, th)


def _pick_fin_tile_rows(H, W):
    """Finalize is pure elementwise HBM roofline: pick big flat tiles."""
    per_row = C * 4 * W * 6                              # x, y, out: f32, double-buffered
    return _largest_divisor_leq(H, _TILE_BUDGET_BYTES // per_row)


def resnet_block_nhwc(x, w1, b1, w2, b2, tile_rows=None):
    """x: (N, H, W, 256); w*: PyTorch Conv2d layout (Cout, Cin, 3, 3); b*: (Cout,)."""
    N, H, W, Cin = x.shape
    assert Cin == C
    assert H >= 2 and W >= 2, "ReflectionPad2d(1) requires H, W >= 2"

    th = _pick_conv_tile_rows(H, W) if tile_rows is None else int(tile_rows)
    assert 1 <= th <= H and H % th == 0, (H, th)
    thf = _pick_fin_tile_rows(H, W)

    x = x.astype(jnp.float32)
    x_bf = x.astype(jnp.bfloat16)                        # bf16 copy feeds the MXU path
    # (Cout, Cin, 3, 3) -> (kh, kw, Cin, Cout) -> (9, Cin, Cout), bf16 for the MXU.
    w1f = jnp.transpose(w1, (2, 3, 1, 0)).reshape(9, C, C).astype(jnp.bfloat16)
    w2f = jnp.transpose(w2, (2, 3, 1, 0)).reshape(9, C, C).astype(jnp.bfloat16)
    b1f = b1.reshape(1, C).astype(jnp.float32)
    b2f = b2.reshape(1, C).astype(jnp.float32)

    h_raw, st1 = _conv_stage(x_bf, w1f, b1f, th, jnp.bfloat16)          # conv1 (+ stats)
    m1, r1 = _stats_to_norm(st1, b1f, H * W)
    y_raw, st2 = _conv_stage(h_raw, w2f, b2f, th, jnp.float32, m1, r1)  # IN1->ReLU->conv2
    m2, r2 = _stats_to_norm(st2, b2f, H * W)
    return _finalize(x, y_raw, m2, r2, thf)                             # IN2 + residual


def resnet_block(x_nchw, w1, b1, w2, b2, tile_rows=None):
    """PyTorch-layout adapter: (N, 256, H, W) -> (N, 256, H, W).

    In an NHWC model, call resnet_block_nhwc directly and avoid these two transposes.
    """
    x = jnp.transpose(x_nchw, (0, 2, 3, 1))
    out = resnet_block_nhwc(x, w1, b1, w2, b2, tile_rows=tile_rows)
    return jnp.transpose(out, (0, 3, 1, 2))


# ----------------------------------------------------------------------------- reference
def reference(x, w1, b1, w2, b2):
    """Pure-JAX f32 reference of the PyTorch forward (NCHW, full-precision convs)."""
    def conv(t, w, b):
        tp = jnp.pad(t, ((0, 0), (0, 0), (1, 1), (1, 1)), mode="reflect")
        y = jax.lax.conv_general_dilated(tp, w, (1, 1), "VALID",
                                         dimension_numbers=("NCHW", "OIHW", "NCHW"),
                                         precision=jax.lax.Precision.HIGHEST)
        return y + b.reshape(1, C, 1, 1)

    def inorm(t):
        mean = jnp.mean(t, axis=(2, 3), keepdims=True)
        var = jnp.mean((t - mean) ** 2, axis=(2, 3), keepdims=True)
        return (t - mean) * jax.lax.rsqrt(var + EPS)

    h = jax.nn.relu(inorm(conv(x, w1, b1)))
    return x + inorm(conv(h, w2, b2))


if __name__ == "__main__":
    key = jax.random.PRNGKey(0)
    kx, kw1, kb1, kw2, kb2 = jax.random.split(key, 5)

    N, H, W = 2, 16, 16
    x = jax.random.normal(kx, (N, C, H, W), jnp.float32)
    # deterministic synthetic parameters (PyTorch Conv2d weight layout: (Cout, Cin, kh, kw))
    w1 = jax.random.normal(kw1, (C, C, 3, 3), jnp.float32) * 0.05
    b1 = jax.random.normal(kb1, (C,), jnp.float32) * 0.1
    w2 = jax.random.normal(kw2, (C, C, 3, 3), jnp.float32) * 0.05
    b2 = jax.random.normal(kb2, (C,), jnp.float32) * 0.1

    fwd = jax.jit(resnet_block, static_argnames=("tile_rows",))
    ref = jax.block_until_ready(reference(x, w1, b1, w2, b2))

    # Tolerance reflects bf16 MXU inputs (f32 accumulation) vs. a full-f32 reference.
    TOL = 3e-2

    # Auto tiling: whole image is one row tile (T == 1, no halo duplication).
    out = jax.block_until_ready(fwd(x, w1, b1, w2, b2))
    assert out.shape == (N, C, H, W)
    assert jnp.allclose(out, ref, atol=TOL, rtol=TOL), float(jnp.max(jnp.abs(out - ref)))

    # Forced 2 row tiles per image: exercises the halo path and the per-tile partial
    # InstanceNorm statistics reduction (T > 1).
    out2 = jax.block_until_ready(fwd(x, w1, b1, w2, b2, tile_rows=8))
    assert jnp.allclose(out2, ref, atol=TOL, rtol=TOL), float(jnp.max(jnp.abs(out2 - ref)))

    print("KERNEL_OK")
</pallas_src>

<mosaic_0001>
module attributes {stable_mosaic.version = 11 : i64} {
  func.func @kernel(%arg0: i32, %arg1: i32, %arg2: memref<1x18x18x256xbf16, #tpu.memory_space<vmem>>, %arg3: memref<9x256x256xbf16, #tpu.memory_space<vmem>>, %arg4: memref<1x256xf32, #tpu.memory_space<vmem>>, %arg5: memref<1x16x16x256xbf16, #tpu.memory_space<vmem>>, %arg6: memref<1x2x256xf32, #tpu.memory_space<vmem>>) attributes {dimension_semantics = [#tpu.dimension_semantics<parallel>, #tpu.dimension_semantics<parallel>], iteration_bounds = array<i64: 2, 1>, scalar_prefetch = 0 : i64, scratch_operands = 0 : i64, tpu.core_type = #tpu.core_type<tc>, window_params = [{transform_indices = @transform_0, window_bounds = array<i64: 1, 18, 18, 256>}, {pipeline_mode = #tpu.pipeline_mode<synchronous>, transform_indices = @transform_1, window_bounds = array<i64: 9, 256, 256>}, {pipeline_mode = #tpu.pipeline_mode<synchronous>, transform_indices = @transform_2, window_bounds = array<i64: 1, 256>}, {transform_indices = @transform_3, window_bounds = array<i64: 1, 16, 16, 256>}, {transform_indices = @transform_4, window_bounds = array<i64: 1, 2, 256>}]} {
    %c0 = arith.constant 0 : index
    %c0_0 = arith.constant 0 : index
    %c0_1 = arith.constant 0 : index
    %c0_2 = arith.constant 0 : index
    %0 = vector.load %arg2[%c0, %c0_0, %c0_1, %c0_2] : memref<1x18x18x256xbf16, #tpu.memory_space<vmem>>, vector<1x18x18x256xbf16>
    %1 = vector.shape_cast %0 : vector<1x18x18x256xbf16> to vector<18x18x256xbf16>
    %2 = vector.extract_strided_slice %1 {offsets = [0, 0, 0], sizes = [16, 18, 256], strides = [1, 1, 1]} : vector<18x18x256xbf16> to vector<16x18x256xbf16>
    %3 = vector.extract_strided_slice %2 {offsets = [0, 0, 0], sizes = [16, 16, 256], strides = [1, 1, 1]} : vector<16x18x256xbf16> to vector<16x16x256xbf16>
    %4 = vector.shape_cast %3 : vector<16x16x256xbf16> to vector<256x256xbf16>
    %c0_3 = arith.constant 0 : index
    %c0_4 = arith.constant 0 : index
    %c0_5 = arith.constant 0 : index
    %5 = vector.load %arg3[%c0_3, %c0_4, %c0_5] : memref<9x256x256xbf16, #tpu.memory_space<vmem>>, vector<1x256x256xbf16>
    %6 = vector.shape_cast %5 : vector<1x256x256xbf16> to vector<256x256xbf16>
    %cst = arith.constant dense<0.000000e+00> : vector<256x256xf32>
    %7 = tpu.matmul %4, %6, %cst {dimension_numbers = #tpu.dot_dimension_numbers<[1], [0], [0], [1], [0, 0, 1, 1], [], []>} : vector<256x256xbf16>, vector<256x256xbf16>, vector<256x256xf32> -> vector<256x256xf32>
    %8 = vector.extract_strided_slice %2 {offsets = [0, 1, 0], sizes = [16, 16, 256], strides = [1, 1, 1]} : vector<16x18x256xbf16> to vector<16x16x256xbf16>
    %9 = vector.shape_cast %8 : vector<16x16x256xbf16> to vector<256x256xbf16>
    %c1 = arith.constant 1 : index
    %c0_6 = arith.constant 0 : index
    %c0_7 = arith.constant 0 : index
    %10 = vector.load %arg3[%c1, %c0_6, %c0_7] : memref<9x256x256xbf16, #tpu.memory_space<vmem>>, vector<1x256x256xbf16>
    %11 = vector.shape_cast %10 : vector<1x256x256xbf16> to vector<256x256xbf16>
    %cst_8 = arith.constant dense<0.000000e+00> : vector<256x256xf32>
    %12 = tpu.matmul %9, %11, %cst_8 {dimension_numbers = #tpu.dot_dimension_numbers<[1], [0], [0], [1], [0, 0, 1, 1], [], []>} : vector<256x256xbf16>, vector<256x256xbf16>, vector<256x256xf32> -> vector<256x256xf32>
    %13 = arith.addf %7, %12 : vector<256x256xf32>
    %14 = vector.extract_strided_slice %2 {offsets = [0, 2, 0], sizes = [16, 16, 256], strides = [1, 1, 1]} : vector<16x18x256xbf16> to vector<16x16x256xbf16>
    %15 = vector.shape_cast %14 : vector<16x16x256xbf16> to vector<256x256xbf16>
    %c2 = arith.constant 2 : index
    %c0_9 = arith.constant 0 : index
    %c0_10 = arith.constant 0 : index
    %16 = vector.load %arg3[%c2, %c0_9, %c0_10] : memref<9x256x256xbf16, #tpu.memory_space<vmem>>, vector<1x256x256xbf16>
    %17 = vector.shape_cast %16 : vector<1x256x256xbf16> to vector<256x256xbf16>
    %cst_11 = arith.constant dense<0.000000e+00> : vector<256x256xf32>
    %18 = tpu.matmul %15, %17, %cst_11 {dimension_numbers = #tpu.dot_dimension_numbers<[1], [0], [0], [1], [0, 0, 1, 1], [], []>} : vector<256x256xbf16>, vector<256x256xbf16>, vector<256x256xf32> -> vector<256x256xf32>
    %19 = arith.addf %13, %18 : vector<256x256xf32>
    %20 = vector.extract_strided_slice %1 {offsets = [1, 0, 0], sizes = [16, 18, 256], strides = [1, 1, 1]} : vector<18x18x256xbf16> to vector<16x18x256xbf16>
    %21 = vector.extract_strided_slice %20 {offsets = [0, 0, 0], sizes = [16, 16, 256], strides = [1, 1, 1]} : vector<16x18x256xbf16> to vector<16x16x256xbf16>
    %22 = vector.shape_cast %21 : vector<16x16x256xbf16> to vector<256x256xbf16>
    %c3 = arith.constant 3 : index
    %c0_12 = arith.constant 0 : index
    %c0_13 = arith.constant 0 : index
    %23 = vector.load %arg3[%c3, %c0_12, %c0_13] : memref<9x256x256xbf16, #tpu.memory_space<vmem>>, vector<1x256x256xbf16>
    %24 = vector.shape_cast %23 : vector<1x256x256xbf16> to vector<256x256xbf16>
    %cst_14 = arith.constant dense<0.000000e+00> : vector<256x256xf32>
    %25 = tpu.matmul %22, %24, %cst_14 {dimension_numbers = #tpu.dot_dimension_numbers<[1], [0], [0], [1], [0, 0, 1, 1], [], []>} : vector<256x256xbf16>, vector<256x256xbf16>, vector<256x256xf32> -> vector<256x256xf32>
    %26 = arith.addf %19, %25 : vector<256x256xf32>
    %27 = vector.extract_strided_slice %20 {offsets = [0, 1, 0], sizes = [16, 16, 256], strides = [1, 1, 1]} : vector<16x18x256xbf16> to vector<16x16x256xbf16>
    %28 = vector.shape_cast %27 : vector<16x16x256xbf16> to vector<256x256xbf16>
    %c4 = arith.constant 4 : index
    %c0_15 = arith.constant 0 : index
    %c0_16 = arith.constant 0 : index
    %29 = vector.load %arg3[%c4, %c0_15, %c0_16] : memref<9x256x256xbf16, #tpu.memory_space<vmem>>, vector<1x256x256xbf16>
    %30 = vector.shape_cast %29 : vector<1x256x256xbf16> to vector<256x256xbf16>
    %cst_17 = arith.constant dense<0.000000e+00> : vector<256x256xf32>
    %31 = tpu.matmul %28, %30, %cst_17 {dimension_numbers = #tpu.dot_dimension_numbers<[1], [0], [0], [1], [0, 0, 1, 1], [], []>} : vector<256x256xbf16>, vector<256x256xbf16>, vector<256x256xf32> -> vector<256x256xf32>
    %32 = arith.addf %26, %31 : vector<256x256xf32>
    %33 = vector.extract_strided_slice %20 {offsets = [0, 2, 0], sizes = [16, 16, 256], strides = [1, 1, 1]} : vector<16x18x256xbf16> to vector<16x16x256xbf16>
    %34 = vector.shape_cast %33 : vector<16x16x256xbf16> to vector<256x256xbf16>
    %c5 = arith.constant 5 : index
    %c0_18 = arith.constant 0 : index
    %c0_19 = arith.constant 0 : index
    %35 = vector.load %arg3[%c5, %c0_18, %c0_19] : memref<9x256x256xbf16, #tpu.memory_space<vmem>>, vector<1x256x256xbf16>
    %36 = vector.shape_cast %35 : vector<1x256x256xbf16> to vector<256x256xbf16>
    %cst_20 = arith.constant dense<0.000000e+00> : vector<256x256xf32>
    %37 = tpu.matmul %34, %36, %cst_20 {dimension_numbers = #tpu.dot_dimension_numbers<[1], [0], [0], [1], [0, 0, 1, 1], [], []>} : vector<256x256xbf16>, vector<256x256xbf16>, vector<256x256xf32> -> vector<256x256xf32>
    %38 = arith.addf %32, %37 : vector<256x256xf32>
    %39 = vector.extract_strided_slice %1 {offsets = [2, 0, 0], sizes = [16, 18, 256], strides = [1, 1, 1]} : vector<18x18x256xbf16> to vector<16x18x256xbf16>
    %40 = vector.extract_strided_slice %39 {offsets = [0, 0, 0], sizes = [16, 16, 256], strides = [1, 1, 1]} : vector<16x18x256xbf16> to vector<16x16x256xbf16>
    %41 = vector.shape_cast %40 : vector<16x16x256xbf16> to vector<256x256xbf16>
    %c6 = arith.constant 6 : index
    %c0_21 = arith.constant 0 : index
    %c0_22 = arith.constant 0 : index
    %42 = vector.load %arg3[%c6, %c0_21, %c0_22] : memref<9x256x256xbf16, #tpu.memory_space<vmem>>, vector<1x256x256xbf16>
    %43 = vector.shape_cast %42 : vector<1x256x256xbf16> to vector<256x256xbf16>
    %cst_23 = arith.constant dense<0.000000e+00> : vector<256x256xf32>
    %44 = tpu.matmul %41, %43, %cst_23 {dimension_numbers = #tpu.dot_dimension_numbers<[1], [0], [0], [1], [0, 0, 1, 1], [], []>} : vector<256x256xbf16>, vector<256x256xbf16>, vector<256x256xf32> -> vector<256x256xf32>
    %45 = arith.addf %38, %44 : vector<256x256xf32>
    %46 = vector.extract_strided_slice %39 {offsets = [0, 1, 0], sizes = [16, 16, 256], strides = [1, 1, 1]} : vector<16x18x256xbf16> to vector<16x16x256xbf16>
    %47 = vector.shape_cast %46 : vector<16x16x256xbf16> to vector<256x256xbf16>
    %c7 = arith.constant 7 : index
    %c0_24 = arith.constant 0 : index
    %c0_25 = arith.constant 0 : index
    %48 = vector.load %arg3[%c7, %c0_24, %c0_25] : memref<9x256x256xbf16, #tpu.memory_space<vmem>>, vector<1x256x256xbf16>
    %49 = vector.shape_cast %48 : vector<1x256x256xbf16> to vector<256x256xbf16>
    %cst_26 = arith.constant dense<0.000000e+00> : vector<256x256xf32>
    %50 = tpu.matmul %47, %49, %cst_26 {dimension_numbers = #tpu.dot_dimension_numbers<[1], [0], [0], [1], [0, 0, 1, 1], [], []>} : vector<256x256xbf16>, vector<256x256xbf16>, vector<256x256xf32> -> vector<256x256xf32>
    %51 = arith.addf %45, %50 : vector<256x256xf32>
    %52 = vector.extract_strided_slice %39 {offsets = [0, 2, 0], sizes = [16, 16, 256], strides = [1, 1, 1]} : vector<16x18x256xbf16> to vector<16x16x256xbf16>
    %53 = vector.shape_cast %52 : vector<16x16x256xbf16> to vector<256x256xbf16>
    %c8 = arith.constant 8 : index
    %c0_27 = arith.constant 0 : index
    %c0_28 = arith.constant 0 : index
    %54 = vector.load %arg3[%c8, %c0_27, %c0_28] : memref<9x256x256xbf16, #tpu.memory_space<vmem>>, vector<1x256x256xbf16>
    %55 = vector.shape_cast %54 : vector<1x256x256xbf16> to vector<256x256xbf16>
    %cst_29 = arith.constant dense<0.000000e+00> : vector<256x256xf32>
    %56 = tpu.matmul %53, %55, %cst_29 {dimension_numbers = #tpu.dot_dimension_numbers<[1], [0], [0], [1], [0, 0, 1, 1], [], []>} : vector<256x256xbf16>, vector<256x256xbf16>, vector<256x256xf32> -> vector<256x256xf32>
    %57 = arith.addf %51, %56 : vector<256x256xf32>
    %cst_30 = arith.constant dense<0.000000e+00> : vector<256xf32>
    %58 = vector.multi_reduction <add>, %57, %cst_30 [0] : vector<256x256xf32> to vector<256xf32>
    %59 = vector.shape_cast %58 : vector<256xf32> to vector<1x256xf32>
    %60 = arith.mulf %57, %57 : vector<256x256xf32>
    %cst_31 = arith.constant dense<0.000000e+00> : vector<256xf32>
    %61 = vector.multi_reduction <add>, %60, %cst_31 [0] : vector<256x256xf32> to vector<256xf32>
    %62 = vector.shape_cast %61 : vector<256xf32> to vector<1x256xf32>
    %63 = tpu.concatenate %59, %62 in 0 : vector<1x256xf32>, vector<1x256xf32> -> vector<2x256xf32>
    %c0_32 = arith.constant 0 : index
    %c0_33 = arith.constant 0 : index
    %c0_34 = arith.constant 0 : index
    %64 = vector.load %arg6[%c0_32, %c0_33, %c0_34] : memref<1x2x256xf32, #tpu.memory_space<vmem>>, vector<1x2x256xf32>
    %65 = vector.shape_cast %64 : vector<1x2x256xf32> to vector<2x256xf32>
    %66 = vector.shape_cast %63 : vector<2x256xf32> to vector<1x2x256xf32>
    tpu.vector_store %arg6[%c0_32, %c0_33, %c0_34], %66 {strides = array<i32>} : memref<1x2x256xf32, #tpu.memory_space<vmem>>, vector<1x2x256xf32>,
    %c0_35 = arith.constant 0 : index
    %c0_36 = arith.constant 0 : index
    %67 = vector.load %arg4[%c0_35, %c0_36] : memref<1x256xf32, #tpu.memory_space<vmem>>, vector<1x256xf32>
    %68 = vector.broadcast %67 : vector<1x256xf32> to vector<256x256xf32>
    %69 = arith.addf %57, %68 : vector<256x256xf32>
    %70 = vector.shape_cast %69 : vector<256x256xf32> to vector<16x16x256xf32>
    %71 = arith.truncf %70 : vector<16x16x256xf32> to vector<16x16x256xbf16>
    %c0_37 = arith.constant 0 : index
    %c0_38 = arith.constant 0 : index
    %c0_39 = arith.constant 0 : index
    %c0_40 = arith.constant 0 : index
    %72 = vector.load %arg5[%c0_37, %c0_38, %c0_39, %c0_40] : memref<1x16x16x256xbf16, #tpu.memory_space<vmem>>, vector<1x16x16x256xbf16>
    %73 = vector.shape_cast %72 : vector<1x16x16x256xbf16> to vector<16x16x256xbf16>
    %74 = vector.shape_cast %71 : vector<16x16x256xbf16> to vector<1x16x16x256xbf16>
    tpu.vector_store %arg5[%c0_37, %c0_38, %c0_39, %c0_40], %74 {strides = array<i32>} : memref<1x16x16x256xbf16, #tpu.memory_space<vmem>>, vector<1x16x16x256xbf16>,
    return
  }
  func.func @transform_0(%arg0: i32, %arg1: i32) -> (i32, i32, i32, i32) {
    %c1_i32 = arith.constant 1 : i32
    %0 = arith.muli %arg0, %c1_i32 : i32
    %1 = arith.addi %0, %arg1 : i32
    %c0_i32 = arith.constant 0 : i32
    %c0_i32_0 = arith.constant 0 : i32
    %c0_i32_1 = arith.constant 0 : i32
    %c0_i32_2 = arith.constant 0 : i32
    return %1, %c0_i32, %c0_i32_0, %c0_i32_1 : i32, i32, i32, i32
  }
  func.func @transform_1(%arg0: i32, %arg1: i32) -> (i32, i32, i32) {
    %c0_i32 = arith.constant 0 : i32
    %c0_i32_0 = arith.constant 0 : i32
    %c0_i32_1 = arith.constant 0 : i32
    %c0_i32_2 = arith.constant 0 : i32
    return %c0_i32, %c0_i32_0, %c0_i32_1 : i32, i32, i32
  }
  func.func @transform_2(%arg0: i32, %arg1: i32) -> (i32, i32) {
    %c0_i32 = arith.constant 0 : i32
    %c0_i32_0 = arith.constant 0 : i32
    %c0_i32_1 = arith.constant 0 : i32
    return %c0_i32, %c0_i32_0 : i32, i32
  }
  func.func @transform_3(%arg0: i32, %arg1: i32) -> (i32, i32, i32, i32) {
    %c0_i32 = arith.constant 0 : i32
    %c0_i32_0 = arith.constant 0 : i32
    %c0_i32_1 = arith.constant 0 : i32
    return %arg0, %arg1, %c0_i32, %c0_i32_0 : i32, i32, i32, i32
  }
  func.func @transform_4(%arg0: i32, %arg1: i32) -> (i32, i32, i32) {
    %c1_i32 = arith.constant 1 : i32
    %0 = arith.muli %arg0, %c1_i32 : i32
    %1 = arith.addi %0, %arg1 : i32
    %c0_i32 = arith.constant 0 : i32
    %c0_i32_0 = arith.constant 0 : i32
    %c0_i32_1 = arith.constant 0 : i32
    return %1, %c0_i32, %c0_i32_0 : i32, i32, i32
  }
}

module attributes {stable_mosaic.version = 11 : i64} {
  func.func @kernel(%arg0: i32, %arg1: i32, %arg2: memref<1x18x18x256xbf16, #tpu.memory_space<vmem>>, %arg3: memref<9x256x256xbf16, #tpu.memory_space<vmem>>, %arg4: memref<1x256xf32, #tpu.memory_space<vmem>>, %arg5: memref<1x1x256xf32, #tpu.memory_space<vmem>>, %arg6: memref<1x1x256xf32, #tpu.memory_space<vmem>>, %arg7: memref<1x16x16x256xf32, #tpu.memory_space<vmem>>, %arg8: memref<1x2x256xf32, #tpu.memory_space<vmem>>) attributes {dimension_semantics = [#tpu.dimension_semantics<parallel>, #tpu.dimension_semantics<parallel>], iteration_bounds = array<i64: 2, 1>, scalar_prefetch = 0 : i64, scratch_operands = 0 : i64, tpu.core_type = #tpu.core_type<tc>, window_params = [{transform_indices = @transform_0, window_bounds = array<i64: 1, 18, 18, 256>}, {pipeline_mode = #tpu.pipeline_mode<synchronous>, transform_indices = @transform_1, window_bounds = array<i64: 9, 256, 256>}, {pipeline_mode = #tpu.pipeline_mode<synchronous>, transform_indices = @transform_2, window_bounds = array<i64: 1, 256>}, {transform_indices = @transform_3, window_bounds = array<i64: 1, 1, 256>}, {transform_indices = @transform_4, window_bounds = array<i64: 1, 1, 256>}, {transform_indices = @transform_5, window_bounds = array<i64: 1, 16, 16, 256>}, {transform_indices = @transform_6, window_bounds = array<i64: 1, 2, 256>}]} {
    %c0 = arith.constant 0 : index
    %c0_0 = arith.constant 0 : index
    %c0_1 = arith.constant 0 : index
    %c0_2 = arith.constant 0 : index
    %0 = vector.load %arg2[%c0, %c0_0, %c0_1, %c0_2] : memref<1x18x18x256xbf16, #tpu.memory_space<vmem>>, vector<1x18x18x256xbf16>
    %1 = vector.shape_cast %0 : vector<1x18x18x256xbf16> to vector<18x18x256xbf16>
    %c0_3 = arith.constant 0 : index
    %c0_4 = arith.constant 0 : index
    %c0_5 = arith.constant 0 : index
    %2 = vector.load %arg5[%c0_3, %c0_4, %c0_5] : memref<1x1x256xf32, #tpu.memory_space<vmem>>, vector<1x1x256xf32>
    %3 = vector.shape_cast %2 : vector<1x1x256xf32> to vector<1x256xf32>
    %4 = arith.truncf %3 : vector<1x256xf32> to vector<1x256xbf16>
    %c0_6 = arith.constant 0 : index
    %c0_7 = arith.constant 0 : index
    %c0_8 = arith.constant 0 : index
    %5 = vector.load %arg6[%c0_6, %c0_7, %c0_8] : memref<1x1x256xf32, #tpu.memory_space<vmem>>, vector<1x1x256xf32>
    %6 = vector.shape_cast %5 : vector<1x1x256xf32> to vector<1x256xf32>
    %7 = arith.truncf %6 : vector<1x256xf32> to vector<1x256xbf16>
    %8 = vector.shape_cast %4 : vector<1x256xbf16> to vector<1x1x256xbf16>
    %9 = vector.broadcast %8 : vector<1x1x256xbf16> to vector<18x18x256xbf16>
    %10 = arith.subf %1, %9 : vector<18x18x256xbf16>
    %11 = vector.shape_cast %7 : vector<1x256xbf16> to vector<1x1x256xbf16>
    %12 = vector.broadcast %11 : vector<1x1x256xbf16> to vector<18x18x256xbf16>
    %13 = arith.mulf %10, %12 : vector<18x18x256xbf16>
    %cst = arith.constant 0.000000e+00 : bf16
    %14 = vector.broadcast %cst : bf16 to vector<18x18x256xbf16>
    %15 = arith.maximumf %13, %14 : vector<18x18x256xbf16>
    %16 = vector.extract_strided_slice %15 {offsets = [0, 0, 0], sizes = [16, 18, 256], strides = [1, 1, 1]} : vector<18x18x256xbf16> to vector<16x18x256xbf16>
    %17 = vector.extract_strided_slice %16 {offsets = [0, 0, 0], sizes = [16, 16, 256], strides = [1, 1, 1]} : vector<16x18x256xbf16> to vector<16x16x256xbf16>
    %18 = vector.shape_cast %17 : vector<16x16x256xbf16> to vector<256x256xbf16>
    %c0_9 = arith.constant 0 : index
    %c0_10 = arith.constant 0 : index
    %c0_11 = arith.constant 0 : index
    %19 = vector.load %arg3[%c0_9, %c0_10, %c0_11] : memref<9x256x256xbf16, #tpu.memory_space<vmem>>, vector<1x256x256xbf16>
    %20 = vector.shape_cast %19 : vector<1x256x256xbf16> to vector<256x256xbf16>
    %cst_12 = arith.constant dense<0.000000e+00> : vector<256x256xf32>
    %21 = tpu.matmul %18, %20, %cst_12 {dimension_numbers = #tpu.dot_dimension_numbers<[1], [0], [0], [1], [0, 0, 1, 1], [], []>} : vector<256x256xbf16>, vector<256x256xbf16>, vector<256x256xf32> -> vector<256x256xf32>
    %22 = vector.extract_strided_slice %16 {offsets = [0, 1, 0], sizes = [16, 16, 256], strides = [1, 1, 1]} : vector<16x18x256xbf16> to vector<16x16x256xbf16>
    %23 = vector.shape_cast %22 : vector<16x16x256xbf16> to vector<256x256xbf16>
    %c1 = arith.constant 1 : index
    %c0_13 = arith.constant 0 : index
    %c0_14 = arith.constant 0 : index
    %24 = vector.load %arg3[%c1, %c0_13, %c0_14] : memref<9x256x256xbf16, #tpu.memory_space<vmem>>, vector<1x256x256xbf16>
    %25 = vector.shape_cast %24 : vector<1x256x256xbf16> to vector<256x256xbf16>
    %cst_15 = arith.constant dense<0.000000e+00> : vector<256x256xf32>
    %26 = tpu.matmul %23, %25, %cst_15 {dimension_numbers = #tpu.dot_dimension_numbers<[1], [0], [0], [1], [0, 0, 1, 1], [], []>} : vector<256x256xbf16>, vector<256x256xbf16>, vector<256x256xf32> -> vector<256x256xf32>
    %27 = arith.addf %21, %26 : vector<256x256xf32>
    %28 = vector.extract_strided_slice %16 {offsets = [0, 2, 0], sizes = [16, 16, 256], strides = [1, 1, 1]} : vector<16x18x256xbf16> to vector<16x16x256xbf16>
    %29 = vector.shape_cast %28 : vector<16x16x256xbf16> to vector<256x256xbf16>
    %c2 = arith.constant 2 : index
    %c0_16 = arith.constant 0 : index
    %c0_17 = arith.constant 0 : index
    %30 = vector.load %arg3[%c2, %c0_16, %c0_17] : memref<9x256x256xbf16, #tpu.memory_space<vmem>>, vector<1x256x256xbf16>
    %31 = vector.shape_cast %30 : vector<1x256x256xbf16> to vector<256x256xbf16>
    %cst_18 = arith.constant dense<0.000000e+00> : vector<256x256xf32>
    %32 = tpu.matmul %29, %31, %cst_18 {dimension_numbers = #tpu.dot_dimension_numbers<[1], [0], [0], [1], [0, 0, 1, 1], [], []>} : vector<256x256xbf16>, vector<256x256xbf16>, vector<256x256xf32> -> vector<256x256xf32>
    %33 = arith.addf %27, %32 : vector<256x256xf32>
    %34 = vector.extract_strided_slice %15 {offsets = [1, 0, 0], sizes = [16, 18, 256], strides = [1, 1, 1]} : vector<18x18x256xbf16> to vector<16x18x256xbf16>
    %35 = vector.extract_strided_slice %34 {offsets = [0, 0, 0], sizes = [16, 16, 256], strides = [1, 1, 1]} : vector<16x18x256xbf16> to vector<16x16x256xbf16>
    %36 = vector.shape_cast %35 : vector<16x16x256xbf16> to vector<256x256xbf16>
    %c3 = arith.constant 3 : index
    %c0_19 = arith.constant 0 : index
    %c0_20 = arith.constant 0 : index
    %37 = vector.load %arg3[%c3, %c0_19, %c0_20] : memref<9x256x256xbf16, #tpu.memory_space<vmem>>, vector<1x256x256xbf16>
    %38 = vector.shape_cast %37 : vector<1x256x256xbf16> to vector<256x256xbf16>
    %cst_21 = arith.constant dense<0.000000e+00> : vector<256x256xf32>
    %39 = tpu.matmul %36, %38, %cst_21 {dimension_numbers = #tpu.dot_dimension_numbers<[1], [0], [0], [1], [0, 0, 1, 1], [], []>} : vector<256x256xbf16>, vector<256x256xbf16>, vector<256x256xf32> -> vector<256x256xf32>
    %40 = arith.addf %33, %39 : vector<256x256xf32>
    %41 = vector.extract_strided_slice %34 {offsets = [0, 1, 0], sizes = [16, 16, 256], strides = [1, 1, 1]} : vector<16x18x256xbf16> to vector<16x16x256xbf16>
    %42 = vector.shape_cast %41 : vector<16x16x256xbf16> to vector<256x256xbf16>
    %c4 = arith.constant 4 : index
    %c0_22 = arith.constant 0 : index
    %c0_23 = arith.constant 0 : index
    %43 = vector.load %arg3[%c4, %c0_22, %c0_23] : memref<9x256x256xbf16, #tpu.memory_space<vmem>>, vector<1x256x256xbf16>
    %44 = vector.shape_cast %43 : vector<1x256x256xbf16> to vector<256x256xbf16>
    %cst_24 = arith.constant dense<0.000000e+00> : vector<256x256xf32>
    %45 = tpu.matmul %42, %44, %cst_24 {dimension_numbers = #tpu.dot_dimension_numbers<[1], [0], [0], [1], [0, 0, 1, 1], [], []>} : vector<256x256xbf16>, vector<256x256xbf16>, vector<256x256xf32> -> vector<256x256xf32>
    %46 = arith.addf %40, %45 : vector<256x256xf32>
    %47 = vector.extract_strided_slice %34 {offsets = [0, 2, 0], sizes = [16, 16, 256], strides = [1, 1, 1]} : vector<16x18x256xbf16> to vector<16x16x256xbf16>
    %48 = vector.shape_cast %47 : vector<16x16x256xbf16> to vector<256x256xbf16>
    %c5 = arith.constant 5 : index
    %c0_25 = arith.constant 0 : index
    %c0_26 = arith.constant 0 : index
    %49 = vector.load %arg3[%c5, %c0_25, %c0_26] : memref<9x256x256xbf16, #tpu.memory_space<vmem>>, vector<1x256x256xbf16>
    %50 = vector.shape_cast %49 : vector<1x256x256xbf16> to vector<256x256xbf16>
    %cst_27 = arith.constant dense<0.000000e+00> : vector<256x256xf32>
    %51 = tpu.matmul %48, %50, %cst_27 {dimension_numbers = #tpu.dot_dimension_numbers<[1], [0], [0], [1], [0, 0, 1, 1], [], []>} : vector<256x256xbf16>, vector<256x256xbf16>, vector<256x256xf32> -> vector<256x256xf32>
    %52 = arith.addf %46, %51 : vector<256x256xf32>
    %53 = vector.extract_strided_slice %15 {offsets = [2, 0, 0], sizes = [16, 18, 256], strides = [1, 1, 1]} : vector<18x18x256xbf16> to vector<16x18x256xbf16>
    %54 = vector.extract_strided_slice %53 {offsets = [0, 0, 0], sizes = [16, 16, 256], strides = [1, 1, 1]} : vector<16x18x256xbf16> to vector<16x16x256xbf16>
    %55 = vector.shape_cast %54 : vector<16x16x256xbf16> to vector<256x256xbf16>
    %c6 = arith.constant 6 : index
    %c0_28 = arith.constant 0 : index
    %c0_29 = arith.constant 0 : index
    %56 = vector.load %arg3[%c6, %c0_28, %c0_29] : memref<9x256x256xbf16, #tpu.memory_space<vmem>>, vector<1x256x256xbf16>
    %57 = vector.shape_cast %56 : vector<1x256x256xbf16> to vector<256x256xbf16>
    %cst_30 = arith.constant dense<0.000000e+00> : vector<256x256xf32>
    %58 = tpu.matmul %55, %57, %cst_30 {dimension_numbers = #tpu.dot_dimension_numbers<[1], [0], [0], [1], [0, 0, 1, 1], [], []>} : vector<256x256xbf16>, vector<256x256xbf16>, vector<256x256xf32> -> vector<256x256xf32>
    %59 = arith.addf %52, %58 : vector<256x256xf32>
    %60 = vector.extract_strided_slice %53 {offsets = [0, 1, 0], sizes = [16, 16, 256], strides = [1, 1, 1]} : vector<16x18x256xbf16> to vector<16x16x256xbf16>
    %61 = vector.shape_cast %60 : vector<16x16x256xbf16> to vector<256x256xbf16>
    %c7 = arith.constant 7 : index
    %c0_31 = arith.constant 0 : index
    %c0_32 = arith.constant 0 : index
    %62 = vector.load %arg3[%c7, %c0_31, %c0_32] : memref<9x256x256xbf16, #tpu.memory_space<vmem>>, vector<1x256x256xbf16>
    %63 = vector.shape_cast %62 : vector<1x256x256xbf16> to vector<256x256xbf16>
    %cst_33 = arith.constant dense<0.000000e+00> : vector<256x256xf32>
    %64 = tpu.matmul %61, %63, %cst_33 {dimension_numbers = #tpu.dot_dimension_numbers<[1], [0], [0], [1], [0, 0, 1, 1], [], []>} : vector<256x256xbf16>, vector<256x256xbf16>, vector<256x256xf32> -> vector<256x256xf32>
    %65 = arith.addf %59, %64 : vector<256x256xf32>
    %66 = vector.extract_strided_slice %53 {offsets = [0, 2, 0], sizes = [16, 16, 256], strides = [1, 1, 1]} : vector<16x18x256xbf16> to vector<16x16x256xbf16>
    %67 = vector.shape_cast %66 : vector<16x16x256xbf16> to vector<256x256xbf16>
    %c8 = arith.constant 8 : index
    %c0_34 = arith.constant 0 : index
    %c0_35 = arith.constant 0 : index
    %68 = vector.load %arg3[%c8, %c0_34, %c0_35] : memref<9x256x256xbf16, #tpu.memory_space<vmem>>, vector<1x256x256xbf16>
    %69 = vector.shape_cast %68 : vector<1x256x256xbf16> to vector<256x256xbf16>
    %cst_36 = arith.constant dense<0.000000e+00> : vector<256x256xf32>
    %70 = tpu.matmul %67, %69, %cst_36 {dimension_numbers = #tpu.dot_dimension_numbers<[1], [0], [0], [1], [0, 0, 1, 1], [], []>} : vector<256x256xbf16>, vector<256x256xbf16>, vector<256x256xf32> -> vector<256x256xf32>
    %71 = arith.addf %65, %70 : vector<256x256xf32>
    %cst_37 = arith.constant dense<0.000000e+00> : vector<256xf32>
    %72 = vector.multi_reduction <add>, %71, %cst_37 [0] : vector<256x256xf32> to vector<256xf32>
    %73 = vector.shape_cast %72 : vector<256xf32> to vector<1x256xf32>
    %74 = arith.mulf %71, %71 : vector<256x256xf32>
    %cst_38 = arith.constant dense<0.000000e+00> : vector<256xf32>
    %75 = vector.multi_reduction <add>, %74, %cst_38 [0] : vector<256x256xf32> to vector<256xf32>
    %76 = vector.shape_cast %75 : vector<256xf32> to vector<1x256xf32>
    %77 = tpu.concatenate %73, %76 in 0 : vector<1x256xf32>, vector<1x256xf32> -> vector<2x256xf32>
    %c0_39 = arith.constant 0 : index
    %c0_40 = arith.constant 0 : index
    %c0_41 = arith.constant 0 : index
    %78 = vector.load %arg8[%c0_39, %c0_40, %c0_41] : memref<1x2x256xf32, #tpu.memory_space<vmem>>, vector<1x2x256xf32>
    %79 = vector.shape_cast %78 : vector<1x2x256xf32> to vector<2x256xf32>
    %80 = vector.shape_cast %77 : vector<2x256xf32> to vector<1x2x256xf32>
    tpu.vector_store %arg8[%c0_39, %c0_40, %c0_41], %80 {strides = array<i32>} : memref<1x2x256xf32, #tpu.memory_space<vmem>>, vector<1x2x256xf32>,
    %c0_42 = arith.constant 0 : index
    %c0_43 = arith.constant 0 : index
    %81 = vector.load %arg4[%c0_42, %c0_43] : memref<1x256xf32, #tpu.memory_space<vmem>>, vector<1x256xf32>
    %82 = vector.broadcast %81 : vector<1x256xf32> to vector<256x256xf32>
    %83 = arith.addf %71, %82 : vector<256x256xf32>
    %84 = vector.shape_cast %83 : vector<256x256xf32> to vector<16x16x256xf32>
    %c0_44 = arith.constant 0 : index
    %c0_45 = arith.constant 0 : index
    %c0_46 = arith.constant 0 : index
    %c0_47 = arith.constant 0 : index
    %85 = vector.load %arg7[%c0_44, %c0_45, %c0_46, %c0_47] : memref<1x16x16x256xf32, #tpu.memory_space<vmem>>, vector<1x16x16x256xf32>
    %86 = vector.shape_cast %85 : vector<1x16x16x256xf32> to vector<16x16x256xf32>
    %87 = vector.shape_cast %84 : vector<16x16x256xf32> to vector<1x16x16x256xf32>
    tpu.vector_store %arg7[%c0_44, %c0_45, %c0_46, %c0_47], %87 {strides = array<i32>} : memref<1x16x16x256xf32, #tpu.memory_space<vmem>>, vector<1x16x16x256xf32>,
    return
  }
  func.func @transform_0(%arg0: i32, %arg1: i32) -> (i32, i32, i32, i32) {
    %c1_i32 = arith.constant 1 : i32
    %0 = arith.muli %arg0, %c1_i32 : i32
    %1 = arith.addi %0, %arg1 : i32
    %c0_i32 = arith.constant 0 : i32
    %c0_i32_0 = arith.constant 0 : i32
    %c0_i32_1 = arith.constant 0 : i32
    %c0_i32_2 = arith.constant 0 : i32
    return %1, %c0_i32, %c0_i32_0, %c0_i32_1 : i32, i32, i32, i32
  }
  func.func @transform_1(%arg0: i32, %arg1: i32) -> (i32, i32, i32) {
    %c0_i32 = arith.constant 0 : i32
    %c0_i32_0 = arith.constant 0 : i32
    %c0_i32_1 = arith.constant 0 : i32
    %c0_i32_2 = arith.constant 0 : i32
    return %c0_i32, %c0_i32_0, %c0_i32_1 : i32, i32, i32
  }
  func.func @transform_2(%arg0: i32, %arg1: i32) -> (i32, i32) {
    %c0_i32 = arith.constant 0 : i32
    %c0_i32_0 = arith.constant 0 : i32
    %c0_i32_1 = arith.constant 0 : i32
    return %c0_i32, %c0_i32_0 : i32, i32
  }
  func.func @transform_3(%arg0: i32, %arg1: i32) -> (i32, i32, i32) {
    %c0_i32 = arith.constant 0 : i32
    %c0_i32_0 = arith.constant 0 : i32
    %c0_i32_1 = arith.constant 0 : i32
    return %arg0, %c0_i32, %c0_i32_0 : i32, i32, i32
  }
  func.func @transform_4(%arg0: i32, %arg1: i32) -> (i32, i32, i32) {
    %c0_i32 = arith.constant 0 : i32
    %c0_i32_0 = arith.constant 0 : i32
    %c0_i32_1 = arith.constant 0 : i32
    return %arg0, %c0_i32, %c0_i32_0 : i32, i32, i32
  }
  func.func @transform_5(%arg0: i32, %arg1: i32) -> (i32, i32, i32, i32) {
    %c0_i32 = arith.constant 0 : i32
    %c0_i32_0 = arith.constant 0 : i32
    %c0_i32_1 = arith.constant 0 : i32
    return %arg0, %arg1, %c0_i32, %c0_i32_0 : i32, i32, i32, i32
  }
  func.func @transform_6(%arg0: i32, %arg1: i32) -> (i32, i32, i32) {
    %c1_i32 = arith.constant 1 : i32
    %0 = arith.muli %arg0, %c1_i32 : i32
    %1 = arith.addi %0, %arg1 : i32
    %c0_i32 = arith.constant 0 : i32
    %c0_i32_0 = arith.constant 0 : i32
    %c0_i32_1 = arith.constant 0 : i32
    return %1, %c0_i32, %c0_i32_0 : i32, i32, i32
  }
}

module attributes {stable_mosaic.version = 11 : i64} {
  func.func @_finalize_kernel(%arg0: i32, %arg1: i32, %arg2: memref<1x16x16x256xf32, #tpu.memory_space<vmem>>, %arg3: memref<1x16x16x256xf32, #tpu.memory_space<vmem>>, %arg4: memref<1x1x256xf32, #tpu.memory_space<vmem>>, %arg5: memref<1x1x256xf32, #tpu.memory_space<vmem>>, %arg6: memref<1x16x16x256xf32, #tpu.memory_space<vmem>>) attributes {dimension_semantics = [#tpu.dimension_semantics<parallel>, #tpu.dimension_semantics<parallel>], iteration_bounds = array<i64: 2, 1>, scalar_prefetch = 0 : i64, scratch_operands = 0 : i64, tpu.core_type = #tpu.core_type<tc>, window_params = [{transform_indices = @transform_0, window_bounds = array<i64: 1, 16, 16, 256>}, {transform_indices = @transform_1, window_bounds = array<i64: 1, 16, 16, 256>}, {transform_indices = @transform_2, window_bounds = array<i64: 1, 1, 256>}, {transform_indices = @transform_3, window_bounds = array<i64: 1, 1, 256>}, {transform_indices = @transform_4, window_bounds = array<i64: 1, 16, 16, 256>}]} {
    %c0 = arith.constant 0 : index
    %c0_0 = arith.constant 0 : index
    %c0_1 = arith.constant 0 : index
    %c0_2 = arith.constant 0 : index
    %0 = vector.load %arg2[%c0, %c0_0, %c0_1, %c0_2] : memref<1x16x16x256xf32, #tpu.memory_space<vmem>>, vector<1x16x16x256xf32>
    %c0_3 = arith.constant 0 : index
    %c0_4 = arith.constant 0 : index
    %c0_5 = arith.constant 0 : index
    %c0_6 = arith.constant 0 : index
    %1 = vector.load %arg3[%c0_3, %c0_4, %c0_5, %c0_6] : memref<1x16x16x256xf32, #tpu.memory_space<vmem>>, vector<1x16x16x256xf32>
    %c0_7 = arith.constant 0 : index
    %c0_8 = arith.constant 0 : index
    %c0_9 = arith.constant 0 : index
    %2 = vector.load %arg4[%c0_7, %c0_8, %c0_9] : memref<1x1x256xf32, #tpu.memory_space<vmem>>, vector<1x1x256xf32>
    %3 = vector.shape_cast %2 : vector<1x1x256xf32> to vector<1x256xf32>
    %4 = vector.shape_cast %3 : vector<1x256xf32> to vector<1x1x1x256xf32>
    %5 = vector.broadcast %4 : vector<1x1x1x256xf32> to vector<1x16x16x256xf32>
    %6 = arith.subf %1, %5 : vector<1x16x16x256xf32>
    %c0_10 = arith.constant 0 : index
    %c0_11 = arith.constant 0 : index
    %c0_12 = arith.constant 0 : index
    %7 = vector.load %arg5[%c0_10, %c0_11, %c0_12] : memref<1x1x256xf32, #tpu.memory_space<vmem>>, vector<1x1x256xf32>
    %8 = vector.shape_cast %7 : vector<1x1x256xf32> to vector<1x256xf32>
    %9 = vector.shape_cast %8 : vector<1x256xf32> to vector<1x1x1x256xf32>
    %10 = vector.broadcast %9 : vector<1x1x1x256xf32> to vector<1x16x16x256xf32>
    %11 = arith.mulf %6, %10 : vector<1x16x16x256xf32>
    %12 = arith.addf %0, %11 : vector<1x16x16x256xf32>
    %c0_13 = arith.constant 0 : index
    %c0_14 = arith.constant 0 : index
    %c0_15 = arith.constant 0 : index
    %c0_16 = arith.constant 0 : index
    %13 = vector.load %arg6[%c0_13, %c0_14, %c0_15, %c0_16] : memref<1x16x16x256xf32, #tpu.memory_space<vmem>>, vector<1x16x16x256xf32>
    tpu.vector_store %arg6[%c0_13, %c0_14, %c0_15, %c0_16], %12 {strides = array<i32>} : memref<1x16x16x256xf32, #tpu.memory_space<vmem>>, vector<1x16x16x256xf32>,
    return
  }
  func.func @transform_0(%arg0: i32, %arg1: i32) -> (i32, i32, i32, i32) {
    %c0_i32 = arith.constant 0 : i32
    %c0_i32_0 = arith.constant 0 : i32
    %c0_i32_1 = arith.constant 0 : i32
    return %arg0, %arg1, %c0_i32, %c0_i32_0 : i32, i32, i32, i32
  }
  func.func @transform_1(%arg0: i32, %arg1: i32) -> (i32, i32, i32, i32) {
    %c0_i32 = arith.constant 0 : i32
    %c0_i32_0 = arith.constant 0 : i32
    %c0_i32_1 = arith.constant 0 : i32
    return %arg0, %arg1, %c0_i32, %c0_i32_0 : i32, i32, i32, i32
  }
  func.func @transform_2(%arg0: i32, %arg1: i32) -> (i32, i32, i32) {
    %c0_i32 = arith.constant 0 : i32
    %c0_i32_0 = arith.constant 0 : i32
    %c0_i32_1 = arith.constant 0 : i32
    return %arg0, %c0_i32, %c0_i32_0 : i32, i32, i32
  }
  func.func @transform_3(%arg0: i32, %arg1: i32) -> (i32, i32, i32) {
    %c0_i32 = arith.constant 0 : i32
    %c0_i32_0 = arith.constant 0 : i32
    %c0_i32_1 = arith.constant 0 : i32
    return %arg0, %c0_i32, %c0_i32_0 : i32, i32, i32
  }
  func.func @transform_4(%arg0: i32, %arg1: i32) -> (i32, i32, i32, i32) {
    %c0_i32 = arith.constant 0 : i32
    %c0_i32_0 = arith.constant 0 : i32
    %c0_i32_1 = arith.constant 0 : i32
    return %arg0, %arg1, %c0_i32, %c0_i32_0 : i32, i32, i32, i32
  }
}

</mosaic_0001>

<llo_original>
// kernel: resnet_block.5
$region0: #{resnet_block.5}
  #allocation0 [shape = 'u32[]', space=smem, size = 0x4, offset = 0x4, fixed_abs, tag = 'smem constant byte address 0x4 - core index']
  #allocation1 [shape = 'u32[144,128]{1,0:T(1,128)}', space=vmem, size = 0x12000, scoped, tag = 'internal scratch']
  %s0 = inlined_call_operand.vmem [shape: f32[2,16,16,256], index: 0, kind: input, shape index: {}]
  %s1 = inlined_call_operand.vmem [shape: f32[2,16,16,256], index: 1, kind: input, shape index: {}]
  %s2 = inlined_call_operand.vmem [shape: f32[2,1,256], index: 2, kind: input, shape index: {}]
  %s3 = inlined_call_operand.vmem [shape: f32[2,1,256], index: 3, kind: input, shape index: {}]
  %s4 = inlined_call_operand.hbm [shape: f32[2,16,16,256], index: 4, kind: output, shape index: {}]
  %s5 = sld [smem:[#allocation0]]
  $region49: #{resnet_block.5} parent=0
    _
  %s7 = ssub.s32 1, %s5
  %s8 = scalar_select 0, %s7, %s5
  $region1: #{resnet_block.5} parent=0
    #allocation2 [shape = 'u8[524288]{0}', space=vmem, size = 0x80000, scoped, tag = 'output window, operand 0']
    #allocation3 [shape = 's32[2]{0}', space=sflag, size = 0x8, scoped, tag = 'scoped memory for resnet_block.5']
    %9 = vsyncpa [#allocation3], 0
    %s10 = scalar_lea.sflag [#allocation3], 1
    %11 = vsyncpa %s10, 0
    loop: start=0, step=1, limit=4
    $region2: #{resnet_block.5} parent=1 // loop_pre_header
      _
    $region3: #{resnet_block.5} parent=1 // loop_header
      %s13 = sphi 0, %s17
      %p14 = scmp.ge.s32.totalorder %s13, 4
      %s20 = sphi 0, %s32
      %s21 = sphi 0, %s28
      %s22 = sphi 0, %s20
      %s23 = sphi 0, %s21
      %s24 = sphi 0, %s22
      %s25 = sphi 0, %s23
      %s37 = sphi 0, %s39
      %s40 = sphi 0, %s37
      %s41 = sphi 0, %s40
      %s57 = sphi 0, %s41
      %s65 = sphi 0, %s67
      %s68 = sphi 0, %s65
      %s69 = sphi 0, %s68
      %s85 = sphi 0, %s69
      %s91 = sphi 0, %s93
      %s94 = sphi 0, %s91
      %s95 = sphi 0, %s94
      %s111 = sphi 0, %s95
      %s117 = sphi 0, %s119
      %s120 = sphi 0, %s117
      %s121 = sphi 0, %s120
      %s137 = sphi 0, %s121
      %s145 = sphi 0, %s147
      %s148 = sphi 0, %s145
      %s149 = sphi 0, %s148
      %s165 = sphi 0, %s149
    $region4: #{resnet_block.5} parent=1 // loop_header_branch
      %16 = sbr.rel (%p14) target = $region8
    $region5: #{resnet_block.5} parent=1 // loop_body
      %s18 = ssub.s32 %s13, 1
      %s19 = ssub.s32 %s13, 2
      %s26 = sadd.s32 1, %s21
      %p27 = scmp.ge.s32.totalorder %s26, 1
      %s28 = scalar_select %p27, 0, %s26
      %s29 = sadd.s32 1, %s20
      %s30 = scalar_select %p27, %s29, %s20
      %p31 = scmp.ge.s32.totalorder %s30, 2
      %s32 = scalar_select %p31, 0, %s30
      %s33 = ssub.s32 %s20, %s32
      %s34 = ssub.s32 %s21, %s28
      %s35 = sor.u32 %s33, %s34
      %p36 = scmp.eq.s32.totalorder %s35, 0
      %s38 = sadd.s32 %s37, 1
      %s39 = scalar_select %p36, %s37, %s38
      %p42 = pneg %p36
      %p43 = scmp.eq.s32.totalorder %s13, 1
      %p44 = por %p42, %p43
      %p45 = scmp.ne.s32.totalorder %s37, %s40
      %p46 = scmp.eq.s32.totalorder %s13, 0
      %p47 = por %p45, %p46
      %p48 = scmp.ne.s32.totalorder %s37, %s40
      %p49 = scmp.eq.s32.totalorder %s18, 1
      %p50 = por %p48, %p49
      %p51 = scmp.ne.s32.totalorder %s40, %s41
      %p52 = scmp.eq.s32.totalorder %s18, 0
      %p53 = por %p51, %p52
      %p54 = scmp.ne.s32.totalorder %s40, %s41
      %p55 = scmp.eq.s32.totalorder %s19, 1
      %p56 = por %p54, %p55
      %p58 = scmp.ne.s32.totalorder %s41, %s57
      %p59 = scmp.eq.s32.totalorder %s19, 0
      %p60 = por %p58, %p59
      %s61 = ssub.s32 %s20, %s32
      %s62 = ssub.s32 %s21, %s28
      %s63 = sor.u32 %s61, %s62
      %p64 = scmp.eq.s32.totalorder %s63, 0
      %s66 = sadd.s32 %s65, 1
      %s67 = scalar_select %p64, %s65, %s66
      %p70 = pneg %p64
      %p71 = scmp.eq.s32.totalorder %s13, 1
      %p72 = por %p70, %p71
      %p73 = scmp.ne.s32.totalorder %s65, %s68
      %p74 = scmp.eq.s32.totalorder %s13, 0
      %p75 = por %p73, %p74
      %p76 = scmp.ne.s32.totalorder %s65, %s68
      %p77 = scmp.eq.s32.totalorder %s18, 1
      %p78 = por %p76, %p77
      %p79 = scmp.ne.s32.totalorder %s68, %s69
      %p80 = scmp.eq.s32.totalorder %s18, 0
      %p81 = por %p79, %p80
      %p82 = scmp.ne.s32.totalorder %s68, %s69
      %p83 = scmp.eq.s32.totalorder %s19, 1
      %p84 = por %p82, %p83
      %p86 = scmp.ne.s32.totalorder %s69, %s85
      %p87 = scmp.eq.s32.totalorder %s19, 0
      %p88 = por %p86, %p87
      %s89 = ssub.s32 %s20, %s32
      %p90 = scmp.eq.s32.totalorder %s89, 0
      %s92 = sadd.s32 %s91, 1
      %s93 = scalar_select %p90, %s91, %s92
      %p96 = pneg %p90
      %p97 = scmp.eq.s32.totalorder %s13, 1
      %p98 = por %p96, %p97
      %p99 = scmp.ne.s32.totalorder %s91, %s94
      %p100 = scmp.eq.s32.totalorder %s13, 0
      %p101 = por %p99, %p100
      %p102 = scmp.ne.s32.totalorder %s91, %s94
      %p103 = scmp.eq.s32.totalorder %s18, 1
      %p104 = por %p102, %p103
      %p105 = scmp.ne.s32.totalorder %s94, %s95
      %p106 = scmp.eq.s32.totalorder %s18, 0
      %p107 = por %p105, %p106
      %p108 = scmp.ne.s32.totalorder %s94, %s95
      %p109 = scmp.eq.s32.totalorder %s19, 1
      %p110 = por %p108, %p109
      %p112 = scmp.ne.s32.totalorder %s95, %s111
      %p113 = scmp.eq.s32.totalorder %s19, 0
      %p114 = por %p112, %p113
      %s115 = ssub.s32 %s20, %s32
      %p116 = scmp.eq.s32.totalorder %s115, 0
      %s118 = sadd.s32 %s117, 1
      %s119 = scalar_select %p116, %s117, %s118
      %p122 = pneg %p116
      %p123 = scmp.eq.s32.totalorder %s13, 1
      %p124 = por %p122, %p123
      %p125 = scmp.ne.s32.totalorder %s117, %s120
      %p126 = scmp.eq.s32.totalorder %s13, 0
      %p127 = por %p125, %p126
      %p128 = scmp.ne.s32.totalorder %s117, %s120
      %p129 = scmp.eq.s32.totalorder %s18, 1
      %p130 = por %p128, %p129
      %p131 = scmp.ne.s32.totalorder %s120, %s121
      %p132 = scmp.eq.s32.totalorder %s18, 0
      %p133 = por %p131, %p132
      %p134 = scmp.ne.s32.totalorder %s120, %s121
      %p135 = scmp.eq.s32.totalorder %s19, 1
      %p136 = por %p134, %p135
      %p138 = scmp.ne.s32.totalorder %s121, %s137
      %p139 = scmp.eq.s32.totalorder %s19, 0
      %p140 = por %p138, %p139
      %s141 = ssub.s32 %s20, %s32
      %s142 = ssub.s32 %s21, %s28
      %s143 = sor.u32 %s141, %s142
      %p144 = scmp.eq.s32.totalorder %s143, 0
      %s146 = sadd.s32 %s145, 1
      %s147 = scalar_select %p144, %s145, %s146
      %p150 = pneg %p144
      %p151 = scmp.eq.s32.totalorder %s13, 1
      %p152 = por %p150, %p151
      %p153 = scmp.ne.s32.totalorder %s145, %s148
      %p154 = scmp.eq.s32.totalorder %s13, 0
      %p155 = por %p153, %p154
      %p156 = scmp.ne.s32.totalorder %s145, %s148
      %p157 = scmp.eq.s32.totalorder %s18, 1
      %p158 = por %p156, %p157
      %p159 = scmp.ne.s32.totalorder %s148, %s149
      %p160 = scmp.eq.s32.totalorder %s18, 0
      %p161 = por %p159, %p160
      %p162 = scmp.ne.s32.totalorder %s148, %s149
      %p163 = scmp.eq.s32.totalorder %s19, 1
      %p164 = por %p162, %p163
      %p166 = scmp.ne.s32.totalorder %s149, %s165
      %p167 = scmp.eq.s32.totalorder %s19, 0
      %p168 = por %p166, %p167
      %p169 = scmp.le.s32.totalorder 1, %s13
      %p170 = scmp.lt.s32.totalorder %s13, 3
      %p171 = pnand %p169, %p170
      %p172 = pneg %p171
      // Predicated region
      $region9: #{resnet_block.5} parent=5 // pred_check
        _
      $region10: #{resnet_block.5} parent=5 // pred_check_branch
        %174 = sbr.rel (%p171) target = $region12
      $region11: #{resnet_block.5} parent=5 // pred_region
        %s175 = ssub.s32 %s13, 1
      $region12: #{resnet_block.5} parent=5 // pred_fallthru
        _
      %p176 = scmp.lt.s32.totalorder %s13, 2
      // Predicated region
      $region13: #{resnet_block.5} parent=5 // pred_check
        %p177 = pneg %p176
      $region14: #{resnet_block.5} parent=5 // pred_check_branch
        %179 = sbr.rel (%p177) target = $region16
      $region15: #{resnet_block.5} parent=5 // pred_region
        // Predicated region
        $region17: #{resnet_block.5} parent=15 // pred_check
          %p180 = pneg %p47
        $region18: #{resnet_block.5} parent=15 // pred_check_branch
          %182 = sbr.rel (%p180) target = $region20
        $region19: #{resnet_block.5} parent=15 // pred_region
          %s183 = smul.u32 16, %s21
          %p184 = scmp.lt.s32.totalorder %s20, 1
          %s185 = scalar_select %p184, %s20, 1
          %p186 = scmp.lt.s32.totalorder %s183, 15
          %s187 = scalar_select %p186, %s183, 15
          %s188 = smul.addr %s187, 4
          %s189 = smul.addr %s185, 64
          %s190 = sadd.s32 %s188, %s189
          %s191 = smul.addr %s190, 8
          %s192 = scalar_lea.vmem %s0, %s191
          %s193 = smul.u32 16, %s21
        $region20: #{resnet_block.5} parent=15 // pred_fallthru
          _
        // Predicated region
        $region21: #{resnet_block.5} parent=15 // pred_check
          %p194 = pneg %p75
        $region22: #{resnet_block.5} parent=15 // pred_check_branch
          %196 = sbr.rel (%p194) target = $region24
        $region23: #{resnet_block.5} parent=15 // pred_region
          %s197 = smul.u32 16, %s21
          %p198 = scmp.lt.s32.totalorder %s20, 1
          %s199 = scalar_select %p198, %s20, 1
          %p200 = scmp.lt.s32.totalorder %s197, 15
          %s201 = scalar_select %p200, %s197, 15
          %s202 = smul.addr %s201, 4
          %s203 = smul.addr %s199, 64
          %s204 = sadd.s32 %s202, %s203
          %s205 = smul.addr %s204, 8
          %s206 = scalar_lea.vmem %s1, %s205
          %s207 = smul.u32 16, %s21
        $region24: #{resnet_block.5} parent=15 // pred_fallthru
          _
        // Predicated region
        $region25: #{resnet_block.5} parent=15 // pred_check
          %p208 = pneg %p101
        $region26: #{resnet_block.5} parent=15 // pred_check_branch
          %210 = sbr.rel (%p208) target = $region28
        $region27: #{resnet_block.5} parent=15 // pred_region
          %p211 = scmp.lt.s32.totalorder %s20, 1
          %s212 = scalar_select %p211, %s20, 1
          %s213 = smul.addr %s212, 2
          %s214 = scalar_lea.vmem %s2, %s213
        $region28: #{resnet_block.5} parent=15 // pred_fallthru
          _
        // Predicated region
        $region29: #{resnet_block.5} parent=15 // pred_check
          %p215 = pneg %p127
        $region30: #{resnet_block.5} parent=15 // pred_check_branch
          %217 = sbr.rel (%p215) target = $region32
        $region31: #{resnet_block.5} parent=15 // pred_region
          %p218 = scmp.lt.s32.totalorder %s20, 1
          %s219 = scalar_select %p218, %s20, 1
          %s220 = smul.addr %s219, 2
          %s221 = scalar_lea.vmem %s3, %s220
        $region32: #{resnet_block.5} parent=15 // pred_fallthru
          _
      $region16: #{resnet_block.5} parent=5 // pred_fallthru
        _
      %p222 = scmp.le.s32.totalorder 1, %s13
      %p223 = scmp.lt.s32.totalorder %s13, 3
      %p224 = pnand %p222, %p223
      %p225 = pneg %p224
      // Predicated region
      $region33: #{resnet_block.5} parent=5 // pred_check
        _
      $region34: #{resnet_block.5} parent=5 // pred_check_branch
        %227 = sbr.rel (%p224) target = $region36
      $region35: #{resnet_block.5} parent=5 // pred_region
        %s228 = ssub.s32 %s13, 1
        %s229 = smul.u32 16, %s23
        %p230 = scmp.lt.s32.totalorder %s22, 1
        %s231 = scalar_select %p230, %s22, 1
        %p232 = scmp.lt.s32.totalorder %s229, 15
        %s233 = scalar_select %p232, %s229, 15
        %s234 = smul.addr %s233, 4
        %s235 = smul.addr %s231, 64
        %s236 = sadd.s32 %s234, %s235
        %s237 = smul.addr %s236, 8
        %s238 = scalar_lea.vmem %s0, %s237
        %p239 = pneg %p53
        %p240 = pneg %p50
        %s241 = smul.u32 16, %s23
        %p242 = scmp.lt.s32.totalorder %s22, 1
        %s243 = scalar_select %p242, %s22, 1
        %p244 = scmp.lt.s32.totalorder %s241, 15
        %s245 = scalar_select %p244, %s241, 15
        %s246 = smul.addr %s245, 4
        %s247 = smul.addr %s243, 64
        %s248 = sadd.s32 %s246, %s247
        %s249 = smul.addr %s248, 8
        %s250 = scalar_lea.vmem %s1, %s249
        %p251 = pneg %p81
        %p252 = pneg %p78
        %p253 = scmp.lt.s32.totalorder %s22, 1
        %s254 = scalar_select %p253, %s22, 1
        %s255 = smul.addr %s254, 2
        %s256 = scalar_lea.vmem %s2, %s255
        %p257 = pneg %p107
        %p258 = pneg %p104
        %p259 = scmp.lt.s32.totalorder %s22, 1
        %s260 = scalar_select %p259, %s22, 1
        %s261 = smul.addr %s260, 2
        %s262 = scalar_lea.vmem %s3, %s261
        %p263 = pneg %p133
        %p264 = pneg %p130
        %p265 = pneg %p161
        %p266 = pneg %p158
        %s267 = sand.u32 %s148, 1
        %s268 = scalar_lea.sflag [#allocation3], %s267
        %s269 = sand.u32 %s148, 1
        %s270 = smul.addr %s269, 512
        %s271 = scalar_lea.vmem [#allocation2], %s270
        %s272 = smul.u32 16, %s23
        %p273 = scmp.lt.s32.totalorder %s22, 1
        %s274 = scalar_select %p273, %s22, 1
        %p275 = scmp.lt.s32.totalorder %s272, 15
        %s276 = scalar_select %p275, %s272, 15
        %s277 = smul.addr %s276, 4
        %s278 = smul.addr %s274, 64
        %s279 = sadd.s32 %s277, %s278
        %s280 = smul.addr %s279, 8
        %s281 = scalar_lea.vmem %s0, %s280
        %s282 = smul.u32 16, %s23
        %s283 = smul.u32 16, %s23
        %p284 = scmp.lt.s32.totalorder %s22, 1
        %s285 = scalar_select %p284, %s22, 1
        %p286 = scmp.lt.s32.totalorder %s283, 15
        %s287 = scalar_select %p286, %s283, 15
        %s288 = smul.addr %s287, 4
        %s289 = smul.addr %s285, 64
        %s290 = sadd.s32 %s288, %s289
        %s291 = smul.addr %s290, 8
        %s292 = scalar_lea.vmem %s1, %s291
        %s293 = smul.u32 16, %s23
        %p294 = scmp.lt.s32.totalorder %s22, 1
        %s295 = scalar_select %p294, %s22, 1
        %s296 = smul.addr %s295, 2
        %s297 = scalar_lea.vmem %s2, %s296
        %p298 = scmp.lt.s32.totalorder %s22, 1
        %s299 = scalar_select %p298, %s22, 1
        %s300 = smul.addr %s299, 2
        %s301 = scalar_lea.vmem %s3, %s300
        %s302 = smul.u32 16, %s23
        %v303 = vld [vmem:[%s281] sm:$0xff]
        %v304 = vld [vmem:[%s281 + $0x8] sm:$0xff]
        %v305 = vld [vmem:[%s281 + $0x10] sm:$0xff]
        %v306 = vld [vmem:[%s281 + $0x18] sm:$0xff]
        %v307 = vld [vmem:[%s281 + $0x20] sm:$0xff]
        %v308 = vld [vmem:[%s281 + $0x28] sm:$0xff]
        %v309 = vld [vmem:[%s281 + $0x30] sm:$0xff]
        %v310 = vld [vmem:[%s281 + $0x38] sm:$0xff]
        %v311 = vld [vmem:[%s281 + $0x40] sm:$0xff]
        %v312 = vld [vmem:[%s281 + $0x48] sm:$0xff]
        %v313 = vld [vmem:[%s281 + $0x50] sm:$0xff]
        %v314 = vld [vmem:[%s281 + $0x58] sm:$0xff]
        %v315 = vld [vmem:[%s281 + $0x60] sm:$0xff]
        %v316 = vld [vmem:[%s281 + $0x68] sm:$0xff]
        %v317 = vld [vmem:[%s281 + $0x70] sm:$0xff]
        %v318 = vld [vmem:[%s281 + $0x78] sm:$0xff]
        %v319 = vld [vmem:[%s281 + $0x80] sm:$0xff]
        %v320 = vld [vmem:[%s281 + $0x88] sm:$0xff]
        %v321 = vld [vmem:[%s281 + $0x90] sm:$0xff]
        %v322 = vld [vmem:[%s281 + $0x98] sm:$0xff]
        %v323 = vld [vmem:[%s281 + $0xa0] sm:$0xff]
        %v324 = vld [vmem:[%s281 + $0xa8] sm:$0xff]
        %v325 = vld [vmem:[%s281 + $0xb0] sm:$0xff]
        %v326 = vld [vmem:[%s281 + $0xb8] sm:$0xff]
        %v327 = vld [vmem:[%s281 + $0xc0] sm:$0xff]
        %v328 = vld [vmem:[%s281 + $0xc8] sm:$0xff]
        %v329 = vld [vmem:[%s281 + $0xd0] sm:$0xff]
        %v330 = vld [vmem:[%s281 + $0xd8] sm:$0xff]
        %v331 = vld [vmem:[%s281 + $0xe0] sm:$0xff]
        %v332 = vld [vmem:[%s281 + $0xe8] sm:$0xff]
        %v333 = vld [vmem:[%s281 + $0xf0] sm:$0xff]
        %v334 = vld [vmem:[%s281 + $0xf8] sm:$0xff]
        %v335 = vld [vmem:[%s281 + $0x100] sm:$0xff]
        %v336 = vld [vmem:[%s281 + $0x108] sm:$0xff]
        %v337 = vld [vmem:[%s281 + $0x110] sm:$0xff]
        %v338 = vld [vmem:[%s281 + $0x118] sm:$0xff]
        %v339 = vld [vmem:[%s281 + $0x120] sm:$0xff]
        %v340 = vld [vmem:[%s281 + $0x128] sm:$0xff]
        %v341 = vld [vmem:[%s281 + $0x130] sm:$0xff]
        %v342 = vld [vmem:[%s281 + $0x138] sm:$0xff]
        %v343 = vld [vmem:[%s281 + $0x140] sm:$0xff]
        %v344 = vld [vmem:[%s281 + $0x148] sm:$0xff]
        %v345 = vld [vmem:[%s281 + $0x150] sm:$0xff]
        %v346 = vld [vmem:[%s281 + $0x158] sm:$0xff]
        %v347 = vld [vmem:[%s281 + $0x160] sm:$0xff]
        %v348 = vld [vmem:[%s281 + $0x168] sm:$0xff]
        %v349 = vld [vmem:[%s281 + $0x170] sm:$0xff]
        %v350 = vld [vmem:[%s281 + $0x178] sm:$0xff]
        %v351 = vld [vmem:[%s281 + $0x180] sm:$0xff]
        %v352 = vld [vmem:[%s281 + $0x188] sm:$0xff]
        %v353 = vld [vmem:[%s281 + $0x190] sm:$0xff]
        %v354 = vld [vmem:[%s281 + $0x198] sm:$0xff]
        %v355 = vld [vmem:[%s281 + $0x1a0] sm:$0xff]
        %v356 = vld [vmem:[%s281 + $0x1a8] sm:$0xff]
        %v357 = vld [vmem:[%s281 + $0x1b0] sm:$0xff]
        %v358 = vld [vmem:[%s281 + $0x1b8] sm:$0xff]
        %v359 = vld [vmem:[%s281 + $0x1c0] sm:$0xff]
        %v360 = vld [vmem:[%s281 + $0x1c8] sm:$0xff]
        %v361 = vld [vmem:[%s281 + $0x1d0] sm:$0xff]
        %v362 = vld [vmem:[%s281 + $0x1d8] sm:$0xff]
        %v363 = vld [vmem:[%s281 + $0x1e0] sm:$0xff]
        %v364 = vld [vmem:[%s281 + $0x1e8] sm:$0xff]
        %v365 = vld [vmem:[%s281 + $0x1f0] sm:$0xff]
        %v366 = vld [vmem:[%s281 + $0x1f8] sm:$0xff]
        %v367 = vld [vmem:[%s292] sm:$0xff]
        %v368 = vld [vmem:[%s292 + $0x8] sm:$0xff]
        %v369 = vld [vmem:[%s292 + $0x10] sm:$0xff]
        %v370 = vld [vmem:[%s292 + $0x18] sm:$0xff]
        %v371 = vld [vmem:[%s292 + $0x20] sm:$0xff]
        %v372 = vld [vmem:[%s292 + $0x28] sm:$0xff]
        %v373 = vld [vmem:[%s292 + $0x30] sm:$0xff]
        %v374 = vld [vmem:[%s292 + $0x38] sm:$0xff]
        %v375 = vld [vmem:[%s292 + $0x40] sm:$0xff]
        %v376 = vld [vmem:[%s292 + $0x48] sm:$0xff]
        %v377 = vld [vmem:[%s292 + $0x50] sm:$0xff]
        %v378 = vld [vmem:[%s292 + $0x58] sm:$0xff]
        %v379 = vld [vmem:[%s292 + $0x60] sm:$0xff]
        %v380 = vld [vmem:[%s292 + $0x68] sm:$0xff]
        %v381 = vld [vmem:[%s292 + $0x70] sm:$0xff]
        %v382 = vld [vmem:[%s292 + $0x78] sm:$0xff]
        %v383 = vld [vmem:[%s292 + $0x80] sm:$0xff]
        %v384 = vld [vmem:[%s292 + $0x88] sm:$0xff]
        %v385 = vld [vmem:[%s292 + $0x90] sm:$0xff]
        %v386 = vld [vmem:[%s292 + $0x98] sm:$0xff]
        %v387 = vld [vmem:[%s292 + $0xa0] sm:$0xff]
        %v388 = vld [vmem:[%s292 + $0xa8] sm:$0xff]
        %v389 = vld [vmem:[%s292 + $0xb0] sm:$0xff]
        %v390 = vld [vmem:[%s292 + $0xb8] sm:$0xff]
        %v391 = vld [vmem:[%s292 + $0xc0] sm:$0xff]
        %v392 = vld [vmem:[%s292 + $0xc8] sm:$0xff]
        %v393 = vld [vmem:[%s292 + $0xd0] sm:$0xff]
        %v394 = vld [vmem:[%s292 + $0xd8] sm:$0xff]
        %v395 = vld [vmem:[%s292 + $0xe0] sm:$0xff]
        %v396 = vld [vmem:[%s292 + $0xe8] sm:$0xff]
        %v397 = vld [vmem:[%s292 + $0xf0] sm:$0xff]
        %v398 = vld [vmem:[%s292 + $0xf8] sm:$0xff]
        %v399 = vld [vmem:[%s292 + $0x100] sm:$0xff]
        %v400 = vld [vmem:[%s292 + $0x108] sm:$0xff]
        %v401 = vld [vmem:[%s292 + $0x110] sm:$0xff]
        %v402 = vld [vmem:[%s292 + $0x118] sm:$0xff]
        %v403 = vld [vmem:[%s292 + $0x120] sm:$0xff]
        %v404 = vld [vmem:[%s292 + $0x128] sm:$0xff]
        %v405 = vld [vmem:[%s292 + $0x130] sm:$0xff]
        %v406 = vld [vmem:[%s292 + $0x138] sm:$0xff]
        %v407 = vld [vmem:[%s292 + $0x140] sm:$0xff]
        %v408 = vld [vmem:[%s292 + $0x148] sm:$0xff]
        %v409 = vld [vmem:[%s292 + $0x150] sm:$0xff]
        %v410 = vld [vmem:[%s292 + $0x158] sm:$0xff]
        %v411 = vld [vmem:[%s292 + $0x160] sm:$0xff]
        %v412 = vld [vmem:[%s292 + $0x168] sm:$0xff]
        %v413 = vld [vmem:[%s292 + $0x170] sm:$0xff]
        %v414 = vld [vmem:[%s292 + $0x178] sm:$0xff]
        %v415 = vld [vmem:[%s292 + $0x180] sm:$0xff]
        %v416 = vld [vmem:[%s292 + $0x188] sm:$0xff]
        %v417 = vld [vmem:[%s292 + $0x190] sm:$0xff]
        %v418 = vld [vmem:[%s292 + $0x198] sm:$0xff]
        %v419 = vld [vmem:[%s292 + $0x1a0] sm:$0xff]
        %v420 = vld [vmem:[%s292 + $0x1a8] sm:$0xff]
        %v421 = vld [vmem:[%s292 + $0x1b0] sm:$0xff]
        %v422 = vld [vmem:[%s292 + $0x1b8] sm:$0xff]
        %v423 = vld [vmem:[%s292 + $0x1c0] sm:$0xff]
        %v424 = vld [vmem:[%s292 + $0x1c8] sm:$0xff]
        %v425 = vld [vmem:[%s292 + $0x1d0] sm:$0xff]
        %v426 = vld [vmem:[%s292 + $0x1d8] sm:$0xff]
        %v427 = vld [vmem:[%s292 + $0x1e0] sm:$0xff]
        %v428 = vld [vmem:[%s292 + $0x1e8] sm:$0xff]
        %v429 = vld [vmem:[%s292 + $0x1f0] sm:$0xff]
        %v430 = vld [vmem:[%s292 + $0x1f8] sm:$0xff]
        %v431 = vld [vmem:[%s297] sm:$0x3]
        %v433 = vlaneseq
        %v434 = vshrl.u32 %v433, 7
        %v435 = vsub.s32 0, %v434
        %v436 = vrot.slane %v431, %v435
        %v437 = vlaneseq
        %v438 = vshrl.u32 %v437, 7
        %v439 = vsub.s32 1, %v438
        %v440 = vrot.slane %v431, %v439
        %v443 = vsub.f32 %v367, %v436
        %v444 = vsub.f32 %v368, %v440
        %v445 = vsub.f32 %v369, %v436
        %v446 = vsub.f32 %v370, %v440
        %v447 = vsub.f32 %v371, %v436
        %v448 = vsub.f32 %v372, %v440
        %v449 = vsub.f32 %v373, %v436
        %v450 = vsub.f32 %v374, %v440
        %v451 = vsub.f32 %v375, %v436
        %v452 = vsub.f32 %v376, %v440
        %v453 = vsub.f32 %v377, %v436
        %v454 = vsub.f32 %v378, %v440
        %v455 = vsub.f32 %v379, %v436
        %v456 = vsub.f32 %v380, %v440
        %v457 = vsub.f32 %v381, %v436
        %v458 = vsub.f32 %v382, %v440
        %v459 = vsub.f32 %v383, %v436
        %v460 = vsub.f32 %v384, %v440
        %v461 = vsub.f32 %v385, %v436
        %v462 = vsub.f32 %v386, %v440
        %v463 = vsub.f32 %v387, %v436
        %v464 = vsub.f32 %v388, %v440
        %v465 = vsub.f32 %v389, %v436
        %v466 = vsub.f32 %v390, %v440
        %v467 = vsub.f32 %v391, %v436
        %v468 = vsub.f32 %v392, %v440
        %v469 = vsub.f32 %v393, %v436
        %v470 = vsub.f32 %v394, %v440
        %v471 = vsub.f32 %v395, %v436
        %v472 = vsub.f32 %v396, %v440
        %v473 = vsub.f32 %v397, %v436
        %v474 = vsub.f32 %v398, %v440
        %v475 = vsub.f32 %v399, %v436
        %v476 = vsub.f32 %v400, %v440
        %v477 = vsub.f32 %v401, %v436
        %v478 = vsub.f32 %v402, %v440
        %v479 = vsub.f32 %v403, %v436
        %v480 = vsub.f32 %v404, %v440
        %v481 = vsub.f32 %v405, %v436
        %v482 = vsub.f32 %v406, %v440
        %v483 = vsub.f32 %v407, %v436
        %v484 = vsub.f32 %v408, %v440
        %v485 = vsub.f32 %v409, %v436
        %v486 = vsub.f32 %v410, %v440
        %v487 = vsub.f32 %v411, %v436
        %v488 = vsub.f32 %v412, %v440
        %v489 = vsub.f32 %v413, %v436
        %v490 = vsub.f32 %v414, %v440
        %v491 = vsub.f32 %v415, %v436
        %v492 = vsub.f32 %v416, %v440
        %v493 = vsub.f32 %v417, %v436
        %v494 = vsub.f32 %v418, %v440
        %v495 = vsub.f32 %v419, %v436
        %v496 = vsub.f32 %v420, %v440
        %v497 = vsub.f32 %v421, %v436
        %v498 = vsub.f32 %v422, %v440
        %v499 = vsub.f32 %v423, %v436
        %v500 = vsub.f32 %v424, %v440
        %v501 = vsub.f32 %v425, %v436
        %v502 = vsub.f32 %v426, %v440
        %v503 = vsub.f32 %v427, %v436
        %v504 = vsub.f32 %v428, %v440
        %v505 = vsub.f32 %v429, %v436
        %v506 = vsub.f32 %v430, %v440
        %v507 = vld [vmem:[%s301] sm:$0x3]
        %v509 = vlaneseq
        %v510 = vshrl.u32 %v509, 7
        %v511 = vsub.s32 0, %v510
        %v512 = vrot.slane %v507, %v511
        %v513 = vlaneseq
        %v514 = vshrl.u32 %v513, 7
        %v515 = vsub.s32 1, %v514
        %v516 = vrot.slane %v507, %v515
        %v519 = vmul.f32 %v443, %v512
        %v520 = vmul.f32 %v444, %v516
        %v521 = vmul.f32 %v445, %v512
        %v522 = vmul.f32 %v446, %v516
        %v523 = vmul.f32 %v447, %v512
        %v524 = vmul.f32 %v448, %v516
        %v525 = vmul.f32 %v449, %v512
        %v526 = vmul.f32 %v450, %v516
        %v527 = vmul.f32 %v451, %v512
        %v528 = vmul.f32 %v452, %v516
        %v529 = vmul.f32 %v453, %v512
        %v530 = vmul.f32 %v454, %v516
        %v531 = vmul.f32 %v455, %v512
        %v532 = vmul.f32 %v456, %v516
        %v533 = vmul.f32 %v457, %v512
        %v534 = vmul.f32 %v458, %v516
        %v535 = vmul.f32 %v459, %v512
        %v536 = vmul.f32 %v460, %v516
        %v537 = vmul.f32 %v461, %v512
        %v538 = vmul.f32 %v462, %v516
        %v539 = vmul.f32 %v463, %v512
        %v540 = vmul.f32 %v464, %v516
        %v541 = vmul.f32 %v465, %v512
        %v542 = vmul.f32 %v466, %v516
        %v543 = vmul.f32 %v467, %v512
        %v544 = vmul.f32 %v468, %v516
        %v545 = vmul.f32 %v469, %v512
        %v546 = vmul.f32 %v470, %v516
        %v547 = vmul.f32 %v471, %v512
        %v548 = vmul.f32 %v472, %v516
        %v549 = vmul.f32 %v473, %v512
        %v550 = vmul.f32 %v474, %v516
        %v551 = vmul.f32 %v475, %v512
        %v552 = vmul.f32 %v476, %v516
        %v553 = vmul.f32 %v477, %v512
        %v554 = vmul.f32 %v478, %v516
        %v555 = vmul.f32 %v479, %v512
        %v556 = vmul.f32 %v480, %v516
        %v557 = vmul.f32 %v481, %v512
        %v558 = vmul.f32 %v482, %v516
        %v559 = vmul.f32 %v483, %v512
        %v560 = vmul.f32 %v484, %v516
        %v561 = vmul.f32 %v485, %v512
        %v562 = vmul.f32 %v486, %v516
        %v563 = vmul.f32 %v487, %v512
        %v564 = vmul.f32 %v488, %v516
        %v565 = vmul.f32 %v489, %v512
        %v566 = vmul.f32 %v490, %v516
        %v567 = vmul.f32 %v491, %v512
        %v568 = vmul.f32 %v492, %v516
        %v569 = vmul.f32 %v493, %v512
        %v570 = vmul.f32 %v494, %v516
        %v571 = vmul.f32 %v495, %v512
        %v572 = vmul.f32 %v496, %v516
        %v573 = vmul.f32 %v497, %v512
        %v574 = vmul.f32 %v498, %v516
        %v575 = vmul.f32 %v499, %v512
        %v576 = vmul.f32 %v500, %v516
        %v577 = vmul.f32 %v501, %v512
        %v578 = vmul.f32 %v502, %v516
        %v579 = vmul.f32 %v503, %v512
        %v580 = vmul.f32 %v504, %v516
        %v581 = vmul.f32 %v505, %v512
        %v582 = vmul.f32 %v506, %v516
        %v583 = vadd.f32 %v303, %v519
        %v584 = vadd.f32 %v304, %v520
        %v585 = vadd.f32 %v305, %v521
        %v586 = vadd.f32 %v306, %v522
        %v587 = vadd.f32 %v307, %v523
        %v588 = vadd.f32 %v308, %v524
        %v589 = vadd.f32 %v309, %v525
        %v590 = vadd.f32 %v310, %v526
        %v591 = vadd.f32 %v311, %v527
        %v592 = vadd.f32 %v312, %v528
        %v593 = vadd.f32 %v313, %v529
        %v594 = vadd.f32 %v314, %v530
        %v595 = vadd.f32 %v315, %v531
        %v596 = vadd.f32 %v316, %v532
        %v597 = vadd.f32 %v317, %v533
        %v598 = vadd.f32 %v318, %v534
        %v599 = vadd.f32 %v319, %v535
        %v600 = vadd.f32 %v320, %v536
        %v601 = vadd.f32 %v321, %v537
        %v602 = vadd.f32 %v322, %v538
        %v603 = vadd.f32 %v323, %v539
        %v604 = vadd.f32 %v324, %v540
        %v605 = vadd.f32 %v325, %v541
        %v606 = vadd.f32 %v326, %v542
        %v607 = vadd.f32 %v327, %v543
        %v608 = vadd.f32 %v328, %v544
        %v609 = vadd.f32 %v329, %v545
        %v610 = vadd.f32 %v330, %v546
        %v611 = vadd.f32 %v331, %v547
        %v612 = vadd.f32 %v332, %v548
        %v613 = vadd.f32 %v333, %v549
        %v614 = vadd.f32 %v334, %v550
        %v615 = vadd.f32 %v335, %v551
        %v616 = vadd.f32 %v336, %v552
        %v617 = vadd.f32 %v337, %v553
        %v618 = vadd.f32 %v338, %v554
        %v619 = vadd.f32 %v339, %v555
        %v620 = vadd.f32 %v340, %v556
        %v621 = vadd.f32 %v341, %v557
        %v622 = vadd.f32 %v342, %v558
        %v623 = vadd.f32 %v343, %v559
        %v624 = vadd.f32 %v344, %v560
        %v625 = vadd.f32 %v345, %v561
        %v626 = vadd.f32 %v346, %v562
        %v627 = vadd.f32 %v347, %v563
        %v628 = vadd.f32 %v348, %v564
        %v629 = vadd.f32 %v349, %v565
        %v630 = vadd.f32 %v350, %v566
        %v631 = vadd.f32 %v351, %v567
        %v632 = vadd.f32 %v352, %v568
        %v633 = vadd.f32 %v353, %v569
        %v634 = vadd.f32 %v354, %v570
        %v635 = vadd.f32 %v355, %v571
        %v636 = vadd.f32 %v356, %v572
        %v637 = vadd.f32 %v357, %v573
        %v638 = vadd.f32 %v358, %v574
        %v639 = vadd.f32 %v359, %v575
        %v640 = vadd.f32 %v360, %v576
        %v641 = vadd.f32 %v361, %v577
        %v642 = vadd.f32 %v362, %v578
        %v643 = vadd.f32 %v363, %v579
        %v644 = vadd.f32 %v364, %v580
        %v645 = vadd.f32 %v365, %v581
        %v646 = vadd.f32 %v366, %v582
        %647 = vst [vmem:[%s271] sm:$0xff] %v583
        %648 = vst [vmem:[%s271 + $0x8] sm:$0xff] %v584
        %649 = vst [vmem:[%s271 + $0x10] sm:$0xff] %v585
        %650 = vst [vmem:[%s271 + $0x18] sm:$0xff] %v586
        %651 = vst [vmem:[%s271 + $0x20] sm:$0xff] %v587
        %652 = vst [vmem:[%s271 + $0x28] sm:$0xff] %v588
        %653 = vst [vmem:[%s271 + $0x30] sm:$0xff] %v589
        %654 = vst [vmem:[%s271 + $0x38] sm:$0xff] %v590
        %655 = vst [vmem:[%s271 + $0x40] sm:$0xff] %v591
        %656 = vst [vmem:[%s271 + $0x48] sm:$0xff] %v592
        %657 = vst [vmem:[%s271 + $0x50] sm:$0xff] %v593
        %658 = vst [vmem:[%s271 + $0x58] sm:$0xff] %v594
        %659 = vst [vmem:[%s271 + $0x60] sm:$0xff] %v595
        %660 = vst [vmem:[%s271 + $0x68] sm:$0xff] %v596
        %661 = vst [vmem:[%s271 + $0x70] sm:$0xff] %v597
        %662 = vst [vmem:[%s271 + $0x78] sm:$0xff] %v598
        %663 = vst [vmem:[%s271 + $0x80] sm:$0xff] %v599
        %664 = vst [vmem:[%s271 + $0x88] sm:$0xff] %v600
        %665 = vst [vmem:[%s271 + $0x90] sm:$0xff] %v601
        %666 = vst [vmem:[%s271 + $0x98] sm:$0xff] %v602
        %667 = vst [vmem:[%s271 + $0xa0] sm:$0xff] %v603
        %668 = vst [vmem:[%s271 + $0xa8] sm:$0xff] %v604
        %669 = vst [vmem:[%s271 + $0xb0] sm:$0xff] %v605
        %670 = vst [vmem:[%s271 + $0xb8] sm:$0xff] %v606
        %671 = vst [vmem:[%s271 + $0xc0] sm:$0xff] %v607
        %672 = vst [vmem:[%s271 + $0xc8] sm:$0xff] %v608
        %673 = vst [vmem:[%s271 + $0xd0] sm:$0xff] %v609
        %674 = vst [vmem:[%s271 + $0xd8] sm:$0xff] %v610
        %675 = vst [vmem:[%s271 + $0xe0] sm:$0xff] %v611
        %676 = vst [vmem:[%s271 + $0xe8] sm:$0xff] %v612
        %677 = vst [vmem:[%s271 + $0xf0] sm:$0xff] %v613
        %678 = vst [vmem:[%s271 + $0xf8] sm:$0xff] %v614
        %679 = vst [vmem:[%s271 + $0x100] sm:$0xff] %v615
        %680 = vst [vmem:[%s271 + $0x108] sm:$0xff] %v616
        %681 = vst [vmem:[%s271 + $0x110] sm:$0xff] %v617
        %682 = vst [vmem:[%s271 + $0x118] sm:$0xff] %v618
        %683 = vst [vmem:[%s271 + $0x120] sm:$0xff] %v619
        %684 = vst [vmem:[%s271 + $0x128] sm:$0xff] %v620
        %685 = vst [vmem:[%s271 + $0x130] sm:$0xff] %v621
        %686 = vst [vmem:[%s271 + $0x138] sm:$0xff] %v622
        %687 = vst [vmem:[%s271 + $0x140] sm:$0xff] %v623
        %688 = vst [vmem:[%s271 + $0x148] sm:$0xff] %v624
        %689 = vst [vmem:[%s271 + $0x150] sm:$0xff] %v625
        %690 = vst [vmem:[%s271 + $0x158] sm:$0xff] %v626
        %691 = vst [vmem:[%s271 + $0x160] sm:$0xff] %v627
        %692 = vst [vmem:[%s271 + $0x168] sm:$0xff] %v628
        %693 = vst [vmem:[%s271 + $0x170] sm:$0xff] %v629
        %694 = vst [vmem:[%s271 + $0x178] sm:$0xff] %v630
        %695 = vst [vmem:[%s271 + $0x180] sm:$0xff] %v631
        %696 = vst [vmem:[%s271 + $0x188] sm:$0xff] %v632
        %697 = vst [vmem:[%s271 + $0x190] sm:$0xff] %v633
        %698 = vst [vmem:[%s271 + $0x198] sm:$0xff] %v634
        %699 = vst [vmem:[%s271 + $0x1a0] sm:$0xff] %v635
        %700 = vst [vmem:[%s271 + $0x1a8] sm:$0xff] %v636
        %701 = vst [vmem:[%s271 + $0x1b0] sm:$0xff] %v637
        %702 = vst [vmem:[%s271 + $0x1b8] sm:$0xff] %v638
        %703 = vst [vmem:[%s271 + $0x1c0] sm:$0xff] %v639
        %704 = vst [vmem:[%s271 + $0x1c8] sm:$0xff] %v640
        %705 = vst [vmem:[%s271 + $0x1d0] sm:$0xff] %v641
        %706 = vst [vmem:[%s271 + $0x1d8] sm:$0xff] %v642
        %707 = vst [vmem:[%s271 + $0x1e0] sm:$0xff] %v643
        %708 = vst [vmem:[%s271 + $0x1e8] sm:$0xff] %v644
        %709 = vst [vmem:[%s271 + $0x1f0] sm:$0xff] %v645
        %710 = vst [vmem:[%s271 + $0x1f8] sm:$0xff] %v646
        %s711 = sand.u32 %s148, 1
        %s712 = scalar_lea.sflag [#allocation3], %s711
        %s713 = sand.u32 %s148, 1
        %s714 = smul.addr %s713, 512
        %s715 = scalar_lea.vmem [#allocation2], %s714
        // Predicated region
        $region37: #{resnet_block.5} parent=35 // pred_check
          %p716 = pneg %p158
        $region38: #{resnet_block.5} parent=35 // pred_check_branch
          %718 = sbr.rel (%p716) target = $region40
        $region39: #{resnet_block.5} parent=35 // pred_region
          %s719 = smul.u32 16, %s23
          %s721 = ssub.s32 8192, 8192
          %722 = vsyncadd %s712, %s721
          %s723 = smul.addr %s719, 4
          %s724 = smul.addr %s22, 64
          %s725 = sadd.s32 %s723, %s724
          %s726 = smul.addr %s725, 128
          %s727 = scalar_lea.hbm %s4, %s726
          %s728 = sshll.u32 %s715, 4
          %s729 = int_to_ptr.vmem [resolvable:$true] %s728
          %734 = dma.vmem_to_hbm [thread:$0]  %s729, 8192, %s727, %s712, 256, 256, 16
        $region40: #{resnet_block.5} parent=35 // pred_fallthru
          _
      $region36: #{resnet_block.5} parent=5 // pred_fallthru
        _
      %p735 = scmp.le.s32.totalorder 2, %s13
      // Predicated region
      $region41: #{resnet_block.5} parent=5 // pred_check
        %p736 = pneg %p735
      $region42: #{resnet_block.5} parent=5 // pred_check_branch
        %738 = sbr.rel (%p736) target = $region44
      $region43: #{resnet_block.5} parent=5 // pred_region
        %s739 = ssub.s32 %s13, 2
        // Predicated region
        $region45: #{resnet_block.5} parent=43 // pred_check
          %p740 = pneg %p164
        $region46: #{resnet_block.5} parent=43 // pred_check_branch
          %742 = sbr.rel (%p740) target = $region48
        $region47: #{resnet_block.5} parent=43 // pred_region
          %s743 = sand.u32 %s149, 1
          %s744 = scalar_lea.sflag [#allocation3], %s743
          %s745 = sand.u32 %s149, 1
          %s746 = smul.addr %s745, 512
          %s747 = scalar_lea.vmem [#allocation2], %s746
          %748 = dma.done %s744, 8192
        $region48: #{resnet_block.5} parent=43 // pred_fallthru
          _
      $region44: #{resnet_block.5} parent=5 // pred_fallthru
        _
    $region6: #{resnet_block.5} parent=1 // loop_footer
      %s17 = sadd.s32 1, %s13
    $region7: #{resnet_block.5} parent=1 // loop_footer_branch
      %12 = sbr.rel target = $region3
    $region8: #{resnet_block.5} parent=1 // loop_exit
      _
    %749 = vsyncpa [#allocation3], 1
    %s750 = scalar_lea.sflag [#allocation3], 1
    %751 = vsyncpa %s750, 1

// kernel: resnet_block.4
$region0: #{resnet_block.4}
  #allocation0 [shape = 'u32[]', space=smem, size = 0x4, offset = 0x4, fixed_abs, tag = 'smem constant byte address 0x4 - core index']
  #allocation1 [shape = 'u32[144,128]{1,0:T(1,128)}', space=vmem, size = 0x12000, scoped, tag = 'internal scratch']
  %s0 = inlined_call_operand.vmem [shape: bf16[2,18,18,256], index: 0, kind: input, shape index: {}]
  %s1 = inlined_call_operand.vmem [shape: bf16[9,256,256], index: 1, kind: input, shape index: {}]
  %s2 = inlined_call_operand.vmem [shape: f32[1,256], index: 2, kind: input, shape index: {}]
  %s3 = inlined_call_operand.vmem [shape: f32[2,1,256], index: 3, kind: input, shape index: {}]
  %s4 = inlined_call_operand.vmem [shape: f32[2,1,256], index: 4, kind: input, shape index: {}]
  %s5 = inlined_call_operand.vmem [shape: f32[2,16,16,256], index: 5, kind: output, shape index: {0}]
  %s6 = inlined_call_operand.vmem [shape: f32[2,2,256], index: 6, kind: output, shape index: {1}]
  %7 = xla_tuple %s5, %s6
  %s8 = sld [smem:[#allocation0]]
  $region61: #{resnet_block.4} parent=0
    _
  %s10 = ssub.s32 1, %s8
  %s11 = scalar_select 0, %s10, %s8
  loop: start=0, step=1, limit=4
  $region2: #{resnet_block.4} parent=0 // loop_pre_header
    _
  $region3: #{resnet_block.4} parent=0 // loop_header
    %s13 = sphi 0, %s17
    %p14 = scmp.ge.s32.totalorder %s13, 4
    %s20 = sphi 0, %s32
    %s21 = sphi 0, %s28
    %s22 = sphi 0, %s20
    %s23 = sphi 0, %s21
    %s24 = sphi 0, %s22
    %s25 = sphi 0, %s23
    %s37 = sphi 0, %s39
    %s40 = sphi 0, %s37
    %s41 = sphi 0, %s40
    %s57 = sphi 0, %s41
    %s61 = sphi 0, %s61
    %s63 = sphi 0, %s61
    %s64 = sphi 0, %s63
    %s78 = sphi 0, %s64
    %s82 = sphi 0, %s82
    %s84 = sphi 0, %s82
    %s85 = sphi 0, %s84
    %s99 = sphi 0, %s85
    %s105 = sphi 0, %s107
    %s108 = sphi 0, %s105
    %s109 = sphi 0, %s108
    %s125 = sphi 0, %s109
    %s131 = sphi 0, %s133
    %s134 = sphi 0, %s131
    %s135 = sphi 0, %s134
    %s151 = sphi 0, %s135
    %s159 = sphi 0, %s161
    %s162 = sphi 0, %s159
    %s163 = sphi 0, %s162
    %s179 = sphi 0, %s163
    %s187 = sphi 0, %s189
    %s190 = sphi 0, %s187
    %s191 = sphi 0, %s190
    %s207 = sphi 0, %s191
  $region4: #{resnet_block.4} parent=0 // loop_header_branch
    %16 = sbr.rel (%p14) target = $region8
  $region5: #{resnet_block.4} parent=0 // loop_body
    %s18 = ssub.s32 %s13, 1
    %s19 = ssub.s32 %s13, 2
    %s26 = sadd.s32 1, %s21
    %p27 = scmp.ge.s32.totalorder %s26, 1
    %s28 = scalar_select %p27, 0, %s26
    %s29 = sadd.s32 1, %s20
    %s30 = scalar_select %p27, %s29, %s20
    %p31 = scmp.ge.s32.totalorder %s30, 2
    %s32 = scalar_select %p31, 0, %s30
    %s33 = sadd.s32 %s20, %s21
    %s34 = sadd.s32 %s32, %s28
    %s35 = ssub.s32 %s33, %s34
    %p36 = scmp.eq.s32.totalorder %s35, 0
    %s38 = sadd.s32 %s37, 1
    %s39 = scalar_select %p36, %s37, %s38
    %p42 = pneg %p36
    %p43 = scmp.eq.s32.totalorder %s13, 1
    %p44 = por %p42, %p43
    %p45 = scmp.ne.s32.totalorder %s37, %s40
    %p46 = scmp.eq.s32.totalorder %s13, 0
    %p47 = por %p45, %p46
    %p48 = scmp.ne.s32.totalorder %s37, %s40
    %p49 = scmp.eq.s32.totalorder %s18, 1
    %p50 = por %p48, %p49
    %p51 = scmp.ne.s32.totalorder %s40, %s41
    %p52 = scmp.eq.s32.totalorder %s18, 0
    %p53 = por %p51, %p52
    %p54 = scmp.ne.s32.totalorder %s40, %s41
    %p55 = scmp.eq.s32.totalorder %s19, 1
    %p56 = por %p54, %p55
    %p58 = scmp.ne.s32.totalorder %s41, %s57
    %p59 = scmp.eq.s32.totalorder %s19, 0
    %p60 = por %p58, %p59
    %s62 = sadd.s32 %s61, 1
    %p65 = scmp.eq.s32.totalorder %s13, 1
    %p66 = scmp.ne.s32.totalorder %s61, %s63
    %p67 = scmp.eq.s32.totalorder %s13, 0
    %p68 = por %p66, %p67
    %p69 = scmp.ne.s32.totalorder %s61, %s63
    %p70 = scmp.eq.s32.totalorder %s18, 1
    %p71 = por %p69, %p70
    %p72 = scmp.ne.s32.totalorder %s63, %s64
    %p73 = scmp.eq.s32.totalorder %s18, 0
    %p74 = por %p72, %p73
    %p75 = scmp.ne.s32.totalorder %s63, %s64
    %p76 = scmp.eq.s32.totalorder %s19, 1
    %p77 = por %p75, %p76
    %p79 = scmp.ne.s32.totalorder %s64, %s78
    %p80 = scmp.eq.s32.totalorder %s19, 0
    %p81 = por %p79, %p80
    %s83 = sadd.s32 %s82, 1
    %p86 = scmp.eq.s32.totalorder %s13, 1
    %p87 = scmp.ne.s32.totalorder %s82, %s84
    %p88 = scmp.eq.s32.totalorder %s13, 0
    %p89 = por %p87, %p88
    %p90 = scmp.ne.s32.totalorder %s82, %s84
    %p91 = scmp.eq.s32.totalorder %s18, 1
    %p92 = por %p90, %p91
    %p93 = scmp.ne.s32.totalorder %s84, %s85
    %p94 = scmp.eq.s32.totalorder %s18, 0
    %p95 = por %p93, %p94
    %p96 = scmp.ne.s32.totalorder %s84, %s85
    %p97 = scmp.eq.s32.totalorder %s19, 1
    %p98 = por %p96, %p97
    %p100 = scmp.ne.s32.totalorder %s85, %s99
    %p101 = scmp.eq.s32.totalorder %s19, 0
    %p102 = por %p100, %p101
    %s103 = ssub.s32 %s20, %s32
    %p104 = scmp.eq.s32.totalorder %s103, 0
    %s106 = sadd.s32 %s105, 1
    %s107 = scalar_select %p104, %s105, %s106
    %p110 = pneg %p104
    %p111 = scmp.eq.s32.totalorder %s13, 1
    %p112 = por %p110, %p111
    %p113 = scmp.ne.s32.totalorder %s105, %s108
    %p114 = scmp.eq.s32.totalorder %s13, 0
    %p115 = por %p113, %p114
    %p116 = scmp.ne.s32.totalorder %s105, %s108
    %p117 = scmp.eq.s32.totalorder %s18, 1
    %p118 = por %p116, %p117
    %p119 = scmp.ne.s32.totalorder %s108, %s109
    %p120 = scmp.eq.s32.totalorder %s18, 0
    %p121 = por %p119, %p120
    %p122 = scmp.ne.s32.totalorder %s108, %s109
    %p123 = scmp.eq.s32.totalorder %s19, 1
    %p124 = por %p122, %p123
    %p126 = scmp.ne.s32.totalorder %s109, %s125
    %p127 = scmp.eq.s32.totalorder %s19, 0
    %p128 = por %p126, %p127
    %s129 = ssub.s32 %s20, %s32
    %p130 = scmp.eq.s32.totalorder %s129, 0
    %s132 = sadd.s32 %s131, 1
    %s133 = scalar_select %p130, %s131, %s132
    %p136 = pneg %p130
    %p137 = scmp.eq.s32.totalorder %s13, 1
    %p138 = por %p136, %p137
    %p139 = scmp.ne.s32.totalorder %s131, %s134
    %p140 = scmp.eq.s32.totalorder %s13, 0
    %p141 = por %p139, %p140
    %p142 = scmp.ne.s32.totalorder %s131, %s134
    %p143 = scmp.eq.s32.totalorder %s18, 1
    %p144 = por %p142, %p143
    %p145 = scmp.ne.s32.totalorder %s134, %s135
    %p146 = scmp.eq.s32.totalorder %s18, 0
    %p147 = por %p145, %p146
    %p148 = scmp.ne.s32.totalorder %s134, %s135
    %p149 = scmp.eq.s32.totalorder %s19, 1
    %p150 = por %p148, %p149
    %p152 = scmp.ne.s32.totalorder %s135, %s151
    %p153 = scmp.eq.s32.totalorder %s19, 0
    %p154 = por %p152, %p153
    %s155 = ssub.s32 %s20, %s32
    %s156 = ssub.s32 %s21, %s28
    %s157 = sor.u32 %s155, %s156
    %p158 = scmp.eq.s32.totalorder %s157, 0
    %s160 = sadd.s32 %s159, 1
    %s161 = scalar_select %p158, %s159, %s160
    %p164 = pneg %p158
    %p165 = scmp.eq.s32.totalorder %s13, 1
    %p166 = por %p164, %p165
    %p167 = scmp.ne.s32.totalorder %s159, %s162
    %p168 = scmp.eq.s32.totalorder %s13, 0
    %p169 = por %p167, %p168
    %p170 = scmp.ne.s32.totalorder %s159, %s162
    %p171 = scmp.eq.s32.totalorder %s18, 1
    %p172 = por %p170, %p171
    %p173 = scmp.ne.s32.totalorder %s162, %s163
    %p174 = scmp.eq.s32.totalorder %s18, 0
    %p175 = por %p173, %p174
    %p176 = scmp.ne.s32.totalorder %s162, %s163
    %p177 = scmp.eq.s32.totalorder %s19, 1
    %p178 = por %p176, %p177
    %p180 = scmp.ne.s32.totalorder %s163, %s179
    %p181 = scmp.eq.s32.totalorder %s19, 0
    %p182 = por %p180, %p181
    %s183 = sadd.s32 %s20, %s21
    %s184 = sadd.s32 %s32, %s28
    %s185 = ssub.s32 %s183, %s184
    %p186 = scmp.eq.s32.totalorder %s185, 0
    %s188 = sadd.s32 %s187, 1
    %s189 = scalar_select %p186, %s187, %s188
    %p192 = pneg %p186
    %p193 = scmp.eq.s32.totalorder %s13, 1
    %p194 = por %p192, %p193
    %p195 = scmp.ne.s32.totalorder %s187, %s190
    %p196 = scmp.eq.s32.totalorder %s13, 0
    %p197 = por %p195, %p196
    %p198 = scmp.ne.s32.totalorder %s187, %s190
    %p199 = scmp.eq.s32.totalorder %s18, 1
    %p200 = por %p198, %p199
    %p201 = scmp.ne.s32.totalorder %s190, %s191
    %p202 = scmp.eq.s32.totalorder %s18, 0
    %p203 = por %p201, %p202
    %p204 = scmp.ne.s32.totalorder %s190, %s191
    %p205 = scmp.eq.s32.totalorder %s19, 1
    %p206 = por %p204, %p205
    %p208 = scmp.ne.s32.totalorder %s191, %s207
    %p209 = scmp.eq.s32.totalorder %s19, 0
    %p210 = por %p208, %p209
    %p211 = scmp.le.s32.totalorder 1, %s13
    %p212 = scmp.lt.s32.totalorder %s13, 3
    %p213 = pnand %p211, %p212
    %p214 = pneg %p213
    // Predicated region
    $region9: #{resnet_block.4} parent=5 // pred_check
      _
    $region10: #{resnet_block.4} parent=5 // pred_check_branch
      %216 = sbr.rel (%p213) target = $region12
    $region11: #{resnet_block.4} parent=5 // pred_region
      %s217 = ssub.s32 %s13, 1
      // Predicated region
      $region13: #{resnet_block.4} parent=11 // pred_check
        %p218 = pneg %p74
      $region14: #{resnet_block.4} parent=11 // pred_check_branch
        %220 = sbr.rel (%p218) target = $region16
      $region15: #{resnet_block.4} parent=11 // pred_region
        _
      $region16: #{resnet_block.4} parent=11 // pred_fallthru
        _
      // Predicated region
      $region17: #{resnet_block.4} parent=11 // pred_check
        %p221 = pneg %p95
      $region18: #{resnet_block.4} parent=11 // pred_check_branch
        %223 = sbr.rel (%p221) target = $region20
      $region19: #{resnet_block.4} parent=11 // pred_region
        _
      $region20: #{resnet_block.4} parent=11 // pred_fallthru
        _
    $region12: #{resnet_block.4} parent=5 // pred_fallthru
      _
    %p224 = scmp.lt.s32.totalorder %s13, 2
    // Predicated region
    $region21: #{resnet_block.4} parent=5 // pred_check
      %p225 = pneg %p224
    $region22: #{resnet_block.4} parent=5 // pred_check_branch
      %227 = sbr.rel (%p225) target = $region24
    $region23: #{resnet_block.4} parent=5 // pred_region
      // Predicated region
      $region25: #{resnet_block.4} parent=23 // pred_check
        %p228 = pneg %p47
      $region26: #{resnet_block.4} parent=23 // pred_check_branch
        %230 = sbr.rel (%p228) target = $region28
      $region27: #{resnet_block.4} parent=23 // pred_region
        %s231 = sadd.s32 %s20, %s21
        %p232 = scmp.lt.s32.totalorder %s231, 1
        %s233 = scalar_select %p232, %s231, 1
        %s234 = smul.addr %s233, 108
        %s235 = smul.addr %s234, 4
        %s236 = scalar_lea.vmem %s0, %s235
        %s237 = sadd.s32 %s20, %s21
      $region28: #{resnet_block.4} parent=23 // pred_fallthru
        _
      // Predicated region
      $region29: #{resnet_block.4} parent=23 // pred_check
        %p238 = pneg %p115
      $region30: #{resnet_block.4} parent=23 // pred_check_branch
        %240 = sbr.rel (%p238) target = $region32
      $region31: #{resnet_block.4} parent=23 // pred_region
        %p241 = scmp.lt.s32.totalorder %s20, 1
        %s242 = scalar_select %p241, %s20, 1
        %s243 = smul.addr %s242, 2
        %s244 = scalar_lea.vmem %s3, %s243
      $region32: #{resnet_block.4} parent=23 // pred_fallthru
        _
      // Predicated region
      $region33: #{resnet_block.4} parent=23 // pred_check
        %p245 = pneg %p141
      $region34: #{resnet_block.4} parent=23 // pred_check_branch
        %247 = sbr.rel (%p245) target = $region36
      $region35: #{resnet_block.4} parent=23 // pred_region
        %p248 = scmp.lt.s32.totalorder %s20, 1
        %s249 = scalar_select %p248, %s20, 1
        %s250 = smul.addr %s249, 2
        %s251 = scalar_lea.vmem %s4, %s250
      $region36: #{resnet_block.4} parent=23 // pred_fallthru
        _
    $region24: #{resnet_block.4} parent=5 // pred_fallthru
      _
    %p252 = scmp.le.s32.totalorder 1, %s13
    %p253 = scmp.lt.s32.totalorder %s13, 3
    %p254 = pnand %p252, %p253
    %p255 = pneg %p254
    // Predicated region
    $region37: #{resnet_block.4} parent=5 // pred_check
      _
    $region38: #{resnet_block.4} parent=5 // pred_check_branch
      %257 = sbr.rel (%p254) target = $region40
    $region39: #{resnet_block.4} parent=5 // pred_region
      %s258 = ssub.s32 %s13, 1
      %s259 = sadd.s32 %s22, %s23
      %p260 = scmp.lt.s32.totalorder %s259, 1
      %s261 = scalar_select %p260, %s259, 1
      %s262 = smul.addr %s261, 108
      %s263 = smul.addr %s262, 4
      %s264 = scalar_lea.vmem %s0, %s263
      %p265 = pneg %p53
      %p266 = pneg %p50
      %p267 = pneg %p74
      %p268 = pneg %p71
      %p269 = pneg %p95
      %p270 = pneg %p92
      %p271 = scmp.lt.s32.totalorder %s22, 1
      %s272 = scalar_select %p271, %s22, 1
      %s273 = smul.addr %s272, 2
      %s274 = scalar_lea.vmem %s3, %s273
      %p275 = pneg %p121
      %p276 = pneg %p118
      %p277 = scmp.lt.s32.totalorder %s22, 1
      %s278 = scalar_select %p277, %s22, 1
      %s279 = smul.addr %s278, 2
      %s280 = scalar_lea.vmem %s4, %s279
      %p281 = pneg %p147
      %p282 = pneg %p144
      %p283 = pneg %p175
      %p284 = pneg %p172
      %s285 = smul.u32 16, %s23
      %p286 = scmp.lt.s32.totalorder %s22, 1
      %s287 = scalar_select %p286, %s22, 1
      %p288 = scmp.lt.s32.totalorder %s285, 15
      %s289 = scalar_select %p288, %s285, 15
      %s290 = smul.addr %s289, 4
      %s291 = smul.addr %s287, 64
      %s292 = sadd.s32 %s290, %s291
      %s293 = smul.addr %s292, 8
      %s294 = scalar_lea.vmem %s5, %s293
      %p295 = pneg %p203
      %p296 = pneg %p200
      %s297 = sadd.s32 %s22, %s23
      %p298 = scmp.lt.s32.totalorder %s297, 1
      %s299 = scalar_select %p298, %s297, 1
      %s300 = smul.addr %s299, 2
      %s301 = smul.addr %s300, 2
      %s302 = scalar_lea.vmem %s6, %s301
      %s303 = sadd.s32 %s22, %s23
      %p304 = scmp.lt.s32.totalorder %s303, 1
      %s305 = scalar_select %p304, %s303, 1
      %s306 = smul.addr %s305, 108
      %s307 = smul.addr %s306, 4
      %s308 = scalar_lea.vmem %s0, %s307
      %s309 = sadd.s32 %s22, %s23
      %p310 = scmp.lt.s32.totalorder %s22, 1
      %s311 = scalar_select %p310, %s22, 1
      %s312 = smul.addr %s311, 2
      %s313 = scalar_lea.vmem %s3, %s312
      %p314 = scmp.lt.s32.totalorder %s22, 1
      %s315 = scalar_select %p314, %s22, 1
      %s316 = smul.addr %s315, 2
      %s317 = scalar_lea.vmem %s4, %s316
      %s318 = smul.u32 16, %s23
      %p319 = scmp.lt.s32.totalorder %s22, 1
      %s320 = scalar_select %p319, %s22, 1
      %p321 = scmp.lt.s32.totalorder %s318, 15
      %s322 = scalar_select %p321, %s318, 15
      %s323 = smul.addr %s322, 4
      %s324 = smul.addr %s320, 64
      %s325 = sadd.s32 %s323, %s324
      %s326 = smul.addr %s325, 8
      %s327 = scalar_lea.vmem %s5, %s326
      %s328 = smul.u32 16, %s23
      %s329 = sadd.s32 %s22, %s23
      %p330 = scmp.lt.s32.totalorder %s329, 1
      %s331 = scalar_select %p330, %s329, 1
      %s332 = smul.addr %s331, 2
      %s333 = smul.addr %s332, 2
      %s334 = scalar_lea.vmem %s6, %s333
      %s335 = sadd.s32 %s22, %s23
      %v337 = vld [vmem:[%s308] sm:$0xff]
      %v338 = vld [vmem:[%s308 + $0x8] sm:$0xff]
      %v339 = vld [vmem:[%s308 + $0x10] sm:$0x11]
      %v340 = vld [vmem:[%s308 + $0x18] sm:$0xff]
      %v341 = vld [vmem:[%s308 + $0x20] sm:$0xff]
      %v342 = vld [vmem:[%s308 + $0x28] sm:$0x11]
      %v343 = vld [vmem:[%s308 + $0x30] sm:$0xff]
      %v344 = vld [vmem:[%s308 + $0x38] sm:$0xff]
      %v345 = vld [vmem:[%s308 + $0x40] sm:$0x11]
      %v346 = vld [vmem:[%s308 + $0x48] sm:$0xff]
      %v347 = vld [vmem:[%s308 + $0x50] sm:$0xff]
      %v348 = vld [vmem:[%s308 + $0x58] sm:$0x11]
      %v349 = vld [vmem:[%s308 + $0x60] sm:$0xff]
      %v350 = vld [vmem:[%s308 + $0x68] sm:$0xff]
      %v351 = vld [vmem:[%s308 + $0x70] sm:$0x11]
      %v352 = vld [vmem:[%s308 + $0x78] sm:$0xff]
      %v353 = vld [vmem:[%s308 + $0x80] sm:$0xff]
      %v354 = vld [vmem:[%s308 + $0x88] sm:$0x11]
      %v355 = vld [vmem:[%s308 + $0x90] sm:$0xff]
      %v356 = vld [vmem:[%s308 + $0x98] sm:$0xff]
      %v357 = vld [vmem:[%s308 + $0xa0] sm:$0x11]
      %v358 = vld [vmem:[%s308 + $0xa8] sm:$0xff]
      %v359 = vld [vmem:[%s308 + $0xb0] sm:$0xff]
      %v360 = vld [vmem:[%s308 + $0xb8] sm:$0x11]
      %v361 = vld [vmem:[%s308 + $0xc0] sm:$0xff]
      %v362 = vld [vmem:[%s308 + $0xc8] sm:$0xff]
      %v363 = vld [vmem:[%s308 + $0xd0] sm:$0x11]
      %v364 = vld [vmem:[%s308 + $0xd8] sm:$0xff]
      %v365 = vld [vmem:[%s308 + $0xe0] sm:$0xff]
      %v366 = vld [vmem:[%s308 + $0xe8] sm:$0x11]
      %v367 = vld [vmem:[%s308 + $0xf0] sm:$0xff]
      %v368 = vld [vmem:[%s308 + $0xf8] sm:$0xff]
      %v369 = vld [vmem:[%s308 + $0x100] sm:$0x11]
      %v370 = vld [vmem:[%s308 + $0x108] sm:$0xff]
      %v371 = vld [vmem:[%s308 + $0x110] sm:$0xff]
      %v372 = vld [vmem:[%s308 + $0x118] sm:$0x11]
      %v373 = vld [vmem:[%s308 + $0x120] sm:$0xff]
      %v374 = vld [vmem:[%s308 + $0x128] sm:$0xff]
      %v375 = vld [vmem:[%s308 + $0x130] sm:$0x11]
      %v376 = vld [vmem:[%s308 + $0x138] sm:$0xff]
      %v377 = vld [vmem:[%s308 + $0x140] sm:$0xff]
      %v378 = vld [vmem:[%s308 + $0x148] sm:$0x11]
      %v379 = vld [vmem:[%s308 + $0x150] sm:$0xff]
      %v380 = vld [vmem:[%s308 + $0x158] sm:$0xff]
      %v381 = vld [vmem:[%s308 + $0x160] sm:$0x11]
      %v382 = vld [vmem:[%s308 + $0x168] sm:$0xff]
      %v383 = vld [vmem:[%s308 + $0x170] sm:$0xff]
      %v384 = vld [vmem:[%s308 + $0x178] sm:$0x11]
      %v385 = vld [vmem:[%s308 + $0x180] sm:$0xff]
      %v386 = vld [vmem:[%s308 + $0x188] sm:$0xff]
      %v387 = vld [vmem:[%s308 + $0x190] sm:$0x11]
      %v388 = vld [vmem:[%s308 + $0x198] sm:$0xff]
      %v389 = vld [vmem:[%s308 + $0x1a0] sm:$0xff]
      %v390 = vld [vmem:[%s308 + $0x1a8] sm:$0x11]
      %v391 = vld [vmem:[%s313] sm:$0x3]
      %v393 = vlaneseq
      %v394 = vshrl.u32 %v393, 7
      %v395 = vsub.s32 0, %v394
      %v396 = vrot.slane %v391, %v395
      %v397 = vlaneseq
      %v398 = vshrl.u32 %v397, 7
      %v399 = vsub.s32 1, %v398
      %v400 = vrot.slane %v391, %v399
      %v403 = vpack.c.bf16 %v396, %v396
      %v404 = vpack.c.bf16 %v400, %v400
      %v405 = vld [vmem:[%s317] sm:$0x3]
      %v407 = vlaneseq
      %v408 = vshrl.u32 %v407, 7
      %v409 = vsub.s32 0, %v408
      %v410 = vrot.slane %v405, %v409
      %v411 = vlaneseq
      %v412 = vshrl.u32 %v411, 7
      %v413 = vsub.s32 1, %v412
      %v414 = vrot.slane %v405, %v413
      %v417 = vpack.c.bf16 %v410, %v410
      %v418 = vpack.c.bf16 %v414, %v414
      %v420 = vpack.i.b16 %v403, %v403
      %v422 = vlaneseq
      %v423 = vshrl.u32 %v422, 7
      %v424 = vsub.s32 0, %v423
      %v425 = vrot.slane %v420, %v424
      %v427 = vpack.i.b16 %v404, %v404
      %v429 = vlaneseq
      %v430 = vshrl.u32 %v429, 7
      %v431 = vsub.s32 0, %v430
      %v432 = vrot.slane %v427, %v431
      %v435 = vunpack.c.l.b16 %v425
      %v436 = vunpack.c.l.b16 %v432
      %v437 = vpack.c.b16 %v436, %v435
      %v439 = vsub.bf16 %v337, %v437
      %v440 = vsub.bf16 %v338, %v437
      %v441 = vsub.bf16 %v339, %v437
      %v442 = vsub.bf16 %v340, %v437
      %v443 = vsub.bf16 %v341, %v437
      %v444 = vsub.bf16 %v342, %v437
      %v445 = vsub.bf16 %v343, %v437
      %v446 = vsub.bf16 %v344, %v437
      %v447 = vsub.bf16 %v345, %v437
      %v448 = vsub.bf16 %v346, %v437
      %v449 = vsub.bf16 %v347, %v437
      %v450 = vsub.bf16 %v348, %v437
      %v451 = vsub.bf16 %v349, %v437
      %v452 = vsub.bf16 %v350, %v437
      %v453 = vsub.bf16 %v351, %v437
      %v454 = vsub.bf16 %v352, %v437
      %v455 = vsub.bf16 %v353, %v437
      %v456 = vsub.bf16 %v354, %v437
      %v457 = vsub.bf16 %v355, %v437
      %v458 = vsub.bf16 %v356, %v437
      %v459 = vsub.bf16 %v357, %v437
      %v460 = vsub.bf16 %v358, %v437
      %v461 = vsub.bf16 %v359, %v437
      %v462 = vsub.bf16 %v360, %v437
      %v463 = vsub.bf16 %v361, %v437
      %v464 = vsub.bf16 %v362, %v437
      %v465 = vsub.bf16 %v363, %v437
      %v466 = vsub.bf16 %v364, %v437
      %v467 = vsub.bf16 %v365, %v437
      %v468 = vsub.bf16 %v366, %v437
      %v469 = vsub.bf16 %v367, %v437
      %v470 = vsub.bf16 %v368, %v437
      %v471 = vsub.bf16 %v369, %v437
      %v472 = vsub.bf16 %v370, %v437
      %v473 = vsub.bf16 %v371, %v437
      %v474 = vsub.bf16 %v372, %v437
      %v475 = vsub.bf16 %v373, %v437
      %v476 = vsub.bf16 %v374, %v437
      %v477 = vsub.bf16 %v375, %v437
      %v478 = vsub.bf16 %v376, %v437
      %v479 = vsub.bf16 %v377, %v437
      %v480 = vsub.bf16 %v378, %v437
      %v481 = vsub.bf16 %v379, %v437
      %v482 = vsub.bf16 %v380, %v437
      %v483 = vsub.bf16 %v381, %v437
      %v484 = vsub.bf16 %v382, %v437
      %v485 = vsub.bf16 %v383, %v437
      %v486 = vsub.bf16 %v384, %v437
      %v487 = vsub.bf16 %v385, %v437
      %v488 = vsub.bf16 %v386, %v437
      %v489 = vsub.bf16 %v387, %v437
      %v490 = vsub.bf16 %v388, %v437
      %v491 = vsub.bf16 %v389, %v437
      %v492 = vsub.bf16 %v390, %v437
      %v494 = vpack.i.b16 %v417, %v417
      %v496 = vlaneseq
      %v497 = vshrl.u32 %v496, 7
      %v498 = vsub.s32 0, %v497
      %v499 = vrot.slane %v494, %v498
      %v501 = vpack.i.b16 %v418, %v418
      %v503 = vlaneseq
      %v504 = vshrl.u32 %v503, 7
      %v505 = vsub.s32 0, %v504
      %v506 = vrot.slane %v501, %v505
      %v509 = vunpack.c.l.b16 %v499
      %v510 = vunpack.c.l.b16 %v506
      %v511 = vpack.c.b16 %v510, %v509
      %v513 = vmul.bf16 %v439, %v511
      %v514 = vmul.bf16 %v440, %v511
      %v515 = vmul.bf16 %v441, %v511
      %v516 = vmul.bf16 %v442, %v511
      %v517 = vmul.bf16 %v443, %v511
      %v518 = vmul.bf16 %v444, %v511
      %v519 = vmul.bf16 %v445, %v511
      %v520 = vmul.bf16 %v446, %v511
      %v521 = vmul.bf16 %v447, %v511
      %v522 = vmul.bf16 %v448, %v511
      %v523 = vmul.bf16 %v449, %v511
      %v524 = vmul.bf16 %v450, %v511
      %v525 = vmul.bf16 %v451, %v511
      %v526 = vmul.bf16 %v452, %v511
      %v527 = vmul.bf16 %v453, %v511
      %v528 = vmul.bf16 %v454, %v511
      %v529 = vmul.bf16 %v455, %v511
      %v530 = vmul.bf16 %v456, %v511
      %v531 = vmul.bf16 %v457, %v511
      %v532 = vmul.bf16 %v458, %v511
      %v533 = vmul.bf16 %v459, %v511
      %v534 = vmul.bf16 %v460, %v511
      %v535 = vmul.bf16 %v461, %v511
      %v536 = vmul.bf16 %v462, %v511
      %v537 = vmul.bf16 %v463, %v511
      %v538 = vmul.bf16 %v464, %v511
      %v539 = vmul.bf16 %v465, %v511
      %v540 = vmul.bf16 %v466, %v511
      %v541 = vmul.bf16 %v467, %v511
      %v542 = vmul.bf16 %v468, %v511
      %v543 = vmul.bf16 %v469, %v511
      %v544 = vmul.bf16 %v470, %v511
      %v545 = vmul.bf16 %v471, %v511
      %v546 = vmul.bf16 %v472, %v511
      %v547 = vmul.bf16 %v473, %v511
      %v548 = vmul.bf16 %v474, %v511
      %v549 = vmul.bf16 %v475, %v511
      %v550 = vmul.bf16 %v476, %v511
      %v551 = vmul.bf16 %v477, %v511
      %v552 = vmul.bf16 %v478, %v511
      %v553 = vmul.bf16 %v479, %v511
      %v554 = vmul.bf16 %v480, %v511
      %v555 = vmul.bf16 %v481, %v511
      %v556 = vmul.bf16 %v482, %v511
      %v557 = vmul.bf16 %v483, %v511
      %v558 = vmul.bf16 %v484, %v511
      %v559 = vmul.bf16 %v485, %v511
      %v560 = vmul.bf16 %v486, %v511
      %v561 = vmul.bf16 %v487, %v511
      %v562 = vmul.bf16 %v488, %v511
      %v563 = vmul.bf16 %v489, %v511
      %v564 = vmul.bf16 %v490, %v511
      %v565 = vmul.bf16 %v491, %v511
      %v566 = vmul.bf16 %v492, %v511
      %v567 = vmax.bf16 %v513, 0
      %v568 = vmax.bf16 %v514, 0
      %v569 = vmax.bf16 %v515, 0
      %v570 = vmax.bf16 %v516, 0
      %v571 = vmax.bf16 %v517, 0
      %v572 = vmax.bf16 %v518, 0
      %v573 = vmax.bf16 %v519, 0
      %v574 = vmax.bf16 %v520, 0
      %v575 = vmax.bf16 %v521, 0
      %v576 = vmax.bf16 %v522, 0
      %v577 = vmax.bf16 %v523, 0
      %v578 = vmax.bf16 %v524, 0
      %v579 = vmax.bf16 %v525, 0
      %v580 = vmax.bf16 %v526, 0
      %v581 = vmax.bf16 %v527, 0
      %v582 = vmax.bf16 %v528, 0
      %v583 = vmax.bf16 %v529, 0
      %v584 = vmax.bf16 %v530, 0
      %v585 = vmax.bf16 %v531, 0
      %v586 = vmax.bf16 %v532, 0
      %v587 = vmax.bf16 %v533, 0
      %v588 = vmax.bf16 %v534, 0
      %v589 = vmax.bf16 %v535, 0
      %v590 = vmax.bf16 %v536, 0
      %v591 = vmax.bf16 %v537, 0
      %v592 = vmax.bf16 %v538, 0
      %v593 = vmax.bf16 %v539, 0
      %v594 = vmax.bf16 %v540, 0
      %v595 = vmax.bf16 %v541, 0
      %v596 = vmax.bf16 %v542, 0
      %v597 = vmax.bf16 %v543, 0
      %v598 = vmax.bf16 %v544, 0
      %v599 = vmax.bf16 %v545, 0
      %v600 = vmax.bf16 %v546, 0
      %v601 = vmax.bf16 %v547, 0
      %v602 = vmax.bf16 %v548, 0
      %v603 = vmax.bf16 %v549, 0
      %v604 = vmax.bf16 %v550, 0
      %v605 = vmax.bf16 %v551, 0
      %v606 = vmax.bf16 %v552, 0
      %v607 = vmax.bf16 %v553, 0
      %v608 = vmax.bf16 %v554, 0
      %v609 = vmax.bf16 %v555, 0
      %v610 = vmax.bf16 %v556, 0
      %v611 = vmax.bf16 %v557, 0
      %v612 = vmax.bf16 %v558, 0
      %v613 = vmax.bf16 %v559, 0
      %v614 = vmax.bf16 %v560, 0
      %v615 = vmax.bf16 %v561, 0
      %v616 = vmax.bf16 %v562, 0
      %v617 = vmax.bf16 %v563, 0
      %v618 = vmax.bf16 %v564, 0
      %v619 = vmax.bf16 %v565, 0
      %v620 = vmax.bf16 %v566, 0
      %v621 = vld [vmem:[%s1] sm:$0xff]
      %v622 = vld [vmem:[%s1 + $0x8] sm:$0xff]
      %v623 = vld [vmem:[%s1 + $0x10] sm:$0xff]
      %v624 = vld [vmem:[%s1 + $0x18] sm:$0xff]
      %v625 = vld [vmem:[%s1 + $0x20] sm:$0xff]
      %v626 = vld [vmem:[%s1 + $0x28] sm:$0xff]
      %v627 = vld [vmem:[%s1 + $0x30] sm:$0xff]
      %v628 = vld [vmem:[%s1 + $0x38] sm:$0xff]
      %v629 = vld [vmem:[%s1 + $0x40] sm:$0xff]
      %v630 = vld [vmem:[%s1 + $0x48] sm:$0xff]
      %v631 = vld [vmem:[%s1 + $0x50] sm:$0xff]
      %v632 = vld [vmem:[%s1 + $0x58] sm:$0xff]
      %v633 = vld [vmem:[%s1 + $0x60] sm:$0xff]
      %v634 = vld [vmem:[%s1 + $0x68] sm:$0xff]
      %v635 = vld [vmem:[%s1 + $0x70] sm:$0xff]
      %v636 = vld [vmem:[%s1 + $0x78] sm:$0xff]
      %v637 = vld [vmem:[%s1 + $0x80] sm:$0xff]
      %v638 = vld [vmem:[%s1 + $0x88] sm:$0xff]
      %v639 = vld [vmem:[%s1 + $0x90] sm:$0xff]
      %v640 = vld [vmem:[%s1 + $0x98] sm:$0xff]
      %v641 = vld [vmem:[%s1 + $0xa0] sm:$0xff]
      %v642 = vld [vmem:[%s1 + $0xa8] sm:$0xff]
      %v643 = vld [vmem:[%s1 + $0xb0] sm:$0xff]
      %v644 = vld [vmem:[%s1 + $0xb8] sm:$0xff]
      %v645 = vld [vmem:[%s1 + $0xc0] sm:$0xff]
      %v646 = vld [vmem:[%s1 + $0xc8] sm:$0xff]
      %v647 = vld [vmem:[%s1 + $0xd0] sm:$0xff]
      %v648 = vld [vmem:[%s1 + $0xd8] sm:$0xff]
      %v649 = vld [vmem:[%s1 + $0xe0] sm:$0xff]
      %v650 = vld [vmem:[%s1 + $0xe8] sm:$0xff]
      %v651 = vld [vmem:[%s1 + $0xf0] sm:$0xff]
      %v652 = vld [vmem:[%s1 + $0xf8] sm:$0xff]
      %vm653 = vsmask.f32 3328
      %vm654 = vsmask.f32 7440
      %vm655 = vmor %vm653, %vm654
      %v657 = vshrl.u32 %v567, 16
      %v659 = vrot.slane %v657, 4
      %v660 = vshll.u32 %v567, 16
      %v662 = vrot.slane %v660, 5
      %v663 = vor.u32 %v659, %v662
      %v664 = vrot.slane %v663, 4
      %v666 = vshll.u32 %v568, 16
      %v668 = vrot.slane %v666, 5
      %v669 = vsel %vm655, %v664, %v668
      %v670 = vshrl.u32 %v568, 16
      %v672 = vrot.slane %v670, 4
      %v673 = vor.u32 %v672, %v668
      %v674 = vrot.slane %v673, 4
      %v676 = vshll.u32 %v569, 16
      %v678 = vrot.slane %v676, 5
      %v679 = vsel %vm655, %v674, %v678
      %v681 = vshrl.u32 %v570, 16
      %v683 = vrot.slane %v681, 4
      %v684 = vshll.u32 %v570, 16
      %v686 = vrot.slane %v684, 5
      %v687 = vor.u32 %v683, %v686
      %v688 = vrot.slane %v687, 4
      %v690 = vshll.u32 %v571, 16
      %v692 = vrot.slane %v690, 5
      %v693 = vsel %vm655, %v688, %v692
      %v694 = vshrl.u32 %v571, 16
      %v696 = vrot.slane %v694, 4
      %v697 = vor.u32 %v696, %v692
      %v698 = vrot.slane %v697, 4
      %v700 = vshll.u32 %v572, 16
      %v702 = vrot.slane %v700, 5
      %v703 = vsel %vm655, %v698, %v702
      %v705 = vshrl.u32 %v573, 16
      %v707 = vrot.slane %v705, 4
      %v708 = vshll.u32 %v573, 16
      %v710 = vrot.slane %v708, 5
      %v711 = vor.u32 %v707, %v710
      %v712 = vrot.slane %v711, 4
      %v714 = vshll.u32 %v574, 16
      %v716 = vrot.slane %v714, 5
      %v717 = vsel %vm655, %v712, %v716
      %v718 = vshrl.u32 %v574, 16
      %v720 = vrot.slane %v718, 4
      %v721 = vor.u32 %v720, %v716
      %v722 = vrot.slane %v721, 4
      %v724 = vshll.u32 %v575, 16
      %v726 = vrot.slane %v724, 5
      %v727 = vsel %vm655, %v722, %v726
      %v729 = vshrl.u32 %v576, 16
      %v731 = vrot.slane %v729, 4
      %v732 = vshll.u32 %v576, 16
      %v734 = vrot.slane %v732, 5
      %v735 = vor.u32 %v731, %v734
      %v736 = vrot.slane %v735, 4
      %v738 = vshll.u32 %v577, 16
      %v740 = vrot.slane %v738, 5
      %v741 = vsel %vm655, %v736, %v740
      %v742 = vshrl.u32 %v577, 16
      %v744 = vrot.slane %v742, 4
      %v745 = vor.u32 %v744, %v740
      %v746 = vrot.slane %v745, 4
      %v748 = vshll.u32 %v578, 16
      %v750 = vrot.slane %v748, 5
      %v751 = vsel %vm655, %v746, %v750
      %v753 = vshrl.u32 %v579, 16
      %v755 = vrot.slane %v753, 4
      %v756 = vshll.u32 %v579, 16
      %v758 = vrot.slane %v756, 5
      %v759 = vor.u32 %v755, %v758
      %v760 = vrot.slane %v759, 4
      %v762 = vshll.u32 %v580, 16
      %v764 = vrot.slane %v762, 5
      %v765 = vsel %vm655, %v760, %v764
      %v766 = vshrl.u32 %v580, 16
      %v768 = vrot.slane %v766, 4
      %v769 = vor.u32 %v768, %v764
      %v770 = vrot.slane %v769, 4
      %v772 = vshll.u32 %v581, 16
      %v774 = vrot.slane %v772, 5
      %v775 = vsel %vm655, %v770, %v774
      %v777 = vshrl.u32 %v582, 16
      %v779 = vrot.slane %v777, 4
      %v780 = vshll.u32 %v582, 16
      %v782 = vrot.slane %v780, 5
      %v783 = vor.u32 %v779, %v782
      %v784 = vrot.slane %v783, 4
      %v786 = vshll.u32 %v583, 16
      %v788 = vrot.slane %v786, 5
      %v789 = vsel %vm655, %v784, %v788
      %v790 = vshrl.u32 %v583, 16
      %v792 = vrot.slane %v790, 4
      %v793 = vor.u32 %v792, %v788
      %v794 = vrot.slane %v793, 4
      %v796 = vshll.u32 %v584, 16
      %v798 = vrot.slane %v796, 5
      %v799 = vsel %vm655, %v794, %v798
      %v801 = vshrl.u32 %v585, 16
      %v803 = vrot.slane %v801, 4
      %v804 = vshll.u32 %v585, 16
      %v806 = vrot.slane %v804, 5
      %v807 = vor.u32 %v803, %v806
      %v808 = vrot.slane %v807, 4
      %v810 = vshll.u32 %v586, 16
      %v812 = vrot.slane %v810, 5
      %v813 = vsel %vm655, %v808, %v812
      %v814 = vshrl.u32 %v586, 16
      %v816 = vrot.slane %v814, 4
      %v817 = vor.u32 %v816, %v812
      %v818 = vrot.slane %v817, 4
      %v820 = vshll.u32 %v587, 16
      %v822 = vrot.slane %v820, 5
      %v823 = vsel %vm655, %v818, %v822
      %v825 = vshrl.u32 %v588, 16
      %v827 = vrot.slane %v825, 4
      %v828 = vshll.u32 %v588, 16
      %v830 = vrot.slane %v828, 5
      %v831 = vor.u32 %v827, %v830
      %v832 = vrot.slane %v831, 4
      %v834 = vshll.u32 %v589, 16
      %v836 = vrot.slane %v834, 5
      %v837 = vsel %vm655, %v832, %v836
      %v838 = vshrl.u32 %v589, 16
      %v840 = vrot.slane %v838, 4
      %v841 = vor.u32 %v840, %v836
      %v842 = vrot.slane %v841, 4
      %v844 = vshll.u32 %v590, 16
      %v846 = vrot.slane %v844, 5
      %v847 = vsel %vm655, %v842, %v846
      %v849 = vshrl.u32 %v591, 16
      %v851 = vrot.slane %v849, 4
      %v852 = vshll.u32 %v591, 16
      %v854 = vrot.slane %v852, 5
      %v855 = vor.u32 %v851, %v854
      %v856 = vrot.slane %v855, 4
      %v858 = vshll.u32 %v592, 16
      %v860 = vrot.slane %v858, 5
      %v861 = vsel %vm655, %v856, %v860
      %v862 = vshrl.u32 %v592, 16
      %v864 = vrot.slane %v862, 4
      %v865 = vor.u32 %v864, %v860
      %v866 = vrot.slane %v865, 4
      %v868 = vshll.u32 %v593, 16
      %v870 = vrot.slane %v868, 5
      %v871 = vsel %vm655, %v866, %v870
      %v873 = vshrl.u32 %v594, 16
      %v875 = vrot.slane %v873, 4
      %v876 = vshll.u32 %v594, 16
      %v878 = vrot.slane %v876, 5
      %v879 = vor.u32 %v875, %v878
      %v880 = vrot.slane %v879, 4
      %v882 = vshll.u32 %v595, 16
      %v884 = vrot.slane %v882, 5
      %v885 = vsel %vm655, %v880, %v884
      %v886 = vshrl.u32 %v595, 16
      %v888 = vrot.slane %v886, 4
      %v889 = vor.u32 %v888, %v884
      %v890 = vrot.slane %v889, 4
      %v892 = vshll.u32 %v596, 16
      %v894 = vrot.slane %v892, 5
      %v895 = vsel %vm655, %v890, %v894
      %v897 = vshrl.u32 %v597, 16
      %v899 = vrot.slane %v897, 4
      %v900 = vshll.u32 %v597, 16
      %v902 = vrot.slane %v900, 5
      %v903 = vor.u32 %v899, %v902
      %v904 = vrot.slane %v903, 4
      %v906 = vshll.u32 %v598, 16
      %v908 = vrot.slane %v906, 5
      %v909 = vsel %vm655, %v904, %v908
      %v910 = vshrl.u32 %v598, 16
      %v912 = vrot.slane %v910, 4
      %v913 = vor.u32 %v912, %v908
      %v914 = vrot.slane %v913, 4
      %v916 = vshll.u32 %v599, 16
      %v918 = vrot.slane %v916, 5
      %v919 = vsel %vm655, %v914, %v918
      %v921 = vshrl.u32 %v600, 16
      %v923 = vrot.slane %v921, 4
      %v924 = vshll.u32 %v600, 16
      %v926 = vrot.slane %v924, 5
      %v927 = vor.u32 %v923, %v926
      %v928 = vrot.slane %v927, 4
      %v930 = vshll.u32 %v601, 16
      %v932 = vrot.slane %v930, 5
      %v933 = vsel %vm655, %v928, %v932
      %v934 = vshrl.u32 %v601, 16
      %v936 = vrot.slane %v934, 4
      %v937 = vor.u32 %v936, %v932
      %v938 = vrot.slane %v937, 4
      %v940 = vshll.u32 %v602, 16
      %v942 = vrot.slane %v940, 5
      %v943 = vsel %vm655, %v938, %v942
      %v945 = vshrl.u32 %v603, 16
      %v947 = vrot.slane %v945, 4
      %v948 = vshll.u32 %v603, 16
      %v950 = vrot.slane %v948, 5
      %v951 = vor.u32 %v947, %v950
      %v952 = vrot.slane %v951, 4
      %v954 = vshll.u32 %v604, 16
      %v956 = vrot.slane %v954, 5
      %v957 = vsel %vm655, %v952, %v956
      %v958 = vshrl.u32 %v604, 16
      %v960 = vrot.slane %v958, 4
      %v961 = vor.u32 %v960, %v956
      %v962 = vrot.slane %v961, 4
      %v964 = vshll.u32 %v605, 16
      %v966 = vrot.slane %v964, 5
      %v967 = vsel %vm655, %v962, %v966
      %v969 = vshrl.u32 %v606, 16
      %v971 = vrot.slane %v969, 4
      %v972 = vshll.u32 %v606, 16
      %v974 = vrot.slane %v972, 5
      %v975 = vor.u32 %v971, %v974
      %v976 = vrot.slane %v975, 4
      %v978 = vshll.u32 %v607, 16
      %v980 = vrot.slane %v978, 5
      %v981 = vsel %vm655, %v976, %v980
      %v982 = vshrl.u32 %v607, 16
      %v984 = vrot.slane %v982, 4
      %v985 = vor.u32 %v984, %v980
      %v986 = vrot.slane %v985, 4
      %v988 = vshll.u32 %v608, 16
      %v990 = vrot.slane %v988, 5
      %v991 = vsel %vm655, %v986, %v990
      %v993 = vshrl.u32 %v609, 16
      %v995 = vrot.slane %v993, 4
      %v996 = vshll.u32 %v609, 16
      %v998 = vrot.slane %v996, 5
      %v999 = vor.u32 %v995, %v998
      %v1000 = vrot.slane %v999, 4
      %v1002 = vshll.u32 %v610, 16
      %v1004 = vrot.slane %v1002, 5
      %v1005 = vsel %vm655, %v1000, %v1004
      %v1006 = vshrl.u32 %v610, 16
      %v1008 = vrot.slane %v1006, 4
      %v1009 = vor.u32 %v1008, %v1004
      %v1010 = vrot.slane %v1009, 4
      %v1012 = vshll.u32 %v611, 16
      %v1014 = vrot.slane %v1012, 5
      %v1015 = vsel %vm655, %v1010, %v1014
      %v1017 = vshrl.u32 %v612, 16
      %v1019 = vrot.slane %v1017, 4
      %v1020 = vshll.u32 %v612, 16
      %v1022 = vrot.slane %v1020, 5
      %v1023 = vor.u32 %v1019, %v1022
      %v1024 = vrot.slane %v1023, 4
      %v1026 = vshll.u32 %v613, 16
      %v1028 = vrot.slane %v1026, 5
      %v1029 = vsel %vm655, %v1024, %v1028
      %v1030 = vshrl.u32 %v613, 16
      %v1032 = vrot.slane %v1030, 4
      %v1033 = vor.u32 %v1032, %v1028
      %v1034 = vrot.slane %v1033, 4
      %v1036 = vshll.u32 %v614, 16
      %v1038 = vrot.slane %v1036, 5
      %v1039 = vsel %vm655, %v1034, %v1038
      %s1040 = scalar_lea.vmem %s1, 256
      %v1041 = vld [vmem:[%s1040] sm:$0xff]
      %v1042 = vld [vmem:[%s1040 + $0x8] sm:$0xff]
      %v1043 = vld [vmem:[%s1040 + $0x10] sm:$0xff]
      %v1044 = vld [vmem:[%s1040 + $0x18] sm:$0xff]
      %v1045 = vld [vmem:[%s1040 + $0x20] sm:$0xff]
      %v1046 = vld [vmem:[%s1040 + $0x28] sm:$0xff]
      %v1047 = vld [vmem:[%s1040 + $0x30] sm:$0xff]
      %v1048 = vld [vmem:[%s1040 + $0x38] sm:$0xff]
      %v1049 = vld [vmem:[%s1040 + $0x40] sm:$0xff]
      %v1050 = vld [vmem:[%s1040 + $0x48] sm:$0xff]
      %v1051 = vld [vmem:[%s1040 + $0x50] sm:$0xff]
      %v1052 = vld [vmem:[%s1040 + $0x58] sm:$0xff]
      %v1053 = vld [vmem:[%s1040 + $0x60] sm:$0xff]
      %v1054 = vld [vmem:[%s1040 + $0x68] sm:$0xff]
      %v1055 = vld [vmem:[%s1040 + $0x70] sm:$0xff]
      %v1056 = vld [vmem:[%s1040 + $0x78] sm:$0xff]
      %v1057 = vld [vmem:[%s1040 + $0x80] sm:$0xff]
      %v1058 = vld [vmem:[%s1040 + $0x88] sm:$0xff]
      %v1059 = vld [vmem:[%s1040 + $0x90] sm:$0xff]
      %v1060 = vld [vmem:[%s1040 + $0x98] sm:$0xff]
      %v1061 = vld [vmem:[%s1040 + $0xa0] sm:$0xff]
      %v1062 = vld [vmem:[%s1040 + $0xa8] sm:$0xff]
      %v1063 = vld [vmem:[%s1040 + $0xb0] sm:$0xff]
      %v1064 = vld [vmem:[%s1040 + $0xb8] sm:$0xff]
      %v1065 = vld [vmem:[%s1040 + $0xc0] sm:$0xff]
      %v1066 = vld [vmem:[%s1040 + $0xc8] sm:$0xff]
      %v1067 = vld [vmem:[%s1040 + $0xd0] sm:$0xff]
      %v1068 = vld [vmem:[%s1040 + $0xd8] sm:$0xff]
      %v1069 = vld [vmem:[%s1040 + $0xe0] sm:$0xff]
      %v1070 = vld [vmem:[%s1040 + $0xe8] sm:$0xff]
      %v1071 = vld [vmem:[%s1040 + $0xf0] sm:$0xff]
      %v1072 = vld [vmem:[%s1040 + $0xf8] sm:$0xff]
      %v1073 = vunpack.c.l.b16 %v669
      %v1074 = vunpack.c.h.b16 %v669
      %v1075 = vunpack.c.l.b16 %v679
      %v1076 = vunpack.c.h.b16 %v679
      %v1077 = vunpack.c.l.b16 %v693
      %v1078 = vunpack.c.h.b16 %v693
      %v1079 = vunpack.c.l.b16 %v703
      %v1080 = vunpack.c.h.b16 %v703
      %v1081 = vunpack.c.l.b16 %v717
      %v1082 = vunpack.c.h.b16 %v717
      %v1083 = vunpack.c.l.b16 %v727
      %v1084 = vunpack.c.h.b16 %v727
      %v1085 = vunpack.c.l.b16 %v741
      %v1086 = vunpack.c.h.b16 %v741
      %v1087 = vunpack.c.l.b16 %v751
      %v1088 = vunpack.c.h.b16 %v751
      %v1089 = vunpack.c.l.b16 %v765
      %v1090 = vunpack.c.h.b16 %v765
      %v1091 = vunpack.c.l.b16 %v775
      %v1092 = vunpack.c.h.b16 %v775
      %v1093 = vunpack.c.l.b16 %v789
      %v1094 = vunpack.c.h.b16 %v789
      %v1095 = vunpack.c.l.b16 %v799
      %v1096 = vunpack.c.h.b16 %v799
      %v1097 = vunpack.c.l.b16 %v813
      %v1098 = vunpack.c.h.b16 %v813
      %v1099 = vunpack.c.l.b16 %v823
      %v1100 = vunpack.c.h.b16 %v823
      %v1101 = vunpack.c.l.b16 %v837
      %v1102 = vunpack.c.h.b16 %v837
      %v1103 = vunpack.c.l.b16 %v847
      %v1104 = vunpack.c.h.b16 %v847
      %v1105 = vunpack.c.l.b16 %v861
      %v1106 = vunpack.c.h.b16 %v861
      %v1107 = vunpack.c.l.b16 %v871
      %v1108 = vunpack.c.h.b16 %v871
      %v1109 = vunpack.c.l.b16 %v885
      %v1110 = vunpack.c.h.b16 %v885
      %v1111 = vunpack.c.l.b16 %v895
      %v1112 = vunpack.c.h.b16 %v895
      %v1113 = vunpack.c.l.b16 %v909
      %v1114 = vunpack.c.h.b16 %v909
      %v1115 = vunpack.c.l.b16 %v919
      %v1116 = vunpack.c.h.b16 %v919
      %v1117 = vunpack.c.l.b16 %v933
      %v1118 = vunpack.c.h.b16 %v933
      %v1119 = vunpack.c.l.b16 %v943
      %v1120 = vunpack.c.h.b16 %v943
      %v1121 = vunpack.c.l.b16 %v957
      %v1122 = vunpack.c.h.b16 %v957
      %v1123 = vunpack.c.l.b16 %v967
      %v1124 = vunpack.c.h.b16 %v967
      %v1125 = vunpack.c.l.b16 %v981
      %v1126 = vunpack.c.h.b16 %v981
      %v1127 = vunpack.c.l.b16 %v991
      %v1128 = vunpack.c.h.b16 %v991
      %v1129 = vunpack.c.l.b16 %v1005
      %v1130 = vunpack.c.h.b16 %v1005
      %v1131 = vunpack.c.l.b16 %v1015
      %v1132 = vunpack.c.h.b16 %v1015
      %v1133 = vunpack.c.l.b16 %v1029
      %v1134 = vunpack.c.h.b16 %v1029
      %v1135 = vunpack.c.l.b16 %v1039
      %v1136 = vunpack.c.h.b16 %v1039
      %v1137 = vpack.c.b16 %v1075, %v1073
      %v1138 = vpack.c.b16 %v1076, %v1074
      %v1139 = vpack.c.b16 %v1079, %v1077
      %v1140 = vpack.c.b16 %v1080, %v1078
      %v1141 = vpack.c.b16 %v1083, %v1081
      %v1142 = vpack.c.b16 %v1084, %v1082
      %v1143 = vpack.c.b16 %v1087, %v1085
      %v1144 = vpack.c.b16 %v1088, %v1086
      %v1145 = vpack.c.b16 %v1091, %v1089
      %v1146 = vpack.c.b16 %v1092, %v1090
      %v1147 = vpack.c.b16 %v1095, %v1093
      %v1148 = vpack.c.b16 %v1096, %v1094
      %v1149 = vpack.c.b16 %v1099, %v1097
      %v1150 = vpack.c.b16 %v1100, %v1098
      %v1151 = vpack.c.b16 %v1103, %v1101
      %v1152 = vpack.c.b16 %v1104, %v1102
      %v1153 = vpack.c.b16 %v1107, %v1105
      %v1154 = vpack.c.b16 %v1108, %v1106
      %v1155 = vpack.c.b16 %v1111, %v1109
      %v1156 = vpack.c.b16 %v1112, %v1110
      %v1157 = vpack.c.b16 %v1115, %v1113
      %v1158 = vpack.c.b16 %v1116, %v1114
      %v1159 = vpack.c.b16 %v1119, %v1117
      %v1160 = vpack.c.b16 %v1120, %v1118
      %v1161 = vpack.c.b16 %v1123, %v1121
      %v1162 = vpack.c.b16 %v1124, %v1122
      %v1163 = vpack.c.b16 %v1127, %v1125
      %v1164 = vpack.c.b16 %v1128, %v1126
      %v1165 = vpack.c.b16 %v1131, %v1129
      %v1166 = vpack.c.b16 %v1132, %v1130
      %v1167 = vpack.c.b16 %v1135, %v1133
      %v1168 = vpack.c.b16 %v1136, %v1134
      %v1233 = vunpack.c.l.b16 %v1041
      %v1234 = vunpack.c.h.b16 %v1041
      %v1235 = vunpack.c.l.b16 %v1042
      %v1236 = vunpack.c.h.b16 %v1042
      %v1237 = vunpack.c.l.b16 %v1043
      %v1238 = vunpack.c.h.b16 %v1043
      %v1239 = vunpack.c.l.b16 %v1044
      %v1240 = vunpack.c.h.b16 %v1044
      %v1241 = vunpack.c.l.b16 %v1045
      %v1242 = vunpack.c.h.b16 %v1045
      %v1243 = vunpack.c.l.b16 %v1046
      %v1244 = vunpack.c.h.b16 %v1046
      %v1245 = vunpack.c.l.b16 %v1047
      %v1246 = vunpack.c.h.b16 %v1047
      %v1247 = vunpack.c.l.b16 %v1048
      %v1248 = vunpack.c.h.b16 %v1048
      %v1249 = vunpack.c.l.b16 %v1049
      %v1250 = vunpack.c.h.b16 %v1049
      %v1251 = vunpack.c.l.b16 %v1050
      %v1252 = vunpack.c.h.b16 %v1050
      %v1253 = vunpack.c.l.b16 %v1051
      %v1254 = vunpack.c.h.b16 %v1051
      %v1255 = vunpack.c.l.b16 %v1052
      %v1256 = vunpack.c.h.b16 %v1052
      %v1257 = vunpack.c.l.b16 %v1053
      %v1258 = vunpack.c.h.b16 %v1053
      %v1259 = vunpack.c.l.b16 %v1054
      %v1260 = vunpack.c.h.b16 %v1054
      %v1261 = vunpack.c.l.b16 %v1055
      %v1262 = vunpack.c.h.b16 %v1055
      %v1263 = vunpack.c.l.b16 %v1056
      %v1264 = vunpack.c.h.b16 %v1056
      %v1265 = vunpack.c.l.b16 %v1057
      %v1266 = vunpack.c.h.b16 %v1057
      %v1267 = vunpack.c.l.b16 %v1058
      %v1268 = vunpack.c.h.b16 %v1058
      %v1269 = vunpack.c.l.b16 %v1059
      %v1270 = vunpack.c.h.b16 %v1059
      %v1271 = vunpack.c.l.b16 %v1060
      %v1272 = vunpack.c.h.b16 %v1060
      %v1273 = vunpack.c.l.b16 %v1061
      %v1274 = vunpack.c.h.b16 %v1061
      %v1275 = vunpack.c.l.b16 %v1062
      %v1276 = vunpack.c.h.b16 %v1062
      %v1277 = vunpack.c.l.b16 %v1063
      %v1278 = vunpack.c.h.b16 %v1063
      %v1279 = vunpack.c.l.b16 %v1064
      %v1280 = vunpack.c.h.b16 %v1064
      %v1281 = vunpack.c.l.b16 %v1065
      %v1282 = vunpack.c.h.b16 %v1065
      %v1283 = vunpack.c.l.b16 %v1066
      %v1284 = vunpack.c.h.b16 %v1066
      %v1285 = vunpack.c.l.b16 %v1067
      %v1286 = vunpack.c.h.b16 %v1067
      %v1287 = vunpack.c.l.b16 %v1068
      %v1288 = vunpack.c.h.b16 %v1068
      %v1289 = vunpack.c.l.b16 %v1069
      %v1290 = vunpack.c.h.b16 %v1069
      %v1291 = vunpack.c.l.b16 %v1070
      %v1292 = vunpack.c.h.b16 %v1070
      %v1293 = vunpack.c.l.b16 %v1071
      %v1294 = vunpack.c.h.b16 %v1071
      %v1295 = vunpack.c.l.b16 %v1072
      %v1296 = vunpack.c.h.b16 %v1072
      %v1297 = vpack.c.b16 %v1235, %v1233
      %v1298 = vpack.c.b16 %v1236, %v1234
      %v1299 = vpack.c.b16 %v1239, %v1237
      %v1300 = vpack.c.b16 %v1240, %v1238
      %v1301 = vpack.c.b16 %v1243, %v1241
      %v1302 = vpack.c.b16 %v1244, %v1242
      %v1303 = vpack.c.b16 %v1247, %v1245
      %v1304 = vpack.c.b16 %v1248, %v1246
      %v1305 = vpack.c.b16 %v1251, %v1249
      %v1306 = vpack.c.b16 %v1252, %v1250
      %v1307 = vpack.c.b16 %v1255, %v1253
      %v1308 = vpack.c.b16 %v1256, %v1254
      %v1309 = vpack.c.b16 %v1259, %v1257
      %v1310 = vpack.c.b16 %v1260, %v1258
      %v1311 = vpack.c.b16 %v1263, %v1261
      %v1312 = vpack.c.b16 %v1264, %v1262
      %v1313 = vpack.c.b16 %v1267, %v1265
      %v1314 = vpack.c.b16 %v1268, %v1266
      %v1315 = vpack.c.b16 %v1271, %v1269
      %v1316 = vpack.c.b16 %v1272, %v1270
      %v1317 = vpack.c.b16 %v1275, %v1273
      %v1318 = vpack.c.b16 %v1276, %v1274
      %v1319 = vpack.c.b16 %v1279, %v1277
      %v1320 = vpack.c.b16 %v1280, %v1278
      %v1321 = vpack.c.b16 %v1283, %v1281
      %v1322 = vpack.c.b16 %v1284, %v1282
      %v1323 = vpack.c.b16 %v1287, %v1285
      %v1324 = vpack.c.b16 %v1288, %v1286
      %v1325 = vpack.c.b16 %v1291, %v1289
      %v1326 = vpack.c.b16 %v1292, %v1290
      %v1327 = vpack.c.b16 %v1295, %v1293
      %v1328 = vpack.c.b16 %v1296, %v1294
      %1361 = vmatprep.subr.bf16.mxu0 %v1298
      %1362 = vmatpush1.bf16.msra.mxu0 %v1297
      %1363 = vmatprep.subr.bf16.mxu0 %v1300
      %1364 = vmatpush1.bf16.msra.mxu0 %v1299
      %1365 = vmatprep.subr.bf16.mxu0 %v1302
      %1366 = vmatpush1.bf16.msra.mxu0 %v1301
      %1367 = vmatprep.subr.bf16.mxu0 %v1304
      %1368 = vmatpush1.bf16.msra.mxu0 %v1303
      %1369 = vmatprep.subr.bf16.mxu0 %v1306
      %1370 = vmatpush1.bf16.msra.mxu0 %v1305
      %1371 = vmatprep.subr.bf16.mxu0 %v1308
      %1372 = vmatpush1.bf16.msra.mxu0 %v1307
      %1373 = vmatprep.subr.bf16.mxu0 %v1310
      %1374 = vmatpush1.bf16.msra.mxu0 %v1309
      %1375 = vmatprep.subr.bf16.mxu0 %v1312
      %1376 = vmatpush1.bf16.msra.mxu0 %v1311
      %1377 = vmatprep.subr.bf16.mxu0 %v1314
      %1378 = vmatpush1.bf16.msra.mxu0 %v1313
      %1379 = vmatprep.subr.bf16.mxu0 %v1316
      %1380 = vmatpush1.bf16.msra.mxu0 %v1315
      %1381 = vmatprep.subr.bf16.mxu0 %v1318
      %1382 = vmatpush1.bf16.msra.mxu0 %v1317
      %1383 = vmatprep.subr.bf16.mxu0 %v1320
      %1384 = vmatpush1.bf16.msra.mxu0 %v1319
      %1385 = vmatprep.subr.bf16.mxu0 %v1322
      %1386 = vmatpush1.bf16.msra.mxu0 %v1321
      %1387 = vmatprep.subr.bf16.mxu0 %v1324
      %1388 = vmatpush1.bf16.msra.mxu0 %v1323
      %1389 = vmatprep.subr.bf16.mxu0 %v1326
      %1390 = vmatpush1.bf16.msra.mxu0 %v1325
      %1391 = vmatprep.subr.bf16.mxu0 %v1328
      %1392 = vmatpush1.bf16.msra.mxu0 %v1327
      %1393 = vmatprep.mubr.bf16.mxu0 %v1138
      %1394 = vmatmul.mubr.bf16.gmra.mrb[0].mxu0 %v1137
      %v1395 = vpop.f32.mrb[0].mxu0
      %v1396 = vadd.f32 0.0, %v1395
      %v1397 = vpop.f32.mrb[0].mxu0
      %v1398 = vadd.f32 0.0, %v1397
      %v1399 = vpop.f32.mrb[0].mxu0
      %v1400 = vadd.f32 0.0, %v1399
      %v1401 = vpop.f32.mrb[0].mxu0
      %v1402 = vadd.f32 0.0, %v1401
      %1403 = vmatprep.mubr.bf16.mxu0 %v1140
      %1404 = vmatmul.mubr.bf16.gmra.mrb[0].mxu0 %v1139
      %v1405 = vpop.f32.mrb[0].mxu0
      %v1406 = vadd.f32 0.0, %v1405
      %v1407 = vpop.f32.mrb[0].mxu0
      %v1408 = vadd.f32 0.0, %v1407
      %v1409 = vpop.f32.mrb[0].mxu0
      %v1410 = vadd.f32 0.0, %v1409
      %v1411 = vpop.f32.mrb[0].mxu0
      %v1412 = vadd.f32 0.0, %v1411
      %1413 = vmatprep.mubr.bf16.mxu0 %v1142
      %1414 = vmatmul.mubr.bf16.gmra.mrb[0].mxu0 %v1141
      %v1415 = vpop.f32.mrb[0].mxu0
      %v1416 = vadd.f32 0.0, %v1415
      %v1417 = vpop.f32.mrb[0].mxu0
      %v1418 = vadd.f32 0.0, %v1417
      %v1419 = vpop.f32.mrb[0].mxu0
      %v1420 = vadd.f32 0.0, %v1419
      %v1421 = vpop.f32.mrb[0].mxu0
      %v1422 = vadd.f32 0.0, %v1421
      %1423 = vmatprep.mubr.bf16.mxu0 %v1144
      %1424 = vmatmul.mubr.bf16.gmra.mrb[0].mxu0 %v1143
      %v1425 = vpop.f32.mrb[0].mxu0
      %v1426 = vadd.f32 0.0, %v1425
      %v1427 = vpop.f32.mrb[0].mxu0
      %v1428 = vadd.f32 0.0, %v1427
      %v1429 = vpop.f32.mrb[0].mxu0
      %v1430 = vadd.f32 0.0, %v1429
      %v1431 = vpop.f32.mrb[0].mxu0
      %v1432 = vadd.f32 0.0, %v1431
      %1433 = vmatprep.mubr.bf16.mxu0 %v1146
      %1434 = vmatmul.mubr.bf16.gmra.mrb[0].mxu0 %v1145
      %v1435 = vpop.f32.mrb[0].mxu0
      %v1436 = vadd.f32 0.0, %v1435
      %v1437 = vpop.f32.mrb[0].mxu0
      %v1438 = vadd.f32 0.0, %v1437
      %v1439 = vpop.f32.mrb[0].mxu0
      %v1440 = vadd.f32 0.0, %v1439
      %v1441 = vpop.f32.mrb[0].mxu0
      %v1442 = vadd.f32 0.0, %v1441
      %1443 = vmatprep.mubr.bf16.mxu0 %v1148
      %1444 = vmatmul.mubr.bf16.gmra.mrb[0].mxu0 %v1147
      %v1445 = vpop.f32.mrb[0].mxu0
      %v1446 = vadd.f32 0.0, %v1445
      %v1447 = vpop.f32.mrb[0].mxu0
      %v1448 = vadd.f32 0.0, %v1447
      %v1449 = vpop.f32.mrb[0].mxu0
      %v1450 = vadd.f32 0.0, %v1449
      %v1451 = vpop.f32.mrb[0].mxu0
      %v1452 = vadd.f32 0.0, %v1451
      %1453 = vmatprep.mubr.bf16.mxu0 %v1150
      %1454 = vmatmul.mubr.bf16.gmra.mrb[0].mxu0 %v1149
      %v1455 = vpop.f32.mrb[0].mxu0
      %v1456 = vadd.f32 0.0, %v1455
      %v1457 = vpop.f32.mrb[0].mxu0
      %v1458 = vadd.f32 0.0, %v1457
      %v1459 = vpop.f32.mrb[0].mxu0
      %v1460 = vadd.f32 0.0, %v1459
      %v1461 = vpop.f32.mrb[0].mxu0
      %v1462 = vadd.f32 0.0, %v1461
      %1463 = vmatprep.mubr.bf16.mxu0 %v1152
      %1464 = vmatmul.mubr.bf16.gmra.mrb[0].mxu0 %v1151
      %v1465 = vpop.f32.mrb[0].mxu0
      %v1466 = vadd.f32 0.0, %v1465
      %v1467 = vpop.f32.mrb[0].mxu0
      %v1468 = vadd.f32 0.0, %v1467
      %v1469 = vpop.f32.mrb[0].mxu0
      %v1470 = vadd.f32 0.0, %v1469
      %v1471 = vpop.f32.mrb[0].mxu0
      %v1472 = vadd.f32 0.0, %v1471
      %1473 = vmatprep.mubr.bf16.mxu0 %v1154
      %1474 = vmatmul.mubr.bf16.gmra.mrb[0].mxu0 %v1153
      %v1475 = vpop.f32.mrb[0].mxu0
      %v1476 = vadd.f32 0.0, %v1475
      %v1477 = vpop.f32.mrb[0].mxu0
      %v1478 = vadd.f32 0.0, %v1477
      %v1479 = vpop.f32.mrb[0].mxu0
      %v1480 = vadd.f32 0.0, %v1479
      %v1481 = vpop.f32.mrb[0].mxu0
      %v1482 = vadd.f32 0.0, %v1481
      %1483 = vmatprep.mubr.bf16.mxu0 %v1156
      %1484 = vmatmul.mubr.bf16.gmra.mrb[0].mxu0 %v1155
      %v1485 = vpop.f32.mrb[0].mxu0
      %v1486 = vadd.f32 0.0, %v1485
      %v1487 = vpop.f32.mrb[0].mxu0
      %v1488 = vadd.f32 0.0, %v1487
      %v1489 = vpop.f32.mrb[0].mxu0
      %v1490 = vadd.f32 0.0, %v1489
      %v1491 = vpop.f32.mrb[0].mxu0
      %v1492 = vadd.f32 0.0, %v1491
      %1493 = vmatprep.mubr.bf16.mxu0 %v1158
      %1494 = vmatmul.mubr.bf16.gmra.mrb[0].mxu0 %v1157
      %v1495 = vpop.f32.mrb[0].mxu0
      %v1496 = vadd.f32 0.0, %v1495
      %v1497 = vpop.f32.mrb[0].mxu0
      %v1498 = vadd.f32 0.0, %v1497
      %v1499 = vpop.f32.mrb[0].mxu0
      %v1500 = vadd.f32 0.0, %v1499
      %v1501 = vpop.f32.mrb[0].mxu0
      %v1502 = vadd.f32 0.0, %v1501
      %1503 = vmatprep.mubr.bf16.mxu0 %v1160
      %1504 = vmatmul.mubr.bf16.gmra.mrb[0].mxu0 %v1159
      %v1505 = vpop.f32.mrb[0].mxu0
      %v1506 = vadd.f32 0.0, %v1505
      %v1507 = vpop.f32.mrb[0].mxu0
      %v1508 = vadd.f32 0.0, %v1507
      %v1509 = vpop.f32.mrb[0].mxu0
      %v1510 = vadd.f32 0.0, %v1509
      %v1511 = vpop.f32.mrb[0].mxu0
      %v1512 = vadd.f32 0.0, %v1511
      %1513 = vmatprep.mubr.bf16.mxu0 %v1162
      %1514 = vmatmul.mubr.bf16.gmra.mrb[0].mxu0 %v1161
      %v1515 = vpop.f32.mrb[0].mxu0
      %v1516 = vadd.f32 0.0, %v1515
      %v1517 = vpop.f32.mrb[0].mxu0
      %v1518 = vadd.f32 0.0, %v1517
      %v1519 = vpop.f32.mrb[0].mxu0
      %v1520 = vadd.f32 0.0, %v1519
      %v1521 = vpop.f32.mrb[0].mxu0
      %v1522 = vadd.f32 0.0, %v1521
      %1523 = vmatprep.mubr.bf16.mxu0 %v1164
      %1524 = vmatmul.mubr.bf16.gmra.mrb[0].mxu0 %v1163
      %v1525 = vpop.f32.mrb[0].mxu0
      %v1526 = vadd.f32 0.0, %v1525
      %v1527 = vpop.f32.mrb[0].mxu0
      %v1528 = vadd.f32 0.0, %v1527
      %v1529 = vpop.f32.mrb[0].mxu0
      %v1530 = vadd.f32 0.0, %v1529
      %v1531 = vpop.f32.mrb[0].mxu0
      %v1532 = vadd.f32 0.0, %v1531
      %1533 = vmatprep.mubr.bf16.mxu0 %v1166
      %1534 = vmatmul.mubr.bf16.gmra.mrb[0].mxu0 %v1165
      %v1535 = vpop.f32.mrb[0].mxu0
      %v1536 = vadd.f32 0.0, %v1535
      %v1537 = vpop.f32.mrb[0].mxu0
      %v1538 = vadd.f32 0.0, %v1537
      %v1539 = vpop.f32.mrb[0].mxu0
      %v1540 = vadd.f32 0.0, %v1539
      %v1541 = vpop.f32.mrb[0].mxu0
      %v1542 = vadd.f32 0.0, %v1541
      %1543 = vmatprep.mubr.bf16.mxu0 %v1168
      %1544 = vmatmul.mubr.bf16.gmra.mrb[0].mxu0 %v1167
      %v1545 = vpop.f32.mrb[0].mxu0
      %v1546 = vadd.f32 0.0, %v1545
      %v1547 = vpop.f32.mrb[0].mxu0
      %v1548 = vadd.f32 0.0, %v1547
      %v1549 = vpop.f32.mrb[0].mxu0
      %v1550 = vadd.f32 0.0, %v1549
      %v1551 = vpop.f32.mrb[0].mxu0
      %v1552 = vadd.f32 0.0, %v1551
      %1553 = vdwg.mxu0
      %v1586 = vunpack.c.l.b16 %v567
      %v1587 = vunpack.c.h.b16 %v567
      %v1588 = vunpack.c.l.b16 %v568
      %v1589 = vunpack.c.h.b16 %v568
      %v1590 = vunpack.c.l.b16 %v570
      %v1591 = vunpack.c.h.b16 %v570
      %v1592 = vunpack.c.l.b16 %v571
      %v1593 = vunpack.c.h.b16 %v571
      %v1594 = vunpack.c.l.b16 %v573
      %v1595 = vunpack.c.h.b16 %v573
      %v1596 = vunpack.c.l.b16 %v574
      %v1597 = vunpack.c.h.b16 %v574
      %v1598 = vunpack.c.l.b16 %v576
      %v1599 = vunpack.c.h.b16 %v576
      %v1600 = vunpack.c.l.b16 %v577
      %v1601 = vunpack.c.h.b16 %v577
      %v1602 = vunpack.c.l.b16 %v579
      %v1603 = vunpack.c.h.b16 %v579
      %v1604 = vunpack.c.l.b16 %v580
      %v1605 = vunpack.c.h.b16 %v580
      %v1606 = vunpack.c.l.b16 %v582
      %v1607 = vunpack.c.h.b16 %v582
      %v1608 = vunpack.c.l.b16 %v583
      %v1609 = vunpack.c.h.b16 %v583
      %v1610 = vunpack.c.l.b16 %v585
      %v1611 = vunpack.c.h.b16 %v585
      %v1612 = vunpack.c.l.b16 %v586
      %v1613 = vunpack.c.h.b16 %v586
      %v1614 = vunpack.c.l.b16 %v588
      %v1615 = vunpack.c.h.b16 %v588
      %v1616 = vunpack.c.l.b16 %v589
      %v1617 = vunpack.c.h.b16 %v589
      %v1618 = vunpack.c.l.b16 %v591
      %v1619 = vunpack.c.h.b16 %v591
      %v1620 = vunpack.c.l.b16 %v592
      %v1621 = vunpack.c.h.b16 %v592
      %v1622 = vunpack.c.l.b16 %v594
      %v1623 = vunpack.c.h.b16 %v594
      %v1624 = vunpack.c.l.b16 %v595
      %v1625 = vunpack.c.h.b16 %v595
      %v1626 = vunpack.c.l.b16 %v597
      %v1627 = vunpack.c.h.b16 %v597
      %v1628 = vunpack.c.l.b16 %v598
      %v1629 = vunpack.c.h.b16 %v598
      %v1630 = vunpack.c.l.b16 %v600
      %v1631 = vunpack.c.h.b16 %v600
      %v1632 = vunpack.c.l.b16 %v601
      %v1633 = vunpack.c.h.b16 %v601
      %v1634 = vunpack.c.l.b16 %v603
      %v1635 = vunpack.c.h.b16 %v603
      %v1636 = vunpack.c.l.b16 %v604
      %v1637 = vunpack.c.h.b16 %v604
      %v1638 = vunpack.c.l.b16 %v606
      %v1639 = vunpack.c.h.b16 %v606
      %v1640 = vunpack.c.l.b16 %v607
      %v1641 = vunpack.c.h.b16 %v607
      %v1642 = vunpack.c.l.b16 %v609
      %v1643 = vunpack.c.h.b16 %v609
      %v1644 = vunpack.c.l.b16 %v610
      %v1645 = vunpack.c.h.b16 %v610
      %v1646 = vunpack.c.l.b16 %v612
      %v1647 = vunpack.c.h.b16 %v612
      %v1648 = vunpack.c.l.b16 %v613
      %v1649 = vunpack.c.h.b16 %v613
      %v1650 = vpack.c.b16 %v1588, %v1586
      %v1651 = vpack.c.b16 %v1589, %v1587
      %v1652 = vpack.c.b16 %v1592, %v1590
      %v1653 = vpack.c.b16 %v1593, %v1591
      %v1654 = vpack.c.b16 %v1596, %v1594
      %v1655 = vpack.c.b16 %v1597, %v1595
      %v1656 = vpack.c.b16 %v1600, %v1598
      %v1657 = vpack.c.b16 %v1601, %v1599
      %v1658 = vpack.c.b16 %v1604, %v1602
      %v1659 = vpack.c.b16 %v1605, %v1603
      %v1660 = vpack.c.b16 %v1608, %v1606
      %v1661 = vpack.c.b16 %v1609, %v1607
      %v1662 = vpack.c.b16 %v1612, %v1610
      %v1663 = vpack.c.b16 %v1613, %v1611
      %v1664 = vpack.c.b16 %v1616, %v1614
      %v1665 = vpack.c.b16 %v1617, %v1615
      %v1666 = vpack.c.b16 %v1620, %v1618
      %v1667 = vpack.c.b16 %v1621, %v1619
      %v1668 = vpack.c.b16 %v1624, %v1622
      %v1669 = vpack.c.b16 %v1625, %v1623
      %v1670 = vpack.c.b16 %v1628, %v1626
      %v1671 = vpack.c.b16 %v1629, %v1627
      %v1672 = vpack.c.b16 %v1632, %v1630
      %v1673 = vpack.c.b16 %v1633, %v1631
      %v1674 = vpack.c.b16 %v1636, %v1634
      %v1675 = vpack.c.b16 %v1637, %v1635
      %v1676 = vpack.c.b16 %v1640, %v1638
      %v1677 = vpack.c.b16 %v1641, %v1639
      %v1678 = vpack.c.b16 %v1644, %v1642
      %v1679 = vpack.c.b16 %v1645, %v1643
      %v1680 = vpack.c.b16 %v1648, %v1646
      %v1681 = vpack.c.b16 %v1649, %v1647
      %v1746 = vunpack.c.l.b16 %v621
      %v1747 = vunpack.c.h.b16 %v621
      %v1748 = vunpack.c.l.b16 %v622
      %v1749 = vunpack.c.h.b16 %v622
      %v1750 = vunpack.c.l.b16 %v623
      %v1751 = vunpack.c.h.b16 %v623
      %v1752 = vunpack.c.l.b16 %v624
      %v1753 = vunpack.c.h.b16 %v624
      %v1754 = vunpack.c.l.b16 %v625
      %v1755 = vunpack.c.h.b16 %v625
      %v1756 = vunpack.c.l.b16 %v626
      %v1757 = vunpack.c.h.b16 %v626
      %v1758 = vunpack.c.l.b16 %v627
      %v1759 = vunpack.c.h.b16 %v627
      %v1760 = vunpack.c.l.b16 %v628
      %v1761 = vunpack.c.h.b16 %v628
      %v1762 = vunpack.c.l.b16 %v629
      %v1763 = vunpack.c.h.b16 %v629
      %v1764 = vunpack.c.l.b16 %v630
      %v1765 = vunpack.c.h.b16 %v630
      %v1766 = vunpack.c.l.b16 %v631
      %v1767 = vunpack.c.h.b16 %v631
      %v1768 = vunpack.c.l.b16 %v632
      %v1769 = vunpack.c.h.b16 %v632
      %v1770 = vunpack.c.l.b16 %v633
      %v1771 = vunpack.c.h.b16 %v633
      %v1772 = vunpack.c.l.b16 %v634
      %v1773 = vunpack.c.h.b16 %v634
      %v1774 = vunpack.c.l.b16 %v635
      %v1775 = vunpack.c.h.b16 %v635
      %v1776 = vunpack.c.l.b16 %v636
      %v1777 = vunpack.c.h.b16 %v636
      %v1778 = vunpack.c.l.b16 %v637
      %v1779 = vunpack.c.h.b16 %v637
      %v1780 = vunpack.c.l.b16 %v638
      %v1781 = vunpack.c.h.b16 %v638
      %v1782 = vunpack.c.l.b16 %v639
      %v1783 = vunpack.c.h.b16 %v639
      %v1784 = vunpack.c.l.b16 %v640
      %v1785 = vunpack.c.h.b16 %v640
      %v1786 = vunpack.c.l.b16 %v641
      %v1787 = vunpack.c.h.b16 %v641
      %v1788 = vunpack.c.l.b16 %v642
      %v1789 = vunpack.c.h.b16 %v642
      %v1790 = vunpack.c.l.b16 %v643
      %v1791 = vunpack.c.h.b16 %v643
      %v1792 = vunpack.c.l.b16 %v644
      %v1793 = vunpack.c.h.b16 %v644
      %v1794 = vunpack.c.l.b16 %v645
      %v1795 = vunpack.c.h.b16 %v645
      %v1796 = vunpack.c.l.b16 %v646
      %v1797 = vunpack.c.h.b16 %v646
      %v1798 = vunpack.c.l.b16 %v647
      %v1799 = vunpack.c.h.b16 %v647
      %v1800 = vunpack.c.l.b16 %v648
      %v1801 = vunpack.c.h.b16 %v648
      %v1802 = vunpack.c.l.b16 %v649
      %v1803 = vunpack.c.h.b16 %v649
      %v1804 = vunpack.c.l.b16 %v650
      %v1805 = vunpack.c.h.b16 %v650
      %v1806 = vunpack.c.l.b16 %v651
      %v1807 = vunpack.c.h.b16 %v651
      %v1808 = vunpack.c.l.b16 %v652
      %v1809 = vunpack.c.h.b16 %v652
      %v1810 = vpack.c.b16 %v1748, %v1746
      %v1811 = vpack.c.b16 %v1749, %v1747
      %v1812 = vpack.c.b16 %v1752, %v1750
      %v1813 = vpack.c.b16 %v1753, %v1751
      %v1814 = vpack.c.b16 %v1756, %v1754
      %v1815 = vpack.c.b16 %v1757, %v1755
      %v1816 = vpack.c.b16 %v1760, %v1758
      %v1817 = vpack.c.b16 %v1761, %v1759
      %v1818 = vpack.c.b16 %v1764, %v1762
      %v1819 = vpack.c.b16 %v1765, %v1763
      %v1820 = vpack.c.b16 %v1768, %v1766
      %v1821 = vpack.c.b16 %v1769, %v1767
      %v1822 = vpack.c.b16 %v1772, %v1770
      %v1823 = vpack.c.b16 %v1773, %v1771
      %v1824 = vpack.c.b16 %v1776, %v1774
      %v1825 = vpack.c.b16 %v1777, %v1775
      %v1826 = vpack.c.b16 %v1780, %v1778
      %v1827 = vpack.c.b16 %v1781, %v1779
      %v1828 = vpack.c.b16 %v1784, %v1782
      %v1829 = vpack.c.b16 %v1785, %v1783
      %v1830 = vpack.c.b16 %v1788, %v1786
      %v1831 = vpack.c.b16 %v1789, %v1787
      %v1832 = vpack.c.b16 %v1792, %v1790
      %v1833 = vpack.c.b16 %v1793, %v1791
      %v1834 = vpack.c.b16 %v1796, %v1794
      %v1835 = vpack.c.b16 %v1797, %v1795
      %v1836 = vpack.c.b16 %v1800, %v1798
      %v1837 = vpack.c.b16 %v1801, %v1799
      %v1838 = vpack.c.b16 %v1804, %v1802
      %v1839 = vpack.c.b16 %v1805, %v1803
      %v1840 = vpack.c.b16 %v1808, %v1806
      %v1841 = vpack.c.b16 %v1809, %v1807
      %1874 = vmatprep.subr.bf16.mxu0 %v1811
      %1875 = vmatpush1.bf16.msra.mxu0 %v1810
      %1876 = vmatprep.subr.bf16.mxu0 %v1813
      %1877 = vmatpush1.bf16.msra.mxu0 %v1812
      %1878 = vmatprep.subr.bf16.mxu0 %v1815
      %1879 = vmatpush1.bf16.msra.mxu0 %v1814
      %1880 = vmatprep.subr.bf16.mxu0 %v1817
      %1881 = vmatpush1.bf16.msra.mxu0 %v1816
      %1882 = vmatprep.subr.bf16.mxu0 %v1819
      %1883 = vmatpush1.bf16.msra.mxu0 %v1818
      %1884 = vmatprep.subr.bf16.mxu0 %v1821
      %1885 = vmatpush1.bf16.msra.mxu0 %v1820
      %1886 = vmatprep.subr.bf16.mxu0 %v1823
      %1887 = vmatpush1.bf16.msra.mxu0 %v1822
      %1888 = vmatprep.subr.bf16.mxu0 %v1825
      %1889 = vmatpush1.bf16.msra.mxu0 %v1824
      %1890 = vmatprep.subr.bf16.mxu0 %v1827
      %1891 = vmatpush1.bf16.msra.mxu0 %v1826
      %1892 = vmatprep.subr.bf16.mxu0 %v1829
      %1893 = vmatpush1.bf16.msra.mxu0 %v1828
      %1894 = vmatprep.subr.bf16.mxu0 %v1831
      %1895 = vmatpush1.bf16.msra.mxu0 %v1830
      %1896 = vmatprep.subr.bf16.mxu0 %v1833
      %1897 = vmatpush1.bf16.msra.mxu0 %v1832
      %1898 = vmatprep.subr.bf16.mxu0 %v1835
      %1899 = vmatpush1.bf16.msra.mxu0 %v1834
      %1900 = vmatprep.subr.bf16.mxu0 %v1837
      %1901 = vmatpush1.bf16.msra.mxu0 %v1836
      %1902 = vmatprep.subr.bf16.mxu0 %v1839
      %1903 = vmatpush1.bf16.msra.mxu0 %v1838
      %1904 = vmatprep.subr.bf16.mxu0 %v1841
      %1905 = vmatpush1.bf16.msra.mxu0 %v1840
      %1906 = vmatprep.mubr.bf16.mxu0 %v1651
      %1907 = vmatmul.mubr.bf16.gmra.mrb[0].mxu0 %v1650
      %v1908 = vpop.f32.mrb[0].mxu0
      %v1909 = vadd.f32 %v1396, %v1908
      %v1910 = vpop.f32.mrb[0].mxu0
      %v1911 = vadd.f32 %v1398, %v1910
      %v1912 = vpop.f32.mrb[0].mxu0
      %v1913 = vadd.f32 %v1400, %v1912
      %v1914 = vpop.f32.mrb[0].mxu0
      %v1915 = vadd.f32 %v1402, %v1914
      %1916 = vmatprep.mubr.bf16.mxu0 %v1653
      %1917 = vmatmul.mubr.bf16.gmra.mrb[0].mxu0 %v1652
      %v1918 = vpop.f32.mrb[0].mxu0
      %v1919 = vadd.f32 %v1406, %v1918
      %v1920 = vpop.f32.mrb[0].mxu0
      %v1921 = vadd.f32 %v1408, %v1920
      %v1922 = vpop.f32.mrb[0].mxu0
      %v1923 = vadd.f32 %v1410, %v1922
      %v1924 = vpop.f32.mrb[0].mxu0
      %v1925 = vadd.f32 %v1412, %v1924
      %1926 = vmatprep.mubr.bf16.mxu0 %v1655
      %1927 = vmatmul.mubr.bf16.gmra.mrb[0].mxu0 %v1654
      %v1928 = vpop.f32.mrb[0].mxu0
      %v1929 = vadd.f32 %v1416, %v1928
      %v1930 = vpop.f32.mrb[0].mxu0
      %v1931 = vadd.f32 %v1418, %v1930
      %v1932 = vpop.f32.mrb[0].mxu0
      %v1933 = vadd.f32 %v1420, %v1932
      %v1934 = vpop.f32.mrb[0].mxu0
      %v1935 = vadd.f32 %v1422, %v1934
      %1936 = vmatprep.mubr.bf16.mxu0 %v1657
      %1937 = vmatmul.mubr.bf16.gmra.mrb[0].mxu0 %v1656
      %v1938 = vpop.f32.mrb[0].mxu0
      %v1939 = vadd.f32 %v1426, %v1938
      %v1940 = vpop.f32.mrb[0].mxu0
      %v1941 = vadd.f32 %v1428, %v1940
      %v1942 = vpop.f32.mrb[0].mxu0
      %v1943 = vadd.f32 %v1430, %v1942
      %v1944 = vpop.f32.mrb[0].mxu0
      %v1945 = vadd.f32 %v1432, %v1944
      %1946 = vmatprep.mubr.bf16.mxu0 %v1659
      %1947 = vmatmul.mubr.bf16.gmra.mrb[0].mxu0 %v1658
      %v1948 = vpop.f32.mrb[0].mxu0
      %v1949 = vadd.f32 %v1436, %v1948
      %v1950 = vpop.f32.mrb[0].mxu0
      %v1951 = vadd.f32 %v1438, %v1950
      %v1952 = vpop.f32.mrb[0].mxu0
      %v1953 = vadd.f32 %v1440, %v1952
      %v1954 = vpop.f32.mrb[0].mxu0
      %v1955 = vadd.f32 %v1442, %v1954
      %1956 = vmatprep.mubr.bf16.mxu0 %v1661
      %1957 = vmatmul.mubr.bf16.gmra.mrb[0].mxu0 %v1660
      %v1958 = vpop.f32.mrb[0].mxu0
      %v1959 = vadd.f32 %v1446, %v1958
      %v1960 = vpop.f32.mrb[0].mxu0
      %v1961 = vadd.f32 %v1448, %v1960
      %v1962 = vpop.f32.mrb[0].mxu0
      %v1963 = vadd.f32 %v1450, %v1962
      %v1964 = vpop.f32.mrb[0].mxu0
      %v1965 = vadd.f32 %v1452, %v1964
      %1966 = vmatprep.mubr.bf16.mxu0 %v1663
      %1967 = vmatmul.mubr.bf16.gmra.mrb[0].mxu0 %v1662
      %v1968 = vpop.f32.mrb[0].mxu0
      %v1969 = vadd.f32 %v1456, %v1968
      %v1970 = vpop.f32.mrb[0].mxu0
      %v1971 = vadd.f32 %v1458, %v1970
      %v1972 = vpop.f32.mrb[0].mxu0
      %v1973 = vadd.f32 %v1460, %v1972
      %v1974 = vpop.f32.mrb[0].mxu0
      %v1975 = vadd.f32 %v1462, %v1974
      %1976 = vmatprep.mubr.bf16.mxu0 %v1665
      %1977 = vmatmul.mubr.bf16.gmra.mrb[0].mxu0 %v1664
      %v1978 = vpop.f32.mrb[0].mxu0
      %v1979 = vadd.f32 %v1466, %v1978
      %v1980 = vpop.f32.mrb[0].mxu0
      %v1981 = vadd.f32 %v1468, %v1980
      %v1982 = vpop.f32.mrb[0].mxu0
      %v1983 = vadd.f32 %v1470, %v1982
      %v1984 = vpop.f32.mrb[0].mxu0
      %v1985 = vadd.f32 %v1472, %v1984
      %1986 = vmatprep.mubr.bf16.mxu0 %v1667
      %1987 = vmatmul.mubr.bf16.gmra.mrb[0].mxu0 %v1666
      %v1988 = vpop.f32.mrb[0].mxu0
      %v1989 = vadd.f32 %v1476, %v1988
      %v1990 = vpop.f32.mrb[0].mxu0
      %v1991 = vadd.f32 %v1478, %v1990
      %v1992 = vpop.f32.mrb[0].mxu0
      %v1993 = vadd.f32 %v1480, %v1992
      %v1994 = vpop.f32.mrb[0].mxu0
      %v1995 = vadd.f32 %v1482, %v1994
      %1996 = vmatprep.mubr.bf16.mxu0 %v1669
      %1997 = vmatmul.mubr.bf16.gmra.mrb[0].mxu0 %v1668
      %v1998 = vpop.f32.mrb[0].mxu0
      %v1999 = vadd.f32 %v1486, %v1998
      %v2000 = vpop.f32.mrb[0].mxu0
      %v2001 = vadd.f32 %v1488, %v2000
      %v2002 = vpop.f32.mrb[0].mxu0
      %v2003 = vadd.f32 %v1490, %v2002
      %v2004 = vpop.f32.mrb[0].mxu0
      %v2005 = vadd.f32 %v1492, %v2004
      %2006 = vmatprep.mubr.bf16.mxu0 %v1671
      %2007 = vmatmul.mubr.bf16.gmra.mrb[0].mxu0 %v1670
      %v2008 = vpop.f32.mrb[0].mxu0
      %v2009 = vadd.f32 %v1496, %v2008
      %v2010 = vpop.f32.mrb[0].mxu0
      %v2011 = vadd.f32 %v1498, %v2010
      %v2012 = vpop.f32.mrb[0].mxu0
      %v2013 = vadd.f32 %v1500, %v2012
      %v2014 = vpop.f32.mrb[0].mxu0
      %v2015 = vadd.f32 %v1502, %v2014
      %2016 = vmatprep.mubr.bf16.mxu0 %v1673
      %2017 = vmatmul.mubr.bf16.gmra.mrb[0].mxu0 %v1672
      %v2018 = vpop.f32.mrb[0].mxu0
      %v2019 = vadd.f32 %v1506, %v2018
      %v2020 = vpop.f32.mrb[0].mxu0
      %v2021 = vadd.f32 %v1508, %v2020
      %v2022 = vpop.f32.mrb[0].mxu0
      %v2023 = vadd.f32 %v1510, %v2022
      %v2024 = vpop.f32.mrb[0].mxu0
      %v2025 = vadd.f32 %v1512, %v2024
      %2026 = vmatprep.mubr.bf16.mxu0 %v1675
      %2027 = vmatmul.mubr.bf16.gmra.mrb[0].mxu0 %v1674
      %v2028 = vpop.f32.mrb[0].mxu0
      %v2029 = vadd.f32 %v1516, %v2028
      %v2030 = vpop.f32.mrb[0].mxu0
      %v2031 = vadd.f32 %v1518, %v2030
      %v2032 = vpop.f32.mrb[0].mxu0
      %v2033 = vadd.f32 %v1520, %v2032
      %v2034 = vpop.f32.mrb[0].mxu0
      %v2035 = vadd.f32 %v1522, %v2034
      %2036 = vmatprep.mubr.bf16.mxu0 %v1677
      %2037 = vmatmul.mubr.bf16.gmra.mrb[0].mxu0 %v1676
      %v2038 = vpop.f32.mrb[0].mxu0
      %v2039 = vadd.f32 %v1526, %v2038
      %v2040 = vpop.f32.mrb[0].mxu0
      %v2041 = vadd.f32 %v1528, %v2040
      %v2042 = vpop.f32.mrb[0].mxu0
      %v2043 = vadd.f32 %v1530, %v2042
      %v2044 = vpop.f32.mrb[0].mxu0
      %v2045 = vadd.f32 %v1532, %v2044
      %2046 = vmatprep.mubr.bf16.mxu0 %v1679
      %2047 = vmatmul.mubr.bf16.gmra.mrb[0].mxu0 %v1678
      %v2048 = vpop.f32.mrb[0].mxu0
      %v2049 = vadd.f32 %v1536, %v2048
      %v2050 = vpop.f32.mrb[0].mxu0
      %v2051 = vadd.f32 %v1538, %v2050
      %v2052 = vpop.f32.mrb[0].mxu0
      %v2053 = vadd.f32 %v1540, %v2052
      %v2054 = vpop.f32.mrb[0].mxu0
      %v2055 = vadd.f32 %v1542, %v2054
      %2056 = vmatprep.mubr.bf16.mxu0 %v1681
      %2057 = vmatmul.mubr.bf16.gmra.mrb[0].mxu0 %v1680
      %v2058 = vpop.f32.mrb[0].mxu0
      %v2059 = vadd.f32 %v1546, %v2058
      %v2060 = vpop.f32.mrb[0].mxu0
      %v2061 = vadd.f32 %v1548, %v2060
      %v2062 = vpop.f32.mrb[0].mxu0
      %v2063 = vadd.f32 %v1550, %v2062
      %v2064 = vpop.f32.mrb[0].mxu0
      %v2065 = vadd.f32 %v1552, %v2064
      %2066 = vdwg.mxu0
      %vm2083 = vcmask 1042432
      %vm2084 = vcmask 1046532
      %vm2085 = vmor %vm2083, %vm2084
      %v2086 = vrot.slane %v567, 5
      %v2087 = vrot.slane %v2086, 4
      %v2088 = vrot.slane %v568, 5
      %v2089 = vsel %vm2085, %v2087, %v2088
      %v2090 = vrot.slane %v2088, 4
      %v2091 = vrot.slane %v569, 5
      %v2092 = vsel %vm2085, %v2090, %v2091
      %v2093 = vrot.slane %v570, 5
      %v2094 = vrot.slane %v2093, 4
      %v2095 = vrot.slane %v571, 5
      %v2096 = vsel %vm2085, %v2094, %v2095
      %v2097 = vrot.slane %v2095, 4
      %v2098 = vrot.slane %v572, 5
      %v2099 = vsel %vm2085, %v2097, %v2098
      %v2100 = vrot.slane %v573, 5
      %v2101 = vrot.slane %v2100, 4
      %v2102 = vrot.slane %v574, 5
      %v2103 = vsel %vm2085, %v2101, %v2102
      %v2104 = vrot.slane %v2102, 4
      %v2105 = vrot.slane %v575, 5
      %v2106 = vsel %vm2085, %v2104, %v2105
      %v2107 = vrot.slane %v576, 5
      %v2108 = vrot.slane %v2107, 4
      %v2109 = vrot.slane %v577, 5
      %v2110 = vsel %vm2085, %v2108, %v2109
      %v2111 = vrot.slane %v2109, 4
      %v2112 = vrot.slane %v578, 5
      %v2113 = vsel %vm2085, %v2111, %v2112
      %v2114 = vrot.slane %v579, 5
      %v2115 = vrot.slane %v2114, 4
      %v2116 = vrot.slane %v580, 5
      %v2117 = vsel %vm2085, %v2115, %v2116
      %v2118 = vrot.slane %v2116, 4
      %v2119 = vrot.slane %v581, 5
      %v2120 = vsel %vm2085, %v2118, %v2119
      %v2121 = vrot.slane %v582, 5
      %v2122 = vrot.slane %v2121, 4
      %v2123 = vrot.slane %v583, 5
      %v2124 = vsel %vm2085, %v2122, %v2123
      %v2125 = vrot.slane %v2123, 4
      %v2126 = vrot.slane %v584, 5
      %v2127 = vsel %vm2085, %v2125, %v2126
      %v2128 = vrot.slane %v585, 5
      %v2129 = vrot.slane %v2128, 4
      %v2130 = vrot.slane %v586, 5
      %v2131 = vsel %vm2085, %v2129, %v2130
      %v2132 = vrot.slane %v2130, 4
      %v2133 = vrot.slane %v587, 5
      %v2134 = vsel %vm2085, %v2132, %v2133
      %v2135 = vrot.slane %v588, 5
      %v2136 = vrot.slane %v2135, 4
      %v2137 = vrot.slane %v589, 5
      %v2138 = vsel %vm2085, %v2136, %v2137
      %v2139 = vrot.slane %v2137, 4
      %v2140 = vrot.slane %v590, 5
      %v2141 = vsel %vm2085, %v2139, %v2140
      %v2142 = vrot.slane %v591, 5
      %v2143 = vrot.slane %v2142, 4
      %v2144 = vrot.slane %v592, 5
      %v2145 = vsel %vm2085, %v2143, %v2144
      %v2146 = vrot.slane %v2144, 4
      %v2147 = vrot.slane %v593, 5
      %v2148 = vsel %vm2085, %v2146, %v2147
      %v2149 = vrot.slane %v594, 5
      %v2150 = vrot.slane %v2149, 4
      %v2151 = vrot.slane %v595, 5
      %v2152 = vsel %vm2085, %v2150, %v2151
      %v2153 = vrot.slane %v2151, 4
      %v2154 = vrot.slane %v596, 5
      %v2155 = vsel %vm2085, %v2153, %v2154
      %v2156 = vrot.slane %v597, 5
      %v2157 = vrot.slane %v2156, 4
      %v2158 = vrot.slane %v598, 5
      %v2159 = vsel %vm2085, %v2157, %v2158
      %v2160 = vrot.slane %v2158, 4
      %v2161 = vrot.slane %v599, 5
      %v2162 = vsel %vm2085, %v2160, %v2161
      %v2163 = vrot.slane %v600, 5
      %v2164 = vrot.slane %v2163, 4
      %v2165 = vrot.slane %v601, 5
      %v2166 = vsel %vm2085, %v2164, %v2165
      %v2167 = vrot.slane %v2165, 4
      %v2168 = vrot.slane %v602, 5
      %v2169 = vsel %vm2085, %v2167, %v2168
      %v2170 = vrot.slane %v603, 5
      %v2171 = vrot.slane %v2170, 4
      %v2172 = vrot.slane %v604, 5
      %v2173 = vsel %vm2085, %v2171, %v2172
      %v2174 = vrot.slane %v2172, 4
      %v2175 = vrot.slane %v605, 5
      %v2176 = vsel %vm2085, %v2174, %v2175
      %v2177 = vrot.slane %v606, 5
      %v2178 = vrot.slane %v2177, 4
      %v2179 = vrot.slane %v607, 5
      %v2180 = vsel %vm2085, %v2178, %v2179
      %v2181 = vrot.slane %v2179, 4
      %v2182 = vrot.slane %v608, 5
      %v2183 = vsel %vm2085, %v2181, %v2182
      %v2184 = vrot.slane %v609, 5
      %v2185 = vrot.slane %v2184, 4
      %v2186 = vrot.slane %v610, 5
      %v2187 = vsel %vm2085, %v2185, %v2186
      %v2188 = vrot.slane %v2186, 4
      %v2189 = vrot.slane %v611, 5
      %v2190 = vsel %vm2085, %v2188, %v2189
      %v2191 = vrot.slane %v612, 5
      %v2192 = vrot.slane %v2191, 4
      %v2193 = vrot.slane %v613, 5
      %v2194 = vsel %vm2085, %v2192, %v2193
      %v2195 = vrot.slane %v2193, 4
      %v2196 = vrot.slane %v614, 5
      %v2197 = vsel %vm2085, %v2195, %v2196
      %s2198 = scalar_lea.vmem %s1, 512
      %v2199 = vld [vmem:[%s2198] sm:$0xff]
      %v2200 = vld [vmem:[%s2198 + $0x8] sm:$0xff]
      %v2201 = vld [vmem:[%s2198 + $0x10] sm:$0xff]
      %v2202 = vld [vmem:[%s2198 + $0x18] sm:$0xff]
      %v2203 = vld [vmem:[%s2198 + $0x20] sm:$0xff]
      %v2204 = vld [vmem:[%s2198 + $0x28] sm:$0xff]
      %v2205 = vld [vmem:[%s2198 + $0x30] sm:$0xff]
      %v2206 = vld [vmem:[%s2198 + $0x38] sm:$0xff]
      %v2207 = vld [vmem:[%s2198 + $0x40] sm:$0xff]
      %v2208 = vld [vmem:[%s2198 + $0x48] sm:$0xff]
      %v2209 = vld [vmem:[%s2198 + $0x50] sm:$0xff]
      %v2210 = vld [vmem:[%s2198 + $0x58] sm:$0xff]
      %v2211 = vld [vmem:[%s2198 + $0x60] sm:$0xff]
      %v2212 = vld [vmem:[%s2198 + $0x68] sm:$0xff]
      %v2213 = vld [vmem:[%s2198 + $0x70] sm:$0xff]
      %v2214 = vld [vmem:[%s2198 + $0x78] sm:$0xff]
      %v2215 = vld [vmem:[%s2198 + $0x80] sm:$0xff]
      %v2216 = vld [vmem:[%s2198 + $0x88] sm:$0xff]
      %v2217 = vld [vmem:[%s2198 + $0x90] sm:$0xff]
      %v2218 = vld [vmem:[%s2198 + $0x98] sm:$0xff]
      %v2219 = vld [vmem:[%s2198 + $0xa0] sm:$0xff]
      %v2220 = vld [vmem:[%s2198 + $0xa8] sm:$0xff]
      %v2221 = vld [vmem:[%s2198 + $0xb0] sm:$0xff]
      %v2222 = vld [vmem:[%s2198 + $0xb8] sm:$0xff]
      %v2223 = vld [vmem:[%s2198 + $0xc0] sm:$0xff]
      %v2224 = vld [vmem:[%s2198 + $0xc8] sm:$0xff]
      %v2225 = vld [vmem:[%s2198 + $0xd0] sm:$0xff]
      %v2226 = vld [vmem:[%s2198 + $0xd8] sm:$0xff]
      %v2227 = vld [vmem:[%s2198 + $0xe0] sm:$0xff]
      %v2228 = vld [vmem:[%s2198 + $0xe8] sm:$0xff]
      %v2229 = vld [vmem:[%s2198 + $0xf0] sm:$0xff]
      %v2230 = vld [vmem:[%s2198 + $0xf8] sm:$0xff]
      %v2231 = vunpack.c.l.b16 %v2089
      %v2232 = vunpack.c.h.b16 %v2089
      %v2233 = vunpack.c.l.b16 %v2092
      %v2234 = vunpack.c.h.b16 %v2092
      %v2235 = vunpack.c.l.b16 %v2096
      %v2236 = vunpack.c.h.b16 %v2096
      %v2237 = vunpack.c.l.b16 %v2099
      %v2238 = vunpack.c.h.b16 %v2099
      %v2239 = vunpack.c.l.b16 %v2103
      %v2240 = vunpack.c.h.b16 %v2103
      %v2241 = vunpack.c.l.b16 %v2106
      %v2242 = vunpack.c.h.b16 %v2106
      %v2243 = vunpack.c.l.b16 %v2110
      %v2244 = vunpack.c.h.b16 %v2110
      %v2245 = vunpack.c.l.b16 %v2113
      %v2246 = vunpack.c.h.b16 %v2113
      %v2247 = vunpack.c.l.b16 %v2117
      %v2248 = vunpack.c.h.b16 %v2117
      %v2249 = vunpack.c.l.b16 %v2120
      %v2250 = vunpack.c.h.b16 %v2120
      %v2251 = vunpack.c.l.b16 %v2124
      %v2252 = vunpack.c.h.b16 %v2124
      %v2253 = vunpack.c.l.b16 %v2127
      %v2254 = vunpack.c.h.b16 %v2127
      %v2255 = vunpack.c.l.b16 %v2131
      %v2256 = vunpack.c.h.b16 %v2131
      %v2257 = vunpack.c.l.b16 %v2134
      %v2258 = vunpack.c.h.b16 %v2134
      %v2259 = vunpack.c.l.b16 %v2138
      %v2260 = vunpack.c.h.b16 %v2138
      %v2261 = vunpack.c.l.b16 %v2141
      %v2262 = vunpack.c.h.b16 %v2141
      %v2263 = vunpack.c.l.b16 %v2145
      %v2264 = vunpack.c.h.b16 %v2145
      %v2265 = vunpack.c.l.b16 %v2148
      %v2266 = vunpack.c.h.b16 %v2148
      %v2267 = vunpack.c.l.b16 %v2152
      %v2268 = vunpack.c.h.b16 %v2152
      %v2269 = vunpack.c.l.b16 %v2155
      %v2270 = vunpack.c.h.b16 %v2155
      %v2271 = vunpack.c.l.b16 %v2159
      %v2272 = vunpack.c.h.b16 %v2159
      %v2273 = vunpack.c.l.b16 %v2162
      %v2274 = vunpack.c.h.b16 %v2162
      %v2275 = vunpack.c.l.b16 %v2166
      %v2276 = vunpack.c.h.b16 %v2166
      %v2277 = vunpack.c.l.b16 %v2169
      %v2278 = vunpack.c.h.b16 %v2169
      %v2279 = vunpack.c.l.b16 %v2173
      %v2280 = vunpack.c.h.b16 %v2173
      %v2281 = vunpack.c.l.b16 %v2176
      %v2282 = vunpack.c.h.b16 %v2176
      %v2283 = vunpack.c.l.b16 %v2180
      %v2284 = vunpack.c.h.b16 %v2180
      %v2285 = vunpack.c.l.b16 %v2183
      %v2286 = vunpack.c.h.b16 %v2183
      %v2287 = vunpack.c.l.b16 %v2187
      %v2288 = vunpack.c.h.b16 %v2187
      %v2289 = vunpack.c.l.b16 %v2190
      %v2290 = vunpack.c.h.b16 %v2190
      %v2291 = vunpack.c.l.b16 %v2194
      %v2292 = vunpack.c.h.b16 %v2194
      %v2293 = vunpack.c.l.b16 %v2197
      %v2294 = vunpack.c.h.b16 %v2197
      %v2295 = vpack.c.b16 %v2233, %v2231
      %v2296 = vpack.c.b16 %v2234, %v2232
      %v2297 = vpack.c.b16 %v2237, %v2235
      %v2298 = vpack.c.b16 %v2238, %v2236
      %v2299 = vpack.c.b16 %v2241, %v2239
      %v2300 = vpack.c.b16 %v2242, %v2240
      %v2301 = vpack.c.b16 %v2245, %v2243
      %v2302 = vpack.c.b16 %v2246, %v2244
      %v2303 = vpack.c.b16 %v2249, %v2247
      %v2304 = vpack.c.b16 %v2250, %v2248
      %v2305 = vpack.c.b16 %v2253, %v2251
      %v2306 = vpack.c.b16 %v2254, %v2252
      %v2307 = vpack.c.b16 %v2257, %v2255
      %v2308 = vpack.c.b16 %v2258, %v2256
      %v2309 = vpack.c.b16 %v2261, %v2259
      %v2310 = vpack.c.b16 %v2262, %v2260
      %v2311 = vpack.c.b16 %v2265, %v2263
      %v2312 = vpack.c.b16 %v2266, %v2264
      %v2313 = vpack.c.b16 %v2269, %v2267
      %v2314 = vpack.c.b16 %v2270, %v2268
      %v2315 = vpack.c.b16 %v2273, %v2271
      %v2316 = vpack.c.b16 %v2274, %v2272
      %v2317 = vpack.c.b16 %v2277, %v2275
      %v2318 = vpack.c.b16 %v2278, %v2276
      %v2319 = vpack.c.b16 %v2281, %v2279
      %v2320 = vpack.c.b16 %v2282, %v2280
      %v2321 = vpack.c.b16 %v2285, %v2283
      %v2322 = vpack.c.b16 %v2286, %v2284
      %v2323 = vpack.c.b16 %v2289, %v2287
      %v2324 = vpack.c.b16 %v2290, %v2288
      %v2325 = vpack.c.b16 %v2293, %v2291
      %v2326 = vpack.c.b16 %v2294, %v2292
      %v2391 = vunpack.c.l.b16 %v2199
      %v2392 = vunpack.c.h.b16 %v2199
      %v2393 = vunpack.c.l.b16 %v2200
      %v2394 = vunpack.c.h.b16 %v2200
      %v2395 = vunpack.c.l.b16 %v2201
      %v2396 = vunpack.c.h.b16 %v2201
      %v2397 = vunpack.c.l.b16 %v2202
      %v2398 = vunpack.c.h.b16 %v2202
      %v2399 = vunpack.c.l.b16 %v2203
      %v2400 = vunpack.c.h.b16 %v2203
      %v2401 = vunpack.c.l.b16 %v2204
      %v2402 = vunpack.c.h.b16 %v2204
      %v2403 = vunpack.c.l.b16 %v2205
      %v2404 = vunpack.c.h.b16 %v2205
      %v2405 = vunpack.c.l.b16 %v2206
      %v2406 = vunpack.c.h.b16 %v2206
      %v2407 = vunpack.c.l.b16 %v2207
      %v2408 = vunpack.c.h.b16 %v2207
      %v2409 = vunpack.c.l.b16 %v2208
      %v2410 = vunpack.c.h.b16 %v2208
      %v2411 = vunpack.c.l.b16 %v2209
      %v2412 = vunpack.c.h.b16 %v2209
      %v2413 = vunpack.c.l.b16 %v2210
      %v2414 = vunpack.c.h.b16 %v2210
      %v2415 = vunpack.c.l.b16 %v2211
      %v2416 = vunpack.c.h.b16 %v2211
      %v2417 = vunpack.c.l.b16 %v2212
      %v2418 = vunpack.c.h.b16 %v2212
      %v2419 = vunpack.c.l.b16 %v2213
      %v2420 = vunpack.c.h.b16 %v2213
      %v2421 = vunpack.c.l.b16 %v2214
      %v2422 = vunpack.c.h.b16 %v2214
      %v2423 = vunpack.c.l.b16 %v2215
      %v2424 = vunpack.c.h.b16 %v2215
      %v2425 = vunpack.c.l.b16 %v2216
      %v2426 = vunpack.c.h.b16 %v2216
      %v2427 = vunpack.c.l.b16 %v2217
      %v2428 = vunpack.c.h.b16 %v2217
      %v2429 = vunpack.c.l.b16 %v2218
      %v2430 = vunpack.c.h.b16 %v2218
      %v2431 = vunpack.c.l.b16 %v2219
      %v2432 = vunpack.c.h.b16 %v2219
      %v2433 = vunpack.c.l.b16 %v2220
      %v2434 = vunpack.c.h.b16 %v2220
      %v2435 = vunpack.c.l.b16 %v2221
      %v2436 = vunpack.c.h.b16 %v2221
      %v2437 = vunpack.c.l.b16 %v2222
      %v2438 = vunpack.c.h.b16 %v2222
      %v2439 = vunpack.c.l.b16 %v2223
      %v2440 = vunpack.c.h.b16 %v2223
      %v2441 = vunpack.c.l.b16 %v2224
      %v2442 = vunpack.c.h.b16 %v2224
      %v2443 = vunpack.c.l.b16 %v2225
      %v2444 = vunpack.c.h.b16 %v2225
      %v2445 = vunpack.c.l.b16 %v2226
      %v2446 = vunpack.c.h.b16 %v2226
      %v2447 = vunpack.c.l.b16 %v2227
      %v2448 = vunpack.c.h.b16 %v2227
      %v2449 = vunpack.c.l.b16 %v2228
      %v2450 = vunpack.c.h.b16 %v2228
      %v2451 = vunpack.c.l.b16 %v2229
      %v2452 = vunpack.c.h.b16 %v2229
      %v2453 = vunpack.c.l.b16 %v2230
      %v2454 = vunpack.c.h.b16 %v2230
      %v2455 = vpack.c.b16 %v2393, %v2391
      %v2456 = vpack.c.b16 %v2394, %v2392
      %v2457 = vpack.c.b16 %v2397, %v2395
      %v2458 = vpack.c.b16 %v2398, %v2396
      %v2459 = vpack.c.b16 %v2401, %v2399
      %v2460 = vpack.c.b16 %v2402, %v2400
      %v2461 = vpack.c.b16 %v2405, %v2403
      %v2462 = vpack.c.b16 %v2406, %v2404
      %v2463 = vpack.c.b16 %v2409, %v2407
      %v2464 = vpack.c.b16 %v2410, %v2408
      %v2465 = vpack.c.b16 %v2413, %v2411
      %v2466 = vpack.c.b16 %v2414, %v2412
      %v2467 = vpack.c.b16 %v2417, %v2415
      %v2468 = vpack.c.b16 %v2418, %v2416
      %v2469 = vpack.c.b16 %v2421, %v2419
      %v2470 = vpack.c.b16 %v2422, %v2420
      %v2471 = vpack.c.b16 %v2425, %v2423
      %v2472 = vpack.c.b16 %v2426, %v2424
      %v2473 = vpack.c.b16 %v2429, %v2427
      %v2474 = vpack.c.b16 %v2430, %v2428
      %v2475 = vpack.c.b16 %v2433, %v2431
      %v2476 = vpack.c.b16 %v2434, %v2432
      %v2477 = vpack.c.b16 %v2437, %v2435
      %v2478 = vpack.c.b16 %v2438, %v2436
      %v2479 = vpack.c.b16 %v2441, %v2439
      %v2480 = vpack.c.b16 %v2442, %v2440
      %v2481 = vpack.c.b16 %v2445, %v2443
      %v2482 = vpack.c.b16 %v2446, %v2444
      %v2483 = vpack.c.b16 %v2449, %v2447
      %v2484 = vpack.c.b16 %v2450, %v2448
      %v2485 = vpack.c.b16 %v2453, %v2451
      %v2486 = vpack.c.b16 %v2454, %v2452
      %2519 = vmatprep.subr.bf16.mxu0 %v2456
      %2520 = vmatpush1.bf16.msra.mxu0 %v2455
      %2521 = vmatprep.subr.bf16.mxu0 %v2458
      %2522 = vmatpush1.bf16.msra.mxu0 %v2457
      %2523 = vmatprep.subr.bf16.mxu0 %v2460
      %2524 = vmatpush1.bf16.msra.mxu0 %v2459
      %2525 = vmatprep.subr.bf16.mxu0 %v2462
      %2526 = vmatpush1.bf16.msra.mxu0 %v2461
      %2527 = vmatprep.subr.bf16.mxu0 %v2464
      %2528 = vmatpush1.bf16.msra.mxu0 %v2463
      %2529 = vmatprep.subr.bf16.mxu0 %v2466
      %2530 = vmatpush1.bf16.msra.mxu0 %v2465
      %2531 = vmatprep.subr.bf16.mxu0 %v2468
      %2532 = vmatpush1.bf16.msra.mxu0 %v2467
      %2533 = vmatprep.subr.bf16.mxu0 %v2470
      %2534 = vmatpush1.bf16.msra.mxu0 %v2469
      %2535 = vmatprep.subr.bf16.mxu0 %v2472
      %2536 = vmatpush1.bf16.msra.mxu0 %v2471
      %2537 = vmatprep.subr.bf16.mxu0 %v2474
      %2538 = vmatpush1.bf16.msra.mxu0 %v2473
      %2539 = vmatprep.subr.bf16.mxu0 %v2476
      %2540 = vmatpush1.bf16.msra.mxu0 %v2475
      %2541 = vmatprep.subr.bf16.mxu0 %v2478
      %2542 = vmatpush1.bf16.msra.mxu0 %v2477
      %2543 = vmatprep.subr.bf16.mxu0 %v2480
      %2544 = vmatpush1.bf16.msra.mxu0 %v2479
      %2545 = vmatprep.subr.bf16.mxu0 %v2482
      %2546 = vmatpush1.bf16.msra.mxu0 %v2481
      %2547 = vmatprep.subr.bf16.mxu0 %v2484
      %2548 = vmatpush1.bf16.msra.mxu0 %v2483
      %2549 = vmatprep.subr.bf16.mxu0 %v2486
      %2550 = vmatpush1.bf16.msra.mxu0 %v2485
      %2551 = vmatprep.mubr.bf16.mxu0 %v2296
      %2552 = vmatmul.mubr.bf16.gmra.mrb[0].mxu0 %v2295
      %v2553 = vpop.f32.mrb[0].mxu0
      %v2554 = vadd.f32 0.0, %v2553
      %v2555 = vpop.f32.mrb[0].mxu0
      %v2556 = vadd.f32 0.0, %v2555
      %v2557 = vpop.f32.mrb[0].mxu0
      %v2558 = vadd.f32 0.0, %v2557
      %v2559 = vpop.f32.mrb[0].mxu0
      %v2560 = vadd.f32 0.0, %v2559
      %2561 = vmatprep.mubr.bf16.mxu0 %v2298
      %2562 = vmatmul.mubr.bf16.gmra.mrb[0].mxu0 %v2297
      %v2563 = vpop.f32.mrb[0].mxu0
      %v2564 = vadd.f32 0.0, %v2563
      %v2565 = vpop.f32.mrb[0].mxu0
      %v2566 = vadd.f32 0.0, %v2565
      %v2567 = vpop.f32.mrb[0].mxu0
      %v2568 = vadd.f32 0.0, %v2567
      %v2569 = vpop.f32.mrb[0].mxu0
      %v2570 = vadd.f32 0.0, %v2569
      %2571 = vmatprep.mubr.bf16.mxu0 %v2300
      %2572 = vmatmul.mubr.bf16.gmra.mrb[0].mxu0 %v2299
      %v2573 = vpop.f32.mrb[0].mxu0
      %v2574 = vadd.f32 0.0, %v2573
      %v2575 = vpop.f32.mrb[0].mxu0
      %v2576 = vadd.f32 0.0, %v2575
      %v2577 = vpop.f32.mrb[0].mxu0
      %v2578 = vadd.f32 0.0, %v2577
      %v2579 = vpop.f32.mrb[0].mxu0
      %v2580 = vadd.f32 0.0, %v2579
      %2581 = vmatprep.mubr.bf16.mxu0 %v2302
      %2582 = vmatmul.mubr.bf16.gmra.mrb[0].mxu0 %v2301
      %v2583 = vpop.f32.mrb[0].mxu0
      %v2584 = vadd.f32 0.0, %v2583
      %v2585 = vpop.f32.mrb[0].mxu0
      %v2586 = vadd.f32 0.0, %v2585
      %v2587 = vpop.f32.mrb[0].mxu0
      %v2588 = vadd.f32 0.0, %v2587
      %v2589 = vpop.f32.mrb[0].mxu0
      %v2590 = vadd.f32 0.0, %v2589
      %2591 = vmatprep.mubr.bf16.mxu0 %v2304
      %2592 = vmatmul.mubr.bf16.gmra.mrb[0].mxu0 %v2303
      %v2593 = vpop.f32.mrb[0].mxu0
      %v2594 = vadd.f32 0.0, %v2593
      %v2595 = vpop.f32.mrb[0].mxu0
      %v2596 = vadd.f32 0.0, %v2595
      %v2597 = vpop.f32.mrb[0].mxu0
      %v2598 = vadd.f32 0.0, %v2597
      %v2599 = vpop.f32.mrb[0].mxu0
      %v2600 = vadd.f32 0.0, %v2599
      %2601 = vmatprep.mubr.bf16.mxu0 %v2306
      %2602 = vmatmul.mubr.bf16.gmra.mrb[0].mxu0 %v2305
      %v2603 = vpop.f32.mrb[0].mxu0
      %v2604 = vadd.f32 0.0, %v2603
      %v2605 = vpop.f32.mrb[0].mxu0
      %v2606 = vadd.f32 0.0, %v2605
      %v2607 = vpop.f32.mrb[0].mxu0
      %v2608 = vadd.f32 0.0, %v2607
      %v2609 = vpop.f32.mrb[0].mxu0
      %v2610 = vadd.f32 0.0, %v2609
      %2611 = vmatprep.mubr.bf16.mxu0 %v2308
      %2612 = vmatmul.mubr.bf16.gmra.mrb[0].mxu0 %v2307
      %v2613 = vpop.f32.mrb[0].mxu0
      %v2614 = vadd.f32 0.0, %v2613
      %v2615 = vpop.f32.mrb[0].mxu0
      %v2616 = vadd.f32 0.0, %v2615
      %v2617 = vpop.f32.mrb[0].mxu0
      %v2618 = vadd.f32 0.0, %v2617
      %v2619 = vpop.f32.mrb[0].mxu0
      %v2620 = vadd.f32 0.0, %v2619
      %2621 = vmatprep.mubr.bf16.mxu0 %v2310
      %2622 = vmatmul.mubr.bf16.gmra.mrb[0].mxu0 %v2309
      %v2623 = vpop.f32.mrb[0].mxu0
      %v2624 = vadd.f32 0.0, %v2623
      %v2625 = vpop.f32.mrb[0].mxu0
      %v2626 = vadd.f32 0.0, %v2625
      %v2627 = vpop.f32.mrb[0].mxu0
      %v2628 = vadd.f32 0.0, %v2627
      %v2629 = vpop.f32.mrb[0].mxu0
      %v2630 = vadd.f32 0.0, %v2629
      %2631 = vmatprep.mubr.bf16.mxu0 %v2312
      %2632 = vmatmul.mubr.bf16.gmra.mrb[0].mxu0 %v2311
      %v2633 = vpop.f32.mrb[0].mxu0
      %v2634 = vadd.f32 0.0, %v2633
      %v2635 = vpop.f32.mrb[0].mxu0
      %v2636 = vadd.f32 0.0, %v2635
      %v2637 = vpop.f32.mrb[0].mxu0
      %v2638 = vadd.f32 0.0, %v2637
      %v2639 = vpop.f32.mrb[0].mxu0
      %v2640 = vadd.f32 0.0, %v2639
      %2641 = vmatprep.mubr.bf16.mxu0 %v2314
      %2642 = vmatmul.mubr.bf16.gmra.mrb[0].mxu0 %v2313
      %v2643 = vpop.f32.mrb[0].mxu0
      %v2644 = vadd.f32 0.0, %v2643
      %v2645 = vpop.f32.mrb[0].mxu0
      %v2646 = vadd.f32 0.0, %v2645
      %v2647 = vpop.f32.mrb[0].mxu0
      %v2648 = vadd.f32 0.0, %v2647
      %v2649 = vpop.f32.mrb[0].mxu0
      %v2650 = vadd.f32 0.0, %v2649
      %2651 = vmatprep.mubr.bf16.mxu0 %v2316
      %2652 = vmatmul.mubr.bf16.gmra.mrb[0].mxu0 %v2315
      %v2653 = vpop.f32.mrb[0].mxu0
      %v2654 = vadd.f32 0.0, %v2653
      %v2655 = vpop.f32.mrb[0].mxu0
      %v2656 = vadd.f32 0.0, %v2655
      %v2657 = vpop.f32.mrb[0].mxu0
      %v2658 = vadd.f32 0.0, %v2657
      %v2659 = vpop.f32.mrb[0].mxu0
      %v2660 = vadd.f32 0.0, %v2659
      %2661 = vmatprep.mubr.bf16.mxu0 %v2318
      %2662 = vmatmul.mubr.bf16.gmra.mrb[0].mxu0 %v2317
      %v2663 = vpop.f32.mrb[0].mxu0
      %v2664 = vadd.f32 0.0, %v2663
      %v2665 = vpop.f32.mrb[0].mxu0
      %v2666 = vadd.f32 0.0, %v2665
      %v2667 = vpop.f32.mrb[0].mxu0
      %v2668 = vadd.f32 0.0, %v2667
      %v2669 = vpop.f32.mrb[0].mxu0
      %v2670 = vadd.f32 0.0, %v2669
      %2671 = vmatprep.mubr.bf16.mxu0 %v2320
      %2672 = vmatmul.mubr.bf16.gmra.mrb[0].mxu0 %v2319
      %v2673 = vpop.f32.mrb[0].mxu0
      %v2674 = vadd.f32 0.0, %v2673
      %v2675 = vpop.f32.mrb[0].mxu0
      %v2676 = vadd.f32 0.0, %v2675
      %v2677 = vpop.f32.mrb[0].mxu0
      %v2678 = vadd.f32 0.0, %v2677
      %v2679 = vpop.f32.mrb[0].mxu0
      %v2680 = vadd.f32 0.0, %v2679
      %2681 = vmatprep.mubr.bf16.mxu0 %v2322
      %2682 = vmatmul.mubr.bf16.gmra.mrb[0].mxu0 %v2321
      %v2683 = vpop.f32.mrb[0].mxu0
      %v2684 = vadd.f32 0.0, %v2683
      %v2685 = vpop.f32.mrb[0].mxu0
      %v2686 = vadd.f32 0.0, %v2685
      %v2687 = vpop.f32.mrb[0].mxu0
      %v2688 = vadd.f32 0.0, %v2687
      %v2689 = vpop.f32.mrb[0].mxu0
      %v2690 = vadd.f32 0.0, %v2689
      %2691 = vmatprep.mubr.bf16.mxu0 %v2324
      %2692 = vmatmul.mubr.bf16.gmra.mrb[0].mxu0 %v2323
      %v2693 = vpop.f32.mrb[0].mxu0
      %v2694 = vadd.f32 0.0, %v2693
      %v2695 = vpop.f32.mrb[0].mxu0
      %v2696 = vadd.f32 0.0, %v2695
      %v2697 = vpop.f32.mrb[0].mxu0
      %v2698 = vadd.f32 0.0, %v2697
      %v2699 = vpop.f32.mrb[0].mxu0
      %v2700 = vadd.f32 0.0, %v2699
      %2701 = vmatprep.mubr.bf16.mxu0 %v2326
      %2702 = vmatmul.mubr.bf16.gmra.mrb[0].mxu0 %v2325
      %v2703 = vpop.f32.mrb[0].mxu0
      %v2704 = vadd.f32 0.0, %v2703
      %v2705 = vpop.f32.mrb[0].mxu0
      %v2706 = vadd.f32 0.0, %v2705
      %v2707 = vpop.f32.mrb[0].mxu0
      %v2708 = vadd.f32 0.0, %v2707
      %v2709 = vpop.f32.mrb[0].mxu0
      %v2710 = vadd.f32 0.0, %v2709
      %2711 = vdwg.mxu0
      %v2712 = vadd.f32 %v1909, %v2554
      %v2713 = vadd.f32 %v1911, %v2556
      %v2714 = vadd.f32 %v1913, %v2558
      %v2715 = vadd.f32 %v1915, %v2560
      %v2716 = vadd.f32 %v1919, %v2564
      %v2717 = vadd.f32 %v1921, %v2566
      %v2718 = vadd.f32 %v1923, %v2568
      %v2719 = vadd.f32 %v1925, %v2570
      %v2720 = vadd.f32 %v1929, %v2574
      %v2721 = vadd.f32 %v1931, %v2576
      %v2722 = vadd.f32 %v1933, %v2578
      %v2723 = vadd.f32 %v1935, %v2580
      %v2724 = vadd.f32 %v1939, %v2584
      %v2725 = vadd.f32 %v1941, %v2586
      %v2726 = vadd.f32 %v1943, %v2588
      %v2727 = vadd.f32 %v1945, %v2590
      %v2728 = vadd.f32 %v1949, %v2594
      %v2729 = vadd.f32 %v1951, %v2596
      %v2730 = vadd.f32 %v1953, %v2598
      %v2731 = vadd.f32 %v1955, %v2600
      %v2732 = vadd.f32 %v1959, %v2604
      %v2733 = vadd.f32 %v1961, %v2606
      %v2734 = vadd.f32 %v1963, %v2608
      %v2735 = vadd.f32 %v1965, %v2610
      %v2736 = vadd.f32 %v1969, %v2614
      %v2737 = vadd.f32 %v1971, %v2616
      %v2738 = vadd.f32 %v1973, %v2618
      %v2739 = vadd.f32 %v1975, %v2620
      %v2740 = vadd.f32 %v1979, %v2624
      %v2741 = vadd.f32 %v1981, %v2626
      %v2742 = vadd.f32 %v1983, %v2628
      %v2743 = vadd.f32 %v1985, %v2630
      %v2744 = vadd.f32 %v1989, %v2634
      %v2745 = vadd.f32 %v1991, %v2636
      %v2746 = vadd.f32 %v1993, %v2638
      %v2747 = vadd.f32 %v1995, %v2640
      %v2748 = vadd.f32 %v1999, %v2644
      %v2749 = vadd.f32 %v2001, %v2646
      %v2750 = vadd.f32 %v2003, %v2648
      %v2751 = vadd.f32 %v2005, %v2650
      %v2752 = vadd.f32 %v2009, %v2654
      %v2753 = vadd.f32 %v2011, %v2656
      %v2754 = vadd.f32 %v2013, %v2658
      %v2755 = vadd.f32 %v2015, %v2660
      %v2756 = vadd.f32 %v2019, %v2664
      %v2757 = vadd.f32 %v2021, %v2666
      %v2758 = vadd.f32 %v2023, %v2668
      %v2759 = vadd.f32 %v2025, %v2670
      %v2760 = vadd.f32 %v2029, %v2674
      %v2761 = vadd.f32 %v2031, %v2676
      %v2762 = vadd.f32 %v2033, %v2678
      %v2763 = vadd.f32 %v2035, %v2680
      %v2764 = vadd.f32 %v2039, %v2684
      %v2765 = vadd.f32 %v2041, %v2686
      %v2766 = vadd.f32 %v2043, %v2688
      %v2767 = vadd.f32 %v2045, %v2690
      %v2768 = vadd.f32 %v2049, %v2694
      %v2769 = vadd.f32 %v2051, %v2696
      %v2770 = vadd.f32 %v2053, %v2698
      %v2771 = vadd.f32 %v2055, %v2700
      %v2772 = vadd.f32 %v2059, %v2704
      %v2773 = vadd.f32 %v2061, %v2706
      %v2774 = vadd.f32 %v2063, %v2708
      %v2775 = vadd.f32 %v2065, %v2710
      %s2776 = scalar_lea.vmem %s1, 768
      %v2777 = vld [vmem:[%s2776] sm:$0xff]
      %v2778 = vld [vmem:[%s2776 + $0x8] sm:$0xff]
      %v2779 = vld [vmem:[%s2776 + $0x10] sm:$0xff]
      %v2780 = vld [vmem:[%s2776 + $0x18] sm:$0xff]
      %v2781 = vld [vmem:[%s2776 + $0x20] sm:$0xff]
      %v2782 = vld [vmem:[%s2776 + $0x28] sm:$0xff]
      %v2783 = vld [vmem:[%s2776 + $0x30] sm:$0xff]
      %v2784 = vld [vmem:[%s2776 + $0x38] sm:$0xff]
      %v2785 = vld [vmem:[%s2776 + $0x40] sm:$0xff]
      %v2786 = vld [vmem:[%s2776 + $0x48] sm:$0xff]
      %v2787 = vld [vmem:[%s2776 + $0x50] sm:$0xff]
      %v2788 = vld [vmem:[%s2776 + $0x58] sm:$0xff]
      %v2789 = vld [vmem:[%s2776 + $0x60] sm:$0xff]
      %v2790 = vld [vmem:[%s2776 + $0x68] sm:$0xff]
      %v2791 = vld [vmem:[%s2776 + $0x70] sm:$0xff]
      %v2792 = vld [vmem:[%s2776 + $0x78] sm:$0xff]
      %v2793 = vld [vmem:[%s2776 + $0x80] sm:$0xff]
      %v2794 = vld [vmem:[%s2776 + $0x88] sm:$0xff]
      %v2795 = vld [vmem:[%s2776 + $0x90] sm:$0xff]
      %v2796 = vld [vmem:[%s2776 + $0x98] sm:$0xff]
      %v2797 = vld [vmem:[%s2776 + $0xa0] sm:$0xff]
      %v2798 = vld [vmem:[%s2776 + $0xa8] sm:$0xff]
      %v2799 = vld [vmem:[%s2776 + $0xb0] sm:$0xff]
      %v2800 = vld [vmem:[%s2776 + $0xb8] sm:$0xff]
      %v2801 = vld [vmem:[%s2776 + $0xc0] sm:$0xff]
      %v2802 = vld [vmem:[%s2776 + $0xc8] sm:$0xff]
      %v2803 = vld [vmem:[%s2776 + $0xd0] sm:$0xff]
      %v2804 = vld [vmem:[%s2776 + $0xd8] sm:$0xff]
      %v2805 = vld [vmem:[%s2776 + $0xe0] sm:$0xff]
      %v2806 = vld [vmem:[%s2776 + $0xe8] sm:$0xff]
      %v2807 = vld [vmem:[%s2776 + $0xf0] sm:$0xff]
      %v2808 = vld [vmem:[%s2776 + $0xf8] sm:$0xff]
      %v2811 = vunpack.c.l.b16 %v615
      %v2812 = vunpack.c.h.b16 %v615
      %v2813 = vunpack.c.l.b16 %v616
      %v2814 = vunpack.c.h.b16 %v616
      %v2815 = vpack.c.b16 %v2813, %v2811
      %v2816 = vpack.c.b16 %v2814, %v2812
      %v2851 = vunpack.c.l.b16 %v2777
      %v2852 = vunpack.c.h.b16 %v2777
      %v2853 = vunpack.c.l.b16 %v2778
      %v2854 = vunpack.c.h.b16 %v2778
      %v2855 = vunpack.c.l.b16 %v2779
      %v2856 = vunpack.c.h.b16 %v2779
      %v2857 = vunpack.c.l.b16 %v2780
      %v2858 = vunpack.c.h.b16 %v2780
      %v2859 = vunpack.c.l.b16 %v2781
      %v2860 = vunpack.c.h.b16 %v2781
      %v2861 = vunpack.c.l.b16 %v2782
      %v2862 = vunpack.c.h.b16 %v2782
      %v2863 = vunpack.c.l.b16 %v2783
      %v2864 = vunpack.c.h.b16 %v2783
      %v2865 = vunpack.c.l.b16 %v2784
      %v2866 = vunpack.c.h.b16 %v2784
      %v2867 = vunpack.c.l.b16 %v2785
      %v2868 = vunpack.c.h.b16 %v2785
      %v2869 = vunpack.c.l.b16 %v2786
      %v2870 = vunpack.c.h.b16 %v2786
      %v2871 = vunpack.c.l.b16 %v2787
      %v2872 = vunpack.c.h.b16 %v2787
      %v2873 = vunpack.c.l.b16 %v2788
      %v2874 = vunpack.c.h.b16 %v2788
      %v2875 = vunpack.c.l.b16 %v2789
      %v2876 = vunpack.c.h.b16 %v2789
      %v2877 = vunpack.c.l.b16 %v2790
      %v2878 = vunpack.c.h.b16 %v2790
      %v2879 = vunpack.c.l.b16 %v2791
      %v2880 = vunpack.c.h.b16 %v2791
      %v2881 = vunpack.c.l.b16 %v2792
      %v2882 = vunpack.c.h.b16 %v2792
      %v2883 = vunpack.c.l.b16 %v2793
      %v2884 = vunpack.c.h.b16 %v2793
      %v2885 = vunpack.c.l.b16 %v2794
      %v2886 = vunpack.c.h.b16 %v2794
      %v2887 = vunpack.c.l.b16 %v2795
      %v2888 = vunpack.c.h.b16 %v2795
      %v2889 = vunpack.c.l.b16 %v2796
      %v2890 = vunpack.c.h.b16 %v2796
      %v2891 = vunpack.c.l.b16 %v2797
      %v2892 = vunpack.c.h.b16 %v2797
      %v2893 = vunpack.c.l.b16 %v2798
      %v2894 = vunpack.c.h.b16 %v2798
      %v2895 = vunpack.c.l.b16 %v2799
      %v2896 = vunpack.c.h.b16 %v2799
      %v2897 = vunpack.c.l.b16 %v2800
      %v2898 = vunpack.c.h.b16 %v2800
      %v2899 = vunpack.c.l.b16 %v2801
      %v2900 = vunpack.c.h.b16 %v2801
      %v2901 = vunpack.c.l.b16 %v2802
      %v2902 = vunpack.c.h.b16 %v2802
      %v2903 = vunpack.c.l.b16 %v2803
      %v2904 = vunpack.c.h.b16 %v2803
      %v2905 = vunpack.c.l.b16 %v2804
      %v2906 = vunpack.c.h.b16 %v2804
      %v2907 = vunpack.c.l.b16 %v2805
      %v2908 = vunpack.c.h.b16 %v2805
      %v2909 = vunpack.c.l.b16 %v2806
      %v2910 = vunpack.c.h.b16 %v2806
      %v2911 = vunpack.c.l.b16 %v2807
      %v2912 = vunpack.c.h.b16 %v2807
      %v2913 = vunpack.c.l.b16 %v2808
      %v2914 = vunpack.c.h.b16 %v2808
      %v2915 = vpack.c.b16 %v2853, %v2851
      %v2916 = vpack.c.b16 %v2854, %v2852
      %v2917 = vpack.c.b16 %v2857, %v2855
      %v2918 = vpack.c.b16 %v2858, %v2856
      %v2919 = vpack.c.b16 %v2861, %v2859
      %v2920 = vpack.c.b16 %v2862, %v2860
      %v2921 = vpack.c.b16 %v2865, %v2863
      %v2922 = vpack.c.b16 %v2866, %v2864
      %v2923 = vpack.c.b16 %v2869, %v2867
      %v2924 = vpack.c.b16 %v2870, %v2868
      %v2925 = vpack.c.b16 %v2873, %v2871
      %v2926 = vpack.c.b16 %v2874, %v2872
      %v2927 = vpack.c.b16 %v2877, %v2875
      %v2928 = vpack.c.b16 %v2878, %v2876
      %v2929 = vpack.c.b16 %v2881, %v2879
      %v2930 = vpack.c.b16 %v2882, %v2880
      %v2931 = vpack.c.b16 %v2885, %v2883
      %v2932 = vpack.c.b16 %v2886, %v2884
      %v2933 = vpack.c.b16 %v2889, %v2887
      %v2934 = vpack.c.b16 %v2890, %v2888
      %v2935 = vpack.c.b16 %v2893, %v2891
      %v2936 = vpack.c.b16 %v2894, %v2892
      %v2937 = vpack.c.b16 %v2897, %v2895
      %v2938 = vpack.c.b16 %v2898, %v2896
      %v2939 = vpack.c.b16 %v2901, %v2899
      %v2940 = vpack.c.b16 %v2902, %v2900
      %v2941 = vpack.c.b16 %v2905, %v2903
      %v2942 = vpack.c.b16 %v2906, %v2904
      %v2943 = vpack.c.b16 %v2909, %v2907
      %v2944 = vpack.c.b16 %v2910, %v2908
      %v2945 = vpack.c.b16 %v2913, %v2911
      %v2946 = vpack.c.b16 %v2914, %v2912
      %2979 = vmatprep.subr.bf16.mxu0 %v2916
      %2980 = vmatpush1.bf16.msra.mxu0 %v2915
      %2981 = vmatprep.subr.bf16.mxu0 %v2918
      %2982 = vmatpush1.bf16.msra.mxu0 %v2917
      %2983 = vmatprep.subr.bf16.mxu0 %v2920
      %2984 = vmatpush1.bf16.msra.mxu0 %v2919
      %2985 = vmatprep.subr.bf16.mxu0 %v2922
      %2986 = vmatpush1.bf16.msra.mxu0 %v2921
      %2987 = vmatprep.subr.bf16.mxu0 %v2924
      %2988 = vmatpush1.bf16.msra.mxu0 %v2923
      %2989 = vmatprep.subr.bf16.mxu0 %v2926
      %2990 = vmatpush1.bf16.msra.mxu0 %v2925
      %2991 = vmatprep.subr.bf16.mxu0 %v2928
      %2992 = vmatpush1.bf16.msra.mxu0 %v2927
      %2993 = vmatprep.subr.bf16.mxu0 %v2930
      %2994 = vmatpush1.bf16.msra.mxu0 %v2929
      %2995 = vmatprep.subr.bf16.mxu0 %v2932
      %2996 = vmatpush1.bf16.msra.mxu0 %v2931
      %2997 = vmatprep.subr.bf16.mxu0 %v2934
      %2998 = vmatpush1.bf16.msra.mxu0 %v2933
      %2999 = vmatprep.subr.bf16.mxu0 %v2936
      %3000 = vmatpush1.bf16.msra.mxu0 %v2935
      %3001 = vmatprep.subr.bf16.mxu0 %v2938
      %3002 = vmatpush1.bf16.msra.mxu0 %v2937
      %3003 = vmatprep.subr.bf16.mxu0 %v2940
      %3004 = vmatpush1.bf16.msra.mxu0 %v2939
      %3005 = vmatprep.subr.bf16.mxu0 %v2942
      %3006 = vmatpush1.bf16.msra.mxu0 %v2941
      %3007 = vmatprep.subr.bf16.mxu0 %v2944
      %3008 = vmatpush1.bf16.msra.mxu0 %v2943
      %3009 = vmatprep.subr.bf16.mxu0 %v2946
      %3010 = vmatpush1.bf16.msra.mxu0 %v2945
      %3011 = vmatprep.mubr.bf16.mxu0 %v1653
      %3012 = vmatmul.mubr.bf16.gmra.mrb[0].mxu0 %v1652
      %v3013 = vpop.f32.mrb[0].mxu0
      %v3014 = vadd.f32 0.0, %v3013
      %v3015 = vpop.f32.mrb[0].mxu0
      %v3016 = vadd.f32 0.0, %v3015
      %v3017 = vpop.f32.mrb[0].mxu0
      %v3018 = vadd.f32 0.0, %v3017
      %v3019 = vpop.f32.mrb[0].mxu0
      %v3020 = vadd.f32 0.0, %v3019
      %3021 = vmatprep.mubr.bf16.mxu0 %v1655
      %3022 = vmatmul.mubr.bf16.gmra.mrb[0].mxu0 %v1654
      %v3023 = vpop.f32.mrb[0].mxu0
      %v3024 = vadd.f32 0.0, %v3023
      %v3025 = vpop.f32.mrb[0].mxu0
      %v3026 = vadd.f32 0.0, %v3025
      %v3027 = vpop.f32.mrb[0].mxu0
      %v3028 = vadd.f32 0.0, %v3027
      %v3029 = vpop.f32.mrb[0].mxu0
      %v3030 = vadd.f32 0.0, %v3029
      %3031 = vmatprep.mubr.bf16.mxu0 %v1657
      %3032 = vmatmul.mubr.bf16.gmra.mrb[0].mxu0 %v1656
      %v3033 = vpop.f32.mrb[0].mxu0
      %v3034 = vadd.f32 0.0, %v3033
      %v3035 = vpop.f32.mrb[0].mxu0
      %v3036 = vadd.f32 0.0, %v3035
      %v3037 = vpop.f32.mrb[0].mxu0
      %v3038 = vadd.f32 0.0, %v3037
      %v3039 = vpop.f32.mrb[0].mxu0
      %v3040 = vadd.f32 0.0, %v3039
      %3041 = vmatprep.mubr.bf16.mxu0 %v1659
      %3042 = vmatmul.mubr.bf16.gmra.mrb[0].mxu0 %v1658
      %v3043 = vpop.f32.mrb[0].mxu0
      %v3044 = vadd.f32 0.0, %v3043
      %v3045 = vpop.f32.mrb[0].mxu0
      %v3046 = vadd.f32 0.0, %v3045
      %v3047 = vpop.f32.mrb[0].mxu0
      %v3048 = vadd.f32 0.0, %v3047
      %v3049 = vpop.f32.mrb[0].mxu0
      %v3050 = vadd.f32 0.0, %v3049
      %3051 = vmatprep.mubr.bf16.mxu0 %v1661
      %3052 = vmatmul.mubr.bf16.gmra.mrb[0].mxu0 %v1660
      %v3053 = vpop.f32.mrb[0].mxu0
      %v3054 = vadd.f32 0.0, %v3053
      %v3055 = vpop.f32.mrb[0].mxu0
      %v3056 = vadd.f32 0.0, %v3055
      %v3057 = vpop.f32.mrb[0].mxu0
      %v3058 = vadd.f32 0.0, %v3057
      %v3059 = vpop.f32.mrb[0].mxu0
      %v3060 = vadd.f32 0.0, %v3059
      %3061 = vmatprep.mubr.bf16.mxu0 %v1663
      %3062 = vmatmul.mubr.bf16.gmra.mrb[0].mxu0 %v1662
      %v3063 = vpop.f32.mrb[0].mxu0
      %v3064 = vadd.f32 0.0, %v3063
      %v3065 = vpop.f32.mrb[0].mxu0
      %v3066 = vadd.f32 0.0, %v3065
      %v3067 = vpop.f32.mrb[0].mxu0
      %v3068 = vadd.f32 0.0, %v3067
      %v3069 = vpop.f32.mrb[0].mxu0
      %v3070 = vadd.f32 0.0, %v3069
      %3071 = vmatprep.mubr.bf16.mxu0 %v1665
      %3072 = vmatmul.mubr.bf16.gmra.mrb[0].mxu0 %v1664
      %v3073 = vpop.f32.mrb[0].mxu0
      %v3074 = vadd.f32 0.0, %v3073
      %v3075 = vpop.f32.mrb[0].mxu0
      %v3076 = vadd.f32 0.0, %v3075
      %v3077 = vpop.f32.mrb[0].mxu0
      %v3078 = vadd.f32 0.0, %v3077
      %v3079 = vpop.f32.mrb[0].mxu0
      %v3080 = vadd.f32 0.0, %v3079
      %3081 = vmatprep.mubr.bf16.mxu0 %v1667
      %3082 = vmatmul.mubr.bf16.gmra.mrb[0].mxu0 %v1666
      %v3083 = vpop.f32.mrb[0].mxu0
      %v3084 = vadd.f32 0.0, %v3083
      %v3085 = vpop.f32.mrb[0].mxu0
      %v3086 = vadd.f32 0.0, %v3085
      %v3087 = vpop.f32.mrb[0].mxu0
      %v3088 = vadd.f32 0.0, %v3087
      %v3089 = vpop.f32.mrb[0].mxu0
      %v3090 = vadd.f32 0.0, %v3089
      %3091 = vmatprep.mubr.bf16.mxu0 %v1669
      %3092 = vmatmul.mubr.bf16.gmra.mrb[0].mxu0 %v1668
      %v3093 = vpop.f32.mrb[0].mxu0
      %v3094 = vadd.f32 0.0, %v3093
      %v3095 = vpop.f32.mrb[0].mxu0
      %v3096 = vadd.f32 0.0, %v3095
      %v3097 = vpop.f32.mrb[0].mxu0
      %v3098 = vadd.f32 0.0, %v3097
      %v3099 = vpop.f32.mrb[0].mxu0
      %v3100 = vadd.f32 0.0, %v3099
      %3101 = vmatprep.mubr.bf16.mxu0 %v1671
      %3102 = vmatmul.mubr.bf16.gmra.mrb[0].mxu0 %v1670
      %v3103 = vpop.f32.mrb[0].mxu0
      %v3104 = vadd.f32 0.0, %v3103
      %v3105 = vpop.f32.mrb[0].mxu0
      %v3106 = vadd.f32 0.0, %v3105
      %v3107 = vpop.f32.mrb[0].mxu0
      %v3108 = vadd.f32 0.0, %v3107
      %v3109 = vpop.f32.mrb[0].mxu0
      %v3110 = vadd.f32 0.0, %v3109
      %3111 = vmatprep.mubr.bf16.mxu0 %v1673
      %3112 = vmatmul.mubr.bf16.gmra.mrb[0].mxu0 %v1672
      %v3113 = vpop.f32.mrb[0].mxu0
      %v3114 = vadd.f32 0.0, %v3113
      %v3115 = vpop.f32.mrb[0].mxu0
      %v3116 = vadd.f32 0.0, %v3115
      %v3117 = vpop.f32.mrb[0].mxu0
      %v3118 = vadd.f32 0.0, %v3117
      %v3119 = vpop.f32.mrb[0].mxu0
      %v3120 = vadd.f32 0.0, %v3119
      %3121 = vmatprep.mubr.bf16.mxu0 %v1675
      %3122 = vmatmul.mubr.bf16.gmra.mrb[0].mxu0 %v1674
      %v3123 = vpop.f32.mrb[0].mxu0
      %v3124 = vadd.f32 0.0, %v3123
      %v3125 = vpop.f32.mrb[0].mxu0
      %v3126 = vadd.f32 0.0, %v3125
      %v3127 = vpop.f32.mrb[0].mxu0
      %v3128 = vadd.f32 0.0, %v3127
      %v3129 = vpop.f32.mrb[0].mxu0
      %v3130 = vadd.f32 0.0, %v3129
      %3131 = vmatprep.mubr.bf16.mxu0 %v1677
      %3132 = vmatmul.mubr.bf16.gmra.mrb[0].mxu0 %v1676
      %v3133 = vpop.f32.mrb[0].mxu0
      %v3134 = vadd.f32 0.0, %v3133
      %v3135 = vpop.f32.mrb[0].mxu0
      %v3136 = vadd.f32 0.0, %v3135
      %v3137 = vpop.f32.mrb[0].mxu0
      %v3138 = vadd.f32 0.0, %v3137
      %v3139 = vpop.f32.mrb[0].mxu0
      %v3140 = vadd.f32 0.0, %v3139
      %3141 = vmatprep.mubr.bf16.mxu0 %v1679
      %3142 = vmatmul.mubr.bf16.gmra.mrb[0].mxu0 %v1678
      %v3143 = vpop.f32.mrb[0].mxu0
      %v3144 = vadd.f32 0.0, %v3143
      %v3145 = vpop.f32.mrb[0].mxu0
      %v3146 = vadd.f32 0.0, %v3145
      %v3147 = vpop.f32.mrb[0].mxu0
      %v3148 = vadd.f32 0.0, %v3147
      %v3149 = vpop.f32.mrb[0].mxu0
      %v3150 = vadd.f32 0.0, %v3149
      %3151 = vmatprep.mubr.bf16.mxu0 %v1681
      %3152 = vmatmul.mubr.bf16.gmra.mrb[0].mxu0 %v1680
      %v3153 = vpop.f32.mrb[0].mxu0
      %v3154 = vadd.f32 0.0, %v3153
      %v3155 = vpop.f32.mrb[0].mxu0
      %v3156 = vadd.f32 0.0, %v3155
      %v3157 = vpop.f32.mrb[0].mxu0
      %v3158 = vadd.f32 0.0, %v3157
      %v3159 = vpop.f32.mrb[0].mxu0
      %v3160 = vadd.f32 0.0, %v3159
      %3161 = vmatprep.mubr.bf16.mxu0 %v2816
      %3162 = vmatmul.mubr.bf16.gmra.mrb[0].mxu0 %v2815
      %v3163 = vpop.f32.mrb[0].mxu0
      %v3164 = vadd.f32 0.0, %v3163
      %v3165 = vpop.f32.mrb[0].mxu0
      %v3166 = vadd.f32 0.0, %v3165
      %v3167 = vpop.f32.mrb[0].mxu0
      %v3168 = vadd.f32 0.0, %v3167
      %v3169 = vpop.f32.mrb[0].mxu0
      %v3170 = vadd.f32 0.0, %v3169
      %3171 = vdwg.mxu0
      %v3172 = vadd.f32 %v2712, %v3014
      %v3173 = vadd.f32 %v2713, %v3016
      %v3174 = vadd.f32 %v2714, %v3018
      %v3175 = vadd.f32 %v2715, %v3020
      %v3176 = vadd.f32 %v2716, %v3024
      %v3177 = vadd.f32 %v2717, %v3026
      %v3178 = vadd.f32 %v2718, %v3028
      %v3179 = vadd.f32 %v2719, %v3030
      %v3180 = vadd.f32 %v2720, %v3034
      %v3181 = vadd.f32 %v2721, %v3036
      %v3182 = vadd.f32 %v2722, %v3038
      %v3183 = vadd.f32 %v2723, %v3040
      %v3184 = vadd.f32 %v2724, %v3044
      %v3185 = vadd.f32 %v2725, %v3046
      %v3186 = vadd.f32 %v2726, %v3048
      %v3187 = vadd.f32 %v2727, %v3050
      %v3188 = vadd.f32 %v2728, %v3054
      %v3189 = vadd.f32 %v2729, %v3056
      %v3190 = vadd.f32 %v2730, %v3058
      %v3191 = vadd.f32 %v2731, %v3060
      %v3192 = vadd.f32 %v2732, %v3064
      %v3193 = vadd.f32 %v2733, %v3066
      %v3194 = vadd.f32 %v2734, %v3068
      %v3195 = vadd.f32 %v2735, %v3070
      %v3196 = vadd.f32 %v2736, %v3074
      %v3197 = vadd.f32 %v2737, %v3076
      %v3198 = vadd.f32 %v2738, %v3078
      %v3199 = vadd.f32 %v2739, %v3080
      %v3200 = vadd.f32 %v2740, %v3084
      %v3201 = vadd.f32 %v2741, %v3086
      %v3202 = vadd.f32 %v2742, %v3088
      %v3203 = vadd.f32 %v2743, %v3090
      %v3204 = vadd.f32 %v2744, %v3094
      %v3205 = vadd.f32 %v2745, %v3096
      %v3206 = vadd.f32 %v2746, %v3098
      %v3207 = vadd.f32 %v2747, %v3100
      %v3208 = vadd.f32 %v2748, %v3104
      %v3209 = vadd.f32 %v2749, %v3106
      %v3210 = vadd.f32 %v2750, %v3108
      %v3211 = vadd.f32 %v2751, %v3110
      %v3212 = vadd.f32 %v2752, %v3114
      %v3213 = vadd.f32 %v2753, %v3116
      %v3214 = vadd.f32 %v2754, %v3118
      %v3215 = vadd.f32 %v2755, %v3120
      %v3216 = vadd.f32 %v2756, %v3124
      %v3217 = vadd.f32 %v2757, %v3126
      %v3218 = vadd.f32 %v2758, %v3128
      %v3219 = vadd.f32 %v2759, %v3130
      %v3220 = vadd.f32 %v2760, %v3134
      %v3221 = vadd.f32 %v2761, %v3136
      %v3222 = vadd.f32 %v2762, %v3138
      %v3223 = vadd.f32 %v2763, %v3140
      %v3224 = vadd.f32 %v2764, %v3144
      %v3225 = vadd.f32 %v2765, %v3146
      %v3226 = vadd.f32 %v2766, %v3148
      %v3227 = vadd.f32 %v2767, %v3150
      %v3228 = vadd.f32 %v2768, %v3154
      %v3229 = vadd.f32 %v2769, %v3156
      %v3230 = vadd.f32 %v2770, %v3158
      %v3231 = vadd.f32 %v2771, %v3160
      %v3232 = vadd.f32 %v2772, %v3164
      %v3233 = vadd.f32 %v2773, %v3166
      %v3234 = vadd.f32 %v2774, %v3168
      %v3235 = vadd.f32 %v2775, %v3170
      %v3237 = vshrl.u32 %v615, 16
      %v3239 = vrot.slane %v3237, 4
      %v3240 = vshll.u32 %v615, 16
      %v3242 = vrot.slane %v3240, 5
      %v3243 = vor.u32 %v3239, %v3242
      %v3244 = vrot.slane %v3243, 4
      %v3246 = vshll.u32 %v616, 16
      %v3248 = vrot.slane %v3246, 5
      %v3249 = vsel %vm655, %v3244, %v3248
      %v3250 = vshrl.u32 %v616, 16
      %v3252 = vrot.slane %v3250, 4
      %v3253 = vor.u32 %v3252, %v3248
      %v3254 = vrot.slane %v3253, 4
      %v3256 = vshll.u32 %v617, 16
      %v3258 = vrot.slane %v3256, 5
      %v3259 = vsel %vm655, %v3254, %v3258
      %s3260 = scalar_lea.vmem %s1, 1024
      %v3261 = vld [vmem:[%s3260] sm:$0xff]
      %v3262 = vld [vmem:[%s3260 + $0x8] sm:$0xff]
      %v3263 = vld [vmem:[%s3260 + $0x10] sm:$0xff]
      %v3264 = vld [vmem:[%s3260 + $0x18] sm:$0xff]
      %v3265 = vld [vmem:[%s3260 + $0x20] sm:$0xff]
      %v3266 = vld [vmem:[%s3260 + $0x28] sm:$0xff]
      %v3267 = vld [vmem:[%s3260 + $0x30] sm:$0xff]
      %v3268 = vld [vmem:[%s3260 + $0x38] sm:$0xff]
      %v3269 = vld [vmem:[%s3260 + $0x40] sm:$0xff]
      %v3270 = vld [vmem:[%s3260 + $0x48] sm:$0xff]
      %v3271 = vld [vmem:[%s3260 + $0x50] sm:$0xff]
      %v3272 = vld [vmem:[%s3260 + $0x58] sm:$0xff]
      %v3273 = vld [vmem:[%s3260 + $0x60] sm:$0xff]
      %v3274 = vld [vmem:[%s3260 + $0x68] sm:$0xff]
      %v3275 = vld [vmem:[%s3260 + $0x70] sm:$0xff]
      %v3276 = vld [vmem:[%s3260 + $0x78] sm:$0xff]
      %v3277 = vld [vmem:[%s3260 + $0x80] sm:$0xff]
      %v3278 = vld [vmem:[%s3260 + $0x88] sm:$0xff]
      %v3279 = vld [vmem:[%s3260 + $0x90] sm:$0xff]
      %v3280 = vld [vmem:[%s3260 + $0x98] sm:$0xff]
      %v3281 = vld [vmem:[%s3260 + $0xa0] sm:$0xff]
      %v3282 = vld [vmem:[%s3260 + $0xa8] sm:$0xff]
      %v3283 = vld [vmem:[%s3260 + $0xb0] sm:$0xff]
      %v3284 = vld [vmem:[%s3260 + $0xb8] sm:$0xff]
      %v3285 = vld [vmem:[%s3260 + $0xc0] sm:$0xff]
      %v3286 = vld [vmem:[%s3260 + $0xc8] sm:$0xff]
      %v3287 = vld [vmem:[%s3260 + $0xd0] sm:$0xff]
      %v3288 = vld [vmem:[%s3260 + $0xd8] sm:$0xff]
      %v3289 = vld [vmem:[%s3260 + $0xe0] sm:$0xff]
      %v3290 = vld [vmem:[%s3260 + $0xe8] sm:$0xff]
      %v3291 = vld [vmem:[%s3260 + $0xf0] sm:$0xff]
      %v3292 = vld [vmem:[%s3260 + $0xf8] sm:$0xff]
      %v3293 = vunpack.c.l.b16 %v3249
      %v3294 = vunpack.c.h.b16 %v3249
      %v3295 = vunpack.c.l.b16 %v3259
      %v3296 = vunpack.c.h.b16 %v3259
      %v3297 = vpack.c.b16 %v3295, %v3293
      %v3298 = vpack.c.b16 %v3296, %v3294
      %v3333 = vunpack.c.l.b16 %v3261
      %v3334 = vunpack.c.h.b16 %v3261
      %v3335 = vunpack.c.l.b16 %v3262
      %v3336 = vunpack.c.h.b16 %v3262
      %v3337 = vunpack.c.l.b16 %v3263
      %v3338 = vunpack.c.h.b16 %v3263
      %v3339 = vunpack.c.l.b16 %v3264
      %v3340 = vunpack.c.h.b16 %v3264
      %v3341 = vunpack.c.l.b16 %v3265
      %v3342 = vunpack.c.h.b16 %v3265
      %v3343 = vunpack.c.l.b16 %v3266
      %v3344 = vunpack.c.h.b16 %v3266
      %v3345 = vunpack.c.l.b16 %v3267
      %v3346 = vunpack.c.h.b16 %v3267
      %v3347 = vunpack.c.l.b16 %v3268
      %v3348 = vunpack.c.h.b16 %v3268
      %v3349 = vunpack.c.l.b16 %v3269
      %v3350 = vunpack.c.h.b16 %v3269
      %v3351 = vunpack.c.l.b16 %v3270
      %v3352 = vunpack.c.h.b16 %v3270
      %v3353 = vunpack.c.l.b16 %v3271
      %v3354 = vunpack.c.h.b16 %v3271
      %v3355 = vunpack.c.l.b16 %v3272
      %v3356 = vunpack.c.h.b16 %v3272
      %v3357 = vunpack.c.l.b16 %v3273
      %v3358 = vunpack.c.h.b16 %v3273
      %v3359 = vunpack.c.l.b16 %v3274
      %v3360 = vunpack.c.h.b16 %v3274
      %v3361 = vunpack.c.l.b16 %v3275
      %v3362 = vunpack.c.h.b16 %v3275
      %v3363 = vunpack.c.l.b16 %v3276
      %v3364 = vunpack.c.h.b16 %v3276
      %v3365 = vunpack.c.l.b16 %v3277
      %v3366 = vunpack.c.h.b16 %v3277
      %v3367 = vunpack.c.l.b16 %v3278
      %v3368 = vunpack.c.h.b16 %v3278
      %v3369 = vunpack.c.l.b16 %v3279
      %v3370 = vunpack.c.h.b16 %v3279
      %v3371 = vunpack.c.l.b16 %v3280
      %v3372 = vunpack.c.h.b16 %v3280
      %v3373 = vunpack.c.l.b16 %v3281
      %v3374 = vunpack.c.h.b16 %v3281
      %v3375 = vunpack.c.l.b16 %v3282
      %v3376 = vunpack.c.h.b16 %v3282
      %v3377 = vunpack.c.l.b16 %v3283
      %v3378 = vunpack.c.h.b16 %v3283
      %v3379 = vunpack.c.l.b16 %v3284
      %v3380 = vunpack.c.h.b16 %v3284
      %v3381 = vunpack.c.l.b16 %v3285
      %v3382 = vunpack.c.h.b16 %v3285
      %v3383 = vunpack.c.l.b16 %v3286
      %v3384 = vunpack.c.h.b16 %v3286
      %v3385 = vunpack.c.l.b16 %v3287
      %v3386 = vunpack.c.h.b16 %v3287
      %v3387 = vunpack.c.l.b16 %v3288
      %v3388 = vunpack.c.h.b16 %v3288
      %v3389 = vunpack.c.l.b16 %v3289
      %v3390 = vunpack.c.h.b16 %v3289
      %v3391 = vunpack.c.l.b16 %v3290
      %v3392 = vunpack.c.h.b16 %v3290
      %v3393 = vunpack.c.l.b16 %v3291
      %v3394 = vunpack.c.h.b16 %v3291
      %v3395 = vunpack.c.l.b16 %v3292
      %v3396 = vunpack.c.h.b16 %v3292
      %v3397 = vpack.c.b16 %v3335, %v3333
      %v3398 = vpack.c.b16 %v3336, %v3334
      %v3399 = vpack.c.b16 %v3339, %v3337
      %v3400 = vpack.c.b16 %v3340, %v3338
      %v3401 = vpack.c.b16 %v3343, %v3341
      %v3402 = vpack.c.b16 %v3344, %v3342
      %v3403 = vpack.c.b16 %v3347, %v3345
      %v3404 = vpack.c.b16 %v3348, %v3346
      %v3405 = vpack.c.b16 %v3351, %v3349
      %v3406 = vpack.c.b16 %v3352, %v3350
      %v3407 = vpack.c.b16 %v3355, %v3353
      %v3408 = vpack.c.b16 %v3356, %v3354
      %v3409 = vpack.c.b16 %v3359, %v3357
      %v3410 = vpack.c.b16 %v3360, %v3358
      %v3411 = vpack.c.b16 %v3363, %v3361
      %v3412 = vpack.c.b16 %v3364, %v3362
      %v3413 = vpack.c.b16 %v3367, %v3365
      %v3414 = vpack.c.b16 %v3368, %v3366
      %v3415 = vpack.c.b16 %v3371, %v3369
      %v3416 = vpack.c.b16 %v3372, %v3370
      %v3417 = vpack.c.b16 %v3375, %v3373
      %v3418 = vpack.c.b16 %v3376, %v3374
      %v3419 = vpack.c.b16 %v3379, %v3377
      %v3420 = vpack.c.b16 %v3380, %v3378
      %v3421 = vpack.c.b16 %v3383, %v3381
      %v3422 = vpack.c.b16 %v3384, %v3382
      %v3423 = vpack.c.b16 %v3387, %v3385
      %v3424 = vpack.c.b16 %v3388, %v3386
      %v3425 = vpack.c.b16 %v3391, %v3389
      %v3426 = vpack.c.b16 %v3392, %v3390
      %v3427 = vpack.c.b16 %v3395, %v3393
      %v3428 = vpack.c.b16 %v3396, %v3394
      %3461 = vmatprep.subr.bf16.mxu0 %v3398
      %3462 = vmatpush1.bf16.msra.mxu0 %v3397
      %3463 = vmatprep.subr.bf16.mxu0 %v3400
      %3464 = vmatpush1.bf16.msra.mxu0 %v3399
      %3465 = vmatprep.subr.bf16.mxu0 %v3402
      %3466 = vmatpush1.bf16.msra.mxu0 %v3401
      %3467 = vmatprep.subr.bf16.mxu0 %v3404
      %3468 = vmatpush1.bf16.msra.mxu0 %v3403
      %3469 = vmatprep.subr.bf16.mxu0 %v3406
      %3470 = vmatpush1.bf16.msra.mxu0 %v3405
      %3471 = vmatprep.subr.bf16.mxu0 %v3408
      %3472 = vmatpush1.bf16.msra.mxu0 %v3407
      %3473 = vmatprep.subr.bf16.mxu0 %v3410
      %3474 = vmatpush1.bf16.msra.mxu0 %v3409
      %3475 = vmatprep.subr.bf16.mxu0 %v3412
      %3476 = vmatpush1.bf16.msra.mxu0 %v3411
      %3477 = vmatprep.subr.bf16.mxu0 %v3414
      %3478 = vmatpush1.bf16.msra.mxu0 %v3413
      %3479 = vmatprep.subr.bf16.mxu0 %v3416
      %3480 = vmatpush1.bf16.msra.mxu0 %v3415
      %3481 = vmatprep.subr.bf16.mxu0 %v3418
      %3482 = vmatpush1.bf16.msra.mxu0 %v3417
      %3483 = vmatprep.subr.bf16.mxu0 %v3420
      %3484 = vmatpush1.bf16.msra.mxu0 %v3419
      %3485 = vmatprep.subr.bf16.mxu0 %v3422
      %3486 = vmatpush1.bf16.msra.mxu0 %v3421
      %3487 = vmatprep.subr.bf16.mxu0 %v3424
      %3488 = vmatpush1.bf16.msra.mxu0 %v3423
      %3489 = vmatprep.subr.bf16.mxu0 %v3426
      %3490 = vmatpush1.bf16.msra.mxu0 %v3425
      %3491 = vmatprep.subr.bf16.mxu0 %v3428
      %3492 = vmatpush1.bf16.msra.mxu0 %v3427
      %3493 = vmatprep.mubr.bf16.mxu0 %v1140
      %3494 = vmatmul.mubr.bf16.gmra.mrb[0].mxu0 %v1139
      %v3495 = vpop.f32.mrb[0].mxu0
      %v3496 = vadd.f32 0.0, %v3495
      %v3497 = vpop.f32.mrb[0].mxu0
      %v3498 = vadd.f32 0.0, %v3497
      %v3499 = vpop.f32.mrb[0].mxu0
      %v3500 = vadd.f32 0.0, %v3499
      %v3501 = vpop.f32.mrb[0].mxu0
      %v3502 = vadd.f32 0.0, %v3501
      %3503 = vmatprep.mubr.bf16.mxu0 %v1142
      %3504 = vmatmul.mubr.bf16.gmra.mrb[0].mxu0 %v1141
      %v3505 = vpop.f32.mrb[0].mxu0
      %v3506 = vadd.f32 0.0, %v3505
      %v3507 = vpop.f32.mrb[0].mxu0
      %v3508 = vadd.f32 0.0, %v3507
      %v3509 = vpop.f32.mrb[0].mxu0
      %v3510 = vadd.f32 0.0, %v3509
      %v3511 = vpop.f32.mrb[0].mxu0
      %v3512 = vadd.f32 0.0, %v3511
      %3513 = vmatprep.mubr.bf16.mxu0 %v1144
      %3514 = vmatmul.mubr.bf16.gmra.mrb[0].mxu0 %v1143
      %v3515 = vpop.f32.mrb[0].mxu0
      %v3516 = vadd.f32 0.0, %v3515
      %v3517 = vpop.f32.mrb[0].mxu0
      %v3518 = vadd.f32 0.0, %v3517
      %v3519 = vpop.f32.mrb[0].mxu0
      %v3520 = vadd.f32 0.0, %v3519
      %v3521 = vpop.f32.mrb[0].mxu0
      %v3522 = vadd.f32 0.0, %v3521
      %3523 = vmatprep.mubr.bf16.mxu0 %v1146
      %3524 = vmatmul.mubr.bf16.gmra.mrb[0].mxu0 %v1145
      %v3525 = vpop.f32.mrb[0].mxu0
      %v3526 = vadd.f32 0.0, %v3525
      %v3527 = vpop.f32.mrb[0].mxu0
      %v3528 = vadd.f32 0.0, %v3527
      %v3529 = vpop.f32.mrb[0].mxu0
      %v3530 = vadd.f32 0.0, %v3529
      %v3531 = vpop.f32.mrb[0].mxu0
      %v3532 = vadd.f32 0.0, %v3531
      %3533 = vmatprep.mubr.bf16.mxu0 %v1148
      %3534 = vmatmul.mubr.bf16.gmra.mrb[0].mxu0 %v1147
      %v3535 = vpop.f32.mrb[0].mxu0
      %v3536 = vadd.f32 0.0, %v3535
      %v3537 = vpop.f32.mrb[0].mxu0
      %v3538 = vadd.f32 0.0, %v3537
      %v3539 = vpop.f32.mrb[0].mxu0
      %v3540 = vadd.f32 0.0, %v3539
      %v3541 = vpop.f32.mrb[0].mxu0
      %v3542 = vadd.f32 0.0, %v3541
      %3543 = vmatprep.mubr.bf16.mxu0 %v1150
      %3544 = vmatmul.mubr.bf16.gmra.mrb[0].mxu0 %v1149
      %v3545 = vpop.f32.mrb[0].mxu0
      %v3546 = vadd.f32 0.0, %v3545
      %v3547 = vpop.f32.mrb[0].mxu0
      %v3548 = vadd.f32 0.0, %v3547
      %v3549 = vpop.f32.mrb[0].mxu0
      %v3550 = vadd.f32 0.0, %v3549
      %v3551 = vpop.f32.mrb[0].mxu0
      %v3552 = vadd.f32 0.0, %v3551
      %3553 = vmatprep.mubr.bf16.mxu0 %v1152
      %3554 = vmatmul.mubr.bf16.gmra.mrb[0].mxu0 %v1151
      %v3555 = vpop.f32.mrb[0].mxu0
      %v3556 = vadd.f32 0.0, %v3555
      %v3557 = vpop.f32.mrb[0].mxu0
      %v3558 = vadd.f32 0.0, %v3557
      %v3559 = vpop.f32.mrb[0].mxu0
      %v3560 = vadd.f32 0.0, %v3559
      %v3561 = vpop.f32.mrb[0].mxu0
      %v3562 = vadd.f32 0.0, %v3561
      %3563 = vmatprep.mubr.bf16.mxu0 %v1154
      %3564 = vmatmul.mubr.bf16.gmra.mrb[0].mxu0 %v1153
      %v3565 = vpop.f32.mrb[0].mxu0
      %v3566 = vadd.f32 0.0, %v3565
      %v3567 = vpop.f32.mrb[0].mxu0
      %v3568 = vadd.f32 0.0, %v3567
      %v3569 = vpop.f32.mrb[0].mxu0
      %v3570 = vadd.f32 0.0, %v3569
      %v3571 = vpop.f32.mrb[0].mxu0
      %v3572 = vadd.f32 0.0, %v3571
      %3573 = vmatprep.mubr.bf16.mxu0 %v1156
      %3574 = vmatmul.mubr.bf16.gmra.mrb[0].mxu0 %v1155
      %v3575 = vpop.f32.mrb[0].mxu0
      %v3576 = vadd.f32 0.0, %v3575
      %v3577 = vpop.f32.mrb[0].mxu0
      %v3578 = vadd.f32 0.0, %v3577
      %v3579 = vpop.f32.mrb[0].mxu0
      %v3580 = vadd.f32 0.0, %v3579
      %v3581 = vpop.f32.mrb[0].mxu0
      %v3582 = vadd.f32 0.0, %v3581
      %3583 = vmatprep.mubr.bf16.mxu0 %v1158
      %3584 = vmatmul.mubr.bf16.gmra.mrb[0].mxu0 %v1157
      %v3585 = vpop.f32.mrb[0].mxu0
      %v3586 = vadd.f32 0.0, %v3585
      %v3587 = vpop.f32.mrb[0].mxu0
      %v3588 = vadd.f32 0.0, %v3587
      %v3589 = vpop.f32.mrb[0].mxu0
      %v3590 = vadd.f32 0.0, %v3589
      %v3591 = vpop.f32.mrb[0].mxu0
      %v3592 = vadd.f32 0.0, %v3591
      %3593 = vmatprep.mubr.bf16.mxu0 %v1160
      %3594 = vmatmul.mubr.bf16.gmra.mrb[0].mxu0 %v1159
      %v3595 = vpop.f32.mrb[0].mxu0
      %v3596 = vadd.f32 0.0, %v3595
      %v3597 = vpop.f32.mrb[0].mxu0
      %v3598 = vadd.f32 0.0, %v3597
      %v3599 = vpop.f32.mrb[0].mxu0
      %v3600 = vadd.f32 0.0, %v3599
      %v3601 = vpop.f32.mrb[0].mxu0
      %v3602 = vadd.f32 0.0, %v3601
      %3603 = vmatprep.mubr.bf16.mxu0 %v1162
      %3604 = vmatmul.mubr.bf16.gmra.mrb[0].mxu0 %v1161
      %v3605 = vpop.f32.mrb[0].mxu0
      %v3606 = vadd.f32 0.0, %v3605
      %v3607 = vpop.f32.mrb[0].mxu0
      %v3608 = vadd.f32 0.0, %v3607
      %v3609 = vpop.f32.mrb[0].mxu0
      %v3610 = vadd.f32 0.0, %v3609
      %v3611 = vpop.f32.mrb[0].mxu0
      %v3612 = vadd.f32 0.0, %v3611
      %3613 = vmatprep.mubr.bf16.mxu0 %v1164
      %3614 = vmatmul.mubr.bf16.gmra.mrb[0].mxu0 %v1163
      %v3615 = vpop.f32.mrb[0].mxu0
      %v3616 = vadd.f32 0.0, %v3615
      %v3617 = vpop.f32.mrb[0].mxu0
      %v3618 = vadd.f32 0.0, %v3617
      %v3619 = vpop.f32.mrb[0].mxu0
      %v3620 = vadd.f32 0.0, %v3619
      %v3621 = vpop.f32.mrb[0].mxu0
      %v3622 = vadd.f32 0.0, %v3621
      %3623 = vmatprep.mubr.bf16.mxu0 %v1166
      %3624 = vmatmul.mubr.bf16.gmra.mrb[0].mxu0 %v1165
      %v3625 = vpop.f32.mrb[0].mxu0
      %v3626 = vadd.f32 0.0, %v3625
      %v3627 = vpop.f32.mrb[0].mxu0
      %v3628 = vadd.f32 0.0, %v3627
      %v3629 = vpop.f32.mrb[0].mxu0
      %v3630 = vadd.f32 0.0, %v3629
      %v3631 = vpop.f32.mrb[0].mxu0
      %v3632 = vadd.f32 0.0, %v3631
      %3633 = vmatprep.mubr.bf16.mxu0 %v1168
      %3634 = vmatmul.mubr.bf16.gmra.mrb[0].mxu0 %v1167
      %v3635 = vpop.f32.mrb[0].mxu0
      %v3636 = vadd.f32 0.0, %v3635
      %v3637 = vpop.f32.mrb[0].mxu0
      %v3638 = vadd.f32 0.0, %v3637
      %v3639 = vpop.f32.mrb[0].mxu0
      %v3640 = vadd.f32 0.0, %v3639
      %v3641 = vpop.f32.mrb[0].mxu0
      %v3642 = vadd.f32 0.0, %v3641
      %3643 = vmatprep.mubr.bf16.mxu0 %v3298
      %3644 = vmatmul.mubr.bf16.gmra.mrb[0].mxu0 %v3297
      %v3645 = vpop.f32.mrb[0].mxu0
      %v3646 = vadd.f32 0.0, %v3645
      %v3647 = vpop.f32.mrb[0].mxu0
      %v3648 = vadd.f32 0.0, %v3647
      %v3649 = vpop.f32.mrb[0].mxu0
      %v3650 = vadd.f32 0.0, %v3649
      %v3651 = vpop.f32.mrb[0].mxu0
      %v3652 = vadd.f32 0.0, %v3651
      %3653 = vdwg.mxu0
      %v3654 = vadd.f32 %v3172, %v3496
      %v3655 = vadd.f32 %v3173, %v3498
      %v3656 = vadd.f32 %v3174, %v3500
      %v3657 = vadd.f32 %v3175, %v3502
      %v3658 = vadd.f32 %v3176, %v3506
      %v3659 = vadd.f32 %v3177, %v3508
      %v3660 = vadd.f32 %v3178, %v3510
      %v3661 = vadd.f32 %v3179, %v3512
      %v3662 = vadd.f32 %v3180, %v3516
      %v3663 = vadd.f32 %v3181, %v3518
      %v3664 = vadd.f32 %v3182, %v3520
      %v3665 = vadd.f32 %v3183, %v3522
      %v3666 = vadd.f32 %v3184, %v3526
      %v3667 = vadd.f32 %v3185, %v3528
      %v3668 = vadd.f32 %v3186, %v3530
      %v3669 = vadd.f32 %v3187, %v3532
      %v3670 = vadd.f32 %v3188, %v3536
      %v3671 = vadd.f32 %v3189, %v3538
      %v3672 = vadd.f32 %v3190, %v3540
      %v3673 = vadd.f32 %v3191, %v3542
      %v3674 = vadd.f32 %v3192, %v3546
      %v3675 = vadd.f32 %v3193, %v3548
      %v3676 = vadd.f32 %v3194, %v3550
      %v3677 = vadd.f32 %v3195, %v3552
      %v3678 = vadd.f32 %v3196, %v3556
      %v3679 = vadd.f32 %v3197, %v3558
      %v3680 = vadd.f32 %v3198, %v3560
      %v3681 = vadd.f32 %v3199, %v3562
      %v3682 = vadd.f32 %v3200, %v3566
      %v3683 = vadd.f32 %v3201, %v3568
      %v3684 = vadd.f32 %v3202, %v3570
      %v3685 = vadd.f32 %v3203, %v3572
      %v3686 = vadd.f32 %v3204, %v3576
      %v3687 = vadd.f32 %v3205, %v3578
      %v3688 = vadd.f32 %v3206, %v3580
      %v3689 = vadd.f32 %v3207, %v3582
      %v3690 = vadd.f32 %v3208, %v3586
      %v3691 = vadd.f32 %v3209, %v3588
      %v3692 = vadd.f32 %v3210, %v3590
      %v3693 = vadd.f32 %v3211, %v3592
      %v3694 = vadd.f32 %v3212, %v3596
      %v3695 = vadd.f32 %v3213, %v3598
      %v3696 = vadd.f32 %v3214, %v3600
      %v3697 = vadd.f32 %v3215, %v3602
      %v3698 = vadd.f32 %v3216, %v3606
      %v3699 = vadd.f32 %v3217, %v3608
      %v3700 = vadd.f32 %v3218, %v3610
      %v3701 = vadd.f32 %v3219, %v3612
      %v3702 = vadd.f32 %v3220, %v3616
      %v3703 = vadd.f32 %v3221, %v3618
      %v3704 = vadd.f32 %v3222, %v3620
      %v3705 = vadd.f32 %v3223, %v3622
      %v3706 = vadd.f32 %v3224, %v3626
      %v3707 = vadd.f32 %v3225, %v3628
      %v3708 = vadd.f32 %v3226, %v3630
      %v3709 = vadd.f32 %v3227, %v3632
      %v3710 = vadd.f32 %v3228, %v3636
      %v3711 = vadd.f32 %v3229, %v3638
      %v3712 = vadd.f32 %v3230, %v3640
      %v3713 = vadd.f32 %v3231, %v3642
      %v3714 = vadd.f32 %v3232, %v3646
      %v3715 = vadd.f32 %v3233, %v3648
      %v3716 = vadd.f32 %v3234, %v3650
      %v3717 = vadd.f32 %v3235, %v3652
      %v3719 = vrot.slane %v615, 5
      %v3720 = vrot.slane %v3719, 4
      %v3721 = vrot.slane %v616, 5
      %v3722 = vsel %vm2085, %v3720, %v3721
      %v3723 = vrot.slane %v3721, 4
      %v3724 = vrot.slane %v617, 5
      %v3725 = vsel %vm2085, %v3723, %v3724
      %s3726 = scalar_lea.vmem %s1, 1280
      %v3727 = vld [vmem:[%s3726] sm:$0xff]
      %v3728 = vld [vmem:[%s3726 + $0x8] sm:$0xff]
      %v3729 = vld [vmem:[%s3726 + $0x10] sm:$0xff]
      %v3730 = vld [vmem:[%s3726 + $0x18] sm:$0xff]
      %v3731 = vld [vmem:[%s3726 + $0x20] sm:$0xff]
      %v3732 = vld [vmem:[%s3726 + $0x28] sm:$0xff]
      %v3733 = vld [vmem:[%s3726 + $0x30] sm:$0xff]
      %v3734 = vld [vmem:[%s3726 + $0x38] sm:$0xff]
      %v3735 = vld [vmem:[%s3726 + $0x40] sm:$0xff]
      %v3736 = vld [vmem:[%s3726 + $0x48] sm:$0xff]
      %v3737 = vld [vmem:[%s3726 + $0x50] sm:$0xff]
      %v3738 = vld [vmem:[%s3726 + $0x58] sm:$0xff]
      %v3739 = vld [vmem:[%s3726 + $0x60] sm:$0xff]
      %v3740 = vld [vmem:[%s3726 + $0x68] sm:$0xff]
      %v3741 = vld [vmem:[%s3726 + $0x70] sm:$0xff]
      %v3742 = vld [vmem:[%s3726 + $0x78] sm:$0xff]
      %v3743 = vld [vmem:[%s3726 + $0x80] sm:$0xff]
      %v3744 = vld [vmem:[%s3726 + $0x88] sm:$0xff]
      %v3745 = vld [vmem:[%s3726 + $0x90] sm:$0xff]
      %v3746 = vld [vmem:[%s3726 + $0x98] sm:$0xff]
      %v3747 = vld [vmem:[%s3726 + $0xa0] sm:$0xff]
      %v3748 = vld [vmem:[%s3726 + $0xa8] sm:$0xff]
      %v3749 = vld [vmem:[%s3726 + $0xb0] sm:$0xff]
      %v3750 = vld [vmem:[%s3726 + $0xb8] sm:$0xff]
      %v3751 = vld [vmem:[%s3726 + $0xc0] sm:$0xff]
      %v3752 = vld [vmem:[%s3726 + $0xc8] sm:$0xff]
      %v3753 = vld [vmem:[%s3726 + $0xd0] sm:$0xff]
      %v3754 = vld [vmem:[%s3726 + $0xd8] sm:$0xff]
      %v3755 = vld [vmem:[%s3726 + $0xe0] sm:$0xff]
      %v3756 = vld [vmem:[%s3726 + $0xe8] sm:$0xff]
      %v3757 = vld [vmem:[%s3726 + $0xf0] sm:$0xff]
      %v3758 = vld [vmem:[%s3726 + $0xf8] sm:$0xff]
      %v3759 = vunpack.c.l.b16 %v3722
      %v3760 = vunpack.c.h.b16 %v3722
      %v3761 = vunpack.c.l.b16 %v3725
      %v3762 = vunpack.c.h.b16 %v3725
      %v3763 = vpack.c.b16 %v3761, %v3759
      %v3764 = vpack.c.b16 %v3762, %v3760
      %v3799 = vunpack.c.l.b16 %v3727
      %v3800 = vunpack.c.h.b16 %v3727
      %v3801 = vunpack.c.l.b16 %v3728
      %v3802 = vunpack.c.h.b16 %v3728
      %v3803 = vunpack.c.l.b16 %v3729
      %v3804 = vunpack.c.h.b16 %v3729
      %v3805 = vunpack.c.l.b16 %v3730
      %v3806 = vunpack.c.h.b16 %v3730
      %v3807 = vunpack.c.l.b16 %v3731
      %v3808 = vunpack.c.h.b16 %v3731
      %v3809 = vunpack.c.l.b16 %v3732
      %v3810 = vunpack.c.h.b16 %v3732
      %v3811 = vunpack.c.l.b16 %v3733
      %v3812 = vunpack.c.h.b16 %v3733
      %v3813 = vunpack.c.l.b16 %v3734
      %v3814 = vunpack.c.h.b16 %v3734
      %v3815 = vunpack.c.l.b16 %v3735
      %v3816 = vunpack.c.h.b16 %v3735
      %v3817 = vunpack.c.l.b16 %v3736
      %v3818 = vunpack.c.h.b16 %v3736
      %v3819 = vunpack.c.l.b16 %v3737
      %v3820 = vunpack.c.h.b16 %v3737
      %v3821 = vunpack.c.l.b16 %v3738
      %v3822 = vunpack.c.h.b16 %v3738
      %v3823 = vunpack.c.l.b16 %v3739
      %v3824 = vunpack.c.h.b16 %v3739
      %v3825 = vunpack.c.l.b16 %v3740
      %v3826 = vunpack.c.h.b16 %v3740
      %v3827 = vunpack.c.l.b16 %v3741
      %v3828 = vunpack.c.h.b16 %v3741
      %v3829 = vunpack.c.l.b16 %v3742
      %v3830 = vunpack.c.h.b16 %v3742
      %v3831 = vunpack.c.l.b16 %v3743
      %v3832 = vunpack.c.h.b16 %v3743
      %v3833 = vunpack.c.l.b16 %v3744
      %v3834 = vunpack.c.h.b16 %v3744
      %v3835 = vunpack.c.l.b16 %v3745
      %v3836 = vunpack.c.h.b16 %v3745
      %v3837 = vunpack.c.l.b16 %v3746
      %v3838 = vunpack.c.h.b16 %v3746
      %v3839 = vunpack.c.l.b16 %v3747
      %v3840 = vunpack.c.h.b16 %v3747
      %v3841 = vunpack.c.l.b16 %v3748
      %v3842 = vunpack.c.h.b16 %v3748
      %v3843 = vunpack.c.l.b16 %v3749
      %v3844 = vunpack.c.h.b16 %v3749
      %v3845 = vunpack.c.l.b16 %v3750
      %v3846 = vunpack.c.h.b16 %v3750
      %v3847 = vunpack.c.l.b16 %v3751
      %v3848 = vunpack.c.h.b16 %v3751
      %v3849 = vunpack.c.l.b16 %v3752
      %v3850 = vunpack.c.h.b16 %v3752
      %v3851 = vunpack.c.l.b16 %v3753
      %v3852 = vunpack.c.h.b16 %v3753
      %v3853 = vunpack.c.l.b16 %v3754
      %v3854 = vunpack.c.h.b16 %v3754
      %v3855 = vunpack.c.l.b16 %v3755
      %v3856 = vunpack.c.h.b16 %v3755
      %v3857 = vunpack.c.l.b16 %v3756
      %v3858 = vunpack.c.h.b16 %v3756
      %v3859 = vunpack.c.l.b16 %v3757
      %v3860 = vunpack.c.h.b16 %v3757
      %v3861 = vunpack.c.l.b16 %v3758
      %v3862 = vunpack.c.h.b16 %v3758
      %v3863 = vpack.c.b16 %v3801, %v3799
      %v3864 = vpack.c.b16 %v3802, %v3800
      %v3865 = vpack.c.b16 %v3805, %v3803
      %v3866 = vpack.c.b16 %v3806, %v3804
      %v3867 = vpack.c.b16 %v3809, %v3807
      %v3868 = vpack.c.b16 %v3810, %v3808
      %v3869 = vpack.c.b16 %v3813, %v3811
      %v3870 = vpack.c.b16 %v3814, %v3812
      %v3871 = vpack.c.b16 %v3817, %v3815
      %v3872 = vpack.c.b16 %v3818, %v3816
      %v3873 = vpack.c.b16 %v3821, %v3819
      %v3874 = vpack.c.b16 %v3822, %v3820
      %v3875 = vpack.c.b16 %v3825, %v3823
      %v3876 = vpack.c.b16 %v3826, %v3824
      %v3877 = vpack.c.b16 %v3829, %v3827
      %v3878 = vpack.c.b16 %v3830, %v3828
      %v3879 = vpack.c.b16 %v3833, %v3831
      %v3880 = vpack.c.b16 %v3834, %v3832
      %v3881 = vpack.c.b16 %v3837, %v3835
      %v3882 = vpack.c.b16 %v3838, %v3836
      %v3883 = vpack.c.b16 %v3841, %v3839
      %v3884 = vpack.c.b16 %v3842, %v3840
      %v3885 = vpack.c.b16 %v3845, %v3843
      %v3886 = vpack.c.b16 %v3846, %v3844
      %v3887 = vpack.c.b16 %v3849, %v3847
      %v3888 = vpack.c.b16 %v3850, %v3848
      %v3889 = vpack.c.b16 %v3853, %v3851
      %v3890 = vpack.c.b16 %v3854, %v3852
      %v3891 = vpack.c.b16 %v3857, %v3855
      %v3892 = vpack.c.b16 %v3858, %v3856
      %v3893 = vpack.c.b16 %v3861, %v3859
      %v3894 = vpack.c.b16 %v3862, %v3860
      %3927 = vmatprep.subr.bf16.mxu0 %v3864
      %3928 = vmatpush1.bf16.msra.mxu0 %v3863
      %3929 = vmatprep.subr.bf16.mxu0 %v3866
      %3930 = vmatpush1.bf16.msra.mxu0 %v3865
      %3931 = vmatprep.subr.bf16.mxu0 %v3868
      %3932 = vmatpush1.bf16.msra.mxu0 %v3867
      %3933 = vmatprep.subr.bf16.mxu0 %v3870
      %3934 = vmatpush1.bf16.msra.mxu0 %v3869
      %3935 = vmatprep.subr.bf16.mxu0 %v3872
      %3936 = vmatpush1.bf16.msra.mxu0 %v3871
      %3937 = vmatprep.subr.bf16.mxu0 %v3874
      %3938 = vmatpush1.bf16.msra.mxu0 %v3873
      %3939 = vmatprep.subr.bf16.mxu0 %v3876
      %3940 = vmatpush1.bf16.msra.mxu0 %v3875
      %3941 = vmatprep.subr.bf16.mxu0 %v3878
      %3942 = vmatpush1.bf16.msra.mxu0 %v3877
      %3943 = vmatprep.subr.bf16.mxu0 %v3880
      %3944 = vmatpush1.bf16.msra.mxu0 %v3879
      %3945 = vmatprep.subr.bf16.mxu0 %v3882
      %3946 = vmatpush1.bf16.msra.mxu0 %v3881
      %3947 = vmatprep.subr.bf16.mxu0 %v3884
      %3948 = vmatpush1.bf16.msra.mxu0 %v3883
      %3949 = vmatprep.subr.bf16.mxu0 %v3886
      %3950 = vmatpush1.bf16.msra.mxu0 %v3885
      %3951 = vmatprep.subr.bf16.mxu0 %v3888
      %3952 = vmatpush1.bf16.msra.mxu0 %v3887
      %3953 = vmatprep.subr.bf16.mxu0 %v3890
      %3954 = vmatpush1.bf16.msra.mxu0 %v3889
      %3955 = vmatprep.subr.bf16.mxu0 %v3892
      %3956 = vmatpush1.bf16.msra.mxu0 %v3891
      %3957 = vmatprep.subr.bf16.mxu0 %v3894
      %3958 = vmatpush1.bf16.msra.mxu0 %v3893
      %3959 = vmatprep.mubr.bf16.mxu0 %v2298
      %3960 = vmatmul.mubr.bf16.gmra.mrb[0].mxu0 %v2297
      %v3961 = vpop.f32.mrb[0].mxu0
      %v3962 = vadd.f32 0.0, %v3961
      %v3963 = vpop.f32.mrb[0].mxu0
      %v3964 = vadd.f32 0.0, %v3963
      %v3965 = vpop.f32.mrb[0].mxu0
      %v3966 = vadd.f32 0.0, %v3965
      %v3967 = vpop.f32.mrb[0].mxu0
      %v3968 = vadd.f32 0.0, %v3967
      %3969 = vmatprep.mubr.bf16.mxu0 %v2300
      %3970 = vmatmul.mubr.bf16.gmra.mrb[0].mxu0 %v2299
      %v3971 = vpop.f32.mrb[0].mxu0
      %v3972 = vadd.f32 0.0, %v3971
      %v3973 = vpop.f32.mrb[0].mxu0
      %v3974 = vadd.f32 0.0, %v3973
      %v3975 = vpop.f32.mrb[0].mxu0
      %v3976 = vadd.f32 0.0, %v3975
      %v3977 = vpop.f32.mrb[0].mxu0
      %v3978 = vadd.f32 0.0, %v3977
      %3979 = vmatprep.mubr.bf16.mxu0 %v2302
      %3980 = vmatmul.mubr.bf16.gmra.mrb[0].mxu0 %v2301
      %v3981 = vpop.f32.mrb[0].mxu0
      %v3982 = vadd.f32 0.0, %v3981
      %v3983 = vpop.f32.mrb[0].mxu0
      %v3984 = vadd.f32 0.0, %v3983
      %v3985 = vpop.f32.mrb[0].mxu0
      %v3986 = vadd.f32 0.0, %v3985
      %v3987 = vpop.f32.mrb[0].mxu0
      %v3988 = vadd.f32 0.0, %v3987
      %3989 = vmatprep.mubr.bf16.mxu0 %v2304
      %3990 = vmatmul.mubr.bf16.gmra.mrb[0].mxu0 %v2303
      %v3991 = vpop.f32.mrb[0].mxu0
      %v3992 = vadd.f32 0.0, %v3991
      %v3993 = vpop.f32.mrb[0].mxu0
      %v3994 = vadd.f32 0.0, %v3993
      %v3995 = vpop.f32.mrb[0].mxu0
      %v3996 = vadd.f32 0.0, %v3995
      %v3997 = vpop.f32.mrb[0].mxu0
      %v3998 = vadd.f32 0.0, %v3997
      %3999 = vmatprep.mubr.bf16.mxu0 %v2306
      %4000 = vmatmul.mubr.bf16.gmra.mrb[0].mxu0 %v2305
      %v4001 = vpop.f32.mrb[0].mxu0
      %v4002 = vadd.f32 0.0, %v4001
      %v4003 = vpop.f32.mrb[0].mxu0
      %v4004 = vadd.f32 0.0, %v4003
      %v4005 = vpop.f32.mrb[0].mxu0
      %v4006 = vadd.f32 0.0, %v4005
      %v4007 = vpop.f32.mrb[0].mxu0
      %v4008 = vadd.f32 0.0, %v4007
      %4009 = vmatprep.mubr.bf16.mxu0 %v2308
      %4010 = vmatmul.mubr.bf16.gmra.mrb[0].mxu0 %v2307
      %v4011 = vpop.f32.mrb[0].mxu0
      %v4012 = vadd.f32 0.0, %v4011
      %v4013 = vpop.f32.mrb[0].mxu0
      %v4014 = vadd.f32 0.0, %v4013
      %v4015 = vpop.f32.mrb[0].mxu0
      %v4016 = vadd.f32 0.0, %v4015
      %v4017 = vpop.f32.mrb[0].mxu0
      %v4018 = vadd.f32 0.0, %v4017
      %4019 = vmatprep.mubr.bf16.mxu0 %v2310
      %4020 = vmatmul.mubr.bf16.gmra.mrb[0].mxu0 %v2309
      %v4021 = vpop.f32.mrb[0].mxu0
      %v4022 = vadd.f32 0.0, %v4021
      %v4023 = vpop.f32.mrb[0].mxu0
      %v4024 = vadd.f32 0.0, %v4023
      %v4025 = vpop.f32.mrb[0].mxu0
      %v4026 = vadd.f32 0.0, %v4025
      %v4027 = vpop.f32.mrb[0].mxu0
      %v4028 = vadd.f32 0.0, %v4027
      %4029 = vmatprep.mubr.bf16.mxu0 %v2312
      %4030 = vmatmul.mubr.bf16.gmra.mrb[0].mxu0 %v2311
      %v4031 = vpop.f32.mrb[0].mxu0
      %v4032 = vadd.f32 0.0, %v4031
      %v4033 = vpop.f32.mrb[0].mxu0
      %v4034 = vadd.f32 0.0, %v4033
      %v4035 = vpop.f32.mrb[0].mxu0
      %v4036 = vadd.f32 0.0, %v4035
      %v4037 = vpop.f32.mrb[0].mxu0
      %v4038 = vadd.f32 0.0, %v4037
      %4039 = vmatprep.mubr.bf16.mxu0 %v2314
      %4040 = vmatmul.mubr.bf16.gmra.mrb[0].mxu0 %v2313
      %v4041 = vpop.f32.mrb[0].mxu0
      %v4042 = vadd.f32 0.0, %v4041
      %v4043 = vpop.f32.mrb[0].mxu0
      %v4044 = vadd.f32 0.0, %v4043
      %v4045 = vpop.f32.mrb[0].mxu0
      %v4046 = vadd.f32 0.0, %v4045
      %v4047 = vpop.f32.mrb[0].mxu0
      %v4048 = vadd.f32 0.0, %v4047
      %4049 = vmatprep.mubr.bf16.mxu0 %v2316
      %4050 = vmatmul.mubr.bf16.gmra.mrb[0].mxu0 %v2315
      %v4051 = vpop.f32.mrb[0].mxu0
      %v4052 = vadd.f32 0.0, %v4051
      %v4053 = vpop.f32.mrb[0].mxu0
      %v4054 = vadd.f32 0.0, %v4053
      %v4055 = vpop.f32.mrb[0].mxu0
      %v4056 = vadd.f32 0.0, %v4055
      %v4057 = vpop.f32.mrb[0].mxu0
      %v4058 = vadd.f32 0.0, %v4057
      %4059 = vmatprep.mubr.bf16.mxu0 %v2318
      %4060 = vmatmul.mubr.bf16.gmra.mrb[0].mxu0 %v2317
      %v4061 = vpop.f32.mrb[0].mxu0
      %v4062 = vadd.f32 0.0, %v4061
      %v4063 = vpop.f32.mrb[0].mxu0
      %v4064 = vadd.f32 0.0, %v4063
      %v4065 = vpop.f32.mrb[0].mxu0
      %v4066 = vadd.f32 0.0, %v4065
      %v4067 = vpop.f32.mrb[0].mxu0
      %v4068 = vadd.f32 0.0, %v4067
      %4069 = vmatprep.mubr.bf16.mxu0 %v2320
      %4070 = vmatmul.mubr.bf16.gmra.mrb[0].mxu0 %v2319
      %v4071 = vpop.f32.mrb[0].mxu0
      %v4072 = vadd.f32 0.0, %v4071
      %v4073 = vpop.f32.mrb[0].mxu0
      %v4074 = vadd.f32 0.0, %v4073
      %v4075 = vpop.f32.mrb[0].mxu0
      %v4076 = vadd.f32 0.0, %v4075
      %v4077 = vpop.f32.mrb[0].mxu0
      %v4078 = vadd.f32 0.0, %v4077
      %4079 = vmatprep.mubr.bf16.mxu0 %v2322
      %4080 = vmatmul.mubr.bf16.gmra.mrb[0].mxu0 %v2321
      %v4081 = vpop.f32.mrb[0].mxu0
      %v4082 = vadd.f32 0.0, %v4081
      %v4083 = vpop.f32.mrb[0].mxu0
      %v4084 = vadd.f32 0.0, %v4083
      %v4085 = vpop.f32.mrb[0].mxu0
      %v4086 = vadd.f32 0.0, %v4085
      %v4087 = vpop.f32.mrb[0].mxu0
      %v4088 = vadd.f32 0.0, %v4087
      %4089 = vmatprep.mubr.bf16.mxu0 %v2324
      %4090 = vmatmul.mubr.bf16.gmra.mrb[0].mxu0 %v2323
      %v4091 = vpop.f32.mrb[0].mxu0
      %v4092 = vadd.f32 0.0, %v4091
      %v4093 = vpop.f32.mrb[0].mxu0
      %v4094 = vadd.f32 0.0, %v4093
      %v4095 = vpop.f32.mrb[0].mxu0
      %v4096 = vadd.f32 0.0, %v4095
      %v4097 = vpop.f32.mrb[0].mxu0
      %v4098 = vadd.f32 0.0, %v4097
      %4099 = vmatprep.mubr.bf16.mxu0 %v2326
      %4100 = vmatmul.mubr.bf16.gmra.mrb[0].mxu0 %v2325
      %v4101 = vpop.f32.mrb[0].mxu0
      %v4102 = vadd.f32 0.0, %v4101
      %v4103 = vpop.f32.mrb[0].mxu0
      %v4104 = vadd.f32 0.0, %v4103
      %v4105 = vpop.f32.mrb[0].mxu0
      %v4106 = vadd.f32 0.0, %v4105
      %v4107 = vpop.f32.mrb[0].mxu0
      %v4108 = vadd.f32 0.0, %v4107
      %4109 = vmatprep.mubr.bf16.mxu0 %v3764
      %4110 = vmatmul.mubr.bf16.gmra.mrb[0].mxu0 %v3763
      %v4111 = vpop.f32.mrb[0].mxu0
      %v4112 = vadd.f32 0.0, %v4111
      %v4113 = vpop.f32.mrb[0].mxu0
      %v4114 = vadd.f32 0.0, %v4113
      %v4115 = vpop.f32.mrb[0].mxu0
      %v4116 = vadd.f32 0.0, %v4115
      %v4117 = vpop.f32.mrb[0].mxu0
      %v4118 = vadd.f32 0.0, %v4117
      %4119 = vdwg.mxu0
      %v4120 = vadd.f32 %v3654, %v3962
      %v4121 = vadd.f32 %v3655, %v3964
      %v4122 = vadd.f32 %v3656, %v3966
      %v4123 = vadd.f32 %v3657, %v3968
      %v4124 = vadd.f32 %v3658, %v3972
      %v4125 = vadd.f32 %v3659, %v3974
      %v4126 = vadd.f32 %v3660, %v3976
      %v4127 = vadd.f32 %v3661, %v3978
      %v4128 = vadd.f32 %v3662, %v3982
      %v4129 = vadd.f32 %v3663, %v3984
      %v4130 = vadd.f32 %v3664, %v3986
      %v4131 = vadd.f32 %v3665, %v3988
      %v4132 = vadd.f32 %v3666, %v3992
      %v4133 = vadd.f32 %v3667, %v3994
      %v4134 = vadd.f32 %v3668, %v3996
      %v4135 = vadd.f32 %v3669, %v3998
      %v4136 = vadd.f32 %v3670, %v4002
      %v4137 = vadd.f32 %v3671, %v4004
      %v4138 = vadd.f32 %v3672, %v4006
      %v4139 = vadd.f32 %v3673, %v4008
      %v4140 = vadd.f32 %v3674, %v4012
      %v4141 = vadd.f32 %v3675, %v4014
      %v4142 = vadd.f32 %v3676, %v4016
      %v4143 = vadd.f32 %v3677, %v4018
      %v4144 = vadd.f32 %v3678, %v4022
      %v4145 = vadd.f32 %v3679, %v4024
      %v4146 = vadd.f32 %v3680, %v4026
      %v4147 = vadd.f32 %v3681, %v4028
      %v4148 = vadd.f32 %v3682, %v4032
      %v4149 = vadd.f32 %v3683, %v4034
      %v4150 = vadd.f32 %v3684, %v4036
      %v4151 = vadd.f32 %v3685, %v4038
      %v4152 = vadd.f32 %v3686, %v4042
      %v4153 = vadd.f32 %v3687, %v4044
      %v4154 = vadd.f32 %v3688, %v4046
      %v4155 = vadd.f32 %v3689, %v4048
      %v4156 = vadd.f32 %v3690, %v4052
      %v4157 = vadd.f32 %v3691, %v4054
      %v4158 = vadd.f32 %v3692, %v4056
      %v4159 = vadd.f32 %v3693, %v4058
      %v4160 = vadd.f32 %v3694, %v4062
      %v4161 = vadd.f32 %v3695, %v4064
      %v4162 = vadd.f32 %v3696, %v4066
      %v4163 = vadd.f32 %v3697, %v4068
      %v4164 = vadd.f32 %v3698, %v4072
      %v4165 = vadd.f32 %v3699, %v4074
      %v4166 = vadd.f32 %v3700, %v4076
      %v4167 = vadd.f32 %v3701, %v4078
      %v4168 = vadd.f32 %v3702, %v4082
      %v4169 = vadd.f32 %v3703, %v4084
      %v4170 = vadd.f32 %v3704, %v4086
      %v4171 = vadd.f32 %v3705, %v4088
      %v4172 = vadd.f32 %v3706, %v4092
      %v4173 = vadd.f32 %v3707, %v4094
      %v4174 = vadd.f32 %v3708, %v4096
      %v4175 = vadd.f32 %v3709, %v4098
      %v4176 = vadd.f32 %v3710, %v4102
      %v4177 = vadd.f32 %v3711, %v4104
      %v4178 = vadd.f32 %v3712, %v4106
      %v4179 = vadd.f32 %v3713, %v4108
      %v4180 = vadd.f32 %v3714, %v4112
      %v4181 = vadd.f32 %v3715, %v4114
      %v4182 = vadd.f32 %v3716, %v4116
      %v4183 = vadd.f32 %v3717, %v4118
      %s4184 = scalar_lea.vmem %s1, 1536
      %v4185 = vld [vmem:[%s4184] sm:$0xff]
      %v4186 = vld [vmem:[%s4184 + $0x8] sm:$0xff]
      %v4187 = vld [vmem:[%s4184 + $0x10] sm:$0xff]
      %v4188 = vld [vmem:[%s4184 + $0x18] sm:$0xff]
      %v4189 = vld [vmem:[%s4184 + $0x20] sm:$0xff]
      %v4190 = vld [vmem:[%s4184 + $0x28] sm:$0xff]
      %v4191 = vld [vmem:[%s4184 + $0x30] sm:$0xff]
      %v4192 = vld [vmem:[%s4184 + $0x38] sm:$0xff]
      %v4193 = vld [vmem:[%s4184 + $0x40] sm:$0xff]
      %v4194 = vld [vmem:[%s4184 + $0x48] sm:$0xff]
      %v4195 = vld [vmem:[%s4184 + $0x50] sm:$0xff]
      %v4196 = vld [vmem:[%s4184 + $0x58] sm:$0xff]
      %v4197 = vld [vmem:[%s4184 + $0x60] sm:$0xff]
      %v4198 = vld [vmem:[%s4184 + $0x68] sm:$0xff]
      %v4199 = vld [vmem:[%s4184 + $0x70] sm:$0xff]
      %v4200 = vld [vmem:[%s4184 + $0x78] sm:$0xff]
      %v4201 = vld [vmem:[%s4184 + $0x80] sm:$0xff]
      %v4202 = vld [vmem:[%s4184 + $0x88] sm:$0xff]
      %v4203 = vld [vmem:[%s4184 + $0x90] sm:$0xff]
      %v4204 = vld [vmem:[%s4184 + $0x98] sm:$0xff]
      %v4205 = vld [vmem:[%s4184 + $0xa0] sm:$0xff]
      %v4206 = vld [vmem:[%s4184 + $0xa8] sm:$0xff]
      %v4207 = vld [vmem:[%s4184 + $0xb0] sm:$0xff]
      %v4208 = vld [vmem:[%s4184 + $0xb8] sm:$0xff]
      %v4209 = vld [vmem:[%s4184 + $0xc0] sm:$0xff]
      %v4210 = vld [vmem:[%s4184 + $0xc8] sm:$0xff]
      %v4211 = vld [vmem:[%s4184 + $0xd0] sm:$0xff]
      %v4212 = vld [vmem:[%s4184 + $0xd8] sm:$0xff]
      %v4213 = vld [vmem:[%s4184 + $0xe0] sm:$0xff]
      %v4214 = vld [vmem:[%s4184 + $0xe8] sm:$0xff]
      %v4215 = vld [vmem:[%s4184 + $0xf0] sm:$0xff]
      %v4216 = vld [vmem:[%s4184 + $0xf8] sm:$0xff]
      %v4219 = vunpack.c.l.b16 %v618
      %v4220 = vunpack.c.h.b16 %v618
      %v4221 = vunpack.c.l.b16 %v619
      %v4222 = vunpack.c.h.b16 %v619
      %v4223 = vpack.c.b16 %v4221, %v4219
      %v4224 = vpack.c.b16 %v4222, %v4220
      %v4259 = vunpack.c.l.b16 %v4185
      %v4260 = vunpack.c.h.b16 %v4185
      %v4261 = vunpack.c.l.b16 %v4186
      %v4262 = vunpack.c.h.b16 %v4186
      %v4263 = vunpack.c.l.b16 %v4187
      %v4264 = vunpack.c.h.b16 %v4187
      %v4265 = vunpack.c.l.b16 %v4188
      %v4266 = vunpack.c.h.b16 %v4188
      %v4267 = vunpack.c.l.b16 %v4189
      %v4268 = vunpack.c.h.b16 %v4189
      %v4269 = vunpack.c.l.b16 %v4190
      %v4270 = vunpack.c.h.b16 %v4190
      %v4271 = vunpack.c.l.b16 %v4191
      %v4272 = vunpack.c.h.b16 %v4191
      %v4273 = vunpack.c.l.b16 %v4192
      %v4274 = vunpack.c.h.b16 %v4192
      %v4275 = vunpack.c.l.b16 %v4193
      %v4276 = vunpack.c.h.b16 %v4193
      %v4277 = vunpack.c.l.b16 %v4194
      %v4278 = vunpack.c.h.b16 %v4194
      %v4279 = vunpack.c.l.b16 %v4195
      %v4280 = vunpack.c.h.b16 %v4195
      %v4281 = vunpack.c.l.b16 %v4196
      %v4282 = vunpack.c.h.b16 %v4196
      %v4283 = vunpack.c.l.b16 %v4197
      %v4284 = vunpack.c.h.b16 %v4197
      %v4285 = vunpack.c.l.b16 %v4198
      %v4286 = vunpack.c.h.b16 %v4198
      %v4287 = vunpack.c.l.b16 %v4199
      %v4288 = vunpack.c.h.b16 %v4199
      %v4289 = vunpack.c.l.b16 %v4200
      %v4290 = vunpack.c.h.b16 %v4200
      %v4291 = vunpack.c.l.b16 %v4201
      %v4292 = vunpack.c.h.b16 %v4201
      %v4293 = vunpack.c.l.b16 %v4202
      %v4294 = vunpack.c.h.b16 %v4202
      %v4295 = vunpack.c.l.b16 %v4203
      %v4296 = vunpack.c.h.b16 %v4203
      %v4297 = vunpack.c.l.b16 %v4204
      %v4298 = vunpack.c.h.b16 %v4204
      %v4299 = vunpack.c.l.b16 %v4205
      %v4300 = vunpack.c.h.b16 %v4205
      %v4301 = vunpack.c.l.b16 %v4206
      %v4302 = vunpack.c.h.b16 %v4206
      %v4303 = vunpack.c.l.b16 %v4207
      %v4304 = vunpack.c.h.b16 %v4207
      %v4305 = vunpack.c.l.b16 %v4208
      %v4306 = vunpack.c.h.b16 %v4208
      %v4307 = vunpack.c.l.b16 %v4209
      %v4308 = vunpack.c.h.b16 %v4209
      %v4309 = vunpack.c.l.b16 %v4210
      %v4310 = vunpack.c.h.b16 %v4210
      %v4311 = vunpack.c.l.b16 %v4211
      %v4312 = vunpack.c.h.b16 %v4211
      %v4313 = vunpack.c.l.b16 %v4212
      %v4314 = vunpack.c.h.b16 %v4212
      %v4315 = vunpack.c.l.b16 %v4213
      %v4316 = vunpack.c.h.b16 %v4213
      %v4317 = vunpack.c.l.b16 %v4214
      %v4318 = vunpack.c.h.b16 %v4214
      %v4319 = vunpack.c.l.b16 %v4215
      %v4320 = vunpack.c.h.b16 %v4215
      %v4321 = vunpack.c.l.b16 %v4216
      %v4322 = vunpack.c.h.b16 %v4216
      %v4323 = vpack.c.b16 %v4261, %v4259
      %v4324 = vpack.c.b16 %v4262, %v4260
      %v4325 = vpack.c.b16 %v4265, %v4263
      %v4326 = vpack.c.b16 %v4266, %v4264
      %v4327 = vpack.c.b16 %v4269, %v4267
      %v4328 = vpack.c.b16 %v4270, %v4268
      %v4329 = vpack.c.b16 %v4273, %v4271
      %v4330 = vpack.c.b16 %v4274, %v4272
      %v4331 = vpack.c.b16 %v4277, %v4275
      %v4332 = vpack.c.b16 %v4278, %v4276
      %v4333 = vpack.c.b16 %v4281, %v4279
      %v4334 = vpack.c.b16 %v4282, %v4280
      %v4335 = vpack.c.b16 %v4285, %v4283
      %v4336 = vpack.c.b16 %v4286, %v4284
      %v4337 = vpack.c.b16 %v4289, %v4287
      %v4338 = vpack.c.b16 %v4290, %v4288
      %v4339 = vpack.c.b16 %v4293, %v4291
      %v4340 = vpack.c.b16 %v4294, %v4292
      %v4341 = vpack.c.b16 %v4297, %v4295
      %v4342 = vpack.c.b16 %v4298, %v4296
      %v4343 = vpack.c.b16 %v4301, %v4299
      %v4344 = vpack.c.b16 %v4302, %v4300
      %v4345 = vpack.c.b16 %v4305, %v4303
      %v4346 = vpack.c.b16 %v4306, %v4304
      %v4347 = vpack.c.b16 %v4309, %v4307
      %v4348 = vpack.c.b16 %v4310, %v4308
      %v4349 = vpack.c.b16 %v4313, %v4311
      %v4350 = vpack.c.b16 %v4314, %v4312
      %v4351 = vpack.c.b16 %v4317, %v4315
      %v4352 = vpack.c.b16 %v4318, %v4316
      %v4353 = vpack.c.b16 %v4321, %v4319
      %v4354 = vpack.c.b16 %v4322, %v4320
      %4387 = vmatprep.subr.bf16.mxu0 %v4324
      %4388 = vmatpush1.bf16.msra.mxu0 %v4323
      %4389 = vmatprep.subr.bf16.mxu0 %v4326
      %4390 = vmatpush1.bf16.msra.mxu0 %v4325
      %4391 = vmatprep.subr.bf16.mxu0 %v4328
      %4392 = vmatpush1.bf16.msra.mxu0 %v4327
      %4393 = vmatprep.subr.bf16.mxu0 %v4330
      %4394 = vmatpush1.bf16.msra.mxu0 %v4329
      %4395 = vmatprep.subr.bf16.mxu0 %v4332
      %4396 = vmatpush1.bf16.msra.mxu0 %v4331
      %4397 = vmatprep.subr.bf16.mxu0 %v4334
      %4398 = vmatpush1.bf16.msra.mxu0 %v4333
      %4399 = vmatprep.subr.bf16.mxu0 %v4336
      %4400 = vmatpush1.bf16.msra.mxu0 %v4335
      %4401 = vmatprep.subr.bf16.mxu0 %v4338
      %4402 = vmatpush1.bf16.msra.mxu0 %v4337
      %4403 = vmatprep.subr.bf16.mxu0 %v4340
      %4404 = vmatpush1.bf16.msra.mxu0 %v4339
      %4405 = vmatprep.subr.bf16.mxu0 %v4342
      %4406 = vmatpush1.bf16.msra.mxu0 %v4341
      %4407 = vmatprep.subr.bf16.mxu0 %v4344
      %4408 = vmatpush1.bf16.msra.mxu0 %v4343
      %4409 = vmatprep.subr.bf16.mxu0 %v4346
      %4410 = vmatpush1.bf16.msra.mxu0 %v4345
      %4411 = vmatprep.subr.bf16.mxu0 %v4348
      %4412 = vmatpush1.bf16.msra.mxu0 %v4347
      %4413 = vmatprep.subr.bf16.mxu0 %v4350
      %4414 = vmatpush1.bf16.msra.mxu0 %v4349
      %4415 = vmatprep.subr.bf16.mxu0 %v4352
      %4416 = vmatpush1.bf16.msra.mxu0 %v4351
      %4417 = vmatprep.subr.bf16.mxu0 %v4354
      %4418 = vmatpush1.bf16.msra.mxu0 %v4353
      %4419 = vmatprep.mubr.bf16.mxu0 %v1655
      %4420 = vmatmul.mubr.bf16.gmra.mrb[0].mxu0 %v1654
      %v4421 = vpop.f32.mrb[0].mxu0
      %v4422 = vadd.f32 0.0, %v4421
      %v4423 = vpop.f32.mrb[0].mxu0
      %v4424 = vadd.f32 0.0, %v4423
      %v4425 = vpop.f32.mrb[0].mxu0
      %v4426 = vadd.f32 0.0, %v4425
      %v4427 = vpop.f32.mrb[0].mxu0
      %v4428 = vadd.f32 0.0, %v4427
      %4429 = vmatprep.mubr.bf16.mxu0 %v1657
      %4430 = vmatmul.mubr.bf16.gmra.mrb[0].mxu0 %v1656
      %v4431 = vpop.f32.mrb[0].mxu0
      %v4432 = vadd.f32 0.0, %v4431
      %v4433 = vpop.f32.mrb[0].mxu0
      %v4434 = vadd.f32 0.0, %v4433
      %v4435 = vpop.f32.mrb[0].mxu0
      %v4436 = vadd.f32 0.0, %v4435
      %v4437 = vpop.f32.mrb[0].mxu0
      %v4438 = vadd.f32 0.0, %v4437
      %4439 = vmatprep.mubr.bf16.mxu0 %v1659
      %4440 = vmatmul.mubr.bf16.gmra.mrb[0].mxu0 %v1658
      %v4441 = vpop.f32.mrb[0].mxu0
      %v4442 = vadd.f32 0.0, %v4441
      %v4443 = vpop.f32.mrb[0].mxu0
      %v4444 = vadd.f32 0.0, %v4443
      %v4445 = vpop.f32.mrb[0].mxu0
      %v4446 = vadd.f32 0.0, %v4445
      %v4447 = vpop.f32.mrb[0].mxu0
      %v4448 = vadd.f32 0.0, %v4447
      %4449 = vmatprep.mubr.bf16.mxu0 %v1661
      %4450 = vmatmul.mubr.bf16.gmra.mrb[0].mxu0 %v1660
      %v4451 = vpop.f32.mrb[0].mxu0
      %v4452 = vadd.f32 0.0, %v4451
      %v4453 = vpop.f32.mrb[0].mxu0
      %v4454 = vadd.f32 0.0, %v4453
      %v4455 = vpop.f32.mrb[0].mxu0
      %v4456 = vadd.f32 0.0, %v4455
      %v4457 = vpop.f32.mrb[0].mxu0
      %v4458 = vadd.f32 0.0, %v4457
      %4459 = vmatprep.mubr.bf16.mxu0 %v1663
      %4460 = vmatmul.mubr.bf16.gmra.mrb[0].mxu0 %v1662
      %v4461 = vpop.f32.mrb[0].mxu0
      %v4462 = vadd.f32 0.0, %v4461
      %v4463 = vpop.f32.mrb[0].mxu0
      %v4464 = vadd.f32 0.0, %v4463
      %v4465 = vpop.f32.mrb[0].mxu0
      %v4466 = vadd.f32 0.0, %v4465
      %v4467 = vpop.f32.mrb[0].mxu0
      %v4468 = vadd.f32 0.0, %v4467
      %4469 = vmatprep.mubr.bf16.mxu0 %v1665
      %4470 = vmatmul.mubr.bf16.gmra.mrb[0].mxu0 %v1664
      %v4471 = vpop.f32.mrb[0].mxu0
      %v4472 = vadd.f32 0.0, %v4471
      %v4473 = vpop.f32.mrb[0].mxu0
      %v4474 = vadd.f32 0.0, %v4473
      %v4475 = vpop.f32.mrb[0].mxu0
      %v4476 = vadd.f32 0.0, %v4475
      %v4477 = vpop.f32.mrb[0].mxu0
      %v4478 = vadd.f32 0.0, %v4477
      %4479 = vmatprep.mubr.bf16.mxu0 %v1667
      %4480 = vmatmul.mubr.bf16.gmra.mrb[0].mxu0 %v1666
      %v4481 = vpop.f32.mrb[0].mxu0
      %v4482 = vadd.f32 0.0, %v4481
      %v4483 = vpop.f32.mrb[0].mxu0
      %v4484 = vadd.f32 0.0, %v4483
      %v4485 = vpop.f32.mrb[0].mxu0
      %v4486 = vadd.f32 0.0, %v4485
      %v4487 = vpop.f32.mrb[0].mxu0
      %v4488 = vadd.f32 0.0, %v4487
      %4489 = vmatprep.mubr.bf16.mxu0 %v1669
      %4490 = vmatmul.mubr.bf16.gmra.mrb[0].mxu0 %v1668
      %v4491 = vpop.f32.mrb[0].mxu0
      %v4492 = vadd.f32 0.0, %v4491
      %v4493 = vpop.f32.mrb[0].mxu0
      %v4494 = vadd.f32 0.0, %v4493
      %v4495 = vpop.f32.mrb[0].mxu0
      %v4496 = vadd.f32 0.0, %v4495
      %v4497 = vpop.f32.mrb[0].mxu0
      %v4498 = vadd.f32 0.0, %v4497
      %4499 = vmatprep.mubr.bf16.mxu0 %v1671
      %4500 = vmatmul.mubr.bf16.gmra.mrb[0].mxu0 %v1670
      %v4501 = vpop.f32.mrb[0].mxu0
      %v4502 = vadd.f32 0.0, %v4501
      %v4503 = vpop.f32.mrb[0].mxu0
      %v4504 = vadd.f32 0.0, %v4503
      %v4505 = vpop.f32.mrb[0].mxu0
      %v4506 = vadd.f32 0.0, %v4505
      %v4507 = vpop.f32.mrb[0].mxu0
      %v4508 = vadd.f32 0.0, %v4507
      %4509 = vmatprep.mubr.bf16.mxu0 %v1673
      %4510 = vmatmul.mubr.bf16.gmra.mrb[0].mxu0 %v1672
      %v4511 = vpop.f32.mrb[0].mxu0
      %v4512 = vadd.f32 0.0, %v4511
      %v4513 = vpop.f32.mrb[0].mxu0
      %v4514 = vadd.f32 0.0, %v4513
      %v4515 = vpop.f32.mrb[0].mxu0
      %v4516 = vadd.f32 0.0, %v4515
      %v4517 = vpop.f32.mrb[0].mxu0
      %v4518 = vadd.f32 0.0, %v4517
      %4519 = vmatprep.mubr.bf16.mxu0 %v1675
      %4520 = vmatmul.mubr.bf16.gmra.mrb[0].mxu0 %v1674
      %v4521 = vpop.f32.mrb[0].mxu0
      %v4522 = vadd.f32 0.0, %v4521
      %v4523 = vpop.f32.mrb[0].mxu0
      %v4524 = vadd.f32 0.0, %v4523
      %v4525 = vpop.f32.mrb[0].mxu0
      %v4526 = vadd.f32 0.0, %v4525
      %v4527 = vpop.f32.mrb[0].mxu0
      %v4528 = vadd.f32 0.0, %v4527
      %4529 = vmatprep.mubr.bf16.mxu0 %v1677
      %4530 = vmatmul.mubr.bf16.gmra.mrb[0].mxu0 %v1676
      %v4531 = vpop.f32.mrb[0].mxu0
      %v4532 = vadd.f32 0.0, %v4531
      %v4533 = vpop.f32.mrb[0].mxu0
      %v4534 = vadd.f32 0.0, %v4533
      %v4535 = vpop.f32.mrb[0].mxu0
      %v4536 = vadd.f32 0.0, %v4535
      %v4537 = vpop.f32.mrb[0].mxu0
      %v4538 = vadd.f32 0.0, %v4537
      %4539 = vmatprep.mubr.bf16.mxu0 %v1679
      %4540 = vmatmul.mubr.bf16.gmra.mrb[0].mxu0 %v1678
      %v4541 = vpop.f32.mrb[0].mxu0
      %v4542 = vadd.f32 0.0, %v4541
      %v4543 = vpop.f32.mrb[0].mxu0
      %v4544 = vadd.f32 0.0, %v4543
      %v4545 = vpop.f32.mrb[0].mxu0
      %v4546 = vadd.f32 0.0, %v4545
      %v4547 = vpop.f32.mrb[0].mxu0
      %v4548 = vadd.f32 0.0, %v4547
      %4549 = vmatprep.mubr.bf16.mxu0 %v1681
      %4550 = vmatmul.mubr.bf16.gmra.mrb[0].mxu0 %v1680
      %v4551 = vpop.f32.mrb[0].mxu0
      %v4552 = vadd.f32 0.0, %v4551
      %v4553 = vpop.f32.mrb[0].mxu0
      %v4554 = vadd.f32 0.0, %v4553
      %v4555 = vpop.f32.mrb[0].mxu0
      %v4556 = vadd.f32 0.0, %v4555
      %v4557 = vpop.f32.mrb[0].mxu0
      %v4558 = vadd.f32 0.0, %v4557
      %4559 = vmatprep.mubr.bf16.mxu0 %v2816
      %4560 = vmatmul.mubr.bf16.gmra.mrb[0].mxu0 %v2815
      %v4561 = vpop.f32.mrb[0].mxu0
      %v4562 = vadd.f32 0.0, %v4561
      %v4563 = vpop.f32.mrb[0].mxu0
      %v4564 = vadd.f32 0.0, %v4563
      %v4565 = vpop.f32.mrb[0].mxu0
      %v4566 = vadd.f32 0.0, %v4565
      %v4567 = vpop.f32.mrb[0].mxu0
      %v4568 = vadd.f32 0.0, %v4567
      %4569 = vmatprep.mubr.bf16.mxu0 %v4224
      %4570 = vmatmul.mubr.bf16.gmra.mrb[0].mxu0 %v4223
      %v4571 = vpop.f32.mrb[0].mxu0
      %v4572 = vadd.f32 0.0, %v4571
      %v4573 = vpop.f32.mrb[0].mxu0
      %v4574 = vadd.f32 0.0, %v4573
      %v4575 = vpop.f32.mrb[0].mxu0
      %v4576 = vadd.f32 0.0, %v4575
      %v4577 = vpop.f32.mrb[0].mxu0
      %v4578 = vadd.f32 0.0, %v4577
      %4579 = vdwg.mxu0
      %v4580 = vadd.f32 %v4120, %v4422
      %v4581 = vadd.f32 %v4121, %v4424
      %v4582 = vadd.f32 %v4122, %v4426
      %v4583 = vadd.f32 %v4123, %v4428
      %v4584 = vadd.f32 %v4124, %v4432
      %v4585 = vadd.f32 %v4125, %v4434
      %v4586 = vadd.f32 %v4126, %v4436
      %v4587 = vadd.f32 %v4127, %v4438
      %v4588 = vadd.f32 %v4128, %v4442
      %v4589 = vadd.f32 %v4129, %v4444
      %v4590 = vadd.f32 %v4130, %v4446
      %v4591 = vadd.f32 %v4131, %v4448
      %v4592 = vadd.f32 %v4132, %v4452
      %v4593 = vadd.f32 %v4133, %v4454
      %v4594 = vadd.f32 %v4134, %v4456
      %v4595 = vadd.f32 %v4135, %v4458
      %v4596 = vadd.f32 %v4136, %v4462
      %v4597 = vadd.f32 %v4137, %v4464
      %v4598 = vadd.f32 %v4138, %v4466
      %v4599 = vadd.f32 %v4139, %v4468
      %v4600 = vadd.f32 %v4140, %v4472
      %v4601 = vadd.f32 %v4141, %v4474
      %v4602 = vadd.f32 %v4142, %v4476
      %v4603 = vadd.f32 %v4143, %v4478
      %v4604 = vadd.f32 %v4144, %v4482
      %v4605 = vadd.f32 %v4145, %v4484
      %v4606 = vadd.f32 %v4146, %v4486
      %v4607 = vadd.f32 %v4147, %v4488
      %v4608 = vadd.f32 %v4148, %v4492
      %v4609 = vadd.f32 %v4149, %v4494
      %v4610 = vadd.f32 %v4150, %v4496
      %v4611 = vadd.f32 %v4151, %v4498
      %v4612 = vadd.f32 %v4152, %v4502
      %v4613 = vadd.f32 %v4153, %v4504
      %v4614 = vadd.f32 %v4154, %v4506
      %v4615 = vadd.f32 %v4155, %v4508
      %v4616 = vadd.f32 %v4156, %v4512
      %v4617 = vadd.f32 %v4157, %v4514
      %v4618 = vadd.f32 %v4158, %v4516
      %v4619 = vadd.f32 %v4159, %v4518
      %v4620 = vadd.f32 %v4160, %v4522
      %v4621 = vadd.f32 %v4161, %v4524
      %v4622 = vadd.f32 %v4162, %v4526
      %v4623 = vadd.f32 %v4163, %v4528
      %v4624 = vadd.f32 %v4164, %v4532
      %v4625 = vadd.f32 %v4165, %v4534
      %v4626 = vadd.f32 %v4166, %v4536
      %v4627 = vadd.f32 %v4167, %v4538
      %v4628 = vadd.f32 %v4168, %v4542
      %v4629 = vadd.f32 %v4169, %v4544
      %v4630 = vadd.f32 %v4170, %v4546
      %v4631 = vadd.f32 %v4171, %v4548
      %v4632 = vadd.f32 %v4172, %v4552
      %v4633 = vadd.f32 %v4173, %v4554
      %v4634 = vadd.f32 %v4174, %v4556
      %v4635 = vadd.f32 %v4175, %v4558
      %v4636 = vadd.f32 %v4176, %v4562
      %v4637 = vadd.f32 %v4177, %v4564
      %v4638 = vadd.f32 %v4178, %v4566
      %v4639 = vadd.f32 %v4179, %v4568
      %v4640 = vadd.f32 %v4180, %v4572
      %v4641 = vadd.f32 %v4181, %v4574
      %v4642 = vadd.f32 %v4182, %v4576
      %v4643 = vadd.f32 %v4183, %v4578
      %v4645 = vshrl.u32 %v618, 16
      %v4647 = vrot.slane %v4645, 4
      %v4648 = vshll.u32 %v618, 16
      %v4650 = vrot.slane %v4648, 5
      %v4651 = vor.u32 %v4647, %v4650
      %v4652 = vrot.slane %v4651, 4
      %v4654 = vshll.u32 %v619, 16
      %v4656 = vrot.slane %v4654, 5
      %v4657 = vsel %vm655, %v4652, %v4656
      %v4658 = vshrl.u32 %v619, 16
      %v4660 = vrot.slane %v4658, 4
      %v4661 = vor.u32 %v4660, %v4656
      %v4662 = vrot.slane %v4661, 4
      %v4664 = vshll.u32 %v620, 16
      %v4666 = vrot.slane %v4664, 5
      %v4667 = vsel %vm655, %v4662, %v4666
      %s4668 = scalar_lea.vmem %s1, 1792
      %v4669 = vld [vmem:[%s4668] sm:$0xff]
      %v4670 = vld [vmem:[%s4668 + $0x8] sm:$0xff]
      %v4671 = vld [vmem:[%s4668 + $0x10] sm:$0xff]
      %v4672 = vld [vmem:[%s4668 + $0x18] sm:$0xff]
      %v4673 = vld [vmem:[%s4668 + $0x20] sm:$0xff]
      %v4674 = vld [vmem:[%s4668 + $0x28] sm:$0xff]
      %v4675 = vld [vmem:[%s4668 + $0x30] sm:$0xff]
      %v4676 = vld [vmem:[%s4668 + $0x38] sm:$0xff]
      %v4677 = vld [vmem:[%s4668 + $0x40] sm:$0xff]
      %v4678 = vld [vmem:[%s4668 + $0x48] sm:$0xff]
      %v4679 = vld [vmem:[%s4668 + $0x50] sm:$0xff]
      %v4680 = vld [vmem:[%s4668 + $0x58] sm:$0xff]
      %v4681 = vld [vmem:[%s4668 + $0x60] sm:$0xff]
      %v4682 = vld [vmem:[%s4668 + $0x68] sm:$0xff]
      %v4683 = vld [vmem:[%s4668 + $0x70] sm:$0xff]
      %v4684 = vld [vmem:[%s4668 + $0x78] sm:$0xff]
      %v4685 = vld [vmem:[%s4668 + $0x80] sm:$0xff]
      %v4686 = vld [vmem:[%s4668 + $0x88] sm:$0xff]
      %v4687 = vld [vmem:[%s4668 + $0x90] sm:$0xff]
      %v4688 = vld [vmem:[%s4668 + $0x98] sm:$0xff]
      %v4689 = vld [vmem:[%s4668 + $0xa0] sm:$0xff]
      %v4690 = vld [vmem:[%s4668 + $0xa8] sm:$0xff]
      %v4691 = vld [vmem:[%s4668 + $0xb0] sm:$0xff]
      %v4692 = vld [vmem:[%s4668 + $0xb8] sm:$0xff]
      %v4693 = vld [vmem:[%s4668 + $0xc0] sm:$0xff]
      %v4694 = vld [vmem:[%s4668 + $0xc8] sm:$0xff]
      %v4695 = vld [vmem:[%s4668 + $0xd0] sm:$0xff]
      %v4696 = vld [vmem:[%s4668 + $0xd8] sm:$0xff]
      %v4697 = vld [vmem:[%s4668 + $0xe0] sm:$0xff]
      %v4698 = vld [vmem:[%s4668 + $0xe8] sm:$0xff]
      %v4699 = vld [vmem:[%s4668 + $0xf0] sm:$0xff]
      %v4700 = vld [vmem:[%s4668 + $0xf8] sm:$0xff]
      %v4701 = vunpack.c.l.b16 %v4657
      %v4702 = vunpack.c.h.b16 %v4657
      %v4703 = vunpack.c.l.b16 %v4667
      %v4704 = vunpack.c.h.b16 %v4667
      %v4705 = vpack.c.b16 %v4703, %v4701
      %v4706 = vpack.c.b16 %v4704, %v4702
      %v4741 = vunpack.c.l.b16 %v4669
      %v4742 = vunpack.c.h.b16 %v4669
      %v4743 = vunpack.c.l.b16 %v4670
      %v4744 = vunpack.c.h.b16 %v4670
      %v4745 = vunpack.c.l.b16 %v4671
      %v4746 = vunpack.c.h.b16 %v4671
      %v4747 = vunpack.c.l.b16 %v4672
      %v4748 = vunpack.c.h.b16 %v4672
      %v4749 = vunpack.c.l.b16 %v4673
      %v4750 = vunpack.c.h.b16 %v4673
      %v4751 = vunpack.c.l.b16 %v4674
      %v4752 = vunpack.c.h.b16 %v4674
      %v4753 = vunpack.c.l.b16 %v4675
      %v4754 = vunpack.c.h.b16 %v4675
      %v4755 = vunpack.c.l.b16 %v4676
      %v4756 = vunpack.c.h.b16 %v4676
      %v4757 = vunpack.c.l.b16 %v4677
      %v4758 = vunpack.c.h.b16 %v4677
      %v4759 = vunpack.c.l.b16 %v4678
      %v4760 = vunpack.c.h.b16 %v4678
      %v4761 = vunpack.c.l.b16 %v4679
      %v4762 = vunpack.c.h.b16 %v4679
      %v4763 = vunpack.c.l.b16 %v4680
      %v4764 = vunpack.c.h.b16 %v4680
      %v4765 = vunpack.c.l.b16 %v4681
      %v4766 = vunpack.c.h.b16 %v4681
      %v4767 = vunpack.c.l.b16 %v4682
      %v4768 = vunpack.c.h.b16 %v4682
      %v4769 = vunpack.c.l.b16 %v4683
      %v4770 = vunpack.c.h.b16 %v4683
      %v4771 = vunpack.c.l.b16 %v4684
      %v4772 = vunpack.c.h.b16 %v4684
      %v4773 = vunpack.c.l.b16 %v4685
      %v4774 = vunpack.c.h.b16 %v4685
      %v4775 = vunpack.c.l.b16 %v4686
      %v4776 = vunpack.c.h.b16 %v4686
      %v4777 = vunpack.c.l.b16 %v4687
      %v4778 = vunpack.c.h.b16 %v4687
      %v4779 = vunpack.c.l.b16 %v4688
      %v4780 = vunpack.c.h.b16 %v4688
      %v4781 = vunpack.c.l.b16 %v4689
      %v4782 = vunpack.c.h.b16 %v4689
      %v4783 = vunpack.c.l.b16 %v4690
      %v4784 = vunpack.c.h.b16 %v4690
      %v4785 = vunpack.c.l.b16 %v4691
      %v4786 = vunpack.c.h.b16 %v4691
      %v4787 = vunpack.c.l.b16 %v4692
      %v4788 = vunpack.c.h.b16 %v4692
      %v4789 = vunpack.c.l.b16 %v4693
      %v4790 = vunpack.c.h.b16 %v4693
      %v4791 = vunpack.c.l.b16 %v4694
      %v4792 = vunpack.c.h.b16 %v4694
      %v4793 = vunpack.c.l.b16 %v4695
      %v4794 = vunpack.c.h.b16 %v4695
      %v4795 = vunpack.c.l.b16 %v4696
      %v4796 = vunpack.c.h.b16 %v4696
      %v4797 = vunpack.c.l.b16 %v4697
      %v4798 = vunpack.c.h.b16 %v4697
      %v4799 = vunpack.c.l.b16 %v4698
      %v4800 = vunpack.c.h.b16 %v4698
      %v4801 = vunpack.c.l.b16 %v4699
      %v4802 = vunpack.c.h.b16 %v4699
      %v4803 = vunpack.c.l.b16 %v4700
      %v4804 = vunpack.c.h.b16 %v4700
      %v4805 = vpack.c.b16 %v4743, %v4741
      %v4806 = vpack.c.b16 %v4744, %v4742
      %v4807 = vpack.c.b16 %v4747, %v4745
      %v4808 = vpack.c.b16 %v4748, %v4746
      %v4809 = vpack.c.b16 %v4751, %v4749
      %v4810 = vpack.c.b16 %v4752, %v4750
      %v4811 = vpack.c.b16 %v4755, %v4753
      %v4812 = vpack.c.b16 %v4756, %v4754
      %v4813 = vpack.c.b16 %v4759, %v4757
      %v4814 = vpack.c.b16 %v4760, %v4758
      %v4815 = vpack.c.b16 %v4763, %v4761
      %v4816 = vpack.c.b16 %v4764, %v4762
      %v4817 = vpack.c.b16 %v4767, %v4765
      %v4818 = vpack.c.b16 %v4768, %v4766
      %v4819 = vpack.c.b16 %v4771, %v4769
      %v4820 = vpack.c.b16 %v4772, %v4770
      %v4821 = vpack.c.b16 %v4775, %v4773
      %v4822 = vpack.c.b16 %v4776, %v4774
      %v4823 = vpack.c.b16 %v4779, %v4777
      %v4824 = vpack.c.b16 %v4780, %v4778
      %v4825 = vpack.c.b16 %v4783, %v4781
      %v4826 = vpack.c.b16 %v4784, %v4782
      %v4827 = vpack.c.b16 %v4787, %v4785
      %v4828 = vpack.c.b16 %v4788, %v4786
      %v4829 = vpack.c.b16 %v4791, %v4789
      %v4830 = vpack.c.b16 %v4792, %v4790
      %v4831 = vpack.c.b16 %v4795, %v4793
      %v4832 = vpack.c.b16 %v4796, %v4794
      %v4833 = vpack.c.b16 %v4799, %v4797
      %v4834 = vpack.c.b16 %v4800, %v4798
      %v4835 = vpack.c.b16 %v4803, %v4801
      %v4836 = vpack.c.b16 %v4804, %v4802
      %4869 = vmatprep.subr.bf16.mxu0 %v4806
      %4870 = vmatpush1.bf16.msra.mxu0 %v4805
      %4871 = vmatprep.subr.bf16.mxu0 %v4808
      %4872 = vmatpush1.bf16.msra.mxu0 %v4807
      %4873 = vmatprep.subr.bf16.mxu0 %v4810
      %4874 = vmatpush1.bf16.msra.mxu0 %v4809
      %4875 = vmatprep.subr.bf16.mxu0 %v4812
      %4876 = vmatpush1.bf16.msra.mxu0 %v4811
      %4877 = vmatprep.subr.bf16.mxu0 %v4814
      %4878 = vmatpush1.bf16.msra.mxu0 %v4813
      %4879 = vmatprep.subr.bf16.mxu0 %v4816
      %4880 = vmatpush1.bf16.msra.mxu0 %v4815
      %4881 = vmatprep.subr.bf16.mxu0 %v4818
      %4882 = vmatpush1.bf16.msra.mxu0 %v4817
      %4883 = vmatprep.subr.bf16.mxu0 %v4820
      %4884 = vmatpush1.bf16.msra.mxu0 %v4819
      %4885 = vmatprep.subr.bf16.mxu0 %v4822
      %4886 = vmatpush1.bf16.msra.mxu0 %v4821
      %4887 = vmatprep.subr.bf16.mxu0 %v4824
      %4888 = vmatpush1.bf16.msra.mxu0 %v4823
      %4889 = vmatprep.subr.bf16.mxu0 %v4826
      %4890 = vmatpush1.bf16.msra.mxu0 %v4825
      %4891 = vmatprep.subr.bf16.mxu0 %v4828
      %4892 = vmatpush1.bf16.msra.mxu0 %v4827
      %4893 = vmatprep.subr.bf16.mxu0 %v4830
      %4894 = vmatpush1.bf16.msra.mxu0 %v4829
      %4895 = vmatprep.subr.bf16.mxu0 %v4832
      %4896 = vmatpush1.bf16.msra.mxu0 %v4831
      %4897 = vmatprep.subr.bf16.mxu0 %v4834
      %4898 = vmatpush1.bf16.msra.mxu0 %v4833
      %4899 = vmatprep.subr.bf16.mxu0 %v4836
      %4900 = vmatpush1.bf16.msra.mxu0 %v4835
      %4901 = vmatprep.mubr.bf16.mxu0 %v1142
      %4902 = vmatmul.mubr.bf16.gmra.mrb[0].mxu0 %v1141
      %v4903 = vpop.f32.mrb[0].mxu0
      %v4904 = vadd.f32 0.0, %v4903
      %v4905 = vpop.f32.mrb[0].mxu0
      %v4906 = vadd.f32 0.0, %v4905
      %v4907 = vpop.f32.mrb[0].mxu0
      %v4908 = vadd.f32 0.0, %v4907
      %v4909 = vpop.f32.mrb[0].mxu0
      %v4910 = vadd.f32 0.0, %v4909
      %4911 = vmatprep.mubr.bf16.mxu0 %v1144
      %4912 = vmatmul.mubr.bf16.gmra.mrb[0].mxu0 %v1143
      %v4913 = vpop.f32.mrb[0].mxu0
      %v4914 = vadd.f32 0.0, %v4913
      %v4915 = vpop.f32.mrb[0].mxu0
      %v4916 = vadd.f32 0.0, %v4915
      %v4917 = vpop.f32.mrb[0].mxu0
      %v4918 = vadd.f32 0.0, %v4917
      %v4919 = vpop.f32.mrb[0].mxu0
      %v4920 = vadd.f32 0.0, %v4919
      %4921 = vmatprep.mubr.bf16.mxu0 %v1146
      %4922 = vmatmul.mubr.bf16.gmra.mrb[0].mxu0 %v1145
      %v4923 = vpop.f32.mrb[0].mxu0
      %v4924 = vadd.f32 0.0, %v4923
      %v4925 = vpop.f32.mrb[0].mxu0
      %v4926 = vadd.f32 0.0, %v4925
      %v4927 = vpop.f32.mrb[0].mxu0
      %v4928 = vadd.f32 0.0, %v4927
      %v4929 = vpop.f32.mrb[0].mxu0
      %v4930 = vadd.f32 0.0, %v4929
      %4931 = vmatprep.mubr.bf16.mxu0 %v1148
      %4932 = vmatmul.mubr.bf16.gmra.mrb[0].mxu0 %v1147
      %v4933 = vpop.f32.mrb[0].mxu0
      %v4934 = vadd.f32 0.0, %v4933
      %v4935 = vpop.f32.mrb[0].mxu0
      %v4936 = vadd.f32 0.0, %v4935
      %v4937 = vpop.f32.mrb[0].mxu0
      %v4938 = vadd.f32 0.0, %v4937
      %v4939 = vpop.f32.mrb[0].mxu0
      %v4940 = vadd.f32 0.0, %v4939
      %4941 = vmatprep.mubr.bf16.mxu0 %v1150
      %4942 = vmatmul.mubr.bf16.gmra.mrb[0].mxu0 %v1149
      %v4943 = vpop.f32.mrb[0].mxu0
      %v4944 = vadd.f32 0.0, %v4943
      %v4945 = vpop.f32.mrb[0].mxu0
      %v4946 = vadd.f32 0.0, %v4945
      %v4947 = vpop.f32.mrb[0].mxu0
      %v4948 = vadd.f32 0.0, %v4947
      %v4949 = vpop.f32.mrb[0].mxu0
      %v4950 = vadd.f32 0.0, %v4949
      %4951 = vmatprep.mubr.bf16.mxu0 %v1152
      %4952 = vmatmul.mubr.bf16.gmra.mrb[0].mxu0 %v1151
      %v4953 = vpop.f32.mrb[0].mxu0
      %v4954 = vadd.f32 0.0, %v4953
      %v4955 = vpop.f32.mrb[0].mxu0
      %v4956 = vadd.f32 0.0, %v4955
      %v4957 = vpop.f32.mrb[0].mxu0
      %v4958 = vadd.f32 0.0, %v4957
      %v4959 = vpop.f32.mrb[0].mxu0
      %v4960 = vadd.f32 0.0, %v4959
      %4961 = vmatprep.mubr.bf16.mxu0 %v1154
      %4962 = vmatmul.mubr.bf16.gmra.mrb[0].mxu0 %v1153
      %v4963 = vpop.f32.mrb[0].mxu0
      %v4964 = vadd.f32 0.0, %v4963
      %v4965 = vpop.f32.mrb[0].mxu0
      %v4966 = vadd.f32 0.0, %v4965
      %v4967 = vpop.f32.mrb[0].mxu0
      %v4968 = vadd.f32 0.0, %v4967
      %v4969 = vpop.f32.mrb[0].mxu0
      %v4970 = vadd.f32 0.0, %v4969
      %4971 = vmatprep.mubr.bf16.mxu0 %v1156
      %4972 = vmatmul.mubr.bf16.gmra.mrb[0].mxu0 %v1155
      %v4973 = vpop.f32.mrb[0].mxu0
      %v4974 = vadd.f32 0.0, %v4973
      %v4975 = vpop.f32.mrb[0].mxu0
      %v4976 = vadd.f32 0.0, %v4975
      %v4977 = vpop.f32.mrb[0].mxu0
      %v4978 = vadd.f32 0.0, %v4977
      %v4979 = vpop.f32.mrb[0].mxu0
      %v4980 = vadd.f32 0.0, %v4979
      %4981 = vmatprep.mubr.bf16.mxu0 %v1158
      %4982 = vmatmul.mubr.bf16.gmra.mrb[0].mxu0 %v1157
      %v4983 = vpop.f32.mrb[0].mxu0
      %v4984 = vadd.f32 0.0, %v4983
      %v4985 = vpop.f32.mrb[0].mxu0
      %v4986 = vadd.f32 0.0, %v4985
      %v4987 = vpop.f32.mrb[0].mxu0
      %v4988 = vadd.f32 0.0, %v4987
      %v4989 = vpop.f32.mrb[0].mxu0
      %v4990 = vadd.f32 0.0, %v4989
      %4991 = vmatprep.mubr.bf16.mxu0 %v1160
      %4992 = vmatmul.mubr.bf16.gmra.mrb[0].mxu0 %v1159
      %v4993 = vpop.f32.mrb[0].mxu0
      %v4994 = vadd.f32 0.0, %v4993
      %v4995 = vpop.f32.mrb[0].mxu0
      %v4996 = vadd.f32 0.0, %v4995
      %v4997 = vpop.f32.mrb[0].mxu0
      %v4998 = vadd.f32 0.0, %v4997
      %v4999 = vpop.f32.mrb[0].mxu0
      %v5000 = vadd.f32 0.0, %v4999
      %5001 = vmatprep.mubr.bf16.mxu0 %v1162
      %5002 = vmatmul.mubr.bf16.gmra.mrb[0].mxu0 %v1161
      %v5003 = vpop.f32.mrb[0].mxu0
      %v5004 = vadd.f32 0.0, %v5003
      %v5005 = vpop.f32.mrb[0].mxu0
      %v5006 = vadd.f32 0.0, %v5005
      %v5007 = vpop.f32.mrb[0].mxu0
      %v5008 = vadd.f32 0.0, %v5007
      %v5009 = vpop.f32.mrb[0].mxu0
      %v5010 = vadd.f32 0.0, %v5009
      %5011 = vmatprep.mubr.bf16.mxu0 %v1164
      %5012 = vmatmul.mubr.bf16.gmra.mrb[0].mxu0 %v1163
      %v5013 = vpop.f32.mrb[0].mxu0
      %v5014 = vadd.f32 0.0, %v5013
      %v5015 = vpop.f32.mrb[0].mxu0
      %v5016 = vadd.f32 0.0, %v5015
      %v5017 = vpop.f32.mrb[0].mxu0
      %v5018 = vadd.f32 0.0, %v5017
      %v5019 = vpop.f32.mrb[0].mxu0
      %v5020 = vadd.f32 0.0, %v5019
      %5021 = vmatprep.mubr.bf16.mxu0 %v1166
      %5022 = vmatmul.mubr.bf16.gmra.mrb[0].mxu0 %v1165
      %v5023 = vpop.f32.mrb[0].mxu0
      %v5024 = vadd.f32 0.0, %v5023
      %v5025 = vpop.f32.mrb[0].mxu0
      %v5026 = vadd.f32 0.0, %v5025
      %v5027 = vpop.f32.mrb[0].mxu0
      %v5028 = vadd.f32 0.0, %v5027
      %v5029 = vpop.f32.mrb[0].mxu0
      %v5030 = vadd.f32 0.0, %v5029
      %5031 = vmatprep.mubr.bf16.mxu0 %v1168
      %5032 = vmatmul.mubr.bf16.gmra.mrb[0].mxu0 %v1167
      %v5033 = vpop.f32.mrb[0].mxu0
      %v5034 = vadd.f32 0.0, %v5033
      %v5035 = vpop.f32.mrb[0].mxu0
      %v5036 = vadd.f32 0.0, %v5035
      %v5037 = vpop.f32.mrb[0].mxu0
      %v5038 = vadd.f32 0.0, %v5037
      %v5039 = vpop.f32.mrb[0].mxu0
      %v5040 = vadd.f32 0.0, %v5039
      %5041 = vmatprep.mubr.bf16.mxu0 %v3298
      %5042 = vmatmul.mubr.bf16.gmra.mrb[0].mxu0 %v3297
      %v5043 = vpop.f32.mrb[0].mxu0
      %v5044 = vadd.f32 0.0, %v5043
      %v5045 = vpop.f32.mrb[0].mxu0
      %v5046 = vadd.f32 0.0, %v5045
      %v5047 = vpop.f32.mrb[0].mxu0
      %v5048 = vadd.f32 0.0, %v5047
      %v5049 = vpop.f32.mrb[0].mxu0
      %v5050 = vadd.f32 0.0, %v5049
      %5051 = vmatprep.mubr.bf16.mxu0 %v4706
      %5052 = vmatmul.mubr.bf16.gmra.mrb[0].mxu0 %v4705
      %v5053 = vpop.f32.mrb[0].mxu0
      %v5054 = vadd.f32 0.0, %v5053
      %v5055 = vpop.f32.mrb[0].mxu0
      %v5056 = vadd.f32 0.0, %v5055
      %v5057 = vpop.f32.mrb[0].mxu0
      %v5058 = vadd.f32 0.0, %v5057
      %v5059 = vpop.f32.mrb[0].mxu0
      %v5060 = vadd.f32 0.0, %v5059
      %5061 = vdwg.mxu0
      %v5062 = vadd.f32 %v4580, %v4904
      %v5063 = vadd.f32 %v4581, %v4906
      %v5064 = vadd.f32 %v4582, %v4908
      %v5065 = vadd.f32 %v4583, %v4910
      %v5066 = vadd.f32 %v4584, %v4914
      %v5067 = vadd.f32 %v4585, %v4916
      %v5068 = vadd.f32 %v4586, %v4918
      %v5069 = vadd.f32 %v4587, %v4920
      %v5070 = vadd.f32 %v4588, %v4924
      %v5071 = vadd.f32 %v4589, %v4926
      %v5072 = vadd.f32 %v4590, %v4928
      %v5073 = vadd.f32 %v4591, %v4930
      %v5074 = vadd.f32 %v4592, %v4934
      %v5075 = vadd.f32 %v4593, %v4936
      %v5076 = vadd.f32 %v4594, %v4938
      %v5077 = vadd.f32 %v4595, %v4940
      %v5078 = vadd.f32 %v4596, %v4944
      %v5079 = vadd.f32 %v4597, %v4946
      %v5080 = vadd.f32 %v4598, %v4948
      %v5081 = vadd.f32 %v4599, %v4950
      %v5082 = vadd.f32 %v4600, %v4954
      %v5083 = vadd.f32 %v4601, %v4956
      %v5084 = vadd.f32 %v4602, %v4958
      %v5085 = vadd.f32 %v4603, %v4960
      %v5086 = vadd.f32 %v4604, %v4964
      %v5087 = vadd.f32 %v4605, %v4966
      %v5088 = vadd.f32 %v4606, %v4968
      %v5089 = vadd.f32 %v4607, %v4970
      %v5090 = vadd.f32 %v4608, %v4974
      %v5091 = vadd.f32 %v4609, %v4976
      %v5092 = vadd.f32 %v4610, %v4978
      %v5093 = vadd.f32 %v4611, %v4980
      %v5094 = vadd.f32 %v4612, %v4984
      %v5095 = vadd.f32 %v4613, %v4986
      %v5096 = vadd.f32 %v4614, %v4988
      %v5097 = vadd.f32 %v4615, %v4990
      %v5098 = vadd.f32 %v4616, %v4994
      %v5099 = vadd.f32 %v4617, %v4996
      %v5100 = vadd.f32 %v4618, %v4998
      %v5101 = vadd.f32 %v4619, %v5000
      %v5102 = vadd.f32 %v4620, %v5004
      %v5103 = vadd.f32 %v4621, %v5006
      %v5104 = vadd.f32 %v4622, %v5008
      %v5105 = vadd.f32 %v4623, %v5010
      %v5106 = vadd.f32 %v4624, %v5014
      %v5107 = vadd.f32 %v4625, %v5016
      %v5108 = vadd.f32 %v4626, %v5018
      %v5109 = vadd.f32 %v4627, %v5020
      %v5110 = vadd.f32 %v4628, %v5024
      %v5111 = vadd.f32 %v4629, %v5026
      %v5112 = vadd.f32 %v4630, %v5028
      %v5113 = vadd.f32 %v4631, %v5030
      %v5114 = vadd.f32 %v4632, %v5034
      %v5115 = vadd.f32 %v4633, %v5036
      %v5116 = vadd.f32 %v4634, %v5038
      %v5117 = vadd.f32 %v4635, %v5040
      %v5118 = vadd.f32 %v4636, %v5044
      %v5119 = vadd.f32 %v4637, %v5046
      %v5120 = vadd.f32 %v4638, %v5048
      %v5121 = vadd.f32 %v4639, %v5050
      %v5122 = vadd.f32 %v4640, %v5054
      %v5123 = vadd.f32 %v4641, %v5056
      %v5124 = vadd.f32 %v4642, %v5058
      %v5125 = vadd.f32 %v4643, %v5060
      %v5127 = vrot.slane %v618, 5
      %v5128 = vrot.slane %v5127, 4
      %v5129 = vrot.slane %v619, 5
      %v5130 = vsel %vm2085, %v5128, %v5129
      %v5131 = vrot.slane %v5129, 4
      %v5132 = vrot.slane %v620, 5
      %v5133 = vsel %vm2085, %v5131, %v5132
      %s5134 = scalar_lea.vmem %s1, 2048
      %v5135 = vld [vmem:[%s5134] sm:$0xff]
      %v5136 = vld [vmem:[%s5134 + $0x8] sm:$0xff]
      %v5137 = vld [vmem:[%s5134 + $0x10] sm:$0xff]
      %v5138 = vld [vmem:[%s5134 + $0x18] sm:$0xff]
      %v5139 = vld [vmem:[%s5134 + $0x20] sm:$0xff]
      %v5140 = vld [vmem:[%s5134 + $0x28] sm:$0xff]
      %v5141 = vld [vmem:[%s5134 + $0x30] sm:$0xff]
      %v5142 = vld [vmem:[%s5134 + $0x38] sm:$0xff]
      %v5143 = vld [vmem:[%s5134 + $0x40] sm:$0xff]
      %v5144 = vld [vmem:[%s5134 + $0x48] sm:$0xff]
      %v5145 = vld [vmem:[%s5134 + $0x50] sm:$0xff]
      %v5146 = vld [vmem:[%s5134 + $0x58] sm:$0xff]
      %v5147 = vld [vmem:[%s5134 + $0x60] sm:$0xff]
      %v5148 = vld [vmem:[%s5134 + $0x68] sm:$0xff]
      %v5149 = vld [vmem:[%s5134 + $0x70] sm:$0xff]
      %v5150 = vld [vmem:[%s5134 + $0x78] sm:$0xff]
      %v5151 = vld [vmem:[%s5134 + $0x80] sm:$0xff]
      %v5152 = vld [vmem:[%s5134 + $0x88] sm:$0xff]
      %v5153 = vld [vmem:[%s5134 + $0x90] sm:$0xff]
      %v5154 = vld [vmem:[%s5134 + $0x98] sm:$0xff]
      %v5155 = vld [vmem:[%s5134 + $0xa0] sm:$0xff]
      %v5156 = vld [vmem:[%s5134 + $0xa8] sm:$0xff]
      %v5157 = vld [vmem:[%s5134 + $0xb0] sm:$0xff]
      %v5158 = vld [vmem:[%s5134 + $0xb8] sm:$0xff]
      %v5159 = vld [vmem:[%s5134 + $0xc0] sm:$0xff]
      %v5160 = vld [vmem:[%s5134 + $0xc8] sm:$0xff]
      %v5161 = vld [vmem:[%s5134 + $0xd0] sm:$0xff]
      %v5162 = vld [vmem:[%s5134 + $0xd8] sm:$0xff]
      %v5163 = vld [vmem:[%s5134 + $0xe0] sm:$0xff]
      %v5164 = vld [vmem:[%s5134 + $0xe8] sm:$0xff]
      %v5165 = vld [vmem:[%s5134 + $0xf0] sm:$0xff]
      %v5166 = vld [vmem:[%s5134 + $0xf8] sm:$0xff]
      %v5167 = vunpack.c.l.b16 %v5130
      %v5168 = vunpack.c.h.b16 %v5130
      %v5169 = vunpack.c.l.b16 %v5133
      %v5170 = vunpack.c.h.b16 %v5133
      %v5171 = vpack.c.b16 %v5169, %v5167
      %v5172 = vpack.c.b16 %v5170, %v5168
      %v5207 = vunpack.c.l.b16 %v5135
      %v5208 = vunpack.c.h.b16 %v5135
      %v5209 = vunpack.c.l.b16 %v5136
      %v5210 = vunpack.c.h.b16 %v5136
      %v5211 = vunpack.c.l.b16 %v5137
      %v5212 = vunpack.c.h.b16 %v5137
      %v5213 = vunpack.c.l.b16 %v5138
      %v5214 = vunpack.c.h.b16 %v5138
      %v5215 = vunpack.c.l.b16 %v5139
      %v5216 = vunpack.c.h.b16 %v5139
      %v5217 = vunpack.c.l.b16 %v5140
      %v5218 = vunpack.c.h.b16 %v5140
      %v5219 = vunpack.c.l.b16 %v5141
      %v5220 = vunpack.c.h.b16 %v5141
      %v5221 = vunpack.c.l.b16 %v5142
      %v5222 = vunpack.c.h.b16 %v5142
      %v5223 = vunpack.c.l.b16 %v5143
      %v5224 = vunpack.c.h.b16 %v5143
      %v5225 = vunpack.c.l.b16 %v5144
      %v5226 = vunpack.c.h.b16 %v5144
      %v5227 = vunpack.c.l.b16 %v5145
      %v5228 = vunpack.c.h.b16 %v5145
      %v5229 = vunpack.c.l.b16 %v5146
      %v5230 = vunpack.c.h.b16 %v5146
      %v5231 = vunpack.c.l.b16 %v5147
      %v5232 = vunpack.c.h.b16 %v5147
      %v5233 = vunpack.c.l.b16 %v5148
      %v5234 = vunpack.c.h.b16 %v5148
      %v5235 = vunpack.c.l.b16 %v5149
      %v5236 = vunpack.c.h.b16 %v5149
      %v5237 = vunpack.c.l.b16 %v5150
      %v5238 = vunpack.c.h.b16 %v5150
      %v5239 = vunpack.c.l.b16 %v5151
      %v5240 = vunpack.c.h.b16 %v5151
      %v5241 = vunpack.c.l.b16 %v5152
      %v5242 = vunpack.c.h.b16 %v5152
      %v5243 = vunpack.c.l.b16 %v5153
      %v5244 = vunpack.c.h.b16 %v5153
      %v5245 = vunpack.c.l.b16 %v5154
      %v5246 = vunpack.c.h.b16 %v5154
      %v5247 = vunpack.c.l.b16 %v5155
      %v5248 = vunpack.c.h.b16 %v5155
      %v5249 = vunpack.c.l.b16 %v5156
      %v5250 = vunpack.c.h.b16 %v5156
      %v5251 = vunpack.c.l.b16 %v5157
      %v5252 = vunpack.c.h.b16 %v5157
      %v5253 = vunpack.c.l.b16 %v5158
      %v5254 = vunpack.c.h.b16 %v5158
      %v5255 = vunpack.c.l.b16 %v5159
      %v5256 = vunpack.c.h.b16 %v5159
      %v5257 = vunpack.c.l.b16 %v5160
      %v5258 = vunpack.c.h.b16 %v5160
      %v5259 = vunpack.c.l.b16 %v5161
      %v5260 = vunpack.c.h.b16 %v5161
      %v5261 = vunpack.c.l.b16 %v5162
      %v5262 = vunpack.c.h.b16 %v5162
      %v5263 = vunpack.c.l.b16 %v5163
      %v5264 = vunpack.c.h.b16 %v5163
      %v5265 = vunpack.c.l.b16 %v5164
      %v5266 = vunpack.c.h.b16 %v5164
      %v5267 = vunpack.c.l.b16 %v5165
      %v5268 = vunpack.c.h.b16 %v5165
      %v5269 = vunpack.c.l.b16 %v5166
      %v5270 = vunpack.c.h.b16 %v5166
      %v5271 = vpack.c.b16 %v5209, %v5207
      %v5272 = vpack.c.b16 %v5210, %v5208
      %v5273 = vpack.c.b16 %v5213, %v5211
      %v5274 = vpack.c.b16 %v5214, %v5212
      %v5275 = vpack.c.b16 %v5217, %v5215
      %v5276 = vpack.c.b16 %v5218, %v5216
      %v5277 = vpack.c.b16 %v5221, %v5219
      %v5278 = vpack.c.b16 %v5222, %v5220
      %v5279 = vpack.c.b16 %v5225, %v5223
      %v5280 = vpack.c.b16 %v5226, %v5224
      %v5281 = vpack.c.b16 %v5229, %v5227
      %v5282 = vpack.c.b16 %v5230, %v5228
      %v5283 = vpack.c.b16 %v5233, %v5231
      %v5284 = vpack.c.b16 %v5234, %v5232
      %v5285 = vpack.c.b16 %v5237, %v5235
      %v5286 = vpack.c.b16 %v5238, %v5236
      %v5287 = vpack.c.b16 %v5241, %v5239
      %v5288 = vpack.c.b16 %v5242, %v5240
      %v5289 = vpack.c.b16 %v5245, %v5243
      %v5290 = vpack.c.b16 %v5246, %v5244
      %v5291 = vpack.c.b16 %v5249, %v5247
      %v5292 = vpack.c.b16 %v5250, %v5248
      %v5293 = vpack.c.b16 %v5253, %v5251
      %v5294 = vpack.c.b16 %v5254, %v5252
      %v5295 = vpack.c.b16 %v5257, %v5255
      %v5296 = vpack.c.b16 %v5258, %v5256
      %v5297 = vpack.c.b16 %v5261, %v5259
      %v5298 = vpack.c.b16 %v5262, %v5260
      %v5299 = vpack.c.b16 %v5265, %v5263
      %v5300 = vpack.c.b16 %v5266, %v5264
      %v5301 = vpack.c.b16 %v5269, %v5267
      %v5302 = vpack.c.b16 %v5270, %v5268
      %5335 = vmatprep.subr.bf16.mxu0 %v5272
      %5336 = vmatpush1.bf16.msra.mxu0 %v5271
      %5337 = vmatprep.subr.bf16.mxu0 %v5274
      %5338 = vmatpush1.bf16.msra.mxu0 %v5273
      %5339 = vmatprep.subr.bf16.mxu0 %v5276
      %5340 = vmatpush1.bf16.msra.mxu0 %v5275
      %5341 = vmatprep.subr.bf16.mxu0 %v5278
      %5342 = vmatpush1.bf16.msra.mxu0 %v5277
      %5343 = vmatprep.subr.bf16.mxu0 %v5280
      %5344 = vmatpush1.bf16.msra.mxu0 %v5279
      %5345 = vmatprep.subr.bf16.mxu0 %v5282
      %5346 = vmatpush1.bf16.msra.mxu0 %v5281
      %5347 = vmatprep.subr.bf16.mxu0 %v5284
      %5348 = vmatpush1.bf16.msra.mxu0 %v5283
      %5349 = vmatprep.subr.bf16.mxu0 %v5286
      %5350 = vmatpush1.bf16.msra.mxu0 %v5285
      %5351 = vmatprep.subr.bf16.mxu0 %v5288
      %5352 = vmatpush1.bf16.msra.mxu0 %v5287
      %5353 = vmatprep.subr.bf16.mxu0 %v5290
      %5354 = vmatpush1.bf16.msra.mxu0 %v5289
      %5355 = vmatprep.subr.bf16.mxu0 %v5292
      %5356 = vmatpush1.bf16.msra.mxu0 %v5291
      %5357 = vmatprep.subr.bf16.mxu0 %v5294
      %5358 = vmatpush1.bf16.msra.mxu0 %v5293
      %5359 = vmatprep.subr.bf16.mxu0 %v5296
      %5360 = vmatpush1.bf16.msra.mxu0 %v5295
      %5361 = vmatprep.subr.bf16.mxu0 %v5298
      %5362 = vmatpush1.bf16.msra.mxu0 %v5297
      %5363 = vmatprep.subr.bf16.mxu0 %v5300
      %5364 = vmatpush1.bf16.msra.mxu0 %v5299
      %5365 = vmatprep.subr.bf16.mxu0 %v5302
      %5366 = vmatpush1.bf16.msra.mxu0 %v5301
      %5367 = vmatprep.mubr.bf16.mxu0 %v2300
      %5368 = vmatmul.mubr.bf16.gmra.mrb[0].mxu0 %v2299
      %v5369 = vpop.f32.mrb[0].mxu0
      %v5370 = vadd.f32 0.0, %v5369
      %v5371 = vpop.f32.mrb[0].mxu0
      %v5372 = vadd.f32 0.0, %v5371
      %v5373 = vpop.f32.mrb[0].mxu0
      %v5374 = vadd.f32 0.0, %v5373
      %v5375 = vpop.f32.mrb[0].mxu0
      %v5376 = vadd.f32 0.0, %v5375
      %5377 = vmatprep.mubr.bf16.mxu0 %v2302
      %5378 = vmatmul.mubr.bf16.gmra.mrb[0].mxu0 %v2301
      %v5379 = vpop.f32.mrb[0].mxu0
      %v5380 = vadd.f32 0.0, %v5379
      %v5381 = vpop.f32.mrb[0].mxu0
      %v5382 = vadd.f32 0.0, %v5381
      %v5383 = vpop.f32.mrb[0].mxu0
      %v5384 = vadd.f32 0.0, %v5383
      %v5385 = vpop.f32.mrb[0].mxu0
      %v5386 = vadd.f32 0.0, %v5385
      %5387 = vmatprep.mubr.bf16.mxu0 %v2304
      %5388 = vmatmul.mubr.bf16.gmra.mrb[0].mxu0 %v2303
      %v5389 = vpop.f32.mrb[0].mxu0
      %v5390 = vadd.f32 0.0, %v5389
      %v5391 = vpop.f32.mrb[0].mxu0
      %v5392 = vadd.f32 0.0, %v5391
      %v5393 = vpop.f32.mrb[0].mxu0
      %v5394 = vadd.f32 0.0, %v5393
      %v5395 = vpop.f32.mrb[0].mxu0
      %v5396 = vadd.f32 0.0, %v5395
      %5397 = vmatprep.mubr.bf16.mxu0 %v2306
      %5398 = vmatmul.mubr.bf16.gmra.mrb[0].mxu0 %v2305
      %v5399 = vpop.f32.mrb[0].mxu0
      %v5400 = vadd.f32 0.0, %v5399
      %v5401 = vpop.f32.mrb[0].mxu0
      %v5402 = vadd.f32 0.0, %v5401
      %v5403 = vpop.f32.mrb[0].mxu0
      %v5404 = vadd.f32 0.0, %v5403
      %v5405 = vpop.f32.mrb[0].mxu0
      %v5406 = vadd.f32 0.0, %v5405
      %5407 = vmatprep.mubr.bf16.mxu0 %v2308
      %5408 = vmatmul.mubr.bf16.gmra.mrb[0].mxu0 %v2307
      %v5409 = vpop.f32.mrb[0].mxu0
      %v5410 = vadd.f32 0.0, %v5409
      %v5411 = vpop.f32.mrb[0].mxu0
      %v5412 = vadd.f32 0.0, %v5411
      %v5413 = vpop.f32.mrb[0].mxu0
      %v5414 = vadd.f32 0.0, %v5413
      %v5415 = vpop.f32.mrb[0].mxu0
      %v5416 = vadd.f32 0.0, %v5415
      %5417 = vmatprep.mubr.bf16.mxu0 %v2310
      %5418 = vmatmul.mubr.bf16.gmra.mrb[0].mxu0 %v2309
      %v5419 = vpop.f32.mrb[0].mxu0
      %v5420 = vadd.f32 0.0, %v5419
      %v5421 = vpop.f32.mrb[0].mxu0
      %v5422 = vadd.f32 0.0, %v5421
      %v5423 = vpop.f32.mrb[0].mxu0
      %v5424 = vadd.f32 0.0, %v5423
      %v5425 = vpop.f32.mrb[0].mxu0
      %v5426 = vadd.f32 0.0, %v5425
      %5427 = vmatprep.mubr.bf16.mxu0 %v2312
      %5428 = vmatmul.mubr.bf16.gmra.mrb[0].mxu0 %v2311
      %v5429 = vpop.f32.mrb[0].mxu0
      %v5430 = vadd.f32 0.0, %v5429
      %v5431 = vpop.f32.mrb[0].mxu0
      %v5432 = vadd.f32 0.0, %v5431
      %v5433 = vpop.f32.mrb[0].mxu0
      %v5434 = vadd.f32 0.0, %v5433
      %v5435 = vpop.f32.mrb[0].mxu0
      %v5436 = vadd.f32 0.0, %v5435
      %5437 = vmatprep.mubr.bf16.mxu0 %v2314
      %5438 = vmatmul.mubr.bf16.gmra.mrb[0].mxu0 %v2313
      %v5439 = vpop.f32.mrb[0].mxu0
      %v5440 = vadd.f32 0.0, %v5439
      %v5441 = vpop.f32.mrb[0].mxu0
      %v5442 = vadd.f32 0.0, %v5441
      %v5443 = vpop.f32.mrb[0].mxu0
      %v5444 = vadd.f32 0.0, %v5443
      %v5445 = vpop.f32.mrb[0].mxu0
      %v5446 = vadd.f32 0.0, %v5445
      %5447 = vmatprep.mubr.bf16.mxu0 %v2316
      %5448 = vmatmul.mubr.bf16.gmra.mrb[0].mxu0 %v2315
      %v5449 = vpop.f32.mrb[0].mxu0
      %v5450 = vadd.f32 0.0, %v5449
      %v5451 = vpop.f32.mrb[0].mxu0
      %v5452 = vadd.f32 0.0, %v5451
      %v5453 = vpop.f32.mrb[0].mxu0
      %v5454 = vadd.f32 0.0, %v5453
      %v5455 = vpop.f32.mrb[0].mxu0
      %v5456 = vadd.f32 0.0, %v5455
      %5457 = vmatprep.mubr.bf16.mxu0 %v2318
      %5458 = vmatmul.mubr.bf16.gmra.mrb[0].mxu0 %v2317
      %v5459 = vpop.f32.mrb[0].mxu0
      %v5460 = vadd.f32 0.0, %v5459
      %v5461 = vpop.f32.mrb[0].mxu0
      %v5462 = vadd.f32 0.0, %v5461
      %v5463 = vpop.f32.mrb[0].mxu0
      %v5464 = vadd.f32 0.0, %v5463
      %v5465 = vpop.f32.mrb[0].mxu0
      %v5466 = vadd.f32 0.0, %v5465
      %5467 = vmatprep.mubr.bf16.mxu0 %v2320
      %5468 = vmatmul.mubr.bf16.gmra.mrb[0].mxu0 %v2319
      %v5469 = vpop.f32.mrb[0].mxu0
      %v5470 = vadd.f32 0.0, %v5469
      %v5471 = vpop.f32.mrb[0].mxu0
      %v5472 = vadd.f32 0.0, %v5471
      %v5473 = vpop.f32.mrb[0].mxu0
      %v5474 = vadd.f32 0.0, %v5473
      %v5475 = vpop.f32.mrb[0].mxu0
      %v5476 = vadd.f32 0.0, %v5475
      %5477 = vmatprep.mubr.bf16.mxu0 %v2322
      %5478 = vmatmul.mubr.bf16.gmra.mrb[0].mxu0 %v2321
      %v5479 = vpop.f32.mrb[0].mxu0
      %v5480 = vadd.f32 0.0, %v5479
      %v5481 = vpop.f32.mrb[0].mxu0
      %v5482 = vadd.f32 0.0, %v5481
      %v5483 = vpop.f32.mrb[0].mxu0
      %v5484 = vadd.f32 0.0, %v5483
      %v5485 = vpop.f32.mrb[0].mxu0
      %v5486 = vadd.f32 0.0, %v5485
      %5487 = vmatprep.mubr.bf16.mxu0 %v2324
      %5488 = vmatmul.mubr.bf16.gmra.mrb[0].mxu0 %v2323
      %v5489 = vpop.f32.mrb[0].mxu0
      %v5490 = vadd.f32 0.0, %v5489
      %v5491 = vpop.f32.mrb[0].mxu0
      %v5492 = vadd.f32 0.0, %v5491
      %v5493 = vpop.f32.mrb[0].mxu0
      %v5494 = vadd.f32 0.0, %v5493
      %v5495 = vpop.f32.mrb[0].mxu0
      %v5496 = vadd.f32 0.0, %v5495
      %5497 = vmatprep.mubr.bf16.mxu0 %v2326
      %5498 = vmatmul.mubr.bf16.gmra.mrb[0].mxu0 %v2325
      %v5499 = vpop.f32.mrb[0].mxu0
      %v5500 = vadd.f32 0.0, %v5499
      %v5501 = vpop.f32.mrb[0].mxu0
      %v5502 = vadd.f32 0.0, %v5501
      %v5503 = vpop.f32.mrb[0].mxu0
      %v5504 = vadd.f32 0.0, %v5503
      %v5505 = vpop.f32.mrb[0].mxu0
      %v5506 = vadd.f32 0.0, %v5505
      %5507 = vmatprep.mubr.bf16.mxu0 %v3764
      %5508 = vmatmul.mubr.bf16.gmra.mrb[0].mxu0 %v3763
      %v5509 = vpop.f32.mrb[0].mxu0
      %v5510 = vadd.f32 0.0, %v5509
      %v5511 = vpop.f32.mrb[0].mxu0
      %v5512 = vadd.f32 0.0, %v5511
      %v5513 = vpop.f32.mrb[0].mxu0
      %v5514 = vadd.f32 0.0, %v5513
      %v5515 = vpop.f32.mrb[0].mxu0
      %v5516 = vadd.f32 0.0, %v5515
      %5517 = vmatprep.mubr.bf16.mxu0 %v5172
      %5518 = vmatmul.mubr.bf16.gmra.mrb[0].mxu0 %v5171
      %v5519 = vpop.f32.mrb[0].mxu0
      %v5520 = vadd.f32 0.0, %v5519
      %v5521 = vpop.f32.mrb[0].mxu0
      %v5522 = vadd.f32 0.0, %v5521
      %v5523 = vpop.f32.mrb[0].mxu0
      %v5524 = vadd.f32 0.0, %v5523
      %v5525 = vpop.f32.mrb[0].mxu0
      %v5526 = vadd.f32 0.0, %v5525
      %5527 = vdwg.mxu0
      %v5528 = vadd.f32 %v5062, %v5370
      %v5529 = vadd.f32 %v5063, %v5372
      %v5530 = vadd.f32 %v5064, %v5374
      %v5531 = vadd.f32 %v5065, %v5376
      %v5532 = vadd.f32 %v5066, %v5380
      %v5533 = vadd.f32 %v5067, %v5382
      %v5534 = vadd.f32 %v5068, %v5384
      %v5535 = vadd.f32 %v5069, %v5386
      %v5536 = vadd.f32 %v5070, %v5390
      %v5537 = vadd.f32 %v5071, %v5392
      %v5538 = vadd.f32 %v5072, %v5394
      %v5539 = vadd.f32 %v5073, %v5396
      %v5540 = vadd.f32 %v5074, %v5400
      %v5541 = vadd.f32 %v5075, %v5402
      %v5542 = vadd.f32 %v5076, %v5404
      %v5543 = vadd.f32 %v5077, %v5406
      %v5544 = vadd.f32 %v5078, %v5410
      %v5545 = vadd.f32 %v5079, %v5412
      %v5546 = vadd.f32 %v5080, %v5414
      %v5547 = vadd.f32 %v5081, %v5416
      %v5548 = vadd.f32 %v5082, %v5420
      %v5549 = vadd.f32 %v5083, %v5422
      %v5550 = vadd.f32 %v5084, %v5424
      %v5551 = vadd.f32 %v5085, %v5426
      %v5552 = vadd.f32 %v5086, %v5430
      %v5553 = vadd.f32 %v5087, %v5432
      %v5554 = vadd.f32 %v5088, %v5434
      %v5555 = vadd.f32 %v5089, %v5436
      %v5556 = vadd.f32 %v5090, %v5440
      %v5557 = vadd.f32 %v5091, %v5442
      %v5558 = vadd.f32 %v5092, %v5444
      %v5559 = vadd.f32 %v5093, %v5446
      %v5560 = vadd.f32 %v5094, %v5450
      %v5561 = vadd.f32 %v5095, %v5452
      %v5562 = vadd.f32 %v5096, %v5454
      %v5563 = vadd.f32 %v5097, %v5456
      %v5564 = vadd.f32 %v5098, %v5460
      %v5565 = vadd.f32 %v5099, %v5462
      %v5566 = vadd.f32 %v5100, %v5464
      %v5567 = vadd.f32 %v5101, %v5466
      %v5568 = vadd.f32 %v5102, %v5470
      %v5569 = vadd.f32 %v5103, %v5472
      %v5570 = vadd.f32 %v5104, %v5474
      %v5571 = vadd.f32 %v5105, %v5476
      %v5572 = vadd.f32 %v5106, %v5480
      %v5573 = vadd.f32 %v5107, %v5482
      %v5574 = vadd.f32 %v5108, %v5484
      %v5575 = vadd.f32 %v5109, %v5486
      %v5576 = vadd.f32 %v5110, %v5490
      %v5577 = vadd.f32 %v5111, %v5492
      %v5578 = vadd.f32 %v5112, %v5494
      %v5579 = vadd.f32 %v5113, %v5496
      %v5580 = vadd.f32 %v5114, %v5500
      %v5581 = vadd.f32 %v5115, %v5502
      %v5582 = vadd.f32 %v5116, %v5504
      %v5583 = vadd.f32 %v5117, %v5506
      %v5584 = vadd.f32 %v5118, %v5510
      %v5585 = vadd.f32 %v5119, %v5512
      %v5586 = vadd.f32 %v5120, %v5514
      %v5587 = vadd.f32 %v5121, %v5516
      %v5588 = vadd.f32 %v5122, %v5520
      %v5589 = vadd.f32 %v5123, %v5522
      %v5590 = vadd.f32 %v5124, %v5524
      %v5591 = vadd.f32 %v5125, %v5526
      %v5592 = vadd.f32 %v5528, %v5530
      %v5593 = vadd.f32 %v5592, %v5532
      %v5594 = vadd.f32 %v5593, %v5534
      %v5595 = vadd.f32 %v5594, %v5536
      %v5596 = vadd.f32 %v5595, %v5538
      %v5597 = vadd.f32 %v5596, %v5540
      %v5598 = vadd.f32 %v5597, %v5542
      %v5599 = vadd.f32 %v5598, %v5544
      %v5600 = vadd.f32 %v5599, %v5546
      %v5601 = vadd.f32 %v5600, %v5548
      %v5602 = vadd.f32 %v5601, %v5550
      %v5603 = vadd.f32 %v5602, %v5552
      %v5604 = vadd.f32 %v5603, %v5554
      %v5605 = vadd.f32 %v5604, %v5556
      %v5606 = vadd.f32 %v5605, %v5558
      %v5607 = vadd.f32 %v5606, %v5560
      %v5608 = vadd.f32 %v5607, %v5562
      %v5609 = vadd.f32 %v5608, %v5564
      %v5610 = vadd.f32 %v5609, %v5566
      %v5611 = vadd.f32 %v5610, %v5568
      %v5612 = vadd.f32 %v5611, %v5570
      %v5613 = vadd.f32 %v5612, %v5572
      %v5614 = vadd.f32 %v5613, %v5574
      %v5615 = vadd.f32 %v5614, %v5576
      %v5616 = vadd.f32 %v5615, %v5578
      %v5617 = vadd.f32 %v5616, %v5580
      %v5618 = vadd.f32 %v5617, %v5582
      %v5619 = vadd.f32 %v5618, %v5584
      %v5620 = vadd.f32 %v5619, %v5586
      %v5621 = vadd.f32 %v5620, %v5588
      %v5622 = vadd.f32 %v5621, %v5590
      %v5623 = vrot.slane %v5622, 4
      %v5624 = vadd.f32 %v5622, %v5623
      %v5625 = vrot.slane %v5624, 2
      %v5626 = vadd.f32 %v5624, %v5625
      %v5627 = vrot.slane %v5626, 1
      %v5628 = vadd.f32 %v5626, %v5627
      %v5629 = vadd.f32 %v5529, %v5531
      %v5630 = vadd.f32 %v5629, %v5533
      %v5631 = vadd.f32 %v5630, %v5535
      %v5632 = vadd.f32 %v5631, %v5537
      %v5633 = vadd.f32 %v5632, %v5539
      %v5634 = vadd.f32 %v5633, %v5541
      %v5635 = vadd.f32 %v5634, %v5543
      %v5636 = vadd.f32 %v5635, %v5545
      %v5637 = vadd.f32 %v5636, %v5547
      %v5638 = vadd.f32 %v5637, %v5549
      %v5639 = vadd.f32 %v5638, %v5551
      %v5640 = vadd.f32 %v5639, %v5553
      %v5641 = vadd.f32 %v5640, %v5555
      %v5642 = vadd.f32 %v5641, %v5557
      %v5643 = vadd.f32 %v5642, %v5559
      %v5644 = vadd.f32 %v5643, %v5561
      %v5645 = vadd.f32 %v5644, %v5563
      %v5646 = vadd.f32 %v5645, %v5565
      %v5647 = vadd.f32 %v5646, %v5567
      %v5648 = vadd.f32 %v5647, %v5569
      %v5649 = vadd.f32 %v5648, %v5571
      %v5650 = vadd.f32 %v5649, %v5573
      %v5651 = vadd.f32 %v5650, %v5575
      %v5652 = vadd.f32 %v5651, %v5577
      %v5653 = vadd.f32 %v5652, %v5579
      %v5654 = vadd.f32 %v5653, %v5581
      %v5655 = vadd.f32 %v5654, %v5583
      %v5656 = vadd.f32 %v5655, %v5585
      %v5657 = vadd.f32 %v5656, %v5587
      %v5658 = vadd.f32 %v5657, %v5589
      %v5659 = vadd.f32 %v5658, %v5591
      %v5660 = vrot.slane %v5659, 4
      %v5661 = vadd.f32 %v5659, %v5660
      %v5662 = vrot.slane %v5661, 2
      %v5663 = vadd.f32 %v5661, %v5662
      %v5664 = vrot.slane %v5663, 1
      %v5665 = vadd.f32 %v5663, %v5664
      %v5666 = vmul.f32 %v5528, %v5528
      %v5667 = vmul.f32 %v5529, %v5529
      %v5668 = vmul.f32 %v5530, %v5530
      %v5669 = vmul.f32 %v5531, %v5531
      %v5670 = vmul.f32 %v5532, %v5532
      %v5671 = vmul.f32 %v5533, %v5533
      %v5672 = vmul.f32 %v5534, %v5534
      %v5673 = vmul.f32 %v5535, %v5535
      %v5674 = vmul.f32 %v5536, %v5536
      %v5675 = vmul.f32 %v5537, %v5537
      %v5676 = vmul.f32 %v5538, %v5538
      %v5677 = vmul.f32 %v5539, %v5539
      %v5678 = vmul.f32 %v5540, %v5540
      %v5679 = vmul.f32 %v5541, %v5541
      %v5680 = vmul.f32 %v5542, %v5542
      %v5681 = vmul.f32 %v5543, %v5543
      %v5682 = vmul.f32 %v5544, %v5544
      %v5683 = vmul.f32 %v5545, %v5545
      %v5684 = vmul.f32 %v5546, %v5546
      %v5685 = vmul.f32 %v5547, %v5547
      %v5686 = vmul.f32 %v5548, %v5548
      %v5687 = vmul.f32 %v5549, %v5549
      %v5688 = vmul.f32 %v5550, %v5550
      %v5689 = vmul.f32 %v5551, %v5551
      %v5690 = vmul.f32 %v5552, %v5552
      %v5691 = vmul.f32 %v5553, %v5553
      %v5692 = vmul.f32 %v5554, %v5554
      %v5693 = vmul.f32 %v5555, %v5555
      %v5694 = vmul.f32 %v5556, %v5556
      %v5695 = vmul.f32 %v5557, %v5557
      %v5696 = vmul.f32 %v5558, %v5558
      %v5697 = vmul.f32 %v5559, %v5559
      %v5698 = vmul.f32 %v5560, %v5560
      %v5699 = vmul.f32 %v5561, %v5561
      %v5700 = vmul.f32 %v5562, %v5562
      %v5701 = vmul.f32 %v5563, %v5563
      %v5702 = vmul.f32 %v5564, %v5564
      %v5703 = vmul.f32 %v5565, %v5565
      %v5704 = vmul.f32 %v5566, %v5566
      %v5705 = vmul.f32 %v5567, %v5567
      %v5706 = vmul.f32 %v5568, %v5568
      %v5707 = vmul.f32 %v5569, %v5569
      %v5708 = vmul.f32 %v5570, %v5570
      %v5709 = vmul.f32 %v5571, %v5571
      %v5710 = vmul.f32 %v5572, %v5572
      %v5711 = vmul.f32 %v5573, %v5573
      %v5712 = vmul.f32 %v5574, %v5574
      %v5713 = vmul.f32 %v5575, %v5575
      %v5714 = vmul.f32 %v5576, %v5576
      %v5715 = vmul.f32 %v5577, %v5577
      %v5716 = vmul.f32 %v5578, %v5578
      %v5717 = vmul.f32 %v5579, %v5579
      %v5718 = vmul.f32 %v5580, %v5580
      %v5719 = vmul.f32 %v5581, %v5581
      %v5720 = vmul.f32 %v5582, %v5582
      %v5721 = vmul.f32 %v5583, %v5583
      %v5722 = vmul.f32 %v5584, %v5584
      %v5723 = vmul.f32 %v5585, %v5585
      %v5724 = vmul.f32 %v5586, %v5586
      %v5725 = vmul.f32 %v5587, %v5587
      %v5726 = vmul.f32 %v5588, %v5588
      %v5727 = vmul.f32 %v5589, %v5589
      %v5728 = vmul.f32 %v5590, %v5590
      %v5729 = vmul.f32 %v5591, %v5591
      %v5730 = vadd.f32 %v5666, %v5668
      %v5731 = vadd.f32 %v5730, %v5670
      %v5732 = vadd.f32 %v5731, %v5672
      %v5733 = vadd.f32 %v5732, %v5674
      %v5734 = vadd.f32 %v5733, %v5676
      %v5735 = vadd.f32 %v5734, %v5678
      %v5736 = vadd.f32 %v5735, %v5680
      %v5737 = vadd.f32 %v5736, %v5682
      %v5738 = vadd.f32 %v5737, %v5684
      %v5739 = vadd.f32 %v5738, %v5686
      %v5740 = vadd.f32 %v5739, %v5688
      %v5741 = vadd.f32 %v5740, %v5690
      %v5742 = vadd.f32 %v5741, %v5692
      %v5743 = vadd.f32 %v5742, %v5694
      %v5744 = vadd.f32 %v5743, %v5696
      %v5745 = vadd.f32 %v5744, %v5698
      %v5746 = vadd.f32 %v5745, %v5700
      %v5747 = vadd.f32 %v5746, %v5702
      %v5748 = vadd.f32 %v5747, %v5704
      %v5749 = vadd.f32 %v5748, %v5706
      %v5750 = vadd.f32 %v5749, %v5708
      %v5751 = vadd.f32 %v5750, %v5710
      %v5752 = vadd.f32 %v5751, %v5712
      %v5753 = vadd.f32 %v5752, %v5714
      %v5754 = vadd.f32 %v5753, %v5716
      %v5755 = vadd.f32 %v5754, %v5718
      %v5756 = vadd.f32 %v5755, %v5720
      %v5757 = vadd.f32 %v5756, %v5722
      %v5758 = vadd.f32 %v5757, %v5724
      %v5759 = vadd.f32 %v5758, %v5726
      %v5760 = vadd.f32 %v5759, %v5728
      %v5761 = vrot.slane %v5760, 4
      %v5762 = vadd.f32 %v5760, %v5761
      %v5763 = vrot.slane %v5762, 2
      %v5764 = vadd.f32 %v5762, %v5763
      %v5765 = vrot.slane %v5764, 1
      %v5766 = vadd.f32 %v5764, %v5765
      %v5767 = vadd.f32 %v5667, %v5669
      %v5768 = vadd.f32 %v5767, %v5671
      %v5769 = vadd.f32 %v5768, %v5673
      %v5770 = vadd.f32 %v5769, %v5675
      %v5771 = vadd.f32 %v5770, %v5677
      %v5772 = vadd.f32 %v5771, %v5679
      %v5773 = vadd.f32 %v5772, %v5681
      %v5774 = vadd.f32 %v5773, %v5683
      %v5775 = vadd.f32 %v5774, %v5685
      %v5776 = vadd.f32 %v5775, %v5687
      %v5777 = vadd.f32 %v5776, %v5689
      %v5778 = vadd.f32 %v5777, %v5691
      %v5779 = vadd.f32 %v5778, %v5693
      %v5780 = vadd.f32 %v5779, %v5695
      %v5781 = vadd.f32 %v5780, %v5697
      %v5782 = vadd.f32 %v5781, %v5699
      %v5783 = vadd.f32 %v5782, %v5701
      %v5784 = vadd.f32 %v5783, %v5703
      %v5785 = vadd.f32 %v5784, %v5705
      %v5786 = vadd.f32 %v5785, %v5707
      %v5787 = vadd.f32 %v5786, %v5709
      %v5788 = vadd.f32 %v5787, %v5711
      %v5789 = vadd.f32 %v5788, %v5713
      %v5790 = vadd.f32 %v5789, %v5715
      %v5791 = vadd.f32 %v5790, %v5717
      %v5792 = vadd.f32 %v5791, %v5719
      %v5793 = vadd.f32 %v5792, %v5721
      %v5794 = vadd.f32 %v5793, %v5723
      %v5795 = vadd.f32 %v5794, %v5725
      %v5796 = vadd.f32 %v5795, %v5727
      %v5797 = vadd.f32 %v5796, %v5729
      %v5798 = vrot.slane %v5797, 4
      %v5799 = vadd.f32 %v5797, %v5798
      %v5800 = vrot.slane %v5799, 2
      %v5801 = vadd.f32 %v5799, %v5800
      %v5802 = vrot.slane %v5801, 1
      %v5803 = vadd.f32 %v5801, %v5802
      %vm5804 = vcmask 1040384
      %v5805 = vsel %vm5804, %v5628, %v5766
      %v5806 = vsel %vm5804, %v5665, %v5803
      %v5809 = vcombine.low %v5805, %v5806
      %v5811 = vunpack.c.l.s4 1983009808
      %v5812 = vunpack.c.0.s8 %v5811
      %v5813 = vlaneseq
      %v5814 = vshrl.u32 %v5813, 7
      %v5815 = vsub.s32 %v5812, %v5814
      %v5816 = vrot.slane %v5809, %v5815
      %5818 = vst [vmem:[%s334] sm:$0xf] %v5816
      %v5819 = vld [vmem:[%s2] sm:$0x3]
      %v5821 = vlaneseq
      %v5822 = vshrl.u32 %v5821, 7
      %v5823 = vsub.s32 0, %v5822
      %v5824 = vrot.slane %v5819, %v5823
      %v5825 = vlaneseq
      %v5826 = vshrl.u32 %v5825, 7
      %v5827 = vsub.s32 1, %v5826
      %v5828 = vrot.slane %v5819, %v5827
      %v5831 = vadd.f32 %v5528, %v5824
      %v5832 = vadd.f32 %v5529, %v5828
      %v5833 = vadd.f32 %v5530, %v5824
      %v5834 = vadd.f32 %v5531, %v5828
      %v5835 = vadd.f32 %v5532, %v5824
      %v5836 = vadd.f32 %v5533, %v5828
      %v5837 = vadd.f32 %v5534, %v5824
      %v5838 = vadd.f32 %v5535, %v5828
      %v5839 = vadd.f32 %v5536, %v5824
      %v5840 = vadd.f32 %v5537, %v5828
      %v5841 = vadd.f32 %v5538, %v5824
      %v5842 = vadd.f32 %v5539, %v5828
      %v5843 = vadd.f32 %v5540, %v5824
      %v5844 = vadd.f32 %v5541, %v5828
      %v5845 = vadd.f32 %v5542, %v5824
      %v5846 = vadd.f32 %v5543, %v5828
      %v5847 = vadd.f32 %v5544, %v5824
      %v5848 = vadd.f32 %v5545, %v5828
      %v5849 = vadd.f32 %v5546, %v5824
      %v5850 = vadd.f32 %v5547, %v5828
      %v5851 = vadd.f32 %v5548, %v5824
      %v5852 = vadd.f32 %v5549, %v5828
      %v5853 = vadd.f32 %v5550, %v5824
      %v5854 = vadd.f32 %v5551, %v5828
      %v5855 = vadd.f32 %v5552, %v5824
      %v5856 = vadd.f32 %v5553, %v5828
      %v5857 = vadd.f32 %v5554, %v5824
      %v5858 = vadd.f32 %v5555, %v5828
      %v5859 = vadd.f32 %v5556, %v5824
      %v5860 = vadd.f32 %v5557, %v5828
      %v5861 = vadd.f32 %v5558, %v5824
      %v5862 = vadd.f32 %v5559, %v5828
      %v5863 = vadd.f32 %v5560, %v5824
      %v5864 = vadd.f32 %v5561, %v5828
      %v5865 = vadd.f32 %v5562, %v5824
      %v5866 = vadd.f32 %v5563, %v5828
      %v5867 = vadd.f32 %v5564, %v5824
      %v5868 = vadd.f32 %v5565, %v5828
      %v5869 = vadd.f32 %v5566, %v5824
      %v5870 = vadd.f32 %v5567, %v5828
      %v5871 = vadd.f32 %v5568, %v5824
      %v5872 = vadd.f32 %v5569, %v5828
      %v5873 = vadd.f32 %v5570, %v5824
      %v5874 = vadd.f32 %v5571, %v5828
      %v5875 = vadd.f32 %v5572, %v5824
      %v5876 = vadd.f32 %v5573, %v5828
      %v5877 = vadd.f32 %v5574, %v5824
      %v5878 = vadd.f32 %v5575, %v5828
      %v5879 = vadd.f32 %v5576, %v5824
      %v5880 = vadd.f32 %v5577, %v5828
      %v5881 = vadd.f32 %v5578, %v5824
      %v5882 = vadd.f32 %v5579, %v5828
      %v5883 = vadd.f32 %v5580, %v5824
      %v5884 = vadd.f32 %v5581, %v5828
      %v5885 = vadd.f32 %v5582, %v5824
      %v5886 = vadd.f32 %v5583, %v5828
      %v5887 = vadd.f32 %v5584, %v5824
      %v5888 = vadd.f32 %v5585, %v5828
      %v5889 = vadd.f32 %v5586, %v5824
      %v5890 = vadd.f32 %v5587, %v5828
      %v5891 = vadd.f32 %v5588, %v5824
      %v5892 = vadd.f32 %v5589, %v5828
      %v5893 = vadd.f32 %v5590, %v5824
      %v5894 = vadd.f32 %v5591, %v5828
      %5895 = vst [vmem:[%s327] sm:$0xff] %v5831
      %5896 = vst [vmem:[%s327 + $0x8] sm:$0xff] %v5832
      %5897 = vst [vmem:[%s327 + $0x10] sm:$0xff] %v5833
      %5898 = vst [vmem:[%s327 + $0x18] sm:$0xff] %v5834
      %5899 = vst [vmem:[%s327 + $0x20] sm:$0xff] %v5835
      %5900 = vst [vmem:[%s327 + $0x28] sm:$0xff] %v5836
      %5901 = vst [vmem:[%s327 + $0x30] sm:$0xff] %v5837
      %5902 = vst [vmem:[%s327 + $0x38] sm:$0xff] %v5838
      %5903 = vst [vmem:[%s327 + $0x40] sm:$0xff] %v5839
      %5904 = vst [vmem:[%s327 + $0x48] sm:$0xff] %v5840
      %5905 = vst [vmem:[%s327 + $0x50] sm:$0xff] %v5841
      %5906 = vst [vmem:[%s327 + $0x58] sm:$0xff] %v5842
      %5907 = vst [vmem:[%s327 + $0x60] sm:$0xff] %v5843
      %5908 = vst [vmem:[%s327 + $0x68] sm:$0xff] %v5844
      %5909 = vst [vmem:[%s327 + $0x70] sm:$0xff] %v5845
      %5910 = vst [vmem:[%s327 + $0x78] sm:$0xff] %v5846
      %5911 = vst [vmem:[%s327 + $0x80] sm:$0xff] %v5847
      %5912 = vst [vmem:[%s327 + $0x88] sm:$0xff] %v5848
      %5913 = vst [vmem:[%s327 + $0x90] sm:$0xff] %v5849
      %5914 = vst [vmem:[%s327 + $0x98] sm:$0xff] %v5850
      %5915 = vst [vmem:[%s327 + $0xa0] sm:$0xff] %v5851
      %5916 = vst [vmem:[%s327 + $0xa8] sm:$0xff] %v5852
      %5917 = vst [vmem:[%s327 + $0xb0] sm:$0xff] %v5853
      %5918 = vst [vmem:[%s327 + $0xb8] sm:$0xff] %v5854
      %5919 = vst [vmem:[%s327 + $0xc0] sm:$0xff] %v5855
      %5920 = vst [vmem:[%s327 + $0xc8] sm:$0xff] %v5856
      %5921 = vst [vmem:[%s327 + $0xd0] sm:$0xff] %v5857
      %5922 = vst [vmem:[%s327 + $0xd8] sm:$0xff] %v5858
      %5923 = vst [vmem:[%s327 + $0xe0] sm:$0xff] %v5859
      %5924 = vst [vmem:[%s327 + $0xe8] sm:$0xff] %v5860
      %5925 = vst [vmem:[%s327 + $0xf0] sm:$0xff] %v5861
      %5926 = vst [vmem:[%s327 + $0xf8] sm:$0xff] %v5862
      %5927 = vst [vmem:[%s327 + $0x100] sm:$0xff] %v5863
      %5928 = vst [vmem:[%s327 + $0x108] sm:$0xff] %v5864
      %5929 = vst [vmem:[%s327 + $0x110] sm:$0xff] %v5865
      %5930 = vst [vmem:[%s327 + $0x118] sm:$0xff] %v5866
      %5931 = vst [vmem:[%s327 + $0x120] sm:$0xff] %v5867
      %5932 = vst [vmem:[%s327 + $0x128] sm:$0xff] %v5868
      %5933 = vst [vmem:[%s327 + $0x130] sm:$0xff] %v5869
      %5934 = vst [vmem:[%s327 + $0x138] sm:$0xff] %v5870
      %5935 = vst [vmem:[%s327 + $0x140] sm:$0xff] %v5871
      %5936 = vst [vmem:[%s327 + $0x148] sm:$0xff] %v5872
      %5937 = vst [vmem:[%s327 + $0x150] sm:$0xff] %v5873
      %5938 = vst [vmem:[%s327 + $0x158] sm:$0xff] %v5874
      %5939 = vst [vmem:[%s327 + $0x160] sm:$0xff] %v5875
      %5940 = vst [vmem:[%s327 + $0x168] sm:$0xff] %v5876
      %5941 = vst [vmem:[%s327 + $0x170] sm:$0xff] %v5877
      %5942 = vst [vmem:[%s327 + $0x178] sm:$0xff] %v5878
      %5943 = vst [vmem:[%s327 + $0x180] sm:$0xff] %v5879
      %5944 = vst [vmem:[%s327 + $0x188] sm:$0xff] %v5880
      %5945 = vst [vmem:[%s327 + $0x190] sm:$0xff] %v5881
      %5946 = vst [vmem:[%s327 + $0x198] sm:$0xff] %v5882
      %5947 = vst [vmem:[%s327 + $0x1a0] sm:$0xff] %v5883
      %5948 = vst [vmem:[%s327 + $0x1a8] sm:$0xff] %v5884
      %5949 = vst [vmem:[%s327 + $0x1b0] sm:$0xff] %v5885
      %5950 = vst [vmem:[%s327 + $0x1b8] sm:$0xff] %v5886
      %5951 = vst [vmem:[%s327 + $0x1c0] sm:$0xff] %v5887
      %5952 = vst [vmem:[%s327 + $0x1c8] sm:$0xff] %v5888
      %5953 = vst [vmem:[%s327 + $0x1d0] sm:$0xff] %v5889
      %5954 = vst [vmem:[%s327 + $0x1d8] sm:$0xff] %v5890
      %5955 = vst [vmem:[%s327 + $0x1e0] sm:$0xff] %v5891
      %5956 = vst [vmem:[%s327 + $0x1e8] sm:$0xff] %v5892
      %5957 = vst [vmem:[%s327 + $0x1f0] sm:$0xff] %v5893
      %5958 = vst [vmem:[%s327 + $0x1f8] sm:$0xff] %v5894
      %s5959 = smul.u32 16, %s23
      %p5960 = scmp.lt.s32.totalorder %s22, 1
      %s5961 = scalar_select %p5960, %s22, 1
      %p5962 = scmp.lt.s32.totalorder %s5959, 15
      %s5963 = scalar_select %p5962, %s5959, 15
      %s5964 = smul.addr %s5963, 4
      %s5965 = smul.addr %s5961, 64
      %s5966 = sadd.s32 %s5964, %s5965
      %s5967 = smul.addr %s5966, 8
      %s5968 = scalar_lea.vmem %s5, %s5967
      %s5969 = sadd.s32 %s22, %s23
      %p5970 = scmp.lt.s32.totalorder %s5969, 1
      %s5971 = scalar_select %p5970, %s5969, 1
      %s5972 = smul.addr %s5971, 2
      %s5973 = smul.addr %s5972, 2
      %s5974 = scalar_lea.vmem %s6, %s5973
      // Predicated region
      $region41: #{resnet_block.4} parent=39 // pred_check
        %p5975 = pneg %p172
      $region42: #{resnet_block.4} parent=39 // pred_check_branch
        %5977 = sbr.rel (%p5975) target = $region44
      $region43: #{resnet_block.4} parent=39 // pred_region
        %s5978 = smul.u32 16, %s23
      $region44: #{resnet_block.4} parent=39 // pred_fallthru
        _
      // Predicated region
      $region45: #{resnet_block.4} parent=39 // pred_check
        %p5979 = pneg %p200
      $region46: #{resnet_block.4} parent=39 // pred_check_branch
        %5981 = sbr.rel (%p5979) target = $region48
      $region47: #{resnet_block.4} parent=39 // pred_region
        %s5982 = sadd.s32 %s22, %s23
      $region48: #{resnet_block.4} parent=39 // pred_fallthru
        _
    $region40: #{resnet_block.4} parent=5 // pred_fallthru
      _
    %p5983 = scmp.le.s32.totalorder 2, %s13
    // Predicated region
    $region49: #{resnet_block.4} parent=5 // pred_check
      %p5984 = pneg %p5983
    $region50: #{resnet_block.4} parent=5 // pred_check_branch
      %5986 = sbr.rel (%p5984) target = $region52
    $region51: #{resnet_block.4} parent=5 // pred_region
      %s5987 = ssub.s32 %s13, 2
      // Predicated region
      $region53: #{resnet_block.4} parent=51 // pred_check
        %p5988 = pneg %p178
      $region54: #{resnet_block.4} parent=51 // pred_check_branch
        %5990 = sbr.rel (%p5988) target = $region56
      $region55: #{resnet_block.4} parent=51 // pred_region
        %s5991 = smul.u32 16, %s25
        %p5992 = scmp.lt.s32.totalorder %s24, 1
        %s5993 = scalar_select %p5992, %s24, 1
        %p5994 = scmp.lt.s32.totalorder %s5991, 15
        %s5995 = scalar_select %p5994, %s5991, 15
        %s5996 = smul.addr %s5995, 4
        %s5997 = smul.addr %s5993, 64
        %s5998 = sadd.s32 %s5996, %s5997
        %s5999 = smul.addr %s5998, 8
        %s6000 = scalar_lea.vmem %s5, %s5999
      $region56: #{resnet_block.4} parent=51 // pred_fallthru
        _
      // Predicated region
      $region57: #{resnet_block.4} parent=51 // pred_check
        %p6001 = pneg %p206
      $region58: #{resnet_block.4} parent=51 // pred_check_branch
        %6003 = sbr.rel (%p6001) target = $region60
      $region59: #{resnet_block.4} parent=51 // pred_region
        %s6004 = sadd.s32 %s24, %s25
        %p6005 = scmp.lt.s32.totalorder %s6004, 1
        %s6006 = scalar_select %p6005, %s6004, 1
        %s6007 = smul.addr %s6006, 2
        %s6008 = smul.addr %s6007, 2
        %s6009 = scalar_lea.vmem %s6, %s6008
      $region60: #{resnet_block.4} parent=51 // pred_fallthru
        _
    $region52: #{resnet_block.4} parent=5 // pred_fallthru
      _
  $region6: #{resnet_block.4} parent=0 // loop_footer
    %s17 = sadd.s32 1, %s13
  $region7: #{resnet_block.4} parent=0 // loop_footer_branch
    %12 = sbr.rel target = $region3
  $region8: #{resnet_block.4} parent=0 // loop_exit
    _

// kernel: resnet_block.3
$region0: #{resnet_block.3}
  #allocation0 [shape = 'u32[]', space=smem, size = 0x4, offset = 0x4, fixed_abs, tag = 'smem constant byte address 0x4 - core index']
  #allocation1 [shape = 'u32[144,128]{1,0:T(1,128)}', space=vmem, size = 0x12000, scoped, tag = 'internal scratch']
  %s0 = inlined_call_operand.vmem [shape: bf16[2,18,18,256], index: 0, kind: input, shape index: {}]
  %s1 = inlined_call_operand.vmem [shape: bf16[9,256,256], index: 1, kind: input, shape index: {}]
  %s2 = inlined_call_operand.vmem [shape: f32[1,256], index: 2, kind: input, shape index: {}]
  %s3 = inlined_call_operand.vmem [shape: bf16[2,16,16,256], index: 3, kind: output, shape index: {0}]
  %s4 = inlined_call_operand.vmem [shape: f32[2,2,256], index: 4, kind: output, shape index: {1}]
  %5 = xla_tuple %s3, %s4
  %s6 = sld [smem:[#allocation0]]
  $region53: #{resnet_block.3} parent=0
    _
  %s8 = ssub.s32 1, %s6
  %s9 = scalar_select 0, %s8, %s6
  loop: start=0, step=1, limit=4
  $region2: #{resnet_block.3} parent=0 // loop_pre_header
    _
  $region3: #{resnet_block.3} parent=0 // loop_header
    %s11 = sphi 0, %s15
    %p12 = scmp.ge.s32.totalorder %s11, 4
    %s18 = sphi 0, %s30
    %s19 = sphi 0, %s26
    %s20 = sphi 0, %s18
    %s21 = sphi 0, %s19
    %s22 = sphi 0, %s20
    %s23 = sphi 0, %s21
    %s35 = sphi 0, %s37
    %s38 = sphi 0, %s35
    %s39 = sphi 0, %s38
    %s55 = sphi 0, %s39
    %s59 = sphi 0, %s59
    %s61 = sphi 0, %s59
    %s62 = sphi 0, %s61
    %s76 = sphi 0, %s62
    %s80 = sphi 0, %s80
    %s82 = sphi 0, %s80
    %s83 = sphi 0, %s82
    %s97 = sphi 0, %s83
    %s105 = sphi 0, %s107
    %s108 = sphi 0, %s105
    %s109 = sphi 0, %s108
    %s125 = sphi 0, %s109
    %s133 = sphi 0, %s135
    %s136 = sphi 0, %s133
    %s137 = sphi 0, %s136
    %s153 = sphi 0, %s137
  $region4: #{resnet_block.3} parent=0 // loop_header_branch
    %14 = sbr.rel (%p12) target = $region8
  $region5: #{resnet_block.3} parent=0 // loop_body
    %s16 = ssub.s32 %s11, 1
    %s17 = ssub.s32 %s11, 2
    %s24 = sadd.s32 1, %s19
    %p25 = scmp.ge.s32.totalorder %s24, 1
    %s26 = scalar_select %p25, 0, %s24
    %s27 = sadd.s32 1, %s18
    %s28 = scalar_select %p25, %s27, %s18
    %p29 = scmp.ge.s32.totalorder %s28, 2
    %s30 = scalar_select %p29, 0, %s28
    %s31 = sadd.s32 %s18, %s19
    %s32 = sadd.s32 %s30, %s26
    %s33 = ssub.s32 %s31, %s32
    %p34 = scmp.eq.s32.totalorder %s33, 0
    %s36 = sadd.s32 %s35, 1
    %s37 = scalar_select %p34, %s35, %s36
    %p40 = pneg %p34
    %p41 = scmp.eq.s32.totalorder %s11, 1
    %p42 = por %p40, %p41
    %p43 = scmp.ne.s32.totalorder %s35, %s38
    %p44 = scmp.eq.s32.totalorder %s11, 0
    %p45 = por %p43, %p44
    %p46 = scmp.ne.s32.totalorder %s35, %s38
    %p47 = scmp.eq.s32.totalorder %s16, 1
    %p48 = por %p46, %p47
    %p49 = scmp.ne.s32.totalorder %s38, %s39
    %p50 = scmp.eq.s32.totalorder %s16, 0
    %p51 = por %p49, %p50
    %p52 = scmp.ne.s32.totalorder %s38, %s39
    %p53 = scmp.eq.s32.totalorder %s17, 1
    %p54 = por %p52, %p53
    %p56 = scmp.ne.s32.totalorder %s39, %s55
    %p57 = scmp.eq.s32.totalorder %s17, 0
    %p58 = por %p56, %p57
    %s60 = sadd.s32 %s59, 1
    %p63 = scmp.eq.s32.totalorder %s11, 1
    %p64 = scmp.ne.s32.totalorder %s59, %s61
    %p65 = scmp.eq.s32.totalorder %s11, 0
    %p66 = por %p64, %p65
    %p67 = scmp.ne.s32.totalorder %s59, %s61
    %p68 = scmp.eq.s32.totalorder %s16, 1
    %p69 = por %p67, %p68
    %p70 = scmp.ne.s32.totalorder %s61, %s62
    %p71 = scmp.eq.s32.totalorder %s16, 0
    %p72 = por %p70, %p71
    %p73 = scmp.ne.s32.totalorder %s61, %s62
    %p74 = scmp.eq.s32.totalorder %s17, 1
    %p75 = por %p73, %p74
    %p77 = scmp.ne.s32.totalorder %s62, %s76
    %p78 = scmp.eq.s32.totalorder %s17, 0
    %p79 = por %p77, %p78
    %s81 = sadd.s32 %s80, 1
    %p84 = scmp.eq.s32.totalorder %s11, 1
    %p85 = scmp.ne.s32.totalorder %s80, %s82
    %p86 = scmp.eq.s32.totalorder %s11, 0
    %p87 = por %p85, %p86
    %p88 = scmp.ne.s32.totalorder %s80, %s82
    %p89 = scmp.eq.s32.totalorder %s16, 1
    %p90 = por %p88, %p89
    %p91 = scmp.ne.s32.totalorder %s82, %s83
    %p92 = scmp.eq.s32.totalorder %s16, 0
    %p93 = por %p91, %p92
    %p94 = scmp.ne.s32.totalorder %s82, %s83
    %p95 = scmp.eq.s32.totalorder %s17, 1
    %p96 = por %p94, %p95
    %p98 = scmp.ne.s32.totalorder %s83, %s97
    %p99 = scmp.eq.s32.totalorder %s17, 0
    %p100 = por %p98, %p99
    %s101 = ssub.s32 %s18, %s30
    %s102 = ssub.s32 %s19, %s26
    %s103 = sor.u32 %s101, %s102
    %p104 = scmp.eq.s32.totalorder %s103, 0
    %s106 = sadd.s32 %s105, 1
    %s107 = scalar_select %p104, %s105, %s106
    %p110 = pneg %p104
    %p111 = scmp.eq.s32.totalorder %s11, 1
    %p112 = por %p110, %p111
    %p113 = scmp.ne.s32.totalorder %s105, %s108
    %p114 = scmp.eq.s32.totalorder %s11, 0
    %p115 = por %p113, %p114
    %p116 = scmp.ne.s32.totalorder %s105, %s108
    %p117 = scmp.eq.s32.totalorder %s16, 1
    %p118 = por %p116, %p117
    %p119 = scmp.ne.s32.totalorder %s108, %s109
    %p120 = scmp.eq.s32.totalorder %s16, 0
    %p121 = por %p119, %p120
    %p122 = scmp.ne.s32.totalorder %s108, %s109
    %p123 = scmp.eq.s32.totalorder %s17, 1
    %p124 = por %p122, %p123
    %p126 = scmp.ne.s32.totalorder %s109, %s125
    %p127 = scmp.eq.s32.totalorder %s17, 0
    %p128 = por %p126, %p127
    %s129 = sadd.s32 %s18, %s19
    %s130 = sadd.s32 %s30, %s26
    %s131 = ssub.s32 %s129, %s130
    %p132 = scmp.eq.s32.totalorder %s131, 0
    %s134 = sadd.s32 %s133, 1
    %s135 = scalar_select %p132, %s133, %s134
    %p138 = pneg %p132
    %p139 = scmp.eq.s32.totalorder %s11, 1
    %p140 = por %p138, %p139
    %p141 = scmp.ne.s32.totalorder %s133, %s136
    %p142 = scmp.eq.s32.totalorder %s11, 0
    %p143 = por %p141, %p142
    %p144 = scmp.ne.s32.totalorder %s133, %s136
    %p145 = scmp.eq.s32.totalorder %s16, 1
    %p146 = por %p144, %p145
    %p147 = scmp.ne.s32.totalorder %s136, %s137
    %p148 = scmp.eq.s32.totalorder %s16, 0
    %p149 = por %p147, %p148
    %p150 = scmp.ne.s32.totalorder %s136, %s137
    %p151 = scmp.eq.s32.totalorder %s17, 1
    %p152 = por %p150, %p151
    %p154 = scmp.ne.s32.totalorder %s137, %s153
    %p155 = scmp.eq.s32.totalorder %s17, 0
    %p156 = por %p154, %p155
    %p157 = scmp.le.s32.totalorder 1, %s11
    %p158 = scmp.lt.s32.totalorder %s11, 3
    %p159 = pnand %p157, %p158
    %p160 = pneg %p159
    // Predicated region
    $region9: #{resnet_block.3} parent=5 // pred_check
      _
    $region10: #{resnet_block.3} parent=5 // pred_check_branch
      %162 = sbr.rel (%p159) target = $region12
    $region11: #{resnet_block.3} parent=5 // pred_region
      %s163 = ssub.s32 %s11, 1
      // Predicated region
      $region13: #{resnet_block.3} parent=11 // pred_check
        %p164 = pneg %p72
      $region14: #{resnet_block.3} parent=11 // pred_check_branch
        %166 = sbr.rel (%p164) target = $region16
      $region15: #{resnet_block.3} parent=11 // pred_region
        _
      $region16: #{resnet_block.3} parent=11 // pred_fallthru
        _
      // Predicated region
      $region17: #{resnet_block.3} parent=11 // pred_check
        %p167 = pneg %p93
      $region18: #{resnet_block.3} parent=11 // pred_check_branch
        %169 = sbr.rel (%p167) target = $region20
      $region19: #{resnet_block.3} parent=11 // pred_region
        _
      $region20: #{resnet_block.3} parent=11 // pred_fallthru
        _
    $region12: #{resnet_block.3} parent=5 // pred_fallthru
      _
    %p170 = scmp.lt.s32.totalorder %s11, 2
    // Predicated region
    $region21: #{resnet_block.3} parent=5 // pred_check
      %p171 = pneg %p170
    $region22: #{resnet_block.3} parent=5 // pred_check_branch
      %173 = sbr.rel (%p171) target = $region24
    $region23: #{resnet_block.3} parent=5 // pred_region
      // Predicated region
      $region25: #{resnet_block.3} parent=23 // pred_check
        %p174 = pneg %p45
      $region26: #{resnet_block.3} parent=23 // pred_check_branch
        %176 = sbr.rel (%p174) target = $region28
      $region27: #{resnet_block.3} parent=23 // pred_region
        %s177 = sadd.s32 %s18, %s19
        %p178 = scmp.lt.s32.totalorder %s177, 1
        %s179 = scalar_select %p178, %s177, 1
        %s180 = smul.addr %s179, 108
        %s181 = smul.addr %s180, 4
        %s182 = scalar_lea.vmem %s0, %s181
        %s183 = sadd.s32 %s18, %s19
      $region28: #{resnet_block.3} parent=23 // pred_fallthru
        _
    $region24: #{resnet_block.3} parent=5 // pred_fallthru
      _
    %p184 = scmp.le.s32.totalorder 1, %s11
    %p185 = scmp.lt.s32.totalorder %s11, 3
    %p186 = pnand %p184, %p185
    %p187 = pneg %p186
    // Predicated region
    $region29: #{resnet_block.3} parent=5 // pred_check
      _
    $region30: #{resnet_block.3} parent=5 // pred_check_branch
      %189 = sbr.rel (%p186) target = $region32
    $region31: #{resnet_block.3} parent=5 // pred_region
      %s190 = ssub.s32 %s11, 1
      %s191 = sadd.s32 %s20, %s21
      %p192 = scmp.lt.s32.totalorder %s191, 1
      %s193 = scalar_select %p192, %s191, 1
      %s194 = smul.addr %s193, 108
      %s195 = smul.addr %s194, 4
      %s196 = scalar_lea.vmem %s0, %s195
      %p197 = pneg %p51
      %p198 = pneg %p48
      %p199 = pneg %p72
      %p200 = pneg %p69
      %p201 = pneg %p93
      %p202 = pneg %p90
      %p203 = pneg %p121
      %p204 = pneg %p118
      %s205 = smul.u32 16, %s21
      %p206 = scmp.lt.s32.totalorder %s20, 1
      %s207 = scalar_select %p206, %s20, 1
      %p208 = scmp.lt.s32.totalorder %s205, 15
      %s209 = scalar_select %p208, %s205, 15
      %s210 = smul.addr %s209, 4
      %s211 = smul.addr %s207, 64
      %s212 = sadd.s32 %s210, %s211
      %s213 = smul.addr %s212, 4
      %s214 = scalar_lea.vmem %s3, %s213
      %p215 = pneg %p149
      %p216 = pneg %p146
      %s217 = sadd.s32 %s20, %s21
      %p218 = scmp.lt.s32.totalorder %s217, 1
      %s219 = scalar_select %p218, %s217, 1
      %s220 = smul.addr %s219, 2
      %s221 = smul.addr %s220, 2
      %s222 = scalar_lea.vmem %s4, %s221
      %s223 = sadd.s32 %s20, %s21
      %p224 = scmp.lt.s32.totalorder %s223, 1
      %s225 = scalar_select %p224, %s223, 1
      %s226 = smul.addr %s225, 108
      %s227 = smul.addr %s226, 4
      %s228 = scalar_lea.vmem %s0, %s227
      %s229 = sadd.s32 %s20, %s21
      %s230 = smul.u32 16, %s21
      %p231 = scmp.lt.s32.totalorder %s20, 1
      %s232 = scalar_select %p231, %s20, 1
      %p233 = scmp.lt.s32.totalorder %s230, 15
      %s234 = scalar_select %p233, %s230, 15
      %s235 = smul.addr %s234, 4
      %s236 = smul.addr %s232, 64
      %s237 = sadd.s32 %s235, %s236
      %s238 = smul.addr %s237, 4
      %s239 = scalar_lea.vmem %s3, %s238
      %s240 = smul.u32 16, %s21
      %s241 = sadd.s32 %s20, %s21
      %p242 = scmp.lt.s32.totalorder %s241, 1
      %s243 = scalar_select %p242, %s241, 1
      %s244 = smul.addr %s243, 2
      %s245 = smul.addr %s244, 2
      %s246 = scalar_lea.vmem %s4, %s245
      %s247 = sadd.s32 %s20, %s21
      %v248 = vld [vmem:[%s228] sm:$0xff]
      %v249 = vld [vmem:[%s228 + $0x8] sm:$0xff]
      %v250 = vld [vmem:[%s228 + $0x10] sm:$0x11]
      %v251 = vld [vmem:[%s228 + $0x18] sm:$0xff]
      %v252 = vld [vmem:[%s228 + $0x20] sm:$0xff]
      %v253 = vld [vmem:[%s228 + $0x28] sm:$0x11]
      %v254 = vld [vmem:[%s228 + $0x30] sm:$0xff]
      %v255 = vld [vmem:[%s228 + $0x38] sm:$0xff]
      %v256 = vld [vmem:[%s228 + $0x40] sm:$0x11]
      %v257 = vld [vmem:[%s228 + $0x48] sm:$0xff]
      %v258 = vld [vmem:[%s228 + $0x50] sm:$0xff]
      %v259 = vld [vmem:[%s228 + $0x58] sm:$0x11]
      %v260 = vld [vmem:[%s228 + $0x60] sm:$0xff]
      %v261 = vld [vmem:[%s228 + $0x68] sm:$0xff]
      %v262 = vld [vmem:[%s228 + $0x70] sm:$0x11]
      %v263 = vld [vmem:[%s228 + $0x78] sm:$0xff]
      %v264 = vld [vmem:[%s228 + $0x80] sm:$0xff]
      %v265 = vld [vmem:[%s228 + $0x88] sm:$0x11]
      %v266 = vld [vmem:[%s228 + $0x90] sm:$0xff]
      %v267 = vld [vmem:[%s228 + $0x98] sm:$0xff]
      %v268 = vld [vmem:[%s228 + $0xa0] sm:$0x11]
      %v269 = vld [vmem:[%s228 + $0xa8] sm:$0xff]
      %v270 = vld [vmem:[%s228 + $0xb0] sm:$0xff]
      %v271 = vld [vmem:[%s228 + $0xb8] sm:$0x11]
      %v272 = vld [vmem:[%s228 + $0xc0] sm:$0xff]
      %v273 = vld [vmem:[%s228 + $0xc8] sm:$0xff]
      %v274 = vld [vmem:[%s228 + $0xd0] sm:$0x11]
      %v275 = vld [vmem:[%s228 + $0xd8] sm:$0xff]
      %v276 = vld [vmem:[%s228 + $0xe0] sm:$0xff]
      %v277 = vld [vmem:[%s228 + $0xe8] sm:$0x11]
      %v278 = vld [vmem:[%s228 + $0xf0] sm:$0xff]
      %v279 = vld [vmem:[%s228 + $0xf8] sm:$0xff]
      %v280 = vld [vmem:[%s228 + $0x100] sm:$0x11]
      %v281 = vld [vmem:[%s228 + $0x108] sm:$0xff]
      %v282 = vld [vmem:[%s228 + $0x110] sm:$0xff]
      %v283 = vld [vmem:[%s228 + $0x118] sm:$0x11]
      %v284 = vld [vmem:[%s228 + $0x120] sm:$0xff]
      %v285 = vld [vmem:[%s228 + $0x128] sm:$0xff]
      %v286 = vld [vmem:[%s228 + $0x130] sm:$0x11]
      %v287 = vld [vmem:[%s228 + $0x138] sm:$0xff]
      %v288 = vld [vmem:[%s228 + $0x140] sm:$0xff]
      %v289 = vld [vmem:[%s228 + $0x148] sm:$0x11]
      %v290 = vld [vmem:[%s228 + $0x150] sm:$0xff]
      %v291 = vld [vmem:[%s228 + $0x158] sm:$0xff]
      %v292 = vld [vmem:[%s228 + $0x160] sm:$0x11]
      %v293 = vld [vmem:[%s228 + $0x168] sm:$0xff]
      %v294 = vld [vmem:[%s228 + $0x170] sm:$0xff]
      %v295 = vld [vmem:[%s228 + $0x178] sm:$0x11]
      %v296 = vld [vmem:[%s228 + $0x180] sm:$0xff]
      %v297 = vld [vmem:[%s228 + $0x188] sm:$0xff]
      %v298 = vld [vmem:[%s228 + $0x190] sm:$0x11]
      %v299 = vld [vmem:[%s228 + $0x198] sm:$0xff]
      %v300 = vld [vmem:[%s228 + $0x1a0] sm:$0xff]
      %v301 = vld [vmem:[%s228 + $0x1a8] sm:$0x11]
      %v302 = vld [vmem:[%s1] sm:$0xff]
      %v303 = vld [vmem:[%s1 + $0x8] sm:$0xff]
      %v304 = vld [vmem:[%s1 + $0x10] sm:$0xff]
      %v305 = vld [vmem:[%s1 + $0x18] sm:$0xff]
      %v306 = vld [vmem:[%s1 + $0x20] sm:$0xff]
      %v307 = vld [vmem:[%s1 + $0x28] sm:$0xff]
      %v308 = vld [vmem:[%s1 + $0x30] sm:$0xff]
      %v309 = vld [vmem:[%s1 + $0x38] sm:$0xff]
      %v310 = vld [vmem:[%s1 + $0x40] sm:$0xff]
      %v311 = vld [vmem:[%s1 + $0x48] sm:$0xff]
      %v312 = vld [vmem:[%s1 + $0x50] sm:$0xff]
      %v313 = vld [vmem:[%s1 + $0x58] sm:$0xff]
      %v314 = vld [vmem:[%s1 + $0x60] sm:$0xff]
      %v315 = vld [vmem:[%s1 + $0x68] sm:$0xff]
      %v316 = vld [vmem:[%s1 + $0x70] sm:$0xff]
      %v317 = vld [vmem:[%s1 + $0x78] sm:$0xff]
      %v318 = vld [vmem:[%s1 + $0x80] sm:$0xff]
      %v319 = vld [vmem:[%s1 + $0x88] sm:$0xff]
      %v320 = vld [vmem:[%s1 + $0x90] sm:$0xff]
      %v321 = vld [vmem:[%s1 + $0x98] sm:$0xff]
      %v322 = vld [vmem:[%s1 + $0xa0] sm:$0xff]
      %v323 = vld [vmem:[%s1 + $0xa8] sm:$0xff]
      %v324 = vld [vmem:[%s1 + $0xb0] sm:$0xff]
      %v325 = vld [vmem:[%s1 + $0xb8] sm:$0xff]
      %v326 = vld [vmem:[%s1 + $0xc0] sm:$0xff]
      %v327 = vld [vmem:[%s1 + $0xc8] sm:$0xff]
      %v328 = vld [vmem:[%s1 + $0xd0] sm:$0xff]
      %v329 = vld [vmem:[%s1 + $0xd8] sm:$0xff]
      %v330 = vld [vmem:[%s1 + $0xe0] sm:$0xff]
      %v331 = vld [vmem:[%s1 + $0xe8] sm:$0xff]
      %v332 = vld [vmem:[%s1 + $0xf0] sm:$0xff]
      %v333 = vld [vmem:[%s1 + $0xf8] sm:$0xff]
      %vm334 = vsmask.f32 3328
      %vm335 = vsmask.f32 7440
      %vm336 = vmor %vm334, %vm335
      %v338 = vshrl.u32 %v248, 16
      %v340 = vrot.slane %v338, 4
      %v341 = vshll.u32 %v248, 16
      %v343 = vrot.slane %v341, 5
      %v344 = vor.u32 %v340, %v343
      %v345 = vrot.slane %v344, 4
      %v347 = vshll.u32 %v249, 16
      %v349 = vrot.slane %v347, 5
      %v350 = vsel %vm336, %v345, %v349
      %v351 = vshrl.u32 %v249, 16
      %v353 = vrot.slane %v351, 4
      %v354 = vor.u32 %v353, %v349
      %v355 = vrot.slane %v354, 4
      %v357 = vshll.u32 %v250, 16
      %v359 = vrot.slane %v357, 5
      %v360 = vsel %vm336, %v355, %v359
      %v362 = vshrl.u32 %v251, 16
      %v364 = vrot.slane %v362, 4
      %v365 = vshll.u32 %v251, 16
      %v367 = vrot.slane %v365, 5
      %v368 = vor.u32 %v364, %v367
      %v369 = vrot.slane %v368, 4
      %v371 = vshll.u32 %v252, 16
      %v373 = vrot.slane %v371, 5
      %v374 = vsel %vm336, %v369, %v373
      %v375 = vshrl.u32 %v252, 16
      %v377 = vrot.slane %v375, 4
      %v378 = vor.u32 %v377, %v373
      %v379 = vrot.slane %v378, 4
      %v381 = vshll.u32 %v253, 16
      %v383 = vrot.slane %v381, 5
      %v384 = vsel %vm336, %v379, %v383
      %v386 = vshrl.u32 %v254, 16
      %v388 = vrot.slane %v386, 4
      %v389 = vshll.u32 %v254, 16
      %v391 = vrot.slane %v389, 5
      %v392 = vor.u32 %v388, %v391
      %v393 = vrot.slane %v392, 4
      %v395 = vshll.u32 %v255, 16
      %v397 = vrot.slane %v395, 5
      %v398 = vsel %vm336, %v393, %v397
      %v399 = vshrl.u32 %v255, 16
      %v401 = vrot.slane %v399, 4
      %v402 = vor.u32 %v401, %v397
      %v403 = vrot.slane %v402, 4
      %v405 = vshll.u32 %v256, 16
      %v407 = vrot.slane %v405, 5
      %v408 = vsel %vm336, %v403, %v407
      %v410 = vshrl.u32 %v257, 16
      %v412 = vrot.slane %v410, 4
      %v413 = vshll.u32 %v257, 16
      %v415 = vrot.slane %v413, 5
      %v416 = vor.u32 %v412, %v415
      %v417 = vrot.slane %v416, 4
      %v419 = vshll.u32 %v258, 16
      %v421 = vrot.slane %v419, 5
      %v422 = vsel %vm336, %v417, %v421
      %v423 = vshrl.u32 %v258, 16
      %v425 = vrot.slane %v423, 4
      %v426 = vor.u32 %v425, %v421
      %v427 = vrot.slane %v426, 4
      %v429 = vshll.u32 %v259, 16
      %v431 = vrot.slane %v429, 5
      %v432 = vsel %vm336, %v427, %v431
      %v434 = vshrl.u32 %v260, 16
      %v436 = vrot.slane %v434, 4
      %v437 = vshll.u32 %v260, 16
      %v439 = vrot.slane %v437, 5
      %v440 = vor.u32 %v436, %v439
      %v441 = vrot.slane %v440, 4
      %v443 = vshll.u32 %v261, 16
      %v445 = vrot.slane %v443, 5
      %v446 = vsel %vm336, %v441, %v445
      %v447 = vshrl.u32 %v261, 16
      %v449 = vrot.slane %v447, 4
      %v450 = vor.u32 %v449, %v445
      %v451 = vrot.slane %v450, 4
      %v453 = vshll.u32 %v262, 16
      %v455 = vrot.slane %v453, 5
      %v456 = vsel %vm336, %v451, %v455
      %v458 = vshrl.u32 %v263, 16
      %v460 = vrot.slane %v458, 4
      %v461 = vshll.u32 %v263, 16
      %v463 = vrot.slane %v461, 5
      %v464 = vor.u32 %v460, %v463
      %v465 = vrot.slane %v464, 4
      %v467 = vshll.u32 %v264, 16
      %v469 = vrot.slane %v467, 5
      %v470 = vsel %vm336, %v465, %v469
      %v471 = vshrl.u32 %v264, 16
      %v473 = vrot.slane %v471, 4
      %v474 = vor.u32 %v473, %v469
      %v475 = vrot.slane %v474, 4
      %v477 = vshll.u32 %v265, 16
      %v479 = vrot.slane %v477, 5
      %v480 = vsel %vm336, %v475, %v479
      %v482 = vshrl.u32 %v266, 16
      %v484 = vrot.slane %v482, 4
      %v485 = vshll.u32 %v266, 16
      %v487 = vrot.slane %v485, 5
      %v488 = vor.u32 %v484, %v487
      %v489 = vrot.slane %v488, 4
      %v491 = vshll.u32 %v267, 16
      %v493 = vrot.slane %v491, 5
      %v494 = vsel %vm336, %v489, %v493
      %v495 = vshrl.u32 %v267, 16
      %v497 = vrot.slane %v495, 4
      %v498 = vor.u32 %v497, %v493
      %v499 = vrot.slane %v498, 4
      %v501 = vshll.u32 %v268, 16
      %v503 = vrot.slane %v501, 5
      %v504 = vsel %vm336, %v499, %v503
      %v506 = vshrl.u32 %v269, 16
      %v508 = vrot.slane %v506, 4
      %v509 = vshll.u32 %v269, 16
      %v511 = vrot.slane %v509, 5
      %v512 = vor.u32 %v508, %v511
      %v513 = vrot.slane %v512, 4
      %v515 = vshll.u32 %v270, 16
      %v517 = vrot.slane %v515, 5
      %v518 = vsel %vm336, %v513, %v517
      %v519 = vshrl.u32 %v270, 16
      %v521 = vrot.slane %v519, 4
      %v522 = vor.u32 %v521, %v517
      %v523 = vrot.slane %v522, 4
      %v525 = vshll.u32 %v271, 16
      %v527 = vrot.slane %v525, 5
      %v528 = vsel %vm336, %v523, %v527
      %v530 = vshrl.u32 %v272, 16
      %v532 = vrot.slane %v530, 4
      %v533 = vshll.u32 %v272, 16
      %v535 = vrot.slane %v533, 5
      %v536 = vor.u32 %v532, %v535
      %v537 = vrot.slane %v536, 4
      %v539 = vshll.u32 %v273, 16
      %v541 = vrot.slane %v539, 5
      %v542 = vsel %vm336, %v537, %v541
      %v543 = vshrl.u32 %v273, 16
      %v545 = vrot.slane %v543, 4
      %v546 = vor.u32 %v545, %v541
      %v547 = vrot.slane %v546, 4
      %v549 = vshll.u32 %v274, 16
      %v551 = vrot.slane %v549, 5
      %v552 = vsel %vm336, %v547, %v551
      %v554 = vshrl.u32 %v275, 16
      %v556 = vrot.slane %v554, 4
      %v557 = vshll.u32 %v275, 16
      %v559 = vrot.slane %v557, 5
      %v560 = vor.u32 %v556, %v559
      %v561 = vrot.slane %v560, 4
      %v563 = vshll.u32 %v276, 16
      %v565 = vrot.slane %v563, 5
      %v566 = vsel %vm336, %v561, %v565
      %v567 = vshrl.u32 %v276, 16
      %v569 = vrot.slane %v567, 4
      %v570 = vor.u32 %v569, %v565
      %v571 = vrot.slane %v570, 4
      %v573 = vshll.u32 %v277, 16
      %v575 = vrot.slane %v573, 5
      %v576 = vsel %vm336, %v571, %v575
      %v578 = vshrl.u32 %v278, 16
      %v580 = vrot.slane %v578, 4
      %v581 = vshll.u32 %v278, 16
      %v583 = vrot.slane %v581, 5
      %v584 = vor.u32 %v580, %v583
      %v585 = vrot.slane %v584, 4
      %v587 = vshll.u32 %v279, 16
      %v589 = vrot.slane %v587, 5
      %v590 = vsel %vm336, %v585, %v589
      %v591 = vshrl.u32 %v279, 16
      %v593 = vrot.slane %v591, 4
      %v594 = vor.u32 %v593, %v589
      %v595 = vrot.slane %v594, 4
      %v597 = vshll.u32 %v280, 16
      %v599 = vrot.slane %v597, 5
      %v600 = vsel %vm336, %v595, %v599
      %v602 = vshrl.u32 %v281, 16
      %v604 = vrot.slane %v602, 4
      %v605 = vshll.u32 %v281, 16
      %v607 = vrot.slane %v605, 5
      %v608 = vor.u32 %v604, %v607
      %v609 = vrot.slane %v608, 4
      %v611 = vshll.u32 %v282, 16
      %v613 = vrot.slane %v611, 5
      %v614 = vsel %vm336, %v609, %v613
      %v615 = vshrl.u32 %v282, 16
      %v617 = vrot.slane %v615, 4
      %v618 = vor.u32 %v617, %v613
      %v619 = vrot.slane %v618, 4
      %v621 = vshll.u32 %v283, 16
      %v623 = vrot.slane %v621, 5
      %v624 = vsel %vm336, %v619, %v623
      %v626 = vshrl.u32 %v284, 16
      %v628 = vrot.slane %v626, 4
      %v629 = vshll.u32 %v284, 16
      %v631 = vrot.slane %v629, 5
      %v632 = vor.u32 %v628, %v631
      %v633 = vrot.slane %v632, 4
      %v635 = vshll.u32 %v285, 16
      %v637 = vrot.slane %v635, 5
      %v638 = vsel %vm336, %v633, %v637
      %v639 = vshrl.u32 %v285, 16
      %v641 = vrot.slane %v639, 4
      %v642 = vor.u32 %v641, %v637
      %v643 = vrot.slane %v642, 4
      %v645 = vshll.u32 %v286, 16
      %v647 = vrot.slane %v645, 5
      %v648 = vsel %vm336, %v643, %v647
      %v650 = vshrl.u32 %v287, 16
      %v652 = vrot.slane %v650, 4
      %v653 = vshll.u32 %v287, 16
      %v655 = vrot.slane %v653, 5
      %v656 = vor.u32 %v652, %v655
      %v657 = vrot.slane %v656, 4
      %v659 = vshll.u32 %v288, 16
      %v661 = vrot.slane %v659, 5
      %v662 = vsel %vm336, %v657, %v661
      %v663 = vshrl.u32 %v288, 16
      %v665 = vrot.slane %v663, 4
      %v666 = vor.u32 %v665, %v661
      %v667 = vrot.slane %v666, 4
      %v669 = vshll.u32 %v289, 16
      %v671 = vrot.slane %v669, 5
      %v672 = vsel %vm336, %v667, %v671
      %v674 = vshrl.u32 %v290, 16
      %v676 = vrot.slane %v674, 4
      %v677 = vshll.u32 %v290, 16
      %v679 = vrot.slane %v677, 5
      %v680 = vor.u32 %v676, %v679
      %v681 = vrot.slane %v680, 4
      %v683 = vshll.u32 %v291, 16
      %v685 = vrot.slane %v683, 5
      %v686 = vsel %vm336, %v681, %v685
      %v687 = vshrl.u32 %v291, 16
      %v689 = vrot.slane %v687, 4
      %v690 = vor.u32 %v689, %v685
      %v691 = vrot.slane %v690, 4
      %v693 = vshll.u32 %v292, 16
      %v695 = vrot.slane %v693, 5
      %v696 = vsel %vm336, %v691, %v695
      %v698 = vshrl.u32 %v293, 16
      %v700 = vrot.slane %v698, 4
      %v701 = vshll.u32 %v293, 16
      %v703 = vrot.slane %v701, 5
      %v704 = vor.u32 %v700, %v703
      %v705 = vrot.slane %v704, 4
      %v707 = vshll.u32 %v294, 16
      %v709 = vrot.slane %v707, 5
      %v710 = vsel %vm336, %v705, %v709
      %v711 = vshrl.u32 %v294, 16
      %v713 = vrot.slane %v711, 4
      %v714 = vor.u32 %v713, %v709
      %v715 = vrot.slane %v714, 4
      %v717 = vshll.u32 %v295, 16
      %v719 = vrot.slane %v717, 5
      %v720 = vsel %vm336, %v715, %v719
      %s721 = scalar_lea.vmem %s1, 256
      %v722 = vld [vmem:[%s721] sm:$0xff]
      %v723 = vld [vmem:[%s721 + $0x8] sm:$0xff]
      %v724 = vld [vmem:[%s721 + $0x10] sm:$0xff]
      %v725 = vld [vmem:[%s721 + $0x18] sm:$0xff]
      %v726 = vld [vmem:[%s721 + $0x20] sm:$0xff]
      %v727 = vld [vmem:[%s721 + $0x28] sm:$0xff]
      %v728 = vld [vmem:[%s721 + $0x30] sm:$0xff]
      %v729 = vld [vmem:[%s721 + $0x38] sm:$0xff]
      %v730 = vld [vmem:[%s721 + $0x40] sm:$0xff]
      %v731 = vld [vmem:[%s721 + $0x48] sm:$0xff]
      %v732 = vld [vmem:[%s721 + $0x50] sm:$0xff]
      %v733 = vld [vmem:[%s721 + $0x58] sm:$0xff]
      %v734 = vld [vmem:[%s721 + $0x60] sm:$0xff]
      %v735 = vld [vmem:[%s721 + $0x68] sm:$0xff]
      %v736 = vld [vmem:[%s721 + $0x70] sm:$0xff]
      %v737 = vld [vmem:[%s721 + $0x78] sm:$0xff]
      %v738 = vld [vmem:[%s721 + $0x80] sm:$0xff]
      %v739 = vld [vmem:[%s721 + $0x88] sm:$0xff]
      %v740 = vld [vmem:[%s721 + $0x90] sm:$0xff]
      %v741 = vld [vmem:[%s721 + $0x98] sm:$0xff]
      %v742 = vld [vmem:[%s721 + $0xa0] sm:$0xff]
      %v743 = vld [vmem:[%s721 + $0xa8] sm:$0xff]
      %v744 = vld [vmem:[%s721 + $0xb0] sm:$0xff]
      %v745 = vld [vmem:[%s721 + $0xb8] sm:$0xff]
      %v746 = vld [vmem:[%s721 + $0xc0] sm:$0xff]
      %v747 = vld [vmem:[%s721 + $0xc8] sm:$0xff]
      %v748 = vld [vmem:[%s721 + $0xd0] sm:$0xff]
      %v749 = vld [vmem:[%s721 + $0xd8] sm:$0xff]
      %v750 = vld [vmem:[%s721 + $0xe0] sm:$0xff]
      %v751 = vld [vmem:[%s721 + $0xe8] sm:$0xff]
      %v752 = vld [vmem:[%s721 + $0xf0] sm:$0xff]
      %v753 = vld [vmem:[%s721 + $0xf8] sm:$0xff]
      %v754 = vunpack.c.l.b16 %v350
      %v755 = vunpack.c.h.b16 %v350
      %v756 = vunpack.c.l.b16 %v360
      %v757 = vunpack.c.h.b16 %v360
      %v758 = vunpack.c.l.b16 %v374
      %v759 = vunpack.c.h.b16 %v374
      %v760 = vunpack.c.l.b16 %v384
      %v761 = vunpack.c.h.b16 %v384
      %v762 = vunpack.c.l.b16 %v398
      %v763 = vunpack.c.h.b16 %v398
      %v764 = vunpack.c.l.b16 %v408
      %v765 = vunpack.c.h.b16 %v408
      %v766 = vunpack.c.l.b16 %v422
      %v767 = vunpack.c.h.b16 %v422
      %v768 = vunpack.c.l.b16 %v432
      %v769 = vunpack.c.h.b16 %v432
      %v770 = vunpack.c.l.b16 %v446
      %v771 = vunpack.c.h.b16 %v446
      %v772 = vunpack.c.l.b16 %v456
      %v773 = vunpack.c.h.b16 %v456
      %v774 = vunpack.c.l.b16 %v470
      %v775 = vunpack.c.h.b16 %v470
      %v776 = vunpack.c.l.b16 %v480
      %v777 = vunpack.c.h.b16 %v480
      %v778 = vunpack.c.l.b16 %v494
      %v779 = vunpack.c.h.b16 %v494
      %v780 = vunpack.c.l.b16 %v504
      %v781 = vunpack.c.h.b16 %v504
      %v782 = vunpack.c.l.b16 %v518
      %v783 = vunpack.c.h.b16 %v518
      %v784 = vunpack.c.l.b16 %v528
      %v785 = vunpack.c.h.b16 %v528
      %v786 = vunpack.c.l.b16 %v542
      %v787 = vunpack.c.h.b16 %v542
      %v788 = vunpack.c.l.b16 %v552
      %v789 = vunpack.c.h.b16 %v552
      %v790 = vunpack.c.l.b16 %v566
      %v791 = vunpack.c.h.b16 %v566
      %v792 = vunpack.c.l.b16 %v576
      %v793 = vunpack.c.h.b16 %v576
      %v794 = vunpack.c.l.b16 %v590
      %v795 = vunpack.c.h.b16 %v590
      %v796 = vunpack.c.l.b16 %v600
      %v797 = vunpack.c.h.b16 %v600
      %v798 = vunpack.c.l.b16 %v614
      %v799 = vunpack.c.h.b16 %v614
      %v800 = vunpack.c.l.b16 %v624
      %v801 = vunpack.c.h.b16 %v624
      %v802 = vunpack.c.l.b16 %v638
      %v803 = vunpack.c.h.b16 %v638
      %v804 = vunpack.c.l.b16 %v648
      %v805 = vunpack.c.h.b16 %v648
      %v806 = vunpack.c.l.b16 %v662
      %v807 = vunpack.c.h.b16 %v662
      %v808 = vunpack.c.l.b16 %v672
      %v809 = vunpack.c.h.b16 %v672
      %v810 = vunpack.c.l.b16 %v686
      %v811 = vunpack.c.h.b16 %v686
      %v812 = vunpack.c.l.b16 %v696
      %v813 = vunpack.c.h.b16 %v696
      %v814 = vunpack.c.l.b16 %v710
      %v815 = vunpack.c.h.b16 %v710
      %v816 = vunpack.c.l.b16 %v720
      %v817 = vunpack.c.h.b16 %v720
      %v818 = vpack.c.b16 %v756, %v754
      %v819 = vpack.c.b16 %v757, %v755
      %v820 = vpack.c.b16 %v760, %v758
      %v821 = vpack.c.b16 %v761, %v759
      %v822 = vpack.c.b16 %v764, %v762
      %v823 = vpack.c.b16 %v765, %v763
      %v824 = vpack.c.b16 %v768, %v766
      %v825 = vpack.c.b16 %v769, %v767
      %v826 = vpack.c.b16 %v772, %v770
      %v827 = vpack.c.b16 %v773, %v771
      %v828 = vpack.c.b16 %v776, %v774
      %v829 = vpack.c.b16 %v777, %v775
      %v830 = vpack.c.b16 %v780, %v778
      %v831 = vpack.c.b16 %v781, %v779
      %v832 = vpack.c.b16 %v784, %v782
      %v833 = vpack.c.b16 %v785, %v783
      %v834 = vpack.c.b16 %v788, %v786
      %v835 = vpack.c.b16 %v789, %v787
      %v836 = vpack.c.b16 %v792, %v790
      %v837 = vpack.c.b16 %v793, %v791
      %v838 = vpack.c.b16 %v796, %v794
      %v839 = vpack.c.b16 %v797, %v795
      %v840 = vpack.c.b16 %v800, %v798
      %v841 = vpack.c.b16 %v801, %v799
      %v842 = vpack.c.b16 %v804, %v802
      %v843 = vpack.c.b16 %v805, %v803
      %v844 = vpack.c.b16 %v808, %v806
      %v845 = vpack.c.b16 %v809, %v807
      %v846 = vpack.c.b16 %v812, %v810
      %v847 = vpack.c.b16 %v813, %v811
      %v848 = vpack.c.b16 %v816, %v814
      %v849 = vpack.c.b16 %v817, %v815
      %v914 = vunpack.c.l.b16 %v722
      %v915 = vunpack.c.h.b16 %v722
      %v916 = vunpack.c.l.b16 %v723
      %v917 = vunpack.c.h.b16 %v723
      %v918 = vunpack.c.l.b16 %v724
      %v919 = vunpack.c.h.b16 %v724
      %v920 = vunpack.c.l.b16 %v725
      %v921 = vunpack.c.h.b16 %v725
      %v922 = vunpack.c.l.b16 %v726
      %v923 = vunpack.c.h.b16 %v726
      %v924 = vunpack.c.l.b16 %v727
      %v925 = vunpack.c.h.b16 %v727
      %v926 = vunpack.c.l.b16 %v728
      %v927 = vunpack.c.h.b16 %v728
      %v928 = vunpack.c.l.b16 %v729
      %v929 = vunpack.c.h.b16 %v729
      %v930 = vunpack.c.l.b16 %v730
      %v931 = vunpack.c.h.b16 %v730
      %v932 = vunpack.c.l.b16 %v731
      %v933 = vunpack.c.h.b16 %v731
      %v934 = vunpack.c.l.b16 %v732
      %v935 = vunpack.c.h.b16 %v732
      %v936 = vunpack.c.l.b16 %v733
      %v937 = vunpack.c.h.b16 %v733
      %v938 = vunpack.c.l.b16 %v734
      %v939 = vunpack.c.h.b16 %v734
      %v940 = vunpack.c.l.b16 %v735
      %v941 = vunpack.c.h.b16 %v735
      %v942 = vunpack.c.l.b16 %v736
      %v943 = vunpack.c.h.b16 %v736
      %v944 = vunpack.c.l.b16 %v737
      %v945 = vunpack.c.h.b16 %v737
      %v946 = vunpack.c.l.b16 %v738
      %v947 = vunpack.c.h.b16 %v738
      %v948 = vunpack.c.l.b16 %v739
      %v949 = vunpack.c.h.b16 %v739
      %v950 = vunpack.c.l.b16 %v740
      %v951 = vunpack.c.h.b16 %v740
      %v952 = vunpack.c.l.b16 %v741
      %v953 = vunpack.c.h.b16 %v741
      %v954 = vunpack.c.l.b16 %v742
      %v955 = vunpack.c.h.b16 %v742
      %v956 = vunpack.c.l.b16 %v743
      %v957 = vunpack.c.h.b16 %v743
      %v958 = vunpack.c.l.b16 %v744
      %v959 = vunpack.c.h.b16 %v744
      %v960 = vunpack.c.l.b16 %v745
      %v961 = vunpack.c.h.b16 %v745
      %v962 = vunpack.c.l.b16 %v746
      %v963 = vunpack.c.h.b16 %v746
      %v964 = vunpack.c.l.b16 %v747
      %v965 = vunpack.c.h.b16 %v747
      %v966 = vunpack.c.l.b16 %v748
      %v967 = vunpack.c.h.b16 %v748
      %v968 = vunpack.c.l.b16 %v749
      %v969 = vunpack.c.h.b16 %v749
      %v970 = vunpack.c.l.b16 %v750
      %v971 = vunpack.c.h.b16 %v750
      %v972 = vunpack.c.l.b16 %v751
      %v973 = vunpack.c.h.b16 %v751
      %v974 = vunpack.c.l.b16 %v752
      %v975 = vunpack.c.h.b16 %v752
      %v976 = vunpack.c.l.b16 %v753
      %v977 = vunpack.c.h.b16 %v753
      %v978 = vpack.c.b16 %v916, %v914
      %v979 = vpack.c.b16 %v917, %v915
      %v980 = vpack.c.b16 %v920, %v918
      %v981 = vpack.c.b16 %v921, %v919
      %v982 = vpack.c.b16 %v924, %v922
      %v983 = vpack.c.b16 %v925, %v923
      %v984 = vpack.c.b16 %v928, %v926
      %v985 = vpack.c.b16 %v929, %v927
      %v986 = vpack.c.b16 %v932, %v930
      %v987 = vpack.c.b16 %v933, %v931
      %v988 = vpack.c.b16 %v936, %v934
      %v989 = vpack.c.b16 %v937, %v935
      %v990 = vpack.c.b16 %v940, %v938
      %v991 = vpack.c.b16 %v941, %v939
      %v992 = vpack.c.b16 %v944, %v942
      %v993 = vpack.c.b16 %v945, %v943
      %v994 = vpack.c.b16 %v948, %v946
      %v995 = vpack.c.b16 %v949, %v947
      %v996 = vpack.c.b16 %v952, %v950
      %v997 = vpack.c.b16 %v953, %v951
      %v998 = vpack.c.b16 %v956, %v954
      %v999 = vpack.c.b16 %v957, %v955
      %v1000 = vpack.c.b16 %v960, %v958
      %v1001 = vpack.c.b16 %v961, %v959
      %v1002 = vpack.c.b16 %v964, %v962
      %v1003 = vpack.c.b16 %v965, %v963
      %v1004 = vpack.c.b16 %v968, %v966
      %v1005 = vpack.c.b16 %v969, %v967
      %v1006 = vpack.c.b16 %v972, %v970
      %v1007 = vpack.c.b16 %v973, %v971
      %v1008 = vpack.c.b16 %v976, %v974
      %v1009 = vpack.c.b16 %v977, %v975
      %1042 = vmatprep.subr.bf16.mxu0 %v979
      %1043 = vmatpush1.bf16.msra.mxu0 %v978
      %1044 = vmatprep.subr.bf16.mxu0 %v981
      %1045 = vmatpush1.bf16.msra.mxu0 %v980
      %1046 = vmatprep.subr.bf16.mxu0 %v983
      %1047 = vmatpush1.bf16.msra.mxu0 %v982
      %1048 = vmatprep.subr.bf16.mxu0 %v985
      %1049 = vmatpush1.bf16.msra.mxu0 %v984
      %1050 = vmatprep.subr.bf16.mxu0 %v987
      %1051 = vmatpush1.bf16.msra.mxu0 %v986
      %1052 = vmatprep.subr.bf16.mxu0 %v989
      %1053 = vmatpush1.bf16.msra.mxu0 %v988
      %1054 = vmatprep.subr.bf16.mxu0 %v991
      %1055 = vmatpush1.bf16.msra.mxu0 %v990
      %1056 = vmatprep.subr.bf16.mxu0 %v993
      %1057 = vmatpush1.bf16.msra.mxu0 %v992
      %1058 = vmatprep.subr.bf16.mxu0 %v995
      %1059 = vmatpush1.bf16.msra.mxu0 %v994
      %1060 = vmatprep.subr.bf16.mxu0 %v997
      %1061 = vmatpush1.bf16.msra.mxu0 %v996
      %1062 = vmatprep.subr.bf16.mxu0 %v999
      %1063 = vmatpush1.bf16.msra.mxu0 %v998
      %1064 = vmatprep.subr.bf16.mxu0 %v1001
      %1065 = vmatpush1.bf16.msra.mxu0 %v1000
      %1066 = vmatprep.subr.bf16.mxu0 %v1003
      %1067 = vmatpush1.bf16.msra.mxu0 %v1002
      %1068 = vmatprep.subr.bf16.mxu0 %v1005
      %1069 = vmatpush1.bf16.msra.mxu0 %v1004
      %1070 = vmatprep.subr.bf16.mxu0 %v1007
      %1071 = vmatpush1.bf16.msra.mxu0 %v1006
      %1072 = vmatprep.subr.bf16.mxu0 %v1009
      %1073 = vmatpush1.bf16.msra.mxu0 %v1008
      %1074 = vmatprep.mubr.bf16.mxu0 %v819
      %1075 = vmatmul.mubr.bf16.gmra.mrb[0].mxu0 %v818
      %v1076 = vpop.f32.mrb[0].mxu0
      %v1077 = vadd.f32 0.0, %v1076
      %v1078 = vpop.f32.mrb[0].mxu0
      %v1079 = vadd.f32 0.0, %v1078
      %v1080 = vpop.f32.mrb[0].mxu0
      %v1081 = vadd.f32 0.0, %v1080
      %v1082 = vpop.f32.mrb[0].mxu0
      %v1083 = vadd.f32 0.0, %v1082
      %1084 = vmatprep.mubr.bf16.mxu0 %v821
      %1085 = vmatmul.mubr.bf16.gmra.mrb[0].mxu0 %v820
      %v1086 = vpop.f32.mrb[0].mxu0
      %v1087 = vadd.f32 0.0, %v1086
      %v1088 = vpop.f32.mrb[0].mxu0
      %v1089 = vadd.f32 0.0, %v1088
      %v1090 = vpop.f32.mrb[0].mxu0
      %v1091 = vadd.f32 0.0, %v1090
      %v1092 = vpop.f32.mrb[0].mxu0
      %v1093 = vadd.f32 0.0, %v1092
      %1094 = vmatprep.mubr.bf16.mxu0 %v823
      %1095 = vmatmul.mubr.bf16.gmra.mrb[0].mxu0 %v822
      %v1096 = vpop.f32.mrb[0].mxu0
      %v1097 = vadd.f32 0.0, %v1096
      %v1098 = vpop.f32.mrb[0].mxu0
      %v1099 = vadd.f32 0.0, %v1098
      %v1100 = vpop.f32.mrb[0].mxu0
      %v1101 = vadd.f32 0.0, %v1100
      %v1102 = vpop.f32.mrb[0].mxu0
      %v1103 = vadd.f32 0.0, %v1102
      %1104 = vmatprep.mubr.bf16.mxu0 %v825
      %1105 = vmatmul.mubr.bf16.gmra.mrb[0].mxu0 %v824
      %v1106 = vpop.f32.mrb[0].mxu0
      %v1107 = vadd.f32 0.0, %v1106
      %v1108 = vpop.f32.mrb[0].mxu0
      %v1109 = vadd.f32 0.0, %v1108
      %v1110 = vpop.f32.mrb[0].mxu0
      %v1111 = vadd.f32 0.0, %v1110
      %v1112 = vpop.f32.mrb[0].mxu0
      %v1113 = vadd.f32 0.0, %v1112
      %1114 = vmatprep.mubr.bf16.mxu0 %v827
      %1115 = vmatmul.mubr.bf16.gmra.mrb[0].mxu0 %v826
      %v1116 = vpop.f32.mrb[0].mxu0
      %v1117 = vadd.f32 0.0, %v1116
      %v1118 = vpop.f32.mrb[0].mxu0
      %v1119 = vadd.f32 0.0, %v1118
      %v1120 = vpop.f32.mrb[0].mxu0
      %v1121 = vadd.f32 0.0, %v1120
      %v1122 = vpop.f32.mrb[0].mxu0
      %v1123 = vadd.f32 0.0, %v1122
      %1124 = vmatprep.mubr.bf16.mxu0 %v829
      %1125 = vmatmul.mubr.bf16.gmra.mrb[0].mxu0 %v828
      %v1126 = vpop.f32.mrb[0].mxu0
      %v1127 = vadd.f32 0.0, %v1126
      %v1128 = vpop.f32.mrb[0].mxu0
      %v1129 = vadd.f32 0.0, %v1128
      %v1130 = vpop.f32.mrb[0].mxu0
      %v1131 = vadd.f32 0.0, %v1130
      %v1132 = vpop.f32.mrb[0].mxu0
      %v1133 = vadd.f32 0.0, %v1132
      %1134 = vmatprep.mubr.bf16.mxu0 %v831
      %1135 = vmatmul.mubr.bf16.gmra.mrb[0].mxu0 %v830
      %v1136 = vpop.f32.mrb[0].mxu0
      %v1137 = vadd.f32 0.0, %v1136
      %v1138 = vpop.f32.mrb[0].mxu0
      %v1139 = vadd.f32 0.0, %v1138
      %v1140 = vpop.f32.mrb[0].mxu0
      %v1141 = vadd.f32 0.0, %v1140
      %v1142 = vpop.f32.mrb[0].mxu0
      %v1143 = vadd.f32 0.0, %v1142
      %1144 = vmatprep.mubr.bf16.mxu0 %v833
      %1145 = vmatmul.mubr.bf16.gmra.mrb[0].mxu0 %v832
      %v1146 = vpop.f32.mrb[0].mxu0
      %v1147 = vadd.f32 0.0, %v1146
      %v1148 = vpop.f32.mrb[0].mxu0
      %v1149 = vadd.f32 0.0, %v1148
      %v1150 = vpop.f32.mrb[0].mxu0
      %v1151 = vadd.f32 0.0, %v1150
      %v1152 = vpop.f32.mrb[0].mxu0
      %v1153 = vadd.f32 0.0, %v1152
      %1154 = vmatprep.mubr.bf16.mxu0 %v835
      %1155 = vmatmul.mubr.bf16.gmra.mrb[0].mxu0 %v834
      %v1156 = vpop.f32.mrb[0].mxu0
      %v1157 = vadd.f32 0.0, %v1156
      %v1158 = vpop.f32.mrb[0].mxu0
      %v1159 = vadd.f32 0.0, %v1158
      %v1160 = vpop.f32.mrb[0].mxu0
      %v1161 = vadd.f32 0.0, %v1160
      %v1162 = vpop.f32.mrb[0].mxu0
      %v1163 = vadd.f32 0.0, %v1162
      %1164 = vmatprep.mubr.bf16.mxu0 %v837
      %1165 = vmatmul.mubr.bf16.gmra.mrb[0].mxu0 %v836
      %v1166 = vpop.f32.mrb[0].mxu0
      %v1167 = vadd.f32 0.0, %v1166
      %v1168 = vpop.f32.mrb[0].mxu0
      %v1169 = vadd.f32 0.0, %v1168
      %v1170 = vpop.f32.mrb[0].mxu0
      %v1171 = vadd.f32 0.0, %v1170
      %v1172 = vpop.f32.mrb[0].mxu0
      %v1173 = vadd.f32 0.0, %v1172
      %1174 = vmatprep.mubr.bf16.mxu0 %v839
      %1175 = vmatmul.mubr.bf16.gmra.mrb[0].mxu0 %v838
      %v1176 = vpop.f32.mrb[0].mxu0
      %v1177 = vadd.f32 0.0, %v1176
      %v1178 = vpop.f32.mrb[0].mxu0
      %v1179 = vadd.f32 0.0, %v1178
      %v1180 = vpop.f32.mrb[0].mxu0
      %v1181 = vadd.f32 0.0, %v1180
      %v1182 = vpop.f32.mrb[0].mxu0
      %v1183 = vadd.f32 0.0, %v1182
      %1184 = vmatprep.mubr.bf16.mxu0 %v841
      %1185 = vmatmul.mubr.bf16.gmra.mrb[0].mxu0 %v840
      %v1186 = vpop.f32.mrb[0].mxu0
      %v1187 = vadd.f32 0.0, %v1186
      %v1188 = vpop.f32.mrb[0].mxu0
      %v1189 = vadd.f32 0.0, %v1188
      %v1190 = vpop.f32.mrb[0].mxu0
      %v1191 = vadd.f32 0.0, %v1190
      %v1192 = vpop.f32.mrb[0].mxu0
      %v1193 = vadd.f32 0.0, %v1192
      %1194 = vmatprep.mubr.bf16.mxu0 %v843
      %1195 = vmatmul.mubr.bf16.gmra.mrb[0].mxu0 %v842
      %v1196 = vpop.f32.mrb[0].mxu0
      %v1197 = vadd.f32 0.0, %v1196
      %v1198 = vpop.f32.mrb[0].mxu0
      %v1199 = vadd.f32 0.0, %v1198
      %v1200 = vpop.f32.mrb[0].mxu0
      %v1201 = vadd.f32 0.0, %v1200
      %v1202 = vpop.f32.mrb[0].mxu0
      %v1203 = vadd.f32 0.0, %v1202
      %1204 = vmatprep.mubr.bf16.mxu0 %v845
      %1205 = vmatmul.mubr.bf16.gmra.mrb[0].mxu0 %v844
      %v1206 = vpop.f32.mrb[0].mxu0
      %v1207 = vadd.f32 0.0, %v1206
      %v1208 = vpop.f32.mrb[0].mxu0
      %v1209 = vadd.f32 0.0, %v1208
      %v1210 = vpop.f32.mrb[0].mxu0
      %v1211 = vadd.f32 0.0, %v1210
      %v1212 = vpop.f32.mrb[0].mxu0
      %v1213 = vadd.f32 0.0, %v1212
      %1214 = vmatprep.mubr.bf16.mxu0 %v847
      %1215 = vmatmul.mubr.bf16.gmra.mrb[0].mxu0 %v846
      %v1216 = vpop.f32.mrb[0].mxu0
      %v1217 = vadd.f32 0.0, %v1216
      %v1218 = vpop.f32.mrb[0].mxu0
      %v1219 = vadd.f32 0.0, %v1218
      %v1220 = vpop.f32.mrb[0].mxu0
      %v1221 = vadd.f32 0.0, %v1220
      %v1222 = vpop.f32.mrb[0].mxu0
      %v1223 = vadd.f32 0.0, %v1222
      %1224 = vmatprep.mubr.bf16.mxu0 %v849
      %1225 = vmatmul.mubr.bf16.gmra.mrb[0].mxu0 %v848
      %v1226 = vpop.f32.mrb[0].mxu0
      %v1227 = vadd.f32 0.0, %v1226
      %v1228 = vpop.f32.mrb[0].mxu0
      %v1229 = vadd.f32 0.0, %v1228
      %v1230 = vpop.f32.mrb[0].mxu0
      %v1231 = vadd.f32 0.0, %v1230
      %v1232 = vpop.f32.mrb[0].mxu0
      %v1233 = vadd.f32 0.0, %v1232
      %1234 = vdwg.mxu0
      %v1267 = vunpack.c.l.b16 %v248
      %v1268 = vunpack.c.h.b16 %v248
      %v1269 = vunpack.c.l.b16 %v249
      %v1270 = vunpack.c.h.b16 %v249
      %v1271 = vunpack.c.l.b16 %v251
      %v1272 = vunpack.c.h.b16 %v251
      %v1273 = vunpack.c.l.b16 %v252
      %v1274 = vunpack.c.h.b16 %v252
      %v1275 = vunpack.c.l.b16 %v254
      %v1276 = vunpack.c.h.b16 %v254
      %v1277 = vunpack.c.l.b16 %v255
      %v1278 = vunpack.c.h.b16 %v255
      %v1279 = vunpack.c.l.b16 %v257
      %v1280 = vunpack.c.h.b16 %v257
      %v1281 = vunpack.c.l.b16 %v258
      %v1282 = vunpack.c.h.b16 %v258
      %v1283 = vunpack.c.l.b16 %v260
      %v1284 = vunpack.c.h.b16 %v260
      %v1285 = vunpack.c.l.b16 %v261
      %v1286 = vunpack.c.h.b16 %v261
      %v1287 = vunpack.c.l.b16 %v263
      %v1288 = vunpack.c.h.b16 %v263
      %v1289 = vunpack.c.l.b16 %v264
      %v1290 = vunpack.c.h.b16 %v264
      %v1291 = vunpack.c.l.b16 %v266
      %v1292 = vunpack.c.h.b16 %v266
      %v1293 = vunpack.c.l.b16 %v267
      %v1294 = vunpack.c.h.b16 %v267
      %v1295 = vunpack.c.l.b16 %v269
      %v1296 = vunpack.c.h.b16 %v269
      %v1297 = vunpack.c.l.b16 %v270
      %v1298 = vunpack.c.h.b16 %v270
      %v1299 = vunpack.c.l.b16 %v272
      %v1300 = vunpack.c.h.b16 %v272
      %v1301 = vunpack.c.l.b16 %v273
      %v1302 = vunpack.c.h.b16 %v273
      %v1303 = vunpack.c.l.b16 %v275
      %v1304 = vunpack.c.h.b16 %v275
      %v1305 = vunpack.c.l.b16 %v276
      %v1306 = vunpack.c.h.b16 %v276
      %v1307 = vunpack.c.l.b16 %v278
      %v1308 = vunpack.c.h.b16 %v278
      %v1309 = vunpack.c.l.b16 %v279
      %v1310 = vunpack.c.h.b16 %v279
      %v1311 = vunpack.c.l.b16 %v281
      %v1312 = vunpack.c.h.b16 %v281
      %v1313 = vunpack.c.l.b16 %v282
      %v1314 = vunpack.c.h.b16 %v282
      %v1315 = vunpack.c.l.b16 %v284
      %v1316 = vunpack.c.h.b16 %v284
      %v1317 = vunpack.c.l.b16 %v285
      %v1318 = vunpack.c.h.b16 %v285
      %v1319 = vunpack.c.l.b16 %v287
      %v1320 = vunpack.c.h.b16 %v287
      %v1321 = vunpack.c.l.b16 %v288
      %v1322 = vunpack.c.h.b16 %v288
      %v1323 = vunpack.c.l.b16 %v290
      %v1324 = vunpack.c.h.b16 %v290
      %v1325 = vunpack.c.l.b16 %v291
      %v1326 = vunpack.c.h.b16 %v291
      %v1327 = vunpack.c.l.b16 %v293
      %v1328 = vunpack.c.h.b16 %v293
      %v1329 = vunpack.c.l.b16 %v294
      %v1330 = vunpack.c.h.b16 %v294
      %v1331 = vpack.c.b16 %v1269, %v1267
      %v1332 = vpack.c.b16 %v1270, %v1268
      %v1333 = vpack.c.b16 %v1273, %v1271
      %v1334 = vpack.c.b16 %v1274, %v1272
      %v1335 = vpack.c.b16 %v1277, %v1275
      %v1336 = vpack.c.b16 %v1278, %v1276
      %v1337 = vpack.c.b16 %v1281, %v1279
      %v1338 = vpack.c.b16 %v1282, %v1280
      %v1339 = vpack.c.b16 %v1285, %v1283
      %v1340 = vpack.c.b16 %v1286, %v1284
      %v1341 = vpack.c.b16 %v1289, %v1287
      %v1342 = vpack.c.b16 %v1290, %v1288
      %v1343 = vpack.c.b16 %v1293, %v1291
      %v1344 = vpack.c.b16 %v1294, %v1292
      %v1345 = vpack.c.b16 %v1297, %v1295
      %v1346 = vpack.c.b16 %v1298, %v1296
      %v1347 = vpack.c.b16 %v1301, %v1299
      %v1348 = vpack.c.b16 %v1302, %v1300
      %v1349 = vpack.c.b16 %v1305, %v1303
      %v1350 = vpack.c.b16 %v1306, %v1304
      %v1351 = vpack.c.b16 %v1309, %v1307
      %v1352 = vpack.c.b16 %v1310, %v1308
      %v1353 = vpack.c.b16 %v1313, %v1311
      %v1354 = vpack.c.b16 %v1314, %v1312
      %v1355 = vpack.c.b16 %v1317, %v1315
      %v1356 = vpack.c.b16 %v1318, %v1316
      %v1357 = vpack.c.b16 %v1321, %v1319
      %v1358 = vpack.c.b16 %v1322, %v1320
      %v1359 = vpack.c.b16 %v1325, %v1323
      %v1360 = vpack.c.b16 %v1326, %v1324
      %v1361 = vpack.c.b16 %v1329, %v1327
      %v1362 = vpack.c.b16 %v1330, %v1328
      %v1427 = vunpack.c.l.b16 %v302
      %v1428 = vunpack.c.h.b16 %v302
      %v1429 = vunpack.c.l.b16 %v303
      %v1430 = vunpack.c.h.b16 %v303
      %v1431 = vunpack.c.l.b16 %v304
      %v1432 = vunpack.c.h.b16 %v304
      %v1433 = vunpack.c.l.b16 %v305
      %v1434 = vunpack.c.h.b16 %v305
      %v1435 = vunpack.c.l.b16 %v306
      %v1436 = vunpack.c.h.b16 %v306
      %v1437 = vunpack.c.l.b16 %v307
      %v1438 = vunpack.c.h.b16 %v307
      %v1439 = vunpack.c.l.b16 %v308
      %v1440 = vunpack.c.h.b16 %v308
      %v1441 = vunpack.c.l.b16 %v309
      %v1442 = vunpack.c.h.b16 %v309
      %v1443 = vunpack.c.l.b16 %v310
      %v1444 = vunpack.c.h.b16 %v310
      %v1445 = vunpack.c.l.b16 %v311
      %v1446 = vunpack.c.h.b16 %v311
      %v1447 = vunpack.c.l.b16 %v312
      %v1448 = vunpack.c.h.b16 %v312
      %v1449 = vunpack.c.l.b16 %v313
      %v1450 = vunpack.c.h.b16 %v313
      %v1451 = vunpack.c.l.b16 %v314
      %v1452 = vunpack.c.h.b16 %v314
      %v1453 = vunpack.c.l.b16 %v315
      %v1454 = vunpack.c.h.b16 %v315
      %v1455 = vunpack.c.l.b16 %v316
      %v1456 = vunpack.c.h.b16 %v316
      %v1457 = vunpack.c.l.b16 %v317
      %v1458 = vunpack.c.h.b16 %v317
      %v1459 = vunpack.c.l.b16 %v318
      %v1460 = vunpack.c.h.b16 %v318
      %v1461 = vunpack.c.l.b16 %v319
      %v1462 = vunpack.c.h.b16 %v319
      %v1463 = vunpack.c.l.b16 %v320
      %v1464 = vunpack.c.h.b16 %v320
      %v1465 = vunpack.c.l.b16 %v321
      %v1466 = vunpack.c.h.b16 %v321
      %v1467 = vunpack.c.l.b16 %v322
      %v1468 = vunpack.c.h.b16 %v322
      %v1469 = vunpack.c.l.b16 %v323
      %v1470 = vunpack.c.h.b16 %v323
      %v1471 = vunpack.c.l.b16 %v324
      %v1472 = vunpack.c.h.b16 %v324
      %v1473 = vunpack.c.l.b16 %v325
      %v1474 = vunpack.c.h.b16 %v325
      %v1475 = vunpack.c.l.b16 %v326
      %v1476 = vunpack.c.h.b16 %v326
      %v1477 = vunpack.c.l.b16 %v327
      %v1478 = vunpack.c.h.b16 %v327
      %v1479 = vunpack.c.l.b16 %v328
      %v1480 = vunpack.c.h.b16 %v328
      %v1481 = vunpack.c.l.b16 %v329
      %v1482 = vunpack.c.h.b16 %v329
      %v1483 = vunpack.c.l.b16 %v330
      %v1484 = vunpack.c.h.b16 %v330
      %v1485 = vunpack.c.l.b16 %v331
      %v1486 = vunpack.c.h.b16 %v331
      %v1487 = vunpack.c.l.b16 %v332
      %v1488 = vunpack.c.h.b16 %v332
      %v1489 = vunpack.c.l.b16 %v333
      %v1490 = vunpack.c.h.b16 %v333
      %v1491 = vpack.c.b16 %v1429, %v1427
      %v1492 = vpack.c.b16 %v1430, %v1428
      %v1493 = vpack.c.b16 %v1433, %v1431
      %v1494 = vpack.c.b16 %v1434, %v1432
      %v1495 = vpack.c.b16 %v1437, %v1435
      %v1496 = vpack.c.b16 %v1438, %v1436
      %v1497 = vpack.c.b16 %v1441, %v1439
      %v1498 = vpack.c.b16 %v1442, %v1440
      %v1499 = vpack.c.b16 %v1445, %v1443
      %v1500 = vpack.c.b16 %v1446, %v1444
      %v1501 = vpack.c.b16 %v1449, %v1447
      %v1502 = vpack.c.b16 %v1450, %v1448
      %v1503 = vpack.c.b16 %v1453, %v1451
      %v1504 = vpack.c.b16 %v1454, %v1452
      %v1505 = vpack.c.b16 %v1457, %v1455
      %v1506 = vpack.c.b16 %v1458, %v1456
      %v1507 = vpack.c.b16 %v1461, %v1459
      %v1508 = vpack.c.b16 %v1462, %v1460
      %v1509 = vpack.c.b16 %v1465, %v1463
      %v1510 = vpack.c.b16 %v1466, %v1464
      %v1511 = vpack.c.b16 %v1469, %v1467
      %v1512 = vpack.c.b16 %v1470, %v1468
      %v1513 = vpack.c.b16 %v1473, %v1471
      %v1514 = vpack.c.b16 %v1474, %v1472
      %v1515 = vpack.c.b16 %v1477, %v1475
      %v1516 = vpack.c.b16 %v1478, %v1476
      %v1517 = vpack.c.b16 %v1481, %v1479
      %v1518 = vpack.c.b16 %v1482, %v1480
      %v1519 = vpack.c.b16 %v1485, %v1483
      %v1520 = vpack.c.b16 %v1486, %v1484
      %v1521 = vpack.c.b16 %v1489, %v1487
      %v1522 = vpack.c.b16 %v1490, %v1488
      %1555 = vmatprep.subr.bf16.mxu0 %v1492
      %1556 = vmatpush1.bf16.msra.mxu0 %v1491
      %1557 = vmatprep.subr.bf16.mxu0 %v1494
      %1558 = vmatpush1.bf16.msra.mxu0 %v1493
      %1559 = vmatprep.subr.bf16.mxu0 %v1496
      %1560 = vmatpush1.bf16.msra.mxu0 %v1495
      %1561 = vmatprep.subr.bf16.mxu0 %v1498
      %1562 = vmatpush1.bf16.msra.mxu0 %v1497
      %1563 = vmatprep.subr.bf16.mxu0 %v1500
      %1564 = vmatpush1.bf16.msra.mxu0 %v1499
      %1565 = vmatprep.subr.bf16.mxu0 %v1502
      %1566 = vmatpush1.bf16.msra.mxu0 %v1501
      %1567 = vmatprep.subr.bf16.mxu0 %v1504
      %1568 = vmatpush1.bf16.msra.mxu0 %v1503
      %1569 = vmatprep.subr.bf16.mxu0 %v1506
      %1570 = vmatpush1.bf16.msra.mxu0 %v1505
      %1571 = vmatprep.subr.bf16.mxu0 %v1508
      %1572 = vmatpush1.bf16.msra.mxu0 %v1507
      %1573 = vmatprep.subr.bf16.mxu0 %v1510
      %1574 = vmatpush1.bf16.msra.mxu0 %v1509
      %1575 = vmatprep.subr.bf16.mxu0 %v1512
      %1576 = vmatpush1.bf16.msra.mxu0 %v1511
      %1577 = vmatprep.subr.bf16.mxu0 %v1514
      %1578 = vmatpush1.bf16.msra.mxu0 %v1513
      %1579 = vmatprep.subr.bf16.mxu0 %v1516
      %1580 = vmatpush1.bf16.msra.mxu0 %v1515
      %1581 = vmatprep.subr.bf16.mxu0 %v1518
      %1582 = vmatpush1.bf16.msra.mxu0 %v1517
      %1583 = vmatprep.subr.bf16.mxu0 %v1520
      %1584 = vmatpush1.bf16.msra.mxu0 %v1519
      %1585 = vmatprep.subr.bf16.mxu0 %v1522
      %1586 = vmatpush1.bf16.msra.mxu0 %v1521
      %1587 = vmatprep.mubr.bf16.mxu0 %v1332
      %1588 = vmatmul.mubr.bf16.gmra.mrb[0].mxu0 %v1331
      %v1589 = vpop.f32.mrb[0].mxu0
      %v1590 = vadd.f32 %v1077, %v1589
      %v1591 = vpop.f32.mrb[0].mxu0
      %v1592 = vadd.f32 %v1079, %v1591
      %v1593 = vpop.f32.mrb[0].mxu0
      %v1594 = vadd.f32 %v1081, %v1593
      %v1595 = vpop.f32.mrb[0].mxu0
      %v1596 = vadd.f32 %v1083, %v1595
      %1597 = vmatprep.mubr.bf16.mxu0 %v1334
      %1598 = vmatmul.mubr.bf16.gmra.mrb[0].mxu0 %v1333
      %v1599 = vpop.f32.mrb[0].mxu0
      %v1600 = vadd.f32 %v1087, %v1599
      %v1601 = vpop.f32.mrb[0].mxu0
      %v1602 = vadd.f32 %v1089, %v1601
      %v1603 = vpop.f32.mrb[0].mxu0
      %v1604 = vadd.f32 %v1091, %v1603
      %v1605 = vpop.f32.mrb[0].mxu0
      %v1606 = vadd.f32 %v1093, %v1605
      %1607 = vmatprep.mubr.bf16.mxu0 %v1336
      %1608 = vmatmul.mubr.bf16.gmra.mrb[0].mxu0 %v1335
      %v1609 = vpop.f32.mrb[0].mxu0
      %v1610 = vadd.f32 %v1097, %v1609
      %v1611 = vpop.f32.mrb[0].mxu0
      %v1612 = vadd.f32 %v1099, %v1611
      %v1613 = vpop.f32.mrb[0].mxu0
      %v1614 = vadd.f32 %v1101, %v1613
      %v1615 = vpop.f32.mrb[0].mxu0
      %v1616 = vadd.f32 %v1103, %v1615
      %1617 = vmatprep.mubr.bf16.mxu0 %v1338
      %1618 = vmatmul.mubr.bf16.gmra.mrb[0].mxu0 %v1337
      %v1619 = vpop.f32.mrb[0].mxu0
      %v1620 = vadd.f32 %v1107, %v1619
      %v1621 = vpop.f32.mrb[0].mxu0
      %v1622 = vadd.f32 %v1109, %v1621
      %v1623 = vpop.f32.mrb[0].mxu0
      %v1624 = vadd.f32 %v1111, %v1623
      %v1625 = vpop.f32.mrb[0].mxu0
      %v1626 = vadd.f32 %v1113, %v1625
      %1627 = vmatprep.mubr.bf16.mxu0 %v1340
      %1628 = vmatmul.mubr.bf16.gmra.mrb[0].mxu0 %v1339
      %v1629 = vpop.f32.mrb[0].mxu0
      %v1630 = vadd.f32 %v1117, %v1629
      %v1631 = vpop.f32.mrb[0].mxu0
      %v1632 = vadd.f32 %v1119, %v1631
      %v1633 = vpop.f32.mrb[0].mxu0
      %v1634 = vadd.f32 %v1121, %v1633
      %v1635 = vpop.f32.mrb[0].mxu0
      %v1636 = vadd.f32 %v1123, %v1635
      %1637 = vmatprep.mubr.bf16.mxu0 %v1342
      %1638 = vmatmul.mubr.bf16.gmra.mrb[0].mxu0 %v1341
      %v1639 = vpop.f32.mrb[0].mxu0
      %v1640 = vadd.f32 %v1127, %v1639
      %v1641 = vpop.f32.mrb[0].mxu0
      %v1642 = vadd.f32 %v1129, %v1641
      %v1643 = vpop.f32.mrb[0].mxu0
      %v1644 = vadd.f32 %v1131, %v1643
      %v1645 = vpop.f32.mrb[0].mxu0
      %v1646 = vadd.f32 %v1133, %v1645
      %1647 = vmatprep.mubr.bf16.mxu0 %v1344
      %1648 = vmatmul.mubr.bf16.gmra.mrb[0].mxu0 %v1343
      %v1649 = vpop.f32.mrb[0].mxu0
      %v1650 = vadd.f32 %v1137, %v1649
      %v1651 = vpop.f32.mrb[0].mxu0
      %v1652 = vadd.f32 %v1139, %v1651
      %v1653 = vpop.f32.mrb[0].mxu0
      %v1654 = vadd.f32 %v1141, %v1653
      %v1655 = vpop.f32.mrb[0].mxu0
      %v1656 = vadd.f32 %v1143, %v1655
      %1657 = vmatprep.mubr.bf16.mxu0 %v1346
      %1658 = vmatmul.mubr.bf16.gmra.mrb[0].mxu0 %v1345
      %v1659 = vpop.f32.mrb[0].mxu0
      %v1660 = vadd.f32 %v1147, %v1659
      %v1661 = vpop.f32.mrb[0].mxu0
      %v1662 = vadd.f32 %v1149, %v1661
      %v1663 = vpop.f32.mrb[0].mxu0
      %v1664 = vadd.f32 %v1151, %v1663
      %v1665 = vpop.f32.mrb[0].mxu0
      %v1666 = vadd.f32 %v1153, %v1665
      %1667 = vmatprep.mubr.bf16.mxu0 %v1348
      %1668 = vmatmul.mubr.bf16.gmra.mrb[0].mxu0 %v1347
      %v1669 = vpop.f32.mrb[0].mxu0
      %v1670 = vadd.f32 %v1157, %v1669
      %v1671 = vpop.f32.mrb[0].mxu0
      %v1672 = vadd.f32 %v1159, %v1671
      %v1673 = vpop.f32.mrb[0].mxu0
      %v1674 = vadd.f32 %v1161, %v1673
      %v1675 = vpop.f32.mrb[0].mxu0
      %v1676 = vadd.f32 %v1163, %v1675
      %1677 = vmatprep.mubr.bf16.mxu0 %v1350
      %1678 = vmatmul.mubr.bf16.gmra.mrb[0].mxu0 %v1349
      %v1679 = vpop.f32.mrb[0].mxu0
      %v1680 = vadd.f32 %v1167, %v1679
      %v1681 = vpop.f32.mrb[0].mxu0
      %v1682 = vadd.f32 %v1169, %v1681
      %v1683 = vpop.f32.mrb[0].mxu0
      %v1684 = vadd.f32 %v1171, %v1683
      %v1685 = vpop.f32.mrb[0].mxu0
      %v1686 = vadd.f32 %v1173, %v1685
      %1687 = vmatprep.mubr.bf16.mxu0 %v1352
      %1688 = vmatmul.mubr.bf16.gmra.mrb[0].mxu0 %v1351
      %v1689 = vpop.f32.mrb[0].mxu0
      %v1690 = vadd.f32 %v1177, %v1689
      %v1691 = vpop.f32.mrb[0].mxu0
      %v1692 = vadd.f32 %v1179, %v1691
      %v1693 = vpop.f32.mrb[0].mxu0
      %v1694 = vadd.f32 %v1181, %v1693
      %v1695 = vpop.f32.mrb[0].mxu0
      %v1696 = vadd.f32 %v1183, %v1695
      %1697 = vmatprep.mubr.bf16.mxu0 %v1354
      %1698 = vmatmul.mubr.bf16.gmra.mrb[0].mxu0 %v1353
      %v1699 = vpop.f32.mrb[0].mxu0
      %v1700 = vadd.f32 %v1187, %v1699
      %v1701 = vpop.f32.mrb[0].mxu0
      %v1702 = vadd.f32 %v1189, %v1701
      %v1703 = vpop.f32.mrb[0].mxu0
      %v1704 = vadd.f32 %v1191, %v1703
      %v1705 = vpop.f32.mrb[0].mxu0
      %v1706 = vadd.f32 %v1193, %v1705
      %1707 = vmatprep.mubr.bf16.mxu0 %v1356
      %1708 = vmatmul.mubr.bf16.gmra.mrb[0].mxu0 %v1355
      %v1709 = vpop.f32.mrb[0].mxu0
      %v1710 = vadd.f32 %v1197, %v1709
      %v1711 = vpop.f32.mrb[0].mxu0
      %v1712 = vadd.f32 %v1199, %v1711
      %v1713 = vpop.f32.mrb[0].mxu0
      %v1714 = vadd.f32 %v1201, %v1713
      %v1715 = vpop.f32.mrb[0].mxu0
      %v1716 = vadd.f32 %v1203, %v1715
      %1717 = vmatprep.mubr.bf16.mxu0 %v1358
      %1718 = vmatmul.mubr.bf16.gmra.mrb[0].mxu0 %v1357
      %v1719 = vpop.f32.mrb[0].mxu0
      %v1720 = vadd.f32 %v1207, %v1719
      %v1721 = vpop.f32.mrb[0].mxu0
      %v1722 = vadd.f32 %v1209, %v1721
      %v1723 = vpop.f32.mrb[0].mxu0
      %v1724 = vadd.f32 %v1211, %v1723
      %v1725 = vpop.f32.mrb[0].mxu0
      %v1726 = vadd.f32 %v1213, %v1725
      %1727 = vmatprep.mubr.bf16.mxu0 %v1360
      %1728 = vmatmul.mubr.bf16.gmra.mrb[0].mxu0 %v1359
      %v1729 = vpop.f32.mrb[0].mxu0
      %v1730 = vadd.f32 %v1217, %v1729
      %v1731 = vpop.f32.mrb[0].mxu0
      %v1732 = vadd.f32 %v1219, %v1731
      %v1733 = vpop.f32.mrb[0].mxu0
      %v1734 = vadd.f32 %v1221, %v1733
      %v1735 = vpop.f32.mrb[0].mxu0
      %v1736 = vadd.f32 %v1223, %v1735
      %1737 = vmatprep.mubr.bf16.mxu0 %v1362
      %1738 = vmatmul.mubr.bf16.gmra.mrb[0].mxu0 %v1361
      %v1739 = vpop.f32.mrb[0].mxu0
      %v1740 = vadd.f32 %v1227, %v1739
      %v1741 = vpop.f32.mrb[0].mxu0
      %v1742 = vadd.f32 %v1229, %v1741
      %v1743 = vpop.f32.mrb[0].mxu0
      %v1744 = vadd.f32 %v1231, %v1743
      %v1745 = vpop.f32.mrb[0].mxu0
      %v1746 = vadd.f32 %v1233, %v1745
      %1747 = vdwg.mxu0
      %vm1764 = vcmask 1042432
      %vm1765 = vcmask 1046532
      %vm1766 = vmor %vm1764, %vm1765
      %v1767 = vrot.slane %v248, 5
      %v1768 = vrot.slane %v1767, 4
      %v1769 = vrot.slane %v249, 5
      %v1770 = vsel %vm1766, %v1768, %v1769
      %v1771 = vrot.slane %v1769, 4
      %v1772 = vrot.slane %v250, 5
      %v1773 = vsel %vm1766, %v1771, %v1772
      %v1774 = vrot.slane %v251, 5
      %v1775 = vrot.slane %v1774, 4
      %v1776 = vrot.slane %v252, 5
      %v1777 = vsel %vm1766, %v1775, %v1776
      %v1778 = vrot.slane %v1776, 4
      %v1779 = vrot.slane %v253, 5
      %v1780 = vsel %vm1766, %v1778, %v1779
      %v1781 = vrot.slane %v254, 5
      %v1782 = vrot.slane %v1781, 4
      %v1783 = vrot.slane %v255, 5
      %v1784 = vsel %vm1766, %v1782, %v1783
      %v1785 = vrot.slane %v1783, 4
      %v1786 = vrot.slane %v256, 5
      %v1787 = vsel %vm1766, %v1785, %v1786
      %v1788 = vrot.slane %v257, 5
      %v1789 = vrot.slane %v1788, 4
      %v1790 = vrot.slane %v258, 5
      %v1791 = vsel %vm1766, %v1789, %v1790
      %v1792 = vrot.slane %v1790, 4
      %v1793 = vrot.slane %v259, 5
      %v1794 = vsel %vm1766, %v1792, %v1793
      %v1795 = vrot.slane %v260, 5
      %v1796 = vrot.slane %v1795, 4
      %v1797 = vrot.slane %v261, 5
      %v1798 = vsel %vm1766, %v1796, %v1797
      %v1799 = vrot.slane %v1797, 4
      %v1800 = vrot.slane %v262, 5
      %v1801 = vsel %vm1766, %v1799, %v1800
      %v1802 = vrot.slane %v263, 5
      %v1803 = vrot.slane %v1802, 4
      %v1804 = vrot.slane %v264, 5
      %v1805 = vsel %vm1766, %v1803, %v1804
      %v1806 = vrot.slane %v1804, 4
      %v1807 = vrot.slane %v265, 5
      %v1808 = vsel %vm1766, %v1806, %v1807
      %v1809 = vrot.slane %v266, 5
      %v1810 = vrot.slane %v1809, 4
      %v1811 = vrot.slane %v267, 5
      %v1812 = vsel %vm1766, %v1810, %v1811
      %v1813 = vrot.slane %v1811, 4
      %v1814 = vrot.slane %v268, 5
      %v1815 = vsel %vm1766, %v1813, %v1814
      %v1816 = vrot.slane %v269, 5
      %v1817 = vrot.slane %v1816, 4
      %v1818 = vrot.slane %v270, 5
      %v1819 = vsel %vm1766, %v1817, %v1818
      %v1820 = vrot.slane %v1818, 4
      %v1821 = vrot.slane %v271, 5
      %v1822 = vsel %vm1766, %v1820, %v1821
      %v1823 = vrot.slane %v272, 5
      %v1824 = vrot.slane %v1823, 4
      %v1825 = vrot.slane %v273, 5
      %v1826 = vsel %vm1766, %v1824, %v1825
      %v1827 = vrot.slane %v1825, 4
      %v1828 = vrot.slane %v274, 5
      %v1829 = vsel %vm1766, %v1827, %v1828
      %v1830 = vrot.slane %v275, 5
      %v1831 = vrot.slane %v1830, 4
      %v1832 = vrot.slane %v276, 5
      %v1833 = vsel %vm1766, %v1831, %v1832
      %v1834 = vrot.slane %v1832, 4
      %v1835 = vrot.slane %v277, 5
      %v1836 = vsel %vm1766, %v1834, %v1835
      %v1837 = vrot.slane %v278, 5
      %v1838 = vrot.slane %v1837, 4
      %v1839 = vrot.slane %v279, 5
      %v1840 = vsel %vm1766, %v1838, %v1839
      %v1841 = vrot.slane %v1839, 4
      %v1842 = vrot.slane %v280, 5
      %v1843 = vsel %vm1766, %v1841, %v1842
      %v1844 = vrot.slane %v281, 5
      %v1845 = vrot.slane %v1844, 4
      %v1846 = vrot.slane %v282, 5
      %v1847 = vsel %vm1766, %v1845, %v1846
      %v1848 = vrot.slane %v1846, 4
      %v1849 = vrot.slane %v283, 5
      %v1850 = vsel %vm1766, %v1848, %v1849
      %v1851 = vrot.slane %v284, 5
      %v1852 = vrot.slane %v1851, 4
      %v1853 = vrot.slane %v285, 5
      %v1854 = vsel %vm1766, %v1852, %v1853
      %v1855 = vrot.slane %v1853, 4
      %v1856 = vrot.slane %v286, 5
      %v1857 = vsel %vm1766, %v1855, %v1856
      %v1858 = vrot.slane %v287, 5
      %v1859 = vrot.slane %v1858, 4
      %v1860 = vrot.slane %v288, 5
      %v1861 = vsel %vm1766, %v1859, %v1860
      %v1862 = vrot.slane %v1860, 4
      %v1863 = vrot.slane %v289, 5
      %v1864 = vsel %vm1766, %v1862, %v1863
      %v1865 = vrot.slane %v290, 5
      %v1866 = vrot.slane %v1865, 4
      %v1867 = vrot.slane %v291, 5
      %v1868 = vsel %vm1766, %v1866, %v1867
      %v1869 = vrot.slane %v1867, 4
      %v1870 = vrot.slane %v292, 5
      %v1871 = vsel %vm1766, %v1869, %v1870
      %v1872 = vrot.slane %v293, 5
      %v1873 = vrot.slane %v1872, 4
      %v1874 = vrot.slane %v294, 5
      %v1875 = vsel %vm1766, %v1873, %v1874
      %v1876 = vrot.slane %v1874, 4
      %v1877 = vrot.slane %v295, 5
      %v1878 = vsel %vm1766, %v1876, %v1877
      %s1879 = scalar_lea.vmem %s1, 512
      %v1880 = vld [vmem:[%s1879] sm:$0xff]
      %v1881 = vld [vmem:[%s1879 + $0x8] sm:$0xff]
      %v1882 = vld [vmem:[%s1879 + $0x10] sm:$0xff]
      %v1883 = vld [vmem:[%s1879 + $0x18] sm:$0xff]
      %v1884 = vld [vmem:[%s1879 + $0x20] sm:$0xff]
      %v1885 = vld [vmem:[%s1879 + $0x28] sm:$0xff]
      %v1886 = vld [vmem:[%s1879 + $0x30] sm:$0xff]
      %v1887 = vld [vmem:[%s1879 + $0x38] sm:$0xff]
      %v1888 = vld [vmem:[%s1879 + $0x40] sm:$0xff]
      %v1889 = vld [vmem:[%s1879 + $0x48] sm:$0xff]
      %v1890 = vld [vmem:[%s1879 + $0x50] sm:$0xff]
      %v1891 = vld [vmem:[%s1879 + $0x58] sm:$0xff]
      %v1892 = vld [vmem:[%s1879 + $0x60] sm:$0xff]
      %v1893 = vld [vmem:[%s1879 + $0x68] sm:$0xff]
      %v1894 = vld [vmem:[%s1879 + $0x70] sm:$0xff]
      %v1895 = vld [vmem:[%s1879 + $0x78] sm:$0xff]
      %v1896 = vld [vmem:[%s1879 + $0x80] sm:$0xff]
      %v1897 = vld [vmem:[%s1879 + $0x88] sm:$0xff]
      %v1898 = vld [vmem:[%s1879 + $0x90] sm:$0xff]
      %v1899 = vld [vmem:[%s1879 + $0x98] sm:$0xff]
      %v1900 = vld [vmem:[%s1879 + $0xa0] sm:$0xff]
      %v1901 = vld [vmem:[%s1879 + $0xa8] sm:$0xff]
      %v1902 = vld [vmem:[%s1879 + $0xb0] sm:$0xff]
      %v1903 = vld [vmem:[%s1879 + $0xb8] sm:$0xff]
      %v1904 = vld [vmem:[%s1879 + $0xc0] sm:$0xff]
      %v1905 = vld [vmem:[%s1879 + $0xc8] sm:$0xff]
      %v1906 = vld [vmem:[%s1879 + $0xd0] sm:$0xff]
      %v1907 = vld [vmem:[%s1879 + $0xd8] sm:$0xff]
      %v1908 = vld [vmem:[%s1879 + $0xe0] sm:$0xff]
      %v1909 = vld [vmem:[%s1879 + $0xe8] sm:$0xff]
      %v1910 = vld [vmem:[%s1879 + $0xf0] sm:$0xff]
      %v1911 = vld [vmem:[%s1879 + $0xf8] sm:$0xff]
      %v1912 = vunpack.c.l.b16 %v1770
      %v1913 = vunpack.c.h.b16 %v1770
      %v1914 = vunpack.c.l.b16 %v1773
      %v1915 = vunpack.c.h.b16 %v1773
      %v1916 = vunpack.c.l.b16 %v1777
      %v1917 = vunpack.c.h.b16 %v1777
      %v1918 = vunpack.c.l.b16 %v1780
      %v1919 = vunpack.c.h.b16 %v1780
      %v1920 = vunpack.c.l.b16 %v1784
      %v1921 = vunpack.c.h.b16 %v1784
      %v1922 = vunpack.c.l.b16 %v1787
      %v1923 = vunpack.c.h.b16 %v1787
      %v1924 = vunpack.c.l.b16 %v1791
      %v1925 = vunpack.c.h.b16 %v1791
      %v1926 = vunpack.c.l.b16 %v1794
      %v1927 = vunpack.c.h.b16 %v1794
      %v1928 = vunpack.c.l.b16 %v1798
      %v1929 = vunpack.c.h.b16 %v1798
      %v1930 = vunpack.c.l.b16 %v1801
      %v1931 = vunpack.c.h.b16 %v1801
      %v1932 = vunpack.c.l.b16 %v1805
      %v1933 = vunpack.c.h.b16 %v1805
      %v1934 = vunpack.c.l.b16 %v1808
      %v1935 = vunpack.c.h.b16 %v1808
      %v1936 = vunpack.c.l.b16 %v1812
      %v1937 = vunpack.c.h.b16 %v1812
      %v1938 = vunpack.c.l.b16 %v1815
      %v1939 = vunpack.c.h.b16 %v1815
      %v1940 = vunpack.c.l.b16 %v1819
      %v1941 = vunpack.c.h.b16 %v1819
      %v1942 = vunpack.c.l.b16 %v1822
      %v1943 = vunpack.c.h.b16 %v1822
      %v1944 = vunpack.c.l.b16 %v1826
      %v1945 = vunpack.c.h.b16 %v1826
      %v1946 = vunpack.c.l.b16 %v1829
      %v1947 = vunpack.c.h.b16 %v1829
      %v1948 = vunpack.c.l.b16 %v1833
      %v1949 = vunpack.c.h.b16 %v1833
      %v1950 = vunpack.c.l.b16 %v1836
      %v1951 = vunpack.c.h.b16 %v1836
      %v1952 = vunpack.c.l.b16 %v1840
      %v1953 = vunpack.c.h.b16 %v1840
      %v1954 = vunpack.c.l.b16 %v1843
      %v1955 = vunpack.c.h.b16 %v1843
      %v1956 = vunpack.c.l.b16 %v1847
      %v1957 = vunpack.c.h.b16 %v1847
      %v1958 = vunpack.c.l.b16 %v1850
      %v1959 = vunpack.c.h.b16 %v1850
      %v1960 = vunpack.c.l.b16 %v1854
      %v1961 = vunpack.c.h.b16 %v1854
      %v1962 = vunpack.c.l.b16 %v1857
      %v1963 = vunpack.c.h.b16 %v1857
      %v1964 = vunpack.c.l.b16 %v1861
      %v1965 = vunpack.c.h.b16 %v1861
      %v1966 = vunpack.c.l.b16 %v1864
      %v1967 = vunpack.c.h.b16 %v1864
      %v1968 = vunpack.c.l.b16 %v1868
      %v1969 = vunpack.c.h.b16 %v1868
      %v1970 = vunpack.c.l.b16 %v1871
      %v1971 = vunpack.c.h.b16 %v1871
      %v1972 = vunpack.c.l.b16 %v1875
      %v1973 = vunpack.c.h.b16 %v1875
      %v1974 = vunpack.c.l.b16 %v1878
      %v1975 = vunpack.c.h.b16 %v1878
      %v1976 = vpack.c.b16 %v1914, %v1912
      %v1977 = vpack.c.b16 %v1915, %v1913
      %v1978 = vpack.c.b16 %v1918, %v1916
      %v1979 = vpack.c.b16 %v1919, %v1917
      %v1980 = vpack.c.b16 %v1922, %v1920
      %v1981 = vpack.c.b16 %v1923, %v1921
      %v1982 = vpack.c.b16 %v1926, %v1924
      %v1983 = vpack.c.b16 %v1927, %v1925
      %v1984 = vpack.c.b16 %v1930, %v1928
      %v1985 = vpack.c.b16 %v1931, %v1929
      %v1986 = vpack.c.b16 %v1934, %v1932
      %v1987 = vpack.c.b16 %v1935, %v1933
      %v1988 = vpack.c.b16 %v1938, %v1936
      %v1989 = vpack.c.b16 %v1939, %v1937
      %v1990 = vpack.c.b16 %v1942, %v1940
      %v1991 = vpack.c.b16 %v1943, %v1941
      %v1992 = vpack.c.b16 %v1946, %v1944
      %v1993 = vpack.c.b16 %v1947, %v1945
      %v1994 = vpack.c.b16 %v1950, %v1948
      %v1995 = vpack.c.b16 %v1951, %v1949
      %v1996 = vpack.c.b16 %v1954, %v1952
      %v1997 = vpack.c.b16 %v1955, %v1953
      %v1998 = vpack.c.b16 %v1958, %v1956
      %v1999 = vpack.c.b16 %v1959, %v1957
      %v2000 = vpack.c.b16 %v1962, %v1960
      %v2001 = vpack.c.b16 %v1963, %v1961
      %v2002 = vpack.c.b16 %v1966, %v1964
      %v2003 = vpack.c.b16 %v1967, %v1965
      %v2004 = vpack.c.b16 %v1970, %v1968
      %v2005 = vpack.c.b16 %v1971, %v1969
      %v2006 = vpack.c.b16 %v1974, %v1972
      %v2007 = vpack.c.b16 %v1975, %v1973
      %v2072 = vunpack.c.l.b16 %v1880
      %v2073 = vunpack.c.h.b16 %v1880
      %v2074 = vunpack.c.l.b16 %v1881
      %v2075 = vunpack.c.h.b16 %v1881
      %v2076 = vunpack.c.l.b16 %v1882
      %v2077 = vunpack.c.h.b16 %v1882
      %v2078 = vunpack.c.l.b16 %v1883
      %v2079 = vunpack.c.h.b16 %v1883
      %v2080 = vunpack.c.l.b16 %v1884
      %v2081 = vunpack.c.h.b16 %v1884
      %v2082 = vunpack.c.l.b16 %v1885
      %v2083 = vunpack.c.h.b16 %v1885
      %v2084 = vunpack.c.l.b16 %v1886
      %v2085 = vunpack.c.h.b16 %v1886
      %v2086 = vunpack.c.l.b16 %v1887
      %v2087 = vunpack.c.h.b16 %v1887
      %v2088 = vunpack.c.l.b16 %v1888
      %v2089 = vunpack.c.h.b16 %v1888
      %v2090 = vunpack.c.l.b16 %v1889
      %v2091 = vunpack.c.h.b16 %v1889
      %v2092 = vunpack.c.l.b16 %v1890
      %v2093 = vunpack.c.h.b16 %v1890
      %v2094 = vunpack.c.l.b16 %v1891
      %v2095 = vunpack.c.h.b16 %v1891
      %v2096 = vunpack.c.l.b16 %v1892
      %v2097 = vunpack.c.h.b16 %v1892
      %v2098 = vunpack.c.l.b16 %v1893
      %v2099 = vunpack.c.h.b16 %v1893
      %v2100 = vunpack.c.l.b16 %v1894
      %v2101 = vunpack.c.h.b16 %v1894
      %v2102 = vunpack.c.l.b16 %v1895
      %v2103 = vunpack.c.h.b16 %v1895
      %v2104 = vunpack.c.l.b16 %v1896
      %v2105 = vunpack.c.h.b16 %v1896
      %v2106 = vunpack.c.l.b16 %v1897
      %v2107 = vunpack.c.h.b16 %v1897
      %v2108 = vunpack.c.l.b16 %v1898
      %v2109 = vunpack.c.h.b16 %v1898
      %v2110 = vunpack.c.l.b16 %v1899
      %v2111 = vunpack.c.h.b16 %v1899
      %v2112 = vunpack.c.l.b16 %v1900
      %v2113 = vunpack.c.h.b16 %v1900
      %v2114 = vunpack.c.l.b16 %v1901
      %v2115 = vunpack.c.h.b16 %v1901
      %v2116 = vunpack.c.l.b16 %v1902
      %v2117 = vunpack.c.h.b16 %v1902
      %v2118 = vunpack.c.l.b16 %v1903
      %v2119 = vunpack.c.h.b16 %v1903
      %v2120 = vunpack.c.l.b16 %v1904
      %v2121 = vunpack.c.h.b16 %v1904
      %v2122 = vunpack.c.l.b16 %v1905
      %v2123 = vunpack.c.h.b16 %v1905
      %v2124 = vunpack.c.l.b16 %v1906
      %v2125 = vunpack.c.h.b16 %v1906
      %v2126 = vunpack.c.l.b16 %v1907
      %v2127 = vunpack.c.h.b16 %v1907
      %v2128 = vunpack.c.l.b16 %v1908
      %v2129 = vunpack.c.h.b16 %v1908
      %v2130 = vunpack.c.l.b16 %v1909
      %v2131 = vunpack.c.h.b16 %v1909
      %v2132 = vunpack.c.l.b16 %v1910
      %v2133 = vunpack.c.h.b16 %v1910
      %v2134 = vunpack.c.l.b16 %v1911
      %v2135 = vunpack.c.h.b16 %v1911
      %v2136 = vpack.c.b16 %v2074, %v2072
      %v2137 = vpack.c.b16 %v2075, %v2073
      %v2138 = vpack.c.b16 %v2078, %v2076
      %v2139 = vpack.c.b16 %v2079, %v2077
      %v2140 = vpack.c.b16 %v2082, %v2080
      %v2141 = vpack.c.b16 %v2083, %v2081
      %v2142 = vpack.c.b16 %v2086, %v2084
      %v2143 = vpack.c.b16 %v2087, %v2085
      %v2144 = vpack.c.b16 %v2090, %v2088
      %v2145 = vpack.c.b16 %v2091, %v2089
      %v2146 = vpack.c.b16 %v2094, %v2092
      %v2147 = vpack.c.b16 %v2095, %v2093
      %v2148 = vpack.c.b16 %v2098, %v2096
      %v2149 = vpack.c.b16 %v2099, %v2097
      %v2150 = vpack.c.b16 %v2102, %v2100
      %v2151 = vpack.c.b16 %v2103, %v2101
      %v2152 = vpack.c.b16 %v2106, %v2104
      %v2153 = vpack.c.b16 %v2107, %v2105
      %v2154 = vpack.c.b16 %v2110, %v2108
      %v2155 = vpack.c.b16 %v2111, %v2109
      %v2156 = vpack.c.b16 %v2114, %v2112
      %v2157 = vpack.c.b16 %v2115, %v2113
      %v2158 = vpack.c.b16 %v2118, %v2116
      %v2159 = vpack.c.b16 %v2119, %v2117
      %v2160 = vpack.c.b16 %v2122, %v2120
      %v2161 = vpack.c.b16 %v2123, %v2121
      %v2162 = vpack.c.b16 %v2126, %v2124
      %v2163 = vpack.c.b16 %v2127, %v2125
      %v2164 = vpack.c.b16 %v2130, %v2128
      %v2165 = vpack.c.b16 %v2131, %v2129
      %v2166 = vpack.c.b16 %v2134, %v2132
      %v2167 = vpack.c.b16 %v2135, %v2133
      %2200 = vmatprep.subr.bf16.mxu0 %v2137
      %2201 = vmatpush1.bf16.msra.mxu0 %v2136
      %2202 = vmatprep.subr.bf16.mxu0 %v2139
      %2203 = vmatpush1.bf16.msra.mxu0 %v2138
      %2204 = vmatprep.subr.bf16.mxu0 %v2141
      %2205 = vmatpush1.bf16.msra.mxu0 %v2140
      %2206 = vmatprep.subr.bf16.mxu0 %v2143
      %2207 = vmatpush1.bf16.msra.mxu0 %v2142
      %2208 = vmatprep.subr.bf16.mxu0 %v2145
      %2209 = vmatpush1.bf16.msra.mxu0 %v2144
      %2210 = vmatprep.subr.bf16.mxu0 %v2147
      %2211 = vmatpush1.bf16.msra.mxu0 %v2146
      %2212 = vmatprep.subr.bf16.mxu0 %v2149
      %2213 = vmatpush1.bf16.msra.mxu0 %v2148
      %2214 = vmatprep.subr.bf16.mxu0 %v2151
      %2215 = vmatpush1.bf16.msra.mxu0 %v2150
      %2216 = vmatprep.subr.bf16.mxu0 %v2153
      %2217 = vmatpush1.bf16.msra.mxu0 %v2152
      %2218 = vmatprep.subr.bf16.mxu0 %v2155
      %2219 = vmatpush1.bf16.msra.mxu0 %v2154
      %2220 = vmatprep.subr.bf16.mxu0 %v2157
      %2221 = vmatpush1.bf16.msra.mxu0 %v2156
      %2222 = vmatprep.subr.bf16.mxu0 %v2159
      %2223 = vmatpush1.bf16.msra.mxu0 %v2158
      %2224 = vmatprep.subr.bf16.mxu0 %v2161
      %2225 = vmatpush1.bf16.msra.mxu0 %v2160
      %2226 = vmatprep.subr.bf16.mxu0 %v2163
      %2227 = vmatpush1.bf16.msra.mxu0 %v2162
      %2228 = vmatprep.subr.bf16.mxu0 %v2165
      %2229 = vmatpush1.bf16.msra.mxu0 %v2164
      %2230 = vmatprep.subr.bf16.mxu0 %v2167
      %2231 = vmatpush1.bf16.msra.mxu0 %v2166
      %2232 = vmatprep.mubr.bf16.mxu0 %v1977
      %2233 = vmatmul.mubr.bf16.gmra.mrb[0].mxu0 %v1976
      %v2234 = vpop.f32.mrb[0].mxu0
      %v2235 = vadd.f32 0.0, %v2234
      %v2236 = vpop.f32.mrb[0].mxu0
      %v2237 = vadd.f32 0.0, %v2236
      %v2238 = vpop.f32.mrb[0].mxu0
      %v2239 = vadd.f32 0.0, %v2238
      %v2240 = vpop.f32.mrb[0].mxu0
      %v2241 = vadd.f32 0.0, %v2240
      %2242 = vmatprep.mubr.bf16.mxu0 %v1979
      %2243 = vmatmul.mubr.bf16.gmra.mrb[0].mxu0 %v1978
      %v2244 = vpop.f32.mrb[0].mxu0
      %v2245 = vadd.f32 0.0, %v2244
      %v2246 = vpop.f32.mrb[0].mxu0
      %v2247 = vadd.f32 0.0, %v2246
      %v2248 = vpop.f32.mrb[0].mxu0
      %v2249 = vadd.f32 0.0, %v2248
      %v2250 = vpop.f32.mrb[0].mxu0
      %v2251 = vadd.f32 0.0, %v2250
      %2252 = vmatprep.mubr.bf16.mxu0 %v1981
      %2253 = vmatmul.mubr.bf16.gmra.mrb[0].mxu0 %v1980
      %v2254 = vpop.f32.mrb[0].mxu0
      %v2255 = vadd.f32 0.0, %v2254
      %v2256 = vpop.f32.mrb[0].mxu0
      %v2257 = vadd.f32 0.0, %v2256
      %v2258 = vpop.f32.mrb[0].mxu0
      %v2259 = vadd.f32 0.0, %v2258
      %v2260 = vpop.f32.mrb[0].mxu0
      %v2261 = vadd.f32 0.0, %v2260
      %2262 = vmatprep.mubr.bf16.mxu0 %v1983
      %2263 = vmatmul.mubr.bf16.gmra.mrb[0].mxu0 %v1982
      %v2264 = vpop.f32.mrb[0].mxu0
      %v2265 = vadd.f32 0.0, %v2264
      %v2266 = vpop.f32.mrb[0].mxu0
      %v2267 = vadd.f32 0.0, %v2266
      %v2268 = vpop.f32.mrb[0].mxu0
      %v2269 = vadd.f32 0.0, %v2268
      %v2270 = vpop.f32.mrb[0].mxu0
      %v2271 = vadd.f32 0.0, %v2270
      %2272 = vmatprep.mubr.bf16.mxu0 %v1985
      %2273 = vmatmul.mubr.bf16.gmra.mrb[0].mxu0 %v1984
      %v2274 = vpop.f32.mrb[0].mxu0
      %v2275 = vadd.f32 0.0, %v2274
      %v2276 = vpop.f32.mrb[0].mxu0
      %v2277 = vadd.f32 0.0, %v2276
      %v2278 = vpop.f32.mrb[0].mxu0
      %v2279 = vadd.f32 0.0, %v2278
      %v2280 = vpop.f32.mrb[0].mxu0
      %v2281 = vadd.f32 0.0, %v2280
      %2282 = vmatprep.mubr.bf16.mxu0 %v1987
      %2283 = vmatmul.mubr.bf16.gmra.mrb[0].mxu0 %v1986
      %v2284 = vpop.f32.mrb[0].mxu0
      %v2285 = vadd.f32 0.0, %v2284
      %v2286 = vpop.f32.mrb[0].mxu0
      %v2287 = vadd.f32 0.0, %v2286
      %v2288 = vpop.f32.mrb[0].mxu0
      %v2289 = vadd.f32 0.0, %v2288
      %v2290 = vpop.f32.mrb[0].mxu0
      %v2291 = vadd.f32 0.0, %v2290
      %2292 = vmatprep.mubr.bf16.mxu0 %v1989
      %2293 = vmatmul.mubr.bf16.gmra.mrb[0].mxu0 %v1988
      %v2294 = vpop.f32.mrb[0].mxu0
      %v2295 = vadd.f32 0.0, %v2294
      %v2296 = vpop.f32.mrb[0].mxu0
      %v2297 = vadd.f32 0.0, %v2296
      %v2298 = vpop.f32.mrb[0].mxu0
      %v2299 = vadd.f32 0.0, %v2298
      %v2300 = vpop.f32.mrb[0].mxu0
      %v2301 = vadd.f32 0.0, %v2300
      %2302 = vmatprep.mubr.bf16.mxu0 %v1991
      %2303 = vmatmul.mubr.bf16.gmra.mrb[0].mxu0 %v1990
      %v2304 = vpop.f32.mrb[0].mxu0
      %v2305 = vadd.f32 0.0, %v2304
      %v2306 = vpop.f32.mrb[0].mxu0
      %v2307 = vadd.f32 0.0, %v2306
      %v2308 = vpop.f32.mrb[0].mxu0
      %v2309 = vadd.f32 0.0, %v2308
      %v2310 = vpop.f32.mrb[0].mxu0
      %v2311 = vadd.f32 0.0, %v2310
      %2312 = vmatprep.mubr.bf16.mxu0 %v1993
      %2313 = vmatmul.mubr.bf16.gmra.mrb[0].mxu0 %v1992
      %v2314 = vpop.f32.mrb[0].mxu0
      %v2315 = vadd.f32 0.0, %v2314
      %v2316 = vpop.f32.mrb[0].mxu0
      %v2317 = vadd.f32 0.0, %v2316
      %v2318 = vpop.f32.mrb[0].mxu0
      %v2319 = vadd.f32 0.0, %v2318
      %v2320 = vpop.f32.mrb[0].mxu0
      %v2321 = vadd.f32 0.0, %v2320
      %2322 = vmatprep.mubr.bf16.mxu0 %v1995
      %2323 = vmatmul.mubr.bf16.gmra.mrb[0].mxu0 %v1994
      %v2324 = vpop.f32.mrb[0].mxu0
      %v2325 = vadd.f32 0.0, %v2324
      %v2326 = vpop.f32.mrb[0].mxu0
      %v2327 = vadd.f32 0.0, %v2326
      %v2328 = vpop.f32.mrb[0].mxu0
      %v2329 = vadd.f32 0.0, %v2328
      %v2330 = vpop.f32.mrb[0].mxu0
      %v2331 = vadd.f32 0.0, %v2330
      %2332 = vmatprep.mubr.bf16.mxu0 %v1997
      %2333 = vmatmul.mubr.bf16.gmra.mrb[0].mxu0 %v1996
      %v2334 = vpop.f32.mrb[0].mxu0
      %v2335 = vadd.f32 0.0, %v2334
      %v2336 = vpop.f32.mrb[0].mxu0
      %v2337 = vadd.f32 0.0, %v2336
      %v2338 = vpop.f32.mrb[0].mxu0
      %v2339 = vadd.f32 0.0, %v2338
      %v2340 = vpop.f32.mrb[0].mxu0
      %v2341 = vadd.f32 0.0, %v2340
      %2342 = vmatprep.mubr.bf16.mxu0 %v1999
      %2343 = vmatmul.mubr.bf16.gmra.mrb[0].mxu0 %v1998
      %v2344 = vpop.f32.mrb[0].mxu0
      %v2345 = vadd.f32 0.0, %v2344
      %v2346 = vpop.f32.mrb[0].mxu0
      %v2347 = vadd.f32 0.0, %v2346
      %v2348 = vpop.f32.mrb[0].mxu0
      %v2349 = vadd.f32 0.0, %v2348
      %v2350 = vpop.f32.mrb[0].mxu0
      %v2351 = vadd.f32 0.0, %v2350
      %2352 = vmatprep.mubr.bf16.mxu0 %v2001
      %2353 = vmatmul.mubr.bf16.gmra.mrb[0].mxu0 %v2000
      %v2354 = vpop.f32.mrb[0].mxu0
      %v2355 = vadd.f32 0.0, %v2354
      %v2356 = vpop.f32.mrb[0].mxu0
      %v2357 = vadd.f32 0.0, %v2356
      %v2358 = vpop.f32.mrb[0].mxu0
      %v2359 = vadd.f32 0.0, %v2358
      %v2360 = vpop.f32.mrb[0].mxu0
      %v2361 = vadd.f32 0.0, %v2360
      %2362 = vmatprep.mubr.bf16.mxu0 %v2003
      %2363 = vmatmul.mubr.bf16.gmra.mrb[0].mxu0 %v2002
      %v2364 = vpop.f32.mrb[0].mxu0
      %v2365 = vadd.f32 0.0, %v2364
      %v2366 = vpop.f32.mrb[0].mxu0
      %v2367 = vadd.f32 0.0, %v2366
      %v2368 = vpop.f32.mrb[0].mxu0
      %v2369 = vadd.f32 0.0, %v2368
      %v2370 = vpop.f32.mrb[0].mxu0
      %v2371 = vadd.f32 0.0, %v2370
      %2372 = vmatprep.mubr.bf16.mxu0 %v2005
      %2373 = vmatmul.mubr.bf16.gmra.mrb[0].mxu0 %v2004
      %v2374 = vpop.f32.mrb[0].mxu0
      %v2375 = vadd.f32 0.0, %v2374
      %v2376 = vpop.f32.mrb[0].mxu0
      %v2377 = vadd.f32 0.0, %v2376
      %v2378 = vpop.f32.mrb[0].mxu0
      %v2379 = vadd.f32 0.0, %v2378
      %v2380 = vpop.f32.mrb[0].mxu0
      %v2381 = vadd.f32 0.0, %v2380
      %2382 = vmatprep.mubr.bf16.mxu0 %v2007
      %2383 = vmatmul.mubr.bf16.gmra.mrb[0].mxu0 %v2006
      %v2384 = vpop.f32.mrb[0].mxu0
      %v2385 = vadd.f32 0.0, %v2384
      %v2386 = vpop.f32.mrb[0].mxu0
      %v2387 = vadd.f32 0.0, %v2386
      %v2388 = vpop.f32.mrb[0].mxu0
      %v2389 = vadd.f32 0.0, %v2388
      %v2390 = vpop.f32.mrb[0].mxu0
      %v2391 = vadd.f32 0.0, %v2390
      %2392 = vdwg.mxu0
      %v2393 = vadd.f32 %v1590, %v2235
      %v2394 = vadd.f32 %v1592, %v2237
      %v2395 = vadd.f32 %v1594, %v2239
      %v2396 = vadd.f32 %v1596, %v2241
      %v2397 = vadd.f32 %v1600, %v2245
      %v2398 = vadd.f32 %v1602, %v2247
      %v2399 = vadd.f32 %v1604, %v2249
      %v2400 = vadd.f32 %v1606, %v2251
      %v2401 = vadd.f32 %v1610, %v2255
      %v2402 = vadd.f32 %v1612, %v2257
      %v2403 = vadd.f32 %v1614, %v2259
      %v2404 = vadd.f32 %v1616, %v2261
      %v2405 = vadd.f32 %v1620, %v2265
      %v2406 = vadd.f32 %v1622, %v2267
      %v2407 = vadd.f32 %v1624, %v2269
      %v2408 = vadd.f32 %v1626, %v2271
      %v2409 = vadd.f32 %v1630, %v2275
      %v2410 = vadd.f32 %v1632, %v2277
      %v2411 = vadd.f32 %v1634, %v2279
      %v2412 = vadd.f32 %v1636, %v2281
      %v2413 = vadd.f32 %v1640, %v2285
      %v2414 = vadd.f32 %v1642, %v2287
      %v2415 = vadd.f32 %v1644, %v2289
      %v2416 = vadd.f32 %v1646, %v2291
      %v2417 = vadd.f32 %v1650, %v2295
      %v2418 = vadd.f32 %v1652, %v2297
      %v2419 = vadd.f32 %v1654, %v2299
      %v2420 = vadd.f32 %v1656, %v2301
      %v2421 = vadd.f32 %v1660, %v2305
      %v2422 = vadd.f32 %v1662, %v2307
      %v2423 = vadd.f32 %v1664, %v2309
      %v2424 = vadd.f32 %v1666, %v2311
      %v2425 = vadd.f32 %v1670, %v2315
      %v2426 = vadd.f32 %v1672, %v2317
      %v2427 = vadd.f32 %v1674, %v2319
      %v2428 = vadd.f32 %v1676, %v2321
      %v2429 = vadd.f32 %v1680, %v2325
      %v2430 = vadd.f32 %v1682, %v2327
      %v2431 = vadd.f32 %v1684, %v2329
      %v2432 = vadd.f32 %v1686, %v2331
      %v2433 = vadd.f32 %v1690, %v2335
      %v2434 = vadd.f32 %v1692, %v2337
      %v2435 = vadd.f32 %v1694, %v2339
      %v2436 = vadd.f32 %v1696, %v2341
      %v2437 = vadd.f32 %v1700, %v2345
      %v2438 = vadd.f32 %v1702, %v2347
      %v2439 = vadd.f32 %v1704, %v2349
      %v2440 = vadd.f32 %v1706, %v2351
      %v2441 = vadd.f32 %v1710, %v2355
      %v2442 = vadd.f32 %v1712, %v2357
      %v2443 = vadd.f32 %v1714, %v2359
      %v2444 = vadd.f32 %v1716, %v2361
      %v2445 = vadd.f32 %v1720, %v2365
      %v2446 = vadd.f32 %v1722, %v2367
      %v2447 = vadd.f32 %v1724, %v2369
      %v2448 = vadd.f32 %v1726, %v2371
      %v2449 = vadd.f32 %v1730, %v2375
      %v2450 = vadd.f32 %v1732, %v2377
      %v2451 = vadd.f32 %v1734, %v2379
      %v2452 = vadd.f32 %v1736, %v2381
      %v2453 = vadd.f32 %v1740, %v2385
      %v2454 = vadd.f32 %v1742, %v2387
      %v2455 = vadd.f32 %v1744, %v2389
      %v2456 = vadd.f32 %v1746, %v2391
      %s2457 = scalar_lea.vmem %s1, 768
      %v2458 = vld [vmem:[%s2457] sm:$0xff]
      %v2459 = vld [vmem:[%s2457 + $0x8] sm:$0xff]
      %v2460 = vld [vmem:[%s2457 + $0x10] sm:$0xff]
      %v2461 = vld [vmem:[%s2457 + $0x18] sm:$0xff]
      %v2462 = vld [vmem:[%s2457 + $0x20] sm:$0xff]
      %v2463 = vld [vmem:[%s2457 + $0x28] sm:$0xff]
      %v2464 = vld [vmem:[%s2457 + $0x30] sm:$0xff]
      %v2465 = vld [vmem:[%s2457 + $0x38] sm:$0xff]
      %v2466 = vld [vmem:[%s2457 + $0x40] sm:$0xff]
      %v2467 = vld [vmem:[%s2457 + $0x48] sm:$0xff]
      %v2468 = vld [vmem:[%s2457 + $0x50] sm:$0xff]
      %v2469 = vld [vmem:[%s2457 + $0x58] sm:$0xff]
      %v2470 = vld [vmem:[%s2457 + $0x60] sm:$0xff]
      %v2471 = vld [vmem:[%s2457 + $0x68] sm:$0xff]
      %v2472 = vld [vmem:[%s2457 + $0x70] sm:$0xff]
      %v2473 = vld [vmem:[%s2457 + $0x78] sm:$0xff]
      %v2474 = vld [vmem:[%s2457 + $0x80] sm:$0xff]
      %v2475 = vld [vmem:[%s2457 + $0x88] sm:$0xff]
      %v2476 = vld [vmem:[%s2457 + $0x90] sm:$0xff]
      %v2477 = vld [vmem:[%s2457 + $0x98] sm:$0xff]
      %v2478 = vld [vmem:[%s2457 + $0xa0] sm:$0xff]
      %v2479 = vld [vmem:[%s2457 + $0xa8] sm:$0xff]
      %v2480 = vld [vmem:[%s2457 + $0xb0] sm:$0xff]
      %v2481 = vld [vmem:[%s2457 + $0xb8] sm:$0xff]
      %v2482 = vld [vmem:[%s2457 + $0xc0] sm:$0xff]
      %v2483 = vld [vmem:[%s2457 + $0xc8] sm:$0xff]
      %v2484 = vld [vmem:[%s2457 + $0xd0] sm:$0xff]
      %v2485 = vld [vmem:[%s2457 + $0xd8] sm:$0xff]
      %v2486 = vld [vmem:[%s2457 + $0xe0] sm:$0xff]
      %v2487 = vld [vmem:[%s2457 + $0xe8] sm:$0xff]
      %v2488 = vld [vmem:[%s2457 + $0xf0] sm:$0xff]
      %v2489 = vld [vmem:[%s2457 + $0xf8] sm:$0xff]
      %v2492 = vunpack.c.l.b16 %v296
      %v2493 = vunpack.c.h.b16 %v296
      %v2494 = vunpack.c.l.b16 %v297
      %v2495 = vunpack.c.h.b16 %v297
      %v2496 = vpack.c.b16 %v2494, %v2492
      %v2497 = vpack.c.b16 %v2495, %v2493
      %v2532 = vunpack.c.l.b16 %v2458
      %v2533 = vunpack.c.h.b16 %v2458
      %v2534 = vunpack.c.l.b16 %v2459
      %v2535 = vunpack.c.h.b16 %v2459
      %v2536 = vunpack.c.l.b16 %v2460
      %v2537 = vunpack.c.h.b16 %v2460
      %v2538 = vunpack.c.l.b16 %v2461
      %v2539 = vunpack.c.h.b16 %v2461
      %v2540 = vunpack.c.l.b16 %v2462
      %v2541 = vunpack.c.h.b16 %v2462
      %v2542 = vunpack.c.l.b16 %v2463
      %v2543 = vunpack.c.h.b16 %v2463
      %v2544 = vunpack.c.l.b16 %v2464
      %v2545 = vunpack.c.h.b16 %v2464
      %v2546 = vunpack.c.l.b16 %v2465
      %v2547 = vunpack.c.h.b16 %v2465
      %v2548 = vunpack.c.l.b16 %v2466
      %v2549 = vunpack.c.h.b16 %v2466
      %v2550 = vunpack.c.l.b16 %v2467
      %v2551 = vunpack.c.h.b16 %v2467
      %v2552 = vunpack.c.l.b16 %v2468
      %v2553 = vunpack.c.h.b16 %v2468
      %v2554 = vunpack.c.l.b16 %v2469
      %v2555 = vunpack.c.h.b16 %v2469
      %v2556 = vunpack.c.l.b16 %v2470
      %v2557 = vunpack.c.h.b16 %v2470
      %v2558 = vunpack.c.l.b16 %v2471
      %v2559 = vunpack.c.h.b16 %v2471
      %v2560 = vunpack.c.l.b16 %v2472
      %v2561 = vunpack.c.h.b16 %v2472
      %v2562 = vunpack.c.l.b16 %v2473
      %v2563 = vunpack.c.h.b16 %v2473
      %v2564 = vunpack.c.l.b16 %v2474
      %v2565 = vunpack.c.h.b16 %v2474
      %v2566 = vunpack.c.l.b16 %v2475
      %v2567 = vunpack.c.h.b16 %v2475
      %v2568 = vunpack.c.l.b16 %v2476
      %v2569 = vunpack.c.h.b16 %v2476
      %v2570 = vunpack.c.l.b16 %v2477
      %v2571 = vunpack.c.h.b16 %v2477
      %v2572 = vunpack.c.l.b16 %v2478
      %v2573 = vunpack.c.h.b16 %v2478
      %v2574 = vunpack.c.l.b16 %v2479
      %v2575 = vunpack.c.h.b16 %v2479
      %v2576 = vunpack.c.l.b16 %v2480
      %v2577 = vunpack.c.h.b16 %v2480
      %v2578 = vunpack.c.l.b16 %v2481
      %v2579 = vunpack.c.h.b16 %v2481
      %v2580 = vunpack.c.l.b16 %v2482
      %v2581 = vunpack.c.h.b16 %v2482
      %v2582 = vunpack.c.l.b16 %v2483
      %v2583 = vunpack.c.h.b16 %v2483
      %v2584 = vunpack.c.l.b16 %v2484
      %v2585 = vunpack.c.h.b16 %v2484
      %v2586 = vunpack.c.l.b16 %v2485
      %v2587 = vunpack.c.h.b16 %v2485
      %v2588 = vunpack.c.l.b16 %v2486
      %v2589 = vunpack.c.h.b16 %v2486
      %v2590 = vunpack.c.l.b16 %v2487
      %v2591 = vunpack.c.h.b16 %v2487
      %v2592 = vunpack.c.l.b16 %v2488
      %v2593 = vunpack.c.h.b16 %v2488
      %v2594 = vunpack.c.l.b16 %v2489
      %v2595 = vunpack.c.h.b16 %v2489
      %v2596 = vpack.c.b16 %v2534, %v2532
      %v2597 = vpack.c.b16 %v2535, %v2533
      %v2598 = vpack.c.b16 %v2538, %v2536
      %v2599 = vpack.c.b16 %v2539, %v2537
      %v2600 = vpack.c.b16 %v2542, %v2540
      %v2601 = vpack.c.b16 %v2543, %v2541
      %v2602 = vpack.c.b16 %v2546, %v2544
      %v2603 = vpack.c.b16 %v2547, %v2545
      %v2604 = vpack.c.b16 %v2550, %v2548
      %v2605 = vpack.c.b16 %v2551, %v2549
      %v2606 = vpack.c.b16 %v2554, %v2552
      %v2607 = vpack.c.b16 %v2555, %v2553
      %v2608 = vpack.c.b16 %v2558, %v2556
      %v2609 = vpack.c.b16 %v2559, %v2557
      %v2610 = vpack.c.b16 %v2562, %v2560
      %v2611 = vpack.c.b16 %v2563, %v2561
      %v2612 = vpack.c.b16 %v2566, %v2564
      %v2613 = vpack.c.b16 %v2567, %v2565
      %v2614 = vpack.c.b16 %v2570, %v2568
      %v2615 = vpack.c.b16 %v2571, %v2569
      %v2616 = vpack.c.b16 %v2574, %v2572
      %v2617 = vpack.c.b16 %v2575, %v2573
      %v2618 = vpack.c.b16 %v2578, %v2576
      %v2619 = vpack.c.b16 %v2579, %v2577
      %v2620 = vpack.c.b16 %v2582, %v2580
      %v2621 = vpack.c.b16 %v2583, %v2581
      %v2622 = vpack.c.b16 %v2586, %v2584
      %v2623 = vpack.c.b16 %v2587, %v2585
      %v2624 = vpack.c.b16 %v2590, %v2588
      %v2625 = vpack.c.b16 %v2591, %v2589
      %v2626 = vpack.c.b16 %v2594, %v2592
      %v2627 = vpack.c.b16 %v2595, %v2593
      %2660 = vmatprep.subr.bf16.mxu0 %v2597
      %2661 = vmatpush1.bf16.msra.mxu0 %v2596
      %2662 = vmatprep.subr.bf16.mxu0 %v2599
      %2663 = vmatpush1.bf16.msra.mxu0 %v2598
      %2664 = vmatprep.subr.bf16.mxu0 %v2601
      %2665 = vmatpush1.bf16.msra.mxu0 %v2600
      %2666 = vmatprep.subr.bf16.mxu0 %v2603
      %2667 = vmatpush1.bf16.msra.mxu0 %v2602
      %2668 = vmatprep.subr.bf16.mxu0 %v2605
      %2669 = vmatpush1.bf16.msra.mxu0 %v2604
      %2670 = vmatprep.subr.bf16.mxu0 %v2607
      %2671 = vmatpush1.bf16.msra.mxu0 %v2606
      %2672 = vmatprep.subr.bf16.mxu0 %v2609
      %2673 = vmatpush1.bf16.msra.mxu0 %v2608
      %2674 = vmatprep.subr.bf16.mxu0 %v2611
      %2675 = vmatpush1.bf16.msra.mxu0 %v2610
      %2676 = vmatprep.subr.bf16.mxu0 %v2613
      %2677 = vmatpush1.bf16.msra.mxu0 %v2612
      %2678 = vmatprep.subr.bf16.mxu0 %v2615
      %2679 = vmatpush1.bf16.msra.mxu0 %v2614
      %2680 = vmatprep.subr.bf16.mxu0 %v2617
      %2681 = vmatpush1.bf16.msra.mxu0 %v2616
      %2682 = vmatprep.subr.bf16.mxu0 %v2619
      %2683 = vmatpush1.bf16.msra.mxu0 %v2618
      %2684 = vmatprep.subr.bf16.mxu0 %v2621
      %2685 = vmatpush1.bf16.msra.mxu0 %v2620
      %2686 = vmatprep.subr.bf16.mxu0 %v2623
      %2687 = vmatpush1.bf16.msra.mxu0 %v2622
      %2688 = vmatprep.subr.bf16.mxu0 %v2625
      %2689 = vmatpush1.bf16.msra.mxu0 %v2624
      %2690 = vmatprep.subr.bf16.mxu0 %v2627
      %2691 = vmatpush1.bf16.msra.mxu0 %v2626
      %2692 = vmatprep.mubr.bf16.mxu0 %v1334
      %2693 = vmatmul.mubr.bf16.gmra.mrb[0].mxu0 %v1333
      %v2694 = vpop.f32.mrb[0].mxu0
      %v2695 = vadd.f32 0.0, %v2694
      %v2696 = vpop.f32.mrb[0].mxu0
      %v2697 = vadd.f32 0.0, %v2696
      %v2698 = vpop.f32.mrb[0].mxu0
      %v2699 = vadd.f32 0.0, %v2698
      %v2700 = vpop.f32.mrb[0].mxu0
      %v2701 = vadd.f32 0.0, %v2700
      %2702 = vmatprep.mubr.bf16.mxu0 %v1336
      %2703 = vmatmul.mubr.bf16.gmra.mrb[0].mxu0 %v1335
      %v2704 = vpop.f32.mrb[0].mxu0
      %v2705 = vadd.f32 0.0, %v2704
      %v2706 = vpop.f32.mrb[0].mxu0
      %v2707 = vadd.f32 0.0, %v2706
      %v2708 = vpop.f32.mrb[0].mxu0
      %v2709 = vadd.f32 0.0, %v2708
      %v2710 = vpop.f32.mrb[0].mxu0
      %v2711 = vadd.f32 0.0, %v2710
      %2712 = vmatprep.mubr.bf16.mxu0 %v1338
      %2713 = vmatmul.mubr.bf16.gmra.mrb[0].mxu0 %v1337
      %v2714 = vpop.f32.mrb[0].mxu0
      %v2715 = vadd.f32 0.0, %v2714
      %v2716 = vpop.f32.mrb[0].mxu0
      %v2717 = vadd.f32 0.0, %v2716
      %v2718 = vpop.f32.mrb[0].mxu0
      %v2719 = vadd.f32 0.0, %v2718
      %v2720 = vpop.f32.mrb[0].mxu0
      %v2721 = vadd.f32 0.0, %v2720
      %2722 = vmatprep.mubr.bf16.mxu0 %v1340
      %2723 = vmatmul.mubr.bf16.gmra.mrb[0].mxu0 %v1339
      %v2724 = vpop.f32.mrb[0].mxu0
      %v2725 = vadd.f32 0.0, %v2724
      %v2726 = vpop.f32.mrb[0].mxu0
      %v2727 = vadd.f32 0.0, %v2726
      %v2728 = vpop.f32.mrb[0].mxu0
      %v2729 = vadd.f32 0.0, %v2728
      %v2730 = vpop.f32.mrb[0].mxu0
      %v2731 = vadd.f32 0.0, %v2730
      %2732 = vmatprep.mubr.bf16.mxu0 %v1342
      %2733 = vmatmul.mubr.bf16.gmra.mrb[0].mxu0 %v1341
      %v2734 = vpop.f32.mrb[0].mxu0
      %v2735 = vadd.f32 0.0, %v2734
      %v2736 = vpop.f32.mrb[0].mxu0
      %v2737 = vadd.f32 0.0, %v2736
      %v2738 = vpop.f32.mrb[0].mxu0
      %v2739 = vadd.f32 0.0, %v2738
      %v2740 = vpop.f32.mrb[0].mxu0
      %v2741 = vadd.f32 0.0, %v2740
      %2742 = vmatprep.mubr.bf16.mxu0 %v1344
      %2743 = vmatmul.mubr.bf16.gmra.mrb[0].mxu0 %v1343
      %v2744 = vpop.f32.mrb[0].mxu0
      %v2745 = vadd.f32 0.0, %v2744
      %v2746 = vpop.f32.mrb[0].mxu0
      %v2747 = vadd.f32 0.0, %v2746
      %v2748 = vpop.f32.mrb[0].mxu0
      %v2749 = vadd.f32 0.0, %v2748
      %v2750 = vpop.f32.mrb[0].mxu0
      %v2751 = vadd.f32 0.0, %v2750
      %2752 = vmatprep.mubr.bf16.mxu0 %v1346
      %2753 = vmatmul.mubr.bf16.gmra.mrb[0].mxu0 %v1345
      %v2754 = vpop.f32.mrb[0].mxu0
      %v2755 = vadd.f32 0.0, %v2754
      %v2756 = vpop.f32.mrb[0].mxu0
      %v2757 = vadd.f32 0.0, %v2756
      %v2758 = vpop.f32.mrb[0].mxu0
      %v2759 = vadd.f32 0.0, %v2758
      %v2760 = vpop.f32.mrb[0].mxu0
      %v2761 = vadd.f32 0.0, %v2760
      %2762 = vmatprep.mubr.bf16.mxu0 %v1348
      %2763 = vmatmul.mubr.bf16.gmra.mrb[0].mxu0 %v1347
      %v2764 = vpop.f32.mrb[0].mxu0
      %v2765 = vadd.f32 0.0, %v2764
      %v2766 = vpop.f32.mrb[0].mxu0
      %v2767 = vadd.f32 0.0, %v2766
      %v2768 = vpop.f32.mrb[0].mxu0
      %v2769 = vadd.f32 0.0, %v2768
      %v2770 = vpop.f32.mrb[0].mxu0
      %v2771 = vadd.f32 0.0, %v2770
      %2772 = vmatprep.mubr.bf16.mxu0 %v1350
      %2773 = vmatmul.mubr.bf16.gmra.mrb[0].mxu0 %v1349
      %v2774 = vpop.f32.mrb[0].mxu0
      %v2775 = vadd.f32 0.0, %v2774
      %v2776 = vpop.f32.mrb[0].mxu0
      %v2777 = vadd.f32 0.0, %v2776
      %v2778 = vpop.f32.mrb[0].mxu0
      %v2779 = vadd.f32 0.0, %v2778
      %v2780 = vpop.f32.mrb[0].mxu0
      %v2781 = vadd.f32 0.0, %v2780
      %2782 = vmatprep.mubr.bf16.mxu0 %v1352
      %2783 = vmatmul.mubr.bf16.gmra.mrb[0].mxu0 %v1351
      %v2784 = vpop.f32.mrb[0].mxu0
      %v2785 = vadd.f32 0.0, %v2784
      %v2786 = vpop.f32.mrb[0].mxu0
      %v2787 = vadd.f32 0.0, %v2786
      %v2788 = vpop.f32.mrb[0].mxu0
      %v2789 = vadd.f32 0.0, %v2788
      %v2790 = vpop.f32.mrb[0].mxu0
      %v2791 = vadd.f32 0.0, %v2790
      %2792 = vmatprep.mubr.bf16.mxu0 %v1354
      %2793 = vmatmul.mubr.bf16.gmra.mrb[0].mxu0 %v1353
      %v2794 = vpop.f32.mrb[0].mxu0
      %v2795 = vadd.f32 0.0, %v2794
      %v2796 = vpop.f32.mrb[0].mxu0
      %v2797 = vadd.f32 0.0, %v2796
      %v2798 = vpop.f32.mrb[0].mxu0
      %v2799 = vadd.f32 0.0, %v2798
      %v2800 = vpop.f32.mrb[0].mxu0
      %v2801 = vadd.f32 0.0, %v2800
      %2802 = vmatprep.mubr.bf16.mxu0 %v1356
      %2803 = vmatmul.mubr.bf16.gmra.mrb[0].mxu0 %v1355
      %v2804 = vpop.f32.mrb[0].mxu0
      %v2805 = vadd.f32 0.0, %v2804
      %v2806 = vpop.f32.mrb[0].mxu0
      %v2807 = vadd.f32 0.0, %v2806
      %v2808 = vpop.f32.mrb[0].mxu0
      %v2809 = vadd.f32 0.0, %v2808
      %v2810 = vpop.f32.mrb[0].mxu0
      %v2811 = vadd.f32 0.0, %v2810
      %2812 = vmatprep.mubr.bf16.mxu0 %v1358
      %2813 = vmatmul.mubr.bf16.gmra.mrb[0].mxu0 %v1357
      %v2814 = vpop.f32.mrb[0].mxu0
      %v2815 = vadd.f32 0.0, %v2814
      %v2816 = vpop.f32.mrb[0].mxu0
      %v2817 = vadd.f32 0.0, %v2816
      %v2818 = vpop.f32.mrb[0].mxu0
      %v2819 = vadd.f32 0.0, %v2818
      %v2820 = vpop.f32.mrb[0].mxu0
      %v2821 = vadd.f32 0.0, %v2820
      %2822 = vmatprep.mubr.bf16.mxu0 %v1360
      %2823 = vmatmul.mubr.bf16.gmra.mrb[0].mxu0 %v1359
      %v2824 = vpop.f32.mrb[0].mxu0
      %v2825 = vadd.f32 0.0, %v2824
      %v2826 = vpop.f32.mrb[0].mxu0
      %v2827 = vadd.f32 0.0, %v2826
      %v2828 = vpop.f32.mrb[0].mxu0
      %v2829 = vadd.f32 0.0, %v2828
      %v2830 = vpop.f32.mrb[0].mxu0
      %v2831 = vadd.f32 0.0, %v2830
      %2832 = vmatprep.mubr.bf16.mxu0 %v1362
      %2833 = vmatmul.mubr.bf16.gmra.mrb[0].mxu0 %v1361
      %v2834 = vpop.f32.mrb[0].mxu0
      %v2835 = vadd.f32 0.0, %v2834
      %v2836 = vpop.f32.mrb[0].mxu0
      %v2837 = vadd.f32 0.0, %v2836
      %v2838 = vpop.f32.mrb[0].mxu0
      %v2839 = vadd.f32 0.0, %v2838
      %v2840 = vpop.f32.mrb[0].mxu0
      %v2841 = vadd.f32 0.0, %v2840
      %2842 = vmatprep.mubr.bf16.mxu0 %v2497
      %2843 = vmatmul.mubr.bf16.gmra.mrb[0].mxu0 %v2496
      %v2844 = vpop.f32.mrb[0].mxu0
      %v2845 = vadd.f32 0.0, %v2844
      %v2846 = vpop.f32.mrb[0].mxu0
      %v2847 = vadd.f32 0.0, %v2846
      %v2848 = vpop.f32.mrb[0].mxu0
      %v2849 = vadd.f32 0.0, %v2848
      %v2850 = vpop.f32.mrb[0].mxu0
      %v2851 = vadd.f32 0.0, %v2850
      %2852 = vdwg.mxu0
      %v2853 = vadd.f32 %v2393, %v2695
      %v2854 = vadd.f32 %v2394, %v2697
      %v2855 = vadd.f32 %v2395, %v2699
      %v2856 = vadd.f32 %v2396, %v2701
      %v2857 = vadd.f32 %v2397, %v2705
      %v2858 = vadd.f32 %v2398, %v2707
      %v2859 = vadd.f32 %v2399, %v2709
      %v2860 = vadd.f32 %v2400, %v2711
      %v2861 = vadd.f32 %v2401, %v2715
      %v2862 = vadd.f32 %v2402, %v2717
      %v2863 = vadd.f32 %v2403, %v2719
      %v2864 = vadd.f32 %v2404, %v2721
      %v2865 = vadd.f32 %v2405, %v2725
      %v2866 = vadd.f32 %v2406, %v2727
      %v2867 = vadd.f32 %v2407, %v2729
      %v2868 = vadd.f32 %v2408, %v2731
      %v2869 = vadd.f32 %v2409, %v2735
      %v2870 = vadd.f32 %v2410, %v2737
      %v2871 = vadd.f32 %v2411, %v2739
      %v2872 = vadd.f32 %v2412, %v2741
      %v2873 = vadd.f32 %v2413, %v2745
      %v2874 = vadd.f32 %v2414, %v2747
      %v2875 = vadd.f32 %v2415, %v2749
      %v2876 = vadd.f32 %v2416, %v2751
      %v2877 = vadd.f32 %v2417, %v2755
      %v2878 = vadd.f32 %v2418, %v2757
      %v2879 = vadd.f32 %v2419, %v2759
      %v2880 = vadd.f32 %v2420, %v2761
      %v2881 = vadd.f32 %v2421, %v2765
      %v2882 = vadd.f32 %v2422, %v2767
      %v2883 = vadd.f32 %v2423, %v2769
      %v2884 = vadd.f32 %v2424, %v2771
      %v2885 = vadd.f32 %v2425, %v2775
      %v2886 = vadd.f32 %v2426, %v2777
      %v2887 = vadd.f32 %v2427, %v2779
      %v2888 = vadd.f32 %v2428, %v2781
      %v2889 = vadd.f32 %v2429, %v2785
      %v2890 = vadd.f32 %v2430, %v2787
      %v2891 = vadd.f32 %v2431, %v2789
      %v2892 = vadd.f32 %v2432, %v2791
      %v2893 = vadd.f32 %v2433, %v2795
      %v2894 = vadd.f32 %v2434, %v2797
      %v2895 = vadd.f32 %v2435, %v2799
      %v2896 = vadd.f32 %v2436, %v2801
      %v2897 = vadd.f32 %v2437, %v2805
      %v2898 = vadd.f32 %v2438, %v2807
      %v2899 = vadd.f32 %v2439, %v2809
      %v2900 = vadd.f32 %v2440, %v2811
      %v2901 = vadd.f32 %v2441, %v2815
      %v2902 = vadd.f32 %v2442, %v2817
      %v2903 = vadd.f32 %v2443, %v2819
      %v2904 = vadd.f32 %v2444, %v2821
      %v2905 = vadd.f32 %v2445, %v2825
      %v2906 = vadd.f32 %v2446, %v2827
      %v2907 = vadd.f32 %v2447, %v2829
      %v2908 = vadd.f32 %v2448, %v2831
      %v2909 = vadd.f32 %v2449, %v2835
      %v2910 = vadd.f32 %v2450, %v2837
      %v2911 = vadd.f32 %v2451, %v2839
      %v2912 = vadd.f32 %v2452, %v2841
      %v2913 = vadd.f32 %v2453, %v2845
      %v2914 = vadd.f32 %v2454, %v2847
      %v2915 = vadd.f32 %v2455, %v2849
      %v2916 = vadd.f32 %v2456, %v2851
      %v2918 = vshrl.u32 %v296, 16
      %v2920 = vrot.slane %v2918, 4
      %v2921 = vshll.u32 %v296, 16
      %v2923 = vrot.slane %v2921, 5
      %v2924 = vor.u32 %v2920, %v2923
      %v2925 = vrot.slane %v2924, 4
      %v2927 = vshll.u32 %v297, 16
      %v2929 = vrot.slane %v2927, 5
      %v2930 = vsel %vm336, %v2925, %v2929
      %v2931 = vshrl.u32 %v297, 16
      %v2933 = vrot.slane %v2931, 4
      %v2934 = vor.u32 %v2933, %v2929
      %v2935 = vrot.slane %v2934, 4
      %v2937 = vshll.u32 %v298, 16
      %v2939 = vrot.slane %v2937, 5
      %v2940 = vsel %vm336, %v2935, %v2939
      %s2941 = scalar_lea.vmem %s1, 1024
      %v2942 = vld [vmem:[%s2941] sm:$0xff]
      %v2943 = vld [vmem:[%s2941 + $0x8] sm:$0xff]
      %v2944 = vld [vmem:[%s2941 + $0x10] sm:$0xff]
      %v2945 = vld [vmem:[%s2941 + $0x18] sm:$0xff]
      %v2946 = vld [vmem:[%s2941 + $0x20] sm:$0xff]
      %v2947 = vld [vmem:[%s2941 + $0x28] sm:$0xff]
      %v2948 = vld [vmem:[%s2941 + $0x30] sm:$0xff]
      %v2949 = vld [vmem:[%s2941 + $0x38] sm:$0xff]
      %v2950 = vld [vmem:[%s2941 + $0x40] sm:$0xff]
      %v2951 = vld [vmem:[%s2941 + $0x48] sm:$0xff]
      %v2952 = vld [vmem:[%s2941 + $0x50] sm:$0xff]
      %v2953 = vld [vmem:[%s2941 + $0x58] sm:$0xff]
      %v2954 = vld [vmem:[%s2941 + $0x60] sm:$0xff]
      %v2955 = vld [vmem:[%s2941 + $0x68] sm:$0xff]
      %v2956 = vld [vmem:[%s2941 + $0x70] sm:$0xff]
      %v2957 = vld [vmem:[%s2941 + $0x78] sm:$0xff]
      %v2958 = vld [vmem:[%s2941 + $0x80] sm:$0xff]
      %v2959 = vld [vmem:[%s2941 + $0x88] sm:$0xff]
      %v2960 = vld [vmem:[%s2941 + $0x90] sm:$0xff]
      %v2961 = vld [vmem:[%s2941 + $0x98] sm:$0xff]
      %v2962 = vld [vmem:[%s2941 + $0xa0] sm:$0xff]
      %v2963 = vld [vmem:[%s2941 + $0xa8] sm:$0xff]
      %v2964 = vld [vmem:[%s2941 + $0xb0] sm:$0xff]
      %v2965 = vld [vmem:[%s2941 + $0xb8] sm:$0xff]
      %v2966 = vld [vmem:[%s2941 + $0xc0] sm:$0xff]
      %v2967 = vld [vmem:[%s2941 + $0xc8] sm:$0xff]
      %v2968 = vld [vmem:[%s2941 + $0xd0] sm:$0xff]
      %v2969 = vld [vmem:[%s2941 + $0xd8] sm:$0xff]
      %v2970 = vld [vmem:[%s2941 + $0xe0] sm:$0xff]
      %v2971 = vld [vmem:[%s2941 + $0xe8] sm:$0xff]
      %v2972 = vld [vmem:[%s2941 + $0xf0] sm:$0xff]
      %v2973 = vld [vmem:[%s2941 + $0xf8] sm:$0xff]
      %v2974 = vunpack.c.l.b16 %v2930
      %v2975 = vunpack.c.h.b16 %v2930
      %v2976 = vunpack.c.l.b16 %v2940
      %v2977 = vunpack.c.h.b16 %v2940
      %v2978 = vpack.c.b16 %v2976, %v2974
      %v2979 = vpack.c.b16 %v2977, %v2975
      %v3014 = vunpack.c.l.b16 %v2942
      %v3015 = vunpack.c.h.b16 %v2942
      %v3016 = vunpack.c.l.b16 %v2943
      %v3017 = vunpack.c.h.b16 %v2943
      %v3018 = vunpack.c.l.b16 %v2944
      %v3019 = vunpack.c.h.b16 %v2944
      %v3020 = vunpack.c.l.b16 %v2945
      %v3021 = vunpack.c.h.b16 %v2945
      %v3022 = vunpack.c.l.b16 %v2946
      %v3023 = vunpack.c.h.b16 %v2946
      %v3024 = vunpack.c.l.b16 %v2947
      %v3025 = vunpack.c.h.b16 %v2947
      %v3026 = vunpack.c.l.b16 %v2948
      %v3027 = vunpack.c.h.b16 %v2948
      %v3028 = vunpack.c.l.b16 %v2949
      %v3029 = vunpack.c.h.b16 %v2949
      %v3030 = vunpack.c.l.b16 %v2950
      %v3031 = vunpack.c.h.b16 %v2950
      %v3032 = vunpack.c.l.b16 %v2951
      %v3033 = vunpack.c.h.b16 %v2951
      %v3034 = vunpack.c.l.b16 %v2952
      %v3035 = vunpack.c.h.b16 %v2952
      %v3036 = vunpack.c.l.b16 %v2953
      %v3037 = vunpack.c.h.b16 %v2953
      %v3038 = vunpack.c.l.b16 %v2954
      %v3039 = vunpack.c.h.b16 %v2954
      %v3040 = vunpack.c.l.b16 %v2955
      %v3041 = vunpack.c.h.b16 %v2955
      %v3042 = vunpack.c.l.b16 %v2956
      %v3043 = vunpack.c.h.b16 %v2956
      %v3044 = vunpack.c.l.b16 %v2957
      %v3045 = vunpack.c.h.b16 %v2957
      %v3046 = vunpack.c.l.b16 %v2958
      %v3047 = vunpack.c.h.b16 %v2958
      %v3048 = vunpack.c.l.b16 %v2959
      %v3049 = vunpack.c.h.b16 %v2959
      %v3050 = vunpack.c.l.b16 %v2960
      %v3051 = vunpack.c.h.b16 %v2960
      %v3052 = vunpack.c.l.b16 %v2961
      %v3053 = vunpack.c.h.b16 %v2961
      %v3054 = vunpack.c.l.b16 %v2962
      %v3055 = vunpack.c.h.b16 %v2962
      %v3056 = vunpack.c.l.b16 %v2963
      %v3057 = vunpack.c.h.b16 %v2963
      %v3058 = vunpack.c.l.b16 %v2964
      %v3059 = vunpack.c.h.b16 %v2964
      %v3060 = vunpack.c.l.b16 %v2965
      %v3061 = vunpack.c.h.b16 %v2965
      %v3062 = vunpack.c.l.b16 %v2966
      %v3063 = vunpack.c.h.b16 %v2966
      %v3064 = vunpack.c.l.b16 %v2967
      %v3065 = vunpack.c.h.b16 %v2967
      %v3066 = vunpack.c.l.b16 %v2968
      %v3067 = vunpack.c.h.b16 %v2968
      %v3068 = vunpack.c.l.b16 %v2969
      %v3069 = vunpack.c.h.b16 %v2969
      %v3070 = vunpack.c.l.b16 %v2970
      %v3071 = vunpack.c.h.b16 %v2970
      %v3072 = vunpack.c.l.b16 %v2971
      %v3073 = vunpack.c.h.b16 %v2971
      %v3074 = vunpack.c.l.b16 %v2972
      %v3075 = vunpack.c.h.b16 %v2972
      %v3076 = vunpack.c.l.b16 %v2973
      %v3077 = vunpack.c.h.b16 %v2973
      %v3078 = vpack.c.b16 %v3016, %v3014
      %v3079 = vpack.c.b16 %v3017, %v3015
      %v3080 = vpack.c.b16 %v3020, %v3018
      %v3081 = vpack.c.b16 %v3021, %v3019
      %v3082 = vpack.c.b16 %v3024, %v3022
      %v3083 = vpack.c.b16 %v3025, %v3023
      %v3084 = vpack.c.b16 %v3028, %v3026
      %v3085 = vpack.c.b16 %v3029, %v3027
      %v3086 = vpack.c.b16 %v3032, %v3030
      %v3087 = vpack.c.b16 %v3033, %v3031
      %v3088 = vpack.c.b16 %v3036, %v3034
      %v3089 = vpack.c.b16 %v3037, %v3035
      %v3090 = vpack.c.b16 %v3040, %v3038
      %v3091 = vpack.c.b16 %v3041, %v3039
      %v3092 = vpack.c.b16 %v3044, %v3042
      %v3093 = vpack.c.b16 %v3045, %v3043
      %v3094 = vpack.c.b16 %v3048, %v3046
      %v3095 = vpack.c.b16 %v3049, %v3047
      %v3096 = vpack.c.b16 %v3052, %v3050
      %v3097 = vpack.c.b16 %v3053, %v3051
      %v3098 = vpack.c.b16 %v3056, %v3054
      %v3099 = vpack.c.b16 %v3057, %v3055
      %v3100 = vpack.c.b16 %v3060, %v3058
      %v3101 = vpack.c.b16 %v3061, %v3059
      %v3102 = vpack.c.b16 %v3064, %v3062
      %v3103 = vpack.c.b16 %v3065, %v3063
      %v3104 = vpack.c.b16 %v3068, %v3066
      %v3105 = vpack.c.b16 %v3069, %v3067
      %v3106 = vpack.c.b16 %v3072, %v3070
      %v3107 = vpack.c.b16 %v3073, %v3071
      %v3108 = vpack.c.b16 %v3076, %v3074
      %v3109 = vpack.c.b16 %v3077, %v3075
      %3142 = vmatprep.subr.bf16.mxu0 %v3079
      %3143 = vmatpush1.bf16.msra.mxu0 %v3078
      %3144 = vmatprep.subr.bf16.mxu0 %v3081
      %3145 = vmatpush1.bf16.msra.mxu0 %v3080
      %3146 = vmatprep.subr.bf16.mxu0 %v3083
      %3147 = vmatpush1.bf16.msra.mxu0 %v3082
      %3148 = vmatprep.subr.bf16.mxu0 %v3085
      %3149 = vmatpush1.bf16.msra.mxu0 %v3084
      %3150 = vmatprep.subr.bf16.mxu0 %v3087
      %3151 = vmatpush1.bf16.msra.mxu0 %v3086
      %3152 = vmatprep.subr.bf16.mxu0 %v3089
      %3153 = vmatpush1.bf16.msra.mxu0 %v3088
      %3154 = vmatprep.subr.bf16.mxu0 %v3091
      %3155 = vmatpush1.bf16.msra.mxu0 %v3090
      %3156 = vmatprep.subr.bf16.mxu0 %v3093
      %3157 = vmatpush1.bf16.msra.mxu0 %v3092
      %3158 = vmatprep.subr.bf16.mxu0 %v3095
      %3159 = vmatpush1.bf16.msra.mxu0 %v3094
      %3160 = vmatprep.subr.bf16.mxu0 %v3097
      %3161 = vmatpush1.bf16.msra.mxu0 %v3096
      %3162 = vmatprep.subr.bf16.mxu0 %v3099
      %3163 = vmatpush1.bf16.msra.mxu0 %v3098
      %3164 = vmatprep.subr.bf16.mxu0 %v3101
      %3165 = vmatpush1.bf16.msra.mxu0 %v3100
      %3166 = vmatprep.subr.bf16.mxu0 %v3103
      %3167 = vmatpush1.bf16.msra.mxu0 %v3102
      %3168 = vmatprep.subr.bf16.mxu0 %v3105
      %3169 = vmatpush1.bf16.msra.mxu0 %v3104
      %3170 = vmatprep.subr.bf16.mxu0 %v3107
      %3171 = vmatpush1.bf16.msra.mxu0 %v3106
      %3172 = vmatprep.subr.bf16.mxu0 %v3109
      %3173 = vmatpush1.bf16.msra.mxu0 %v3108
      %3174 = vmatprep.mubr.bf16.mxu0 %v821
      %3175 = vmatmul.mubr.bf16.gmra.mrb[0].mxu0 %v820
      %v3176 = vpop.f32.mrb[0].mxu0
      %v3177 = vadd.f32 0.0, %v3176
      %v3178 = vpop.f32.mrb[0].mxu0
      %v3179 = vadd.f32 0.0, %v3178
      %v3180 = vpop.f32.mrb[0].mxu0
      %v3181 = vadd.f32 0.0, %v3180
      %v3182 = vpop.f32.mrb[0].mxu0
      %v3183 = vadd.f32 0.0, %v3182
      %3184 = vmatprep.mubr.bf16.mxu0 %v823
      %3185 = vmatmul.mubr.bf16.gmra.mrb[0].mxu0 %v822
      %v3186 = vpop.f32.mrb[0].mxu0
      %v3187 = vadd.f32 0.0, %v3186
      %v3188 = vpop.f32.mrb[0].mxu0
      %v3189 = vadd.f32 0.0, %v3188
      %v3190 = vpop.f32.mrb[0].mxu0
      %v3191 = vadd.f32 0.0, %v3190
      %v3192 = vpop.f32.mrb[0].mxu0
      %v3193 = vadd.f32 0.0, %v3192
      %3194 = vmatprep.mubr.bf16.mxu0 %v825
      %3195 = vmatmul.mubr.bf16.gmra.mrb[0].mxu0 %v824
      %v3196 = vpop.f32.mrb[0].mxu0
      %v3197 = vadd.f32 0.0, %v3196
      %v3198 = vpop.f32.mrb[0].mxu0
      %v3199 = vadd.f32 0.0, %v3198
      %v3200 = vpop.f32.mrb[0].mxu0
      %v3201 = vadd.f32 0.0, %v3200
      %v3202 = vpop.f32.mrb[0].mxu0
      %v3203 = vadd.f32 0.0, %v3202
      %3204 = vmatprep.mubr.bf16.mxu0 %v827
      %3205 = vmatmul.mubr.bf16.gmra.mrb[0].mxu0 %v826
      %v3206 = vpop.f32.mrb[0].mxu0
      %v3207 = vadd.f32 0.0, %v3206
      %v3208 = vpop.f32.mrb[0].mxu0
      %v3209 = vadd.f32 0.0, %v3208
      %v3210 = vpop.f32.mrb[0].mxu0
      %v3211 = vadd.f32 0.0, %v3210
      %v3212 = vpop.f32.mrb[0].mxu0
      %v3213 = vadd.f32 0.0, %v3212
      %3214 = vmatprep.mubr.bf16.mxu0 %v829
      %3215 = vmatmul.mubr.bf16.gmra.mrb[0].mxu0 %v828
      %v3216 = vpop.f32.mrb[0].mxu0
      %v3217 = vadd.f32 0.0, %v3216
      %v3218 = vpop.f32.mrb[0].mxu0
      %v3219 = vadd.f32 0.0, %v3218
      %v3220 = vpop.f32.mrb[0].mxu0
      %v3221 = vadd.f32 0.0, %v3220
      %v3222 = vpop.f32.mrb[0].mxu0
      %v3223 = vadd.f32 0.0, %v3222
      %3224 = vmatprep.mubr.bf16.mxu0 %v831
      %3225 = vmatmul.mubr.bf16.gmra.mrb[0].mxu0 %v830
      %v3226 = vpop.f32.mrb[0].mxu0
      %v3227 = vadd.f32 0.0, %v3226
      %v3228 = vpop.f32.mrb[0].mxu0
      %v3229 = vadd.f32 0.0, %v3228
      %v3230 = vpop.f32.mrb[0].mxu0
      %v3231 = vadd.f32 0.0, %v3230
      %v3232 = vpop.f32.mrb[0].mxu0
      %v3233 = vadd.f32 0.0, %v3232
      %3234 = vmatprep.mubr.bf16.mxu0 %v833
      %3235 = vmatmul.mubr.bf16.gmra.mrb[0].mxu0 %v832
      %v3236 = vpop.f32.mrb[0].mxu0
      %v3237 = vadd.f32 0.0, %v3236
      %v3238 = vpop.f32.mrb[0].mxu0
      %v3239 = vadd.f32 0.0, %v3238
      %v3240 = vpop.f32.mrb[0].mxu0
      %v3241 = vadd.f32 0.0, %v3240
      %v3242 = vpop.f32.mrb[0].mxu0
      %v3243 = vadd.f32 0.0, %v3242
      %3244 = vmatprep.mubr.bf16.mxu0 %v835
      %3245 = vmatmul.mubr.bf16.gmra.mrb[0].mxu0 %v834
      %v3246 = vpop.f32.mrb[0].mxu0
      %v3247 = vadd.f32 0.0, %v3246
      %v3248 = vpop.f32.mrb[0].mxu0
      %v3249 = vadd.f32 0.0, %v3248
      %v3250 = vpop.f32.mrb[0].mxu0
      %v3251 = vadd.f32 0.0, %v3250
      %v3252 = vpop.f32.mrb[0].mxu0
      %v3253 = vadd.f32 0.0, %v3252
      %3254 = vmatprep.mubr.bf16.mxu0 %v837
      %3255 = vmatmul.mubr.bf16.gmra.mrb[0].mxu0 %v836
      %v3256 = vpop.f32.mrb[0].mxu0
      %v3257 = vadd.f32 0.0, %v3256
      %v3258 = vpop.f32.mrb[0].mxu0
      %v3259 = vadd.f32 0.0, %v3258
      %v3260 = vpop.f32.mrb[0].mxu0
      %v3261 = vadd.f32 0.0, %v3260
      %v3262 = vpop.f32.mrb[0].mxu0
      %v3263 = vadd.f32 0.0, %v3262
      %3264 = vmatprep.mubr.bf16.mxu0 %v839
      %3265 = vmatmul.mubr.bf16.gmra.mrb[0].mxu0 %v838
      %v3266 = vpop.f32.mrb[0].mxu0
      %v3267 = vadd.f32 0.0, %v3266
      %v3268 = vpop.f32.mrb[0].mxu0
      %v3269 = vadd.f32 0.0, %v3268
      %v3270 = vpop.f32.mrb[0].mxu0
      %v3271 = vadd.f32 0.0, %v3270
      %v3272 = vpop.f32.mrb[0].mxu0
      %v3273 = vadd.f32 0.0, %v3272
      %3274 = vmatprep.mubr.bf16.mxu0 %v841
      %3275 = vmatmul.mubr.bf16.gmra.mrb[0].mxu0 %v840
      %v3276 = vpop.f32.mrb[0].mxu0
      %v3277 = vadd.f32 0.0, %v3276
      %v3278 = vpop.f32.mrb[0].mxu0
      %v3279 = vadd.f32 0.0, %v3278
      %v3280 = vpop.f32.mrb[0].mxu0
      %v3281 = vadd.f32 0.0, %v3280
      %v3282 = vpop.f32.mrb[0].mxu0
      %v3283 = vadd.f32 0.0, %v3282
      %3284 = vmatprep.mubr.bf16.mxu0 %v843
      %3285 = vmatmul.mubr.bf16.gmra.mrb[0].mxu0 %v842
      %v3286 = vpop.f32.mrb[0].mxu0
      %v3287 = vadd.f32 0.0, %v3286
      %v3288 = vpop.f32.mrb[0].mxu0
      %v3289 = vadd.f32 0.0, %v3288
      %v3290 = vpop.f32.mrb[0].mxu0
      %v3291 = vadd.f32 0.0, %v3290
      %v3292 = vpop.f32.mrb[0].mxu0
      %v3293 = vadd.f32 0.0, %v3292
      %3294 = vmatprep.mubr.bf16.mxu0 %v845
      %3295 = vmatmul.mubr.bf16.gmra.mrb[0].mxu0 %v844
      %v3296 = vpop.f32.mrb[0].mxu0
      %v3297 = vadd.f32 0.0, %v3296
      %v3298 = vpop.f32.mrb[0].mxu0
      %v3299 = vadd.f32 0.0, %v3298
      %v3300 = vpop.f32.mrb[0].mxu0
      %v3301 = vadd.f32 0.0, %v3300
      %v3302 = vpop.f32.mrb[0].mxu0
      %v3303 = vadd.f32 0.0, %v3302
      %3304 = vmatprep.mubr.bf16.mxu0 %v847
      %3305 = vmatmul.mubr.bf16.gmra.mrb[0].mxu0 %v846
      %v3306 = vpop.f32.mrb[0].mxu0
      %v3307 = vadd.f32 0.0, %v3306
      %v3308 = vpop.f32.mrb[0].mxu0
      %v3309 = vadd.f32 0.0, %v3308
      %v3310 = vpop.f32.mrb[0].mxu0
      %v3311 = vadd.f32 0.0, %v3310
      %v3312 = vpop.f32.mrb[0].mxu0
      %v3313 = vadd.f32 0.0, %v3312
      %3314 = vmatprep.mubr.bf16.mxu0 %v849
      %3315 = vmatmul.mubr.bf16.gmra.mrb[0].mxu0 %v848
      %v3316 = vpop.f32.mrb[0].mxu0
      %v3317 = vadd.f32 0.0, %v3316
      %v3318 = vpop.f32.mrb[0].mxu0
      %v3319 = vadd.f32 0.0, %v3318
      %v3320 = vpop.f32.mrb[0].mxu0
      %v3321 = vadd.f32 0.0, %v3320
      %v3322 = vpop.f32.mrb[0].mxu0
      %v3323 = vadd.f32 0.0, %v3322
      %3324 = vmatprep.mubr.bf16.mxu0 %v2979
      %3325 = vmatmul.mubr.bf16.gmra.mrb[0].mxu0 %v2978
      %v3326 = vpop.f32.mrb[0].mxu0
      %v3327 = vadd.f32 0.0, %v3326
      %v3328 = vpop.f32.mrb[0].mxu0
      %v3329 = vadd.f32 0.0, %v3328
      %v3330 = vpop.f32.mrb[0].mxu0
      %v3331 = vadd.f32 0.0, %v3330
      %v3332 = vpop.f32.mrb[0].mxu0
      %v3333 = vadd.f32 0.0, %v3332
      %3334 = vdwg.mxu0
      %v3335 = vadd.f32 %v2853, %v3177
      %v3336 = vadd.f32 %v2854, %v3179
      %v3337 = vadd.f32 %v2855, %v3181
      %v3338 = vadd.f32 %v2856, %v3183
      %v3339 = vadd.f32 %v2857, %v3187
      %v3340 = vadd.f32 %v2858, %v3189
      %v3341 = vadd.f32 %v2859, %v3191
      %v3342 = vadd.f32 %v2860, %v3193
      %v3343 = vadd.f32 %v2861, %v3197
      %v3344 = vadd.f32 %v2862, %v3199
      %v3345 = vadd.f32 %v2863, %v3201
      %v3346 = vadd.f32 %v2864, %v3203
      %v3347 = vadd.f32 %v2865, %v3207
      %v3348 = vadd.f32 %v2866, %v3209
      %v3349 = vadd.f32 %v2867, %v3211
      %v3350 = vadd.f32 %v2868, %v3213
      %v3351 = vadd.f32 %v2869, %v3217
      %v3352 = vadd.f32 %v2870, %v3219
      %v3353 = vadd.f32 %v2871, %v3221
      %v3354 = vadd.f32 %v2872, %v3223
      %v3355 = vadd.f32 %v2873, %v3227
      %v3356 = vadd.f32 %v2874, %v3229
      %v3357 = vadd.f32 %v2875, %v3231
      %v3358 = vadd.f32 %v2876, %v3233
      %v3359 = vadd.f32 %v2877, %v3237
      %v3360 = vadd.f32 %v2878, %v3239
      %v3361 = vadd.f32 %v2879, %v3241
      %v3362 = vadd.f32 %v2880, %v3243
      %v3363 = vadd.f32 %v2881, %v3247
      %v3364 = vadd.f32 %v2882, %v3249
      %v3365 = vadd.f32 %v2883, %v3251
      %v3366 = vadd.f32 %v2884, %v3253
      %v3367 = vadd.f32 %v2885, %v3257
      %v3368 = vadd.f32 %v2886, %v3259
      %v3369 = vadd.f32 %v2887, %v3261
      %v3370 = vadd.f32 %v2888, %v3263
      %v3371 = vadd.f32 %v2889, %v3267
      %v3372 = vadd.f32 %v2890, %v3269
      %v3373 = vadd.f32 %v2891, %v3271
      %v3374 = vadd.f32 %v2892, %v3273
      %v3375 = vadd.f32 %v2893, %v3277
      %v3376 = vadd.f32 %v2894, %v3279
      %v3377 = vadd.f32 %v2895, %v3281
      %v3378 = vadd.f32 %v2896, %v3283
      %v3379 = vadd.f32 %v2897, %v3287
      %v3380 = vadd.f32 %v2898, %v3289
      %v3381 = vadd.f32 %v2899, %v3291
      %v3382 = vadd.f32 %v2900, %v3293
      %v3383 = vadd.f32 %v2901, %v3297
      %v3384 = vadd.f32 %v2902, %v3299
      %v3385 = vadd.f32 %v2903, %v3301
      %v3386 = vadd.f32 %v2904, %v3303
      %v3387 = vadd.f32 %v2905, %v3307
      %v3388 = vadd.f32 %v2906, %v3309
      %v3389 = vadd.f32 %v2907, %v3311
      %v3390 = vadd.f32 %v2908, %v3313
      %v3391 = vadd.f32 %v2909, %v3317
      %v3392 = vadd.f32 %v2910, %v3319
      %v3393 = vadd.f32 %v2911, %v3321
      %v3394 = vadd.f32 %v2912, %v3323
      %v3395 = vadd.f32 %v2913, %v3327
      %v3396 = vadd.f32 %v2914, %v3329
      %v3397 = vadd.f32 %v2915, %v3331
      %v3398 = vadd.f32 %v2916, %v3333
      %v3400 = vrot.slane %v296, 5
      %v3401 = vrot.slane %v3400, 4
      %v3402 = vrot.slane %v297, 5
      %v3403 = vsel %vm1766, %v3401, %v3402
      %v3404 = vrot.slane %v3402, 4
      %v3405 = vrot.slane %v298, 5
      %v3406 = vsel %vm1766, %v3404, %v3405
      %s3407 = scalar_lea.vmem %s1, 1280
      %v3408 = vld [vmem:[%s3407] sm:$0xff]
      %v3409 = vld [vmem:[%s3407 + $0x8] sm:$0xff]
      %v3410 = vld [vmem:[%s3407 + $0x10] sm:$0xff]
      %v3411 = vld [vmem:[%s3407 + $0x18] sm:$0xff]
      %v3412 = vld [vmem:[%s3407 + $0x20] sm:$0xff]
      %v3413 = vld [vmem:[%s3407 + $0x28] sm:$0xff]
      %v3414 = vld [vmem:[%s3407 + $0x30] sm:$0xff]
      %v3415 = vld [vmem:[%s3407 + $0x38] sm:$0xff]
      %v3416 = vld [vmem:[%s3407 + $0x40] sm:$0xff]
      %v3417 = vld [vmem:[%s3407 + $0x48] sm:$0xff]
      %v3418 = vld [vmem:[%s3407 + $0x50] sm:$0xff]
      %v3419 = vld [vmem:[%s3407 + $0x58] sm:$0xff]
      %v3420 = vld [vmem:[%s3407 + $0x60] sm:$0xff]
      %v3421 = vld [vmem:[%s3407 + $0x68] sm:$0xff]
      %v3422 = vld [vmem:[%s3407 + $0x70] sm:$0xff]
      %v3423 = vld [vmem:[%s3407 + $0x78] sm:$0xff]
      %v3424 = vld [vmem:[%s3407 + $0x80] sm:$0xff]
      %v3425 = vld [vmem:[%s3407 + $0x88] sm:$0xff]
      %v3426 = vld [vmem:[%s3407 + $0x90] sm:$0xff]
      %v3427 = vld [vmem:[%s3407 + $0x98] sm:$0xff]
      %v3428 = vld [vmem:[%s3407 + $0xa0] sm:$0xff]
      %v3429 = vld [vmem:[%s3407 + $0xa8] sm:$0xff]
      %v3430 = vld [vmem:[%s3407 + $0xb0] sm:$0xff]
      %v3431 = vld [vmem:[%s3407 + $0xb8] sm:$0xff]
      %v3432 = vld [vmem:[%s3407 + $0xc0] sm:$0xff]
      %v3433 = vld [vmem:[%s3407 + $0xc8] sm:$0xff]
      %v3434 = vld [vmem:[%s3407 + $0xd0] sm:$0xff]
      %v3435 = vld [vmem:[%s3407 + $0xd8] sm:$0xff]
      %v3436 = vld [vmem:[%s3407 + $0xe0] sm:$0xff]
      %v3437 = vld [vmem:[%s3407 + $0xe8] sm:$0xff]
      %v3438 = vld [vmem:[%s3407 + $0xf0] sm:$0xff]
      %v3439 = vld [vmem:[%s3407 + $0xf8] sm:$0xff]
      %v3440 = vunpack.c.l.b16 %v3403
      %v3441 = vunpack.c.h.b16 %v3403
      %v3442 = vunpack.c.l.b16 %v3406
      %v3443 = vunpack.c.h.b16 %v3406
      %v3444 = vpack.c.b16 %v3442, %v3440
      %v3445 = vpack.c.b16 %v3443, %v3441
      %v3480 = vunpack.c.l.b16 %v3408
      %v3481 = vunpack.c.h.b16 %v3408
      %v3482 = vunpack.c.l.b16 %v3409
      %v3483 = vunpack.c.h.b16 %v3409
      %v3484 = vunpack.c.l.b16 %v3410
      %v3485 = vunpack.c.h.b16 %v3410
      %v3486 = vunpack.c.l.b16 %v3411
      %v3487 = vunpack.c.h.b16 %v3411
      %v3488 = vunpack.c.l.b16 %v3412
      %v3489 = vunpack.c.h.b16 %v3412
      %v3490 = vunpack.c.l.b16 %v3413
      %v3491 = vunpack.c.h.b16 %v3413
      %v3492 = vunpack.c.l.b16 %v3414
      %v3493 = vunpack.c.h.b16 %v3414
      %v3494 = vunpack.c.l.b16 %v3415
      %v3495 = vunpack.c.h.b16 %v3415
      %v3496 = vunpack.c.l.b16 %v3416
      %v3497 = vunpack.c.h.b16 %v3416
      %v3498 = vunpack.c.l.b16 %v3417
      %v3499 = vunpack.c.h.b16 %v3417
      %v3500 = vunpack.c.l.b16 %v3418
      %v3501 = vunpack.c.h.b16 %v3418
      %v3502 = vunpack.c.l.b16 %v3419
      %v3503 = vunpack.c.h.b16 %v3419
      %v3504 = vunpack.c.l.b16 %v3420
      %v3505 = vunpack.c.h.b16 %v3420
      %v3506 = vunpack.c.l.b16 %v3421
      %v3507 = vunpack.c.h.b16 %v3421
      %v3508 = vunpack.c.l.b16 %v3422
      %v3509 = vunpack.c.h.b16 %v3422
      %v3510 = vunpack.c.l.b16 %v3423
      %v3511 = vunpack.c.h.b16 %v3423
      %v3512 = vunpack.c.l.b16 %v3424
      %v3513 = vunpack.c.h.b16 %v3424
      %v3514 = vunpack.c.l.b16 %v3425
      %v3515 = vunpack.c.h.b16 %v3425
      %v3516 = vunpack.c.l.b16 %v3426
      %v3517 = vunpack.c.h.b16 %v3426
      %v3518 = vunpack.c.l.b16 %v3427
      %v3519 = vunpack.c.h.b16 %v3427
      %v3520 = vunpack.c.l.b16 %v3428
      %v3521 = vunpack.c.h.b16 %v3428
      %v3522 = vunpack.c.l.b16 %v3429
      %v3523 = vunpack.c.h.b16 %v3429
      %v3524 = vunpack.c.l.b16 %v3430
      %v3525 = vunpack.c.h.b16 %v3430
      %v3526 = vunpack.c.l.b16 %v3431
      %v3527 = vunpack.c.h.b16 %v3431
      %v3528 = vunpack.c.l.b16 %v3432
      %v3529 = vunpack.c.h.b16 %v3432
      %v3530 = vunpack.c.l.b16 %v3433
      %v3531 = vunpack.c.h.b16 %v3433
      %v3532 = vunpack.c.l.b16 %v3434
      %v3533 = vunpack.c.h.b16 %v3434
      %v3534 = vunpack.c.l.b16 %v3435
      %v3535 = vunpack.c.h.b16 %v3435
      %v3536 = vunpack.c.l.b16 %v3436
      %v3537 = vunpack.c.h.b16 %v3436
      %v3538 = vunpack.c.l.b16 %v3437
      %v3539 = vunpack.c.h.b16 %v3437
      %v3540 = vunpack.c.l.b16 %v3438
      %v3541 = vunpack.c.h.b16 %v3438
      %v3542 = vunpack.c.l.b16 %v3439
      %v3543 = vunpack.c.h.b16 %v3439
      %v3544 = vpack.c.b16 %v3482, %v3480
      %v3545 = vpack.c.b16 %v3483, %v3481
      %v3546 = vpack.c.b16 %v3486, %v3484
      %v3547 = vpack.c.b16 %v3487, %v3485
      %v3548 = vpack.c.b16 %v3490, %v3488
      %v3549 = vpack.c.b16 %v3491, %v3489
      %v3550 = vpack.c.b16 %v3494, %v3492
      %v3551 = vpack.c.b16 %v3495, %v3493
      %v3552 = vpack.c.b16 %v3498, %v3496
      %v3553 = vpack.c.b16 %v3499, %v3497
      %v3554 = vpack.c.b16 %v3502, %v3500
      %v3555 = vpack.c.b16 %v3503, %v3501
      %v3556 = vpack.c.b16 %v3506, %v3504
      %v3557 = vpack.c.b16 %v3507, %v3505
      %v3558 = vpack.c.b16 %v3510, %v3508
      %v3559 = vpack.c.b16 %v3511, %v3509
      %v3560 = vpack.c.b16 %v3514, %v3512
      %v3561 = vpack.c.b16 %v3515, %v3513
      %v3562 = vpack.c.b16 %v3518, %v3516
      %v3563 = vpack.c.b16 %v3519, %v3517
      %v3564 = vpack.c.b16 %v3522, %v3520
      %v3565 = vpack.c.b16 %v3523, %v3521
      %v3566 = vpack.c.b16 %v3526, %v3524
      %v3567 = vpack.c.b16 %v3527, %v3525
      %v3568 = vpack.c.b16 %v3530, %v3528
      %v3569 = vpack.c.b16 %v3531, %v3529
      %v3570 = vpack.c.b16 %v3534, %v3532
      %v3571 = vpack.c.b16 %v3535, %v3533
      %v3572 = vpack.c.b16 %v3538, %v3536
      %v3573 = vpack.c.b16 %v3539, %v3537
      %v3574 = vpack.c.b16 %v3542, %v3540
      %v3575 = vpack.c.b16 %v3543, %v3541
      %3608 = vmatprep.subr.bf16.mxu0 %v3545
      %3609 = vmatpush1.bf16.msra.mxu0 %v3544
      %3610 = vmatprep.subr.bf16.mxu0 %v3547
      %3611 = vmatpush1.bf16.msra.mxu0 %v3546
      %3612 = vmatprep.subr.bf16.mxu0 %v3549
      %3613 = vmatpush1.bf16.msra.mxu0 %v3548
      %3614 = vmatprep.subr.bf16.mxu0 %v3551
      %3615 = vmatpush1.bf16.msra.mxu0 %v3550
      %3616 = vmatprep.subr.bf16.mxu0 %v3553
      %3617 = vmatpush1.bf16.msra.mxu0 %v3552
      %3618 = vmatprep.subr.bf16.mxu0 %v3555
      %3619 = vmatpush1.bf16.msra.mxu0 %v3554
      %3620 = vmatprep.subr.bf16.mxu0 %v3557
      %3621 = vmatpush1.bf16.msra.mxu0 %v3556
      %3622 = vmatprep.subr.bf16.mxu0 %v3559
      %3623 = vmatpush1.bf16.msra.mxu0 %v3558
      %3624 = vmatprep.subr.bf16.mxu0 %v3561
      %3625 = vmatpush1.bf16.msra.mxu0 %v3560
      %3626 = vmatprep.subr.bf16.mxu0 %v3563
      %3627 = vmatpush1.bf16.msra.mxu0 %v3562
      %3628 = vmatprep.subr.bf16.mxu0 %v3565
      %3629 = vmatpush1.bf16.msra.mxu0 %v3564
      %3630 = vmatprep.subr.bf16.mxu0 %v3567
      %3631 = vmatpush1.bf16.msra.mxu0 %v3566
      %3632 = vmatprep.subr.bf16.mxu0 %v3569
      %3633 = vmatpush1.bf16.msra.mxu0 %v3568
      %3634 = vmatprep.subr.bf16.mxu0 %v3571
      %3635 = vmatpush1.bf16.msra.mxu0 %v3570
      %3636 = vmatprep.subr.bf16.mxu0 %v3573
      %3637 = vmatpush1.bf16.msra.mxu0 %v3572
      %3638 = vmatprep.subr.bf16.mxu0 %v3575
      %3639 = vmatpush1.bf16.msra.mxu0 %v3574
      %3640 = vmatprep.mubr.bf16.mxu0 %v1979
      %3641 = vmatmul.mubr.bf16.gmra.mrb[0].mxu0 %v1978
      %v3642 = vpop.f32.mrb[0].mxu0
      %v3643 = vadd.f32 0.0, %v3642
      %v3644 = vpop.f32.mrb[0].mxu0
      %v3645 = vadd.f32 0.0, %v3644
      %v3646 = vpop.f32.mrb[0].mxu0
      %v3647 = vadd.f32 0.0, %v3646
      %v3648 = vpop.f32.mrb[0].mxu0
      %v3649 = vadd.f32 0.0, %v3648
      %3650 = vmatprep.mubr.bf16.mxu0 %v1981
      %3651 = vmatmul.mubr.bf16.gmra.mrb[0].mxu0 %v1980
      %v3652 = vpop.f32.mrb[0].mxu0
      %v3653 = vadd.f32 0.0, %v3652
      %v3654 = vpop.f32.mrb[0].mxu0
      %v3655 = vadd.f32 0.0, %v3654
      %v3656 = vpop.f32.mrb[0].mxu0
      %v3657 = vadd.f32 0.0, %v3656
      %v3658 = vpop.f32.mrb[0].mxu0
      %v3659 = vadd.f32 0.0, %v3658
      %3660 = vmatprep.mubr.bf16.mxu0 %v1983
      %3661 = vmatmul.mubr.bf16.gmra.mrb[0].mxu0 %v1982
      %v3662 = vpop.f32.mrb[0].mxu0
      %v3663 = vadd.f32 0.0, %v3662
      %v3664 = vpop.f32.mrb[0].mxu0
      %v3665 = vadd.f32 0.0, %v3664
      %v3666 = vpop.f32.mrb[0].mxu0
      %v3667 = vadd.f32 0.0, %v3666
      %v3668 = vpop.f32.mrb[0].mxu0
      %v3669 = vadd.f32 0.0, %v3668
      %3670 = vmatprep.mubr.bf16.mxu0 %v1985
      %3671 = vmatmul.mubr.bf16.gmra.mrb[0].mxu0 %v1984
      %v3672 = vpop.f32.mrb[0].mxu0
      %v3673 = vadd.f32 0.0, %v3672
      %v3674 = vpop.f32.mrb[0].mxu0
      %v3675 = vadd.f32 0.0, %v3674
      %v3676 = vpop.f32.mrb[0].mxu0
      %v3677 = vadd.f32 0.0, %v3676
      %v3678 = vpop.f32.mrb[0].mxu0
      %v3679 = vadd.f32 0.0, %v3678
      %3680 = vmatprep.mubr.bf16.mxu0 %v1987
      %3681 = vmatmul.mubr.bf16.gmra.mrb[0].mxu0 %v1986
      %v3682 = vpop.f32.mrb[0].mxu0
      %v3683 = vadd.f32 0.0, %v3682
      %v3684 = vpop.f32.mrb[0].mxu0
      %v3685 = vadd.f32 0.0, %v3684
      %v3686 = vpop.f32.mrb[0].mxu0
      %v3687 = vadd.f32 0.0, %v3686
      %v3688 = vpop.f32.mrb[0].mxu0
      %v3689 = vadd.f32 0.0, %v3688
      %3690 = vmatprep.mubr.bf16.mxu0 %v1989
      %3691 = vmatmul.mubr.bf16.gmra.mrb[0].mxu0 %v1988
      %v3692 = vpop.f32.mrb[0].mxu0
      %v3693 = vadd.f32 0.0, %v3692
      %v3694 = vpop.f32.mrb[0].mxu0
      %v3695 = vadd.f32 0.0, %v3694
      %v3696 = vpop.f32.mrb[0].mxu0
      %v3697 = vadd.f32 0.0, %v3696
      %v3698 = vpop.f32.mrb[0].mxu0
      %v3699 = vadd.f32 0.0, %v3698
      %3700 = vmatprep.mubr.bf16.mxu0 %v1991
      %3701 = vmatmul.mubr.bf16.gmra.mrb[0].mxu0 %v1990
      %v3702 = vpop.f32.mrb[0].mxu0
      %v3703 = vadd.f32 0.0, %v3702
      %v3704 = vpop.f32.mrb[0].mxu0
      %v3705 = vadd.f32 0.0, %v3704
      %v3706 = vpop.f32.mrb[0].mxu0
      %v3707 = vadd.f32 0.0, %v3706
      %v3708 = vpop.f32.mrb[0].mxu0
      %v3709 = vadd.f32 0.0, %v3708
      %3710 = vmatprep.mubr.bf16.mxu0 %v1993
      %3711 = vmatmul.mubr.bf16.gmra.mrb[0].mxu0 %v1992
      %v3712 = vpop.f32.mrb[0].mxu0
      %v3713 = vadd.f32 0.0, %v3712
      %v3714 = vpop.f32.mrb[0].mxu0
      %v3715 = vadd.f32 0.0, %v3714
      %v3716 = vpop.f32.mrb[0].mxu0
      %v3717 = vadd.f32 0.0, %v3716
      %v3718 = vpop.f32.mrb[0].mxu0
      %v3719 = vadd.f32 0.0, %v3718
      %3720 = vmatprep.mubr.bf16.mxu0 %v1995
      %3721 = vmatmul.mubr.bf16.gmra.mrb[0].mxu0 %v1994
      %v3722 = vpop.f32.mrb[0].mxu0
      %v3723 = vadd.f32 0.0, %v3722
      %v3724 = vpop.f32.mrb[0].mxu0
      %v3725 = vadd.f32 0.0, %v3724
      %v3726 = vpop.f32.mrb[0].mxu0
      %v3727 = vadd.f32 0.0, %v3726
      %v3728 = vpop.f32.mrb[0].mxu0
      %v3729 = vadd.f32 0.0, %v3728
      %3730 = vmatprep.mubr.bf16.mxu0 %v1997
      %3731 = vmatmul.mubr.bf16.gmra.mrb[0].mxu0 %v1996
      %v3732 = vpop.f32.mrb[0].mxu0
      %v3733 = vadd.f32 0.0, %v3732
      %v3734 = vpop.f32.mrb[0].mxu0
      %v3735 = vadd.f32 0.0, %v3734
      %v3736 = vpop.f32.mrb[0].mxu0
      %v3737 = vadd.f32 0.0, %v3736
      %v3738 = vpop.f32.mrb[0].mxu0
      %v3739 = vadd.f32 0.0, %v3738
      %3740 = vmatprep.mubr.bf16.mxu0 %v1999
      %3741 = vmatmul.mubr.bf16.gmra.mrb[0].mxu0 %v1998
      %v3742 = vpop.f32.mrb[0].mxu0
      %v3743 = vadd.f32 0.0, %v3742
      %v3744 = vpop.f32.mrb[0].mxu0
      %v3745 = vadd.f32 0.0, %v3744
      %v3746 = vpop.f32.mrb[0].mxu0
      %v3747 = vadd.f32 0.0, %v3746
      %v3748 = vpop.f32.mrb[0].mxu0
      %v3749 = vadd.f32 0.0, %v3748
      %3750 = vmatprep.mubr.bf16.mxu0 %v2001
      %3751 = vmatmul.mubr.bf16.gmra.mrb[0].mxu0 %v2000
      %v3752 = vpop.f32.mrb[0].mxu0
      %v3753 = vadd.f32 0.0, %v3752
      %v3754 = vpop.f32.mrb[0].mxu0
      %v3755 = vadd.f32 0.0, %v3754
      %v3756 = vpop.f32.mrb[0].mxu0
      %v3757 = vadd.f32 0.0, %v3756
      %v3758 = vpop.f32.mrb[0].mxu0
      %v3759 = vadd.f32 0.0, %v3758
      %3760 = vmatprep.mubr.bf16.mxu0 %v2003
      %3761 = vmatmul.mubr.bf16.gmra.mrb[0].mxu0 %v2002
      %v3762 = vpop.f32.mrb[0].mxu0
      %v3763 = vadd.f32 0.0, %v3762
      %v3764 = vpop.f32.mrb[0].mxu0
      %v3765 = vadd.f32 0.0, %v3764
      %v3766 = vpop.f32.mrb[0].mxu0
      %v3767 = vadd.f32 0.0, %v3766
      %v3768 = vpop.f32.mrb[0].mxu0
      %v3769 = vadd.f32 0.0, %v3768
      %3770 = vmatprep.mubr.bf16.mxu0 %v2005
      %3771 = vmatmul.mubr.bf16.gmra.mrb[0].mxu0 %v2004
      %v3772 = vpop.f32.mrb[0].mxu0
      %v3773 = vadd.f32 0.0, %v3772
      %v3774 = vpop.f32.mrb[0].mxu0
      %v3775 = vadd.f32 0.0, %v3774
      %v3776 = vpop.f32.mrb[0].mxu0
      %v3777 = vadd.f32 0.0, %v3776
      %v3778 = vpop.f32.mrb[0].mxu0
      %v3779 = vadd.f32 0.0, %v3778
      %3780 = vmatprep.mubr.bf16.mxu0 %v2007
      %3781 = vmatmul.mubr.bf16.gmra.mrb[0].mxu0 %v2006
      %v3782 = vpop.f32.mrb[0].mxu0
      %v3783 = vadd.f32 0.0, %v3782
      %v3784 = vpop.f32.mrb[0].mxu0
      %v3785 = vadd.f32 0.0, %v3784
      %v3786 = vpop.f32.mrb[0].mxu0
      %v3787 = vadd.f32 0.0, %v3786
      %v3788 = vpop.f32.mrb[0].mxu0
      %v3789 = vadd.f32 0.0, %v3788
      %3790 = vmatprep.mubr.bf16.mxu0 %v3445
      %3791 = vmatmul.mubr.bf16.gmra.mrb[0].mxu0 %v3444
      %v3792 = vpop.f32.mrb[0].mxu0
      %v3793 = vadd.f32 0.0, %v3792
      %v3794 = vpop.f32.mrb[0].mxu0
      %v3795 = vadd.f32 0.0, %v3794
      %v3796 = vpop.f32.mrb[0].mxu0
      %v3797 = vadd.f32 0.0, %v3796
      %v3798 = vpop.f32.mrb[0].mxu0
      %v3799 = vadd.f32 0.0, %v3798
      %3800 = vdwg.mxu0
      %v3801 = vadd.f32 %v3335, %v3643
      %v3802 = vadd.f32 %v3336, %v3645
      %v3803 = vadd.f32 %v3337, %v3647
      %v3804 = vadd.f32 %v3338, %v3649
      %v3805 = vadd.f32 %v3339, %v3653
      %v3806 = vadd.f32 %v3340, %v3655
      %v3807 = vadd.f32 %v3341, %v3657
      %v3808 = vadd.f32 %v3342, %v3659
      %v3809 = vadd.f32 %v3343, %v3663
      %v3810 = vadd.f32 %v3344, %v3665
      %v3811 = vadd.f32 %v3345, %v3667
      %v3812 = vadd.f32 %v3346, %v3669
      %v3813 = vadd.f32 %v3347, %v3673
      %v3814 = vadd.f32 %v3348, %v3675
      %v3815 = vadd.f32 %v3349, %v3677
      %v3816 = vadd.f32 %v3350, %v3679
      %v3817 = vadd.f32 %v3351, %v3683
      %v3818 = vadd.f32 %v3352, %v3685
      %v3819 = vadd.f32 %v3353, %v3687
      %v3820 = vadd.f32 %v3354, %v3689
      %v3821 = vadd.f32 %v3355, %v3693
      %v3822 = vadd.f32 %v3356, %v3695
      %v3823 = vadd.f32 %v3357, %v3697
      %v3824 = vadd.f32 %v3358, %v3699
      %v3825 = vadd.f32 %v3359, %v3703
      %v3826 = vadd.f32 %v3360, %v3705
      %v3827 = vadd.f32 %v3361, %v3707
      %v3828 = vadd.f32 %v3362, %v3709
      %v3829 = vadd.f32 %v3363, %v3713
      %v3830 = vadd.f32 %v3364, %v3715
      %v3831 = vadd.f32 %v3365, %v3717
      %v3832 = vadd.f32 %v3366, %v3719
      %v3833 = vadd.f32 %v3367, %v3723
      %v3834 = vadd.f32 %v3368, %v3725
      %v3835 = vadd.f32 %v3369, %v3727
      %v3836 = vadd.f32 %v3370, %v3729
      %v3837 = vadd.f32 %v3371, %v3733
      %v3838 = vadd.f32 %v3372, %v3735
      %v3839 = vadd.f32 %v3373, %v3737
      %v3840 = vadd.f32 %v3374, %v3739
      %v3841 = vadd.f32 %v3375, %v3743
      %v3842 = vadd.f32 %v3376, %v3745
      %v3843 = vadd.f32 %v3377, %v3747
      %v3844 = vadd.f32 %v3378, %v3749
      %v3845 = vadd.f32 %v3379, %v3753
      %v3846 = vadd.f32 %v3380, %v3755
      %v3847 = vadd.f32 %v3381, %v3757
      %v3848 = vadd.f32 %v3382, %v3759
      %v3849 = vadd.f32 %v3383, %v3763
      %v3850 = vadd.f32 %v3384, %v3765
      %v3851 = vadd.f32 %v3385, %v3767
      %v3852 = vadd.f32 %v3386, %v3769
      %v3853 = vadd.f32 %v3387, %v3773
      %v3854 = vadd.f32 %v3388, %v3775
      %v3855 = vadd.f32 %v3389, %v3777
      %v3856 = vadd.f32 %v3390, %v3779
      %v3857 = vadd.f32 %v3391, %v3783
      %v3858 = vadd.f32 %v3392, %v3785
      %v3859 = vadd.f32 %v3393, %v3787
      %v3860 = vadd.f32 %v3394, %v3789
      %v3861 = vadd.f32 %v3395, %v3793
      %v3862 = vadd.f32 %v3396, %v3795
      %v3863 = vadd.f32 %v3397, %v3797
      %v3864 = vadd.f32 %v3398, %v3799
      %s3865 = scalar_lea.vmem %s1, 1536
      %v3866 = vld [vmem:[%s3865] sm:$0xff]
      %v3867 = vld [vmem:[%s3865 + $0x8] sm:$0xff]
      %v3868 = vld [vmem:[%s3865 + $0x10] sm:$0xff]
      %v3869 = vld [vmem:[%s3865 + $0x18] sm:$0xff]
      %v3870 = vld [vmem:[%s3865 + $0x20] sm:$0xff]
      %v3871 = vld [vmem:[%s3865 + $0x28] sm:$0xff]
      %v3872 = vld [vmem:[%s3865 + $0x30] sm:$0xff]
      %v3873 = vld [vmem:[%s3865 + $0x38] sm:$0xff]
      %v3874 = vld [vmem:[%s3865 + $0x40] sm:$0xff]
      %v3875 = vld [vmem:[%s3865 + $0x48] sm:$0xff]
      %v3876 = vld [vmem:[%s3865 + $0x50] sm:$0xff]
      %v3877 = vld [vmem:[%s3865 + $0x58] sm:$0xff]
      %v3878 = vld [vmem:[%s3865 + $0x60] sm:$0xff]
      %v3879 = vld [vmem:[%s3865 + $0x68] sm:$0xff]
      %v3880 = vld [vmem:[%s3865 + $0x70] sm:$0xff]
      %v3881 = vld [vmem:[%s3865 + $0x78] sm:$0xff]
      %v3882 = vld [vmem:[%s3865 + $0x80] sm:$0xff]
      %v3883 = vld [vmem:[%s3865 + $0x88] sm:$0xff]
      %v3884 = vld [vmem:[%s3865 + $0x90] sm:$0xff]
      %v3885 = vld [vmem:[%s3865 + $0x98] sm:$0xff]
      %v3886 = vld [vmem:[%s3865 + $0xa0] sm:$0xff]
      %v3887 = vld [vmem:[%s3865 + $0xa8] sm:$0xff]
      %v3888 = vld [vmem:[%s3865 + $0xb0] sm:$0xff]
      %v3889 = vld [vmem:[%s3865 + $0xb8] sm:$0xff]
      %v3890 = vld [vmem:[%s3865 + $0xc0] sm:$0xff]
      %v3891 = vld [vmem:[%s3865 + $0xc8] sm:$0xff]
      %v3892 = vld [vmem:[%s3865 + $0xd0] sm:$0xff]
      %v3893 = vld [vmem:[%s3865 + $0xd8] sm:$0xff]
      %v3894 = vld [vmem:[%s3865 + $0xe0] sm:$0xff]
      %v3895 = vld [vmem:[%s3865 + $0xe8] sm:$0xff]
      %v3896 = vld [vmem:[%s3865 + $0xf0] sm:$0xff]
      %v3897 = vld [vmem:[%s3865 + $0xf8] sm:$0xff]
      %v3900 = vunpack.c.l.b16 %v299
      %v3901 = vunpack.c.h.b16 %v299
      %v3902 = vunpack.c.l.b16 %v300
      %v3903 = vunpack.c.h.b16 %v300
      %v3904 = vpack.c.b16 %v3902, %v3900
      %v3905 = vpack.c.b16 %v3903, %v3901
      %v3940 = vunpack.c.l.b16 %v3866
      %v3941 = vunpack.c.h.b16 %v3866
      %v3942 = vunpack.c.l.b16 %v3867
      %v3943 = vunpack.c.h.b16 %v3867
      %v3944 = vunpack.c.l.b16 %v3868
      %v3945 = vunpack.c.h.b16 %v3868
      %v3946 = vunpack.c.l.b16 %v3869
      %v3947 = vunpack.c.h.b16 %v3869
      %v3948 = vunpack.c.l.b16 %v3870
      %v3949 = vunpack.c.h.b16 %v3870
      %v3950 = vunpack.c.l.b16 %v3871
      %v3951 = vunpack.c.h.b16 %v3871
      %v3952 = vunpack.c.l.b16 %v3872
      %v3953 = vunpack.c.h.b16 %v3872
      %v3954 = vunpack.c.l.b16 %v3873
      %v3955 = vunpack.c.h.b16 %v3873
      %v3956 = vunpack.c.l.b16 %v3874
      %v3957 = vunpack.c.h.b16 %v3874
      %v3958 = vunpack.c.l.b16 %v3875
      %v3959 = vunpack.c.h.b16 %v3875
      %v3960 = vunpack.c.l.b16 %v3876
      %v3961 = vunpack.c.h.b16 %v3876
      %v3962 = vunpack.c.l.b16 %v3877
      %v3963 = vunpack.c.h.b16 %v3877
      %v3964 = vunpack.c.l.b16 %v3878
      %v3965 = vunpack.c.h.b16 %v3878
      %v3966 = vunpack.c.l.b16 %v3879
      %v3967 = vunpack.c.h.b16 %v3879
      %v3968 = vunpack.c.l.b16 %v3880
      %v3969 = vunpack.c.h.b16 %v3880
      %v3970 = vunpack.c.l.b16 %v3881
      %v3971 = vunpack.c.h.b16 %v3881
      %v3972 = vunpack.c.l.b16 %v3882
      %v3973 = vunpack.c.h.b16 %v3882
      %v3974 = vunpack.c.l.b16 %v3883
      %v3975 = vunpack.c.h.b16 %v3883
      %v3976 = vunpack.c.l.b16 %v3884
      %v3977 = vunpack.c.h.b16 %v3884
      %v3978 = vunpack.c.l.b16 %v3885
      %v3979 = vunpack.c.h.b16 %v3885
      %v3980 = vunpack.c.l.b16 %v3886
      %v3981 = vunpack.c.h.b16 %v3886
      %v3982 = vunpack.c.l.b16 %v3887
      %v3983 = vunpack.c.h.b16 %v3887
      %v3984 = vunpack.c.l.b16 %v3888
      %v3985 = vunpack.c.h.b16 %v3888
      %v3986 = vunpack.c.l.b16 %v3889
      %v3987 = vunpack.c.h.b16 %v3889
      %v3988 = vunpack.c.l.b16 %v3890
      %v3989 = vunpack.c.h.b16 %v3890
      %v3990 = vunpack.c.l.b16 %v3891
      %v3991 = vunpack.c.h.b16 %v3891
      %v3992 = vunpack.c.l.b16 %v3892
      %v3993 = vunpack.c.h.b16 %v3892
      %v3994 = vunpack.c.l.b16 %v3893
      %v3995 = vunpack.c.h.b16 %v3893
      %v3996 = vunpack.c.l.b16 %v3894
      %v3997 = vunpack.c.h.b16 %v3894
      %v3998 = vunpack.c.l.b16 %v3895
      %v3999 = vunpack.c.h.b16 %v3895
      %v4000 = vunpack.c.l.b16 %v3896
      %v4001 = vunpack.c.h.b16 %v3896
      %v4002 = vunpack.c.l.b16 %v3897
      %v4003 = vunpack.c.h.b16 %v3897
      %v4004 = vpack.c.b16 %v3942, %v3940
      %v4005 = vpack.c.b16 %v3943, %v3941
      %v4006 = vpack.c.b16 %v3946, %v3944
      %v4007 = vpack.c.b16 %v3947, %v3945
      %v4008 = vpack.c.b16 %v3950, %v3948
      %v4009 = vpack.c.b16 %v3951, %v3949
      %v4010 = vpack.c.b16 %v3954, %v3952
      %v4011 = vpack.c.b16 %v3955, %v3953
      %v4012 = vpack.c.b16 %v3958, %v3956
      %v4013 = vpack.c.b16 %v3959, %v3957
      %v4014 = vpack.c.b16 %v3962, %v3960
      %v4015 = vpack.c.b16 %v3963, %v3961
      %v4016 = vpack.c.b16 %v3966, %v3964
      %v4017 = vpack.c.b16 %v3967, %v3965
      %v4018 = vpack.c.b16 %v3970, %v3968
      %v4019 = vpack.c.b16 %v3971, %v3969
      %v4020 = vpack.c.b16 %v3974, %v3972
      %v4021 = vpack.c.b16 %v3975, %v3973
      %v4022 = vpack.c.b16 %v3978, %v3976
      %v4023 = vpack.c.b16 %v3979, %v3977
      %v4024 = vpack.c.b16 %v3982, %v3980
      %v4025 = vpack.c.b16 %v3983, %v3981
      %v4026 = vpack.c.b16 %v3986, %v3984
      %v4027 = vpack.c.b16 %v3987, %v3985
      %v4028 = vpack.c.b16 %v3990, %v3988
      %v4029 = vpack.c.b16 %v3991, %v3989
      %v4030 = vpack.c.b16 %v3994, %v3992
      %v4031 = vpack.c.b16 %v3995, %v3993
      %v4032 = vpack.c.b16 %v3998, %v3996
      %v4033 = vpack.c.b16 %v3999, %v3997
      %v4034 = vpack.c.b16 %v4002, %v4000
      %v4035 = vpack.c.b16 %v4003, %v4001
      %4068 = vmatprep.subr.bf16.mxu0 %v4005
      %4069 = vmatpush1.bf16.msra.mxu0 %v4004
      %4070 = vmatprep.subr.bf16.mxu0 %v4007
      %4071 = vmatpush1.bf16.msra.mxu0 %v4006
      %4072 = vmatprep.subr.bf16.mxu0 %v4009
      %4073 = vmatpush1.bf16.msra.mxu0 %v4008
      %4074 = vmatprep.subr.bf16.mxu0 %v4011
      %4075 = vmatpush1.bf16.msra.mxu0 %v4010
      %4076 = vmatprep.subr.bf16.mxu0 %v4013
      %4077 = vmatpush1.bf16.msra.mxu0 %v4012
      %4078 = vmatprep.subr.bf16.mxu0 %v4015
      %4079 = vmatpush1.bf16.msra.mxu0 %v4014
      %4080 = vmatprep.subr.bf16.mxu0 %v4017
      %4081 = vmatpush1.bf16.msra.mxu0 %v4016
      %4082 = vmatprep.subr.bf16.mxu0 %v4019
      %4083 = vmatpush1.bf16.msra.mxu0 %v4018
      %4084 = vmatprep.subr.bf16.mxu0 %v4021
      %4085 = vmatpush1.bf16.msra.mxu0 %v4020
      %4086 = vmatprep.subr.bf16.mxu0 %v4023
      %4087 = vmatpush1.bf16.msra.mxu0 %v4022
      %4088 = vmatprep.subr.bf16.mxu0 %v4025
      %4089 = vmatpush1.bf16.msra.mxu0 %v4024
      %4090 = vmatprep.subr.bf16.mxu0 %v4027
      %4091 = vmatpush1.bf16.msra.mxu0 %v4026
      %4092 = vmatprep.subr.bf16.mxu0 %v4029
      %4093 = vmatpush1.bf16.msra.mxu0 %v4028
      %4094 = vmatprep.subr.bf16.mxu0 %v4031
      %4095 = vmatpush1.bf16.msra.mxu0 %v4030
      %4096 = vmatprep.subr.bf16.mxu0 %v4033
      %4097 = vmatpush1.bf16.msra.mxu0 %v4032
      %4098 = vmatprep.subr.bf16.mxu0 %v4035
      %4099 = vmatpush1.bf16.msra.mxu0 %v4034
      %4100 = vmatprep.mubr.bf16.mxu0 %v1336
      %4101 = vmatmul.mubr.bf16.gmra.mrb[0].mxu0 %v1335
      %v4102 = vpop.f32.mrb[0].mxu0
      %v4103 = vadd.f32 0.0, %v4102
      %v4104 = vpop.f32.mrb[0].mxu0
      %v4105 = vadd.f32 0.0, %v4104
      %v4106 = vpop.f32.mrb[0].mxu0
      %v4107 = vadd.f32 0.0, %v4106
      %v4108 = vpop.f32.mrb[0].mxu0
      %v4109 = vadd.f32 0.0, %v4108
      %4110 = vmatprep.mubr.bf16.mxu0 %v1338
      %4111 = vmatmul.mubr.bf16.gmra.mrb[0].mxu0 %v1337
      %v4112 = vpop.f32.mrb[0].mxu0
      %v4113 = vadd.f32 0.0, %v4112
      %v4114 = vpop.f32.mrb[0].mxu0
      %v4115 = vadd.f32 0.0, %v4114
      %v4116 = vpop.f32.mrb[0].mxu0
      %v4117 = vadd.f32 0.0, %v4116
      %v4118 = vpop.f32.mrb[0].mxu0
      %v4119 = vadd.f32 0.0, %v4118
      %4120 = vmatprep.mubr.bf16.mxu0 %v1340
      %4121 = vmatmul.mubr.bf16.gmra.mrb[0].mxu0 %v1339
      %v4122 = vpop.f32.mrb[0].mxu0
      %v4123 = vadd.f32 0.0, %v4122
      %v4124 = vpop.f32.mrb[0].mxu0
      %v4125 = vadd.f32 0.0, %v4124
      %v4126 = vpop.f32.mrb[0].mxu0
      %v4127 = vadd.f32 0.0, %v4126
      %v4128 = vpop.f32.mrb[0].mxu0
      %v4129 = vadd.f32 0.0, %v4128
      %4130 = vmatprep.mubr.bf16.mxu0 %v1342
      %4131 = vmatmul.mubr.bf16.gmra.mrb[0].mxu0 %v1341
      %v4132 = vpop.f32.mrb[0].mxu0
      %v4133 = vadd.f32 0.0, %v4132
      %v4134 = vpop.f32.mrb[0].mxu0
      %v4135 = vadd.f32 0.0, %v4134
      %v4136 = vpop.f32.mrb[0].mxu0
      %v4137 = vadd.f32 0.0, %v4136
      %v4138 = vpop.f32.mrb[0].mxu0
      %v4139 = vadd.f32 0.0, %v4138
      %4140 = vmatprep.mubr.bf16.mxu0 %v1344
      %4141 = vmatmul.mubr.bf16.gmra.mrb[0].mxu0 %v1343
      %v4142 = vpop.f32.mrb[0].mxu0
      %v4143 = vadd.f32 0.0, %v4142
      %v4144 = vpop.f32.mrb[0].mxu0
      %v4145 = vadd.f32 0.0, %v4144
      %v4146 = vpop.f32.mrb[0].mxu0
      %v4147 = vadd.f32 0.0, %v4146
      %v4148 = vpop.f32.mrb[0].mxu0
      %v4149 = vadd.f32 0.0, %v4148
      %4150 = vmatprep.mubr.bf16.mxu0 %v1346
      %4151 = vmatmul.mubr.bf16.gmra.mrb[0].mxu0 %v1345
      %v4152 = vpop.f32.mrb[0].mxu0
      %v4153 = vadd.f32 0.0, %v4152
      %v4154 = vpop.f32.mrb[0].mxu0
      %v4155 = vadd.f32 0.0, %v4154
      %v4156 = vpop.f32.mrb[0].mxu0
      %v4157 = vadd.f32 0.0, %v4156
      %v4158 = vpop.f32.mrb[0].mxu0
      %v4159 = vadd.f32 0.0, %v4158
      %4160 = vmatprep.mubr.bf16.mxu0 %v1348
      %4161 = vmatmul.mubr.bf16.gmra.mrb[0].mxu0 %v1347
      %v4162 = vpop.f32.mrb[0].mxu0
      %v4163 = vadd.f32 0.0, %v4162
      %v4164 = vpop.f32.mrb[0].mxu0
      %v4165 = vadd.f32 0.0, %v4164
      %v4166 = vpop.f32.mrb[0].mxu0
      %v4167 = vadd.f32 0.0, %v4166
      %v4168 = vpop.f32.mrb[0].mxu0
      %v4169 = vadd.f32 0.0, %v4168
      %4170 = vmatprep.mubr.bf16.mxu0 %v1350
      %4171 = vmatmul.mubr.bf16.gmra.mrb[0].mxu0 %v1349
      %v4172 = vpop.f32.mrb[0].mxu0
      %v4173 = vadd.f32 0.0, %v4172
      %v4174 = vpop.f32.mrb[0].mxu0
      %v4175 = vadd.f32 0.0, %v4174
      %v4176 = vpop.f32.mrb[0].mxu0
      %v4177 = vadd.f32 0.0, %v4176
      %v4178 = vpop.f32.mrb[0].mxu0
      %v4179 = vadd.f32 0.0, %v4178
      %4180 = vmatprep.mubr.bf16.mxu0 %v1352
      %4181 = vmatmul.mubr.bf16.gmra.mrb[0].mxu0 %v1351
      %v4182 = vpop.f32.mrb[0].mxu0
      %v4183 = vadd.f32 0.0, %v4182
      %v4184 = vpop.f32.mrb[0].mxu0
      %v4185 = vadd.f32 0.0, %v4184
      %v4186 = vpop.f32.mrb[0].mxu0
      %v4187 = vadd.f32 0.0, %v4186
      %v4188 = vpop.f32.mrb[0].mxu0
      %v4189 = vadd.f32 0.0, %v4188
      %4190 = vmatprep.mubr.bf16.mxu0 %v1354
      %4191 = vmatmul.mubr.bf16.gmra.mrb[0].mxu0 %v1353
      %v4192 = vpop.f32.mrb[0].mxu0
      %v4193 = vadd.f32 0.0, %v4192
      %v4194 = vpop.f32.mrb[0].mxu0
      %v4195 = vadd.f32 0.0, %v4194
      %v4196 = vpop.f32.mrb[0].mxu0
      %v4197 = vadd.f32 0.0, %v4196
      %v4198 = vpop.f32.mrb[0].mxu0
      %v4199 = vadd.f32 0.0, %v4198
      %4200 = vmatprep.mubr.bf16.mxu0 %v1356
      %4201 = vmatmul.mubr.bf16.gmra.mrb[0].mxu0 %v1355
      %v4202 = vpop.f32.mrb[0].mxu0
      %v4203 = vadd.f32 0.0, %v4202
      %v4204 = vpop.f32.mrb[0].mxu0
      %v4205 = vadd.f32 0.0, %v4204
      %v4206 = vpop.f32.mrb[0].mxu0
      %v4207 = vadd.f32 0.0, %v4206
      %v4208 = vpop.f32.mrb[0].mxu0
      %v4209 = vadd.f32 0.0, %v4208
      %4210 = vmatprep.mubr.bf16.mxu0 %v1358
      %4211 = vmatmul.mubr.bf16.gmra.mrb[0].mxu0 %v1357
      %v4212 = vpop.f32.mrb[0].mxu0
      %v4213 = vadd.f32 0.0, %v4212
      %v4214 = vpop.f32.mrb[0].mxu0
      %v4215 = vadd.f32 0.0, %v4214
      %v4216 = vpop.f32.mrb[0].mxu0
      %v4217 = vadd.f32 0.0, %v4216
      %v4218 = vpop.f32.mrb[0].mxu0
      %v4219 = vadd.f32 0.0, %v4218
      %4220 = vmatprep.mubr.bf16.mxu0 %v1360
      %4221 = vmatmul.mubr.bf16.gmra.mrb[0].mxu0 %v1359
      %v4222 = vpop.f32.mrb[0].mxu0
      %v4223 = vadd.f32 0.0, %v4222
      %v4224 = vpop.f32.mrb[0].mxu0
      %v4225 = vadd.f32 0.0, %v4224
      %v4226 = vpop.f32.mrb[0].mxu0
      %v4227 = vadd.f32 0.0, %v4226
      %v4228 = vpop.f32.mrb[0].mxu0
      %v4229 = vadd.f32 0.0, %v4228
      %4230 = vmatprep.mubr.bf16.mxu0 %v1362
      %4231 = vmatmul.mubr.bf16.gmra.mrb[0].mxu0 %v1361
      %v4232 = vpop.f32.mrb[0].mxu0
      %v4233 = vadd.f32 0.0, %v4232
      %v4234 = vpop.f32.mrb[0].mxu0
      %v4235 = vadd.f32 0.0, %v4234
      %v4236 = vpop.f32.mrb[0].mxu0
      %v4237 = vadd.f32 0.0, %v4236
      %v4238 = vpop.f32.mrb[0].mxu0
      %v4239 = vadd.f32 0.0, %v4238
      %4240 = vmatprep.mubr.bf16.mxu0 %v2497
      %4241 = vmatmul.mubr.bf16.gmra.mrb[0].mxu0 %v2496
      %v4242 = vpop.f32.mrb[0].mxu0
      %v4243 = vadd.f32 0.0, %v4242
      %v4244 = vpop.f32.mrb[0].mxu0
      %v4245 = vadd.f32 0.0, %v4244
      %v4246 = vpop.f32.mrb[0].mxu0
      %v4247 = vadd.f32 0.0, %v4246
      %v4248 = vpop.f32.mrb[0].mxu0
      %v4249 = vadd.f32 0.0, %v4248
      %4250 = vmatprep.mubr.bf16.mxu0 %v3905
      %4251 = vmatmul.mubr.bf16.gmra.mrb[0].mxu0 %v3904
      %v4252 = vpop.f32.mrb[0].mxu0
      %v4253 = vadd.f32 0.0, %v4252
      %v4254 = vpop.f32.mrb[0].mxu0
      %v4255 = vadd.f32 0.0, %v4254
      %v4256 = vpop.f32.mrb[0].mxu0
      %v4257 = vadd.f32 0.0, %v4256
      %v4258 = vpop.f32.mrb[0].mxu0
      %v4259 = vadd.f32 0.0, %v4258
      %4260 = vdwg.mxu0
      %v4261 = vadd.f32 %v3801, %v4103
      %v4262 = vadd.f32 %v3802, %v4105
      %v4263 = vadd.f32 %v3803, %v4107
      %v4264 = vadd.f32 %v3804, %v4109
      %v4265 = vadd.f32 %v3805, %v4113
      %v4266 = vadd.f32 %v3806, %v4115
      %v4267 = vadd.f32 %v3807, %v4117
      %v4268 = vadd.f32 %v3808, %v4119
      %v4269 = vadd.f32 %v3809, %v4123
      %v4270 = vadd.f32 %v3810, %v4125
      %v4271 = vadd.f32 %v3811, %v4127
      %v4272 = vadd.f32 %v3812, %v4129
      %v4273 = vadd.f32 %v3813, %v4133
      %v4274 = vadd.f32 %v3814, %v4135
      %v4275 = vadd.f32 %v3815, %v4137
      %v4276 = vadd.f32 %v3816, %v4139
      %v4277 = vadd.f32 %v3817, %v4143
      %v4278 = vadd.f32 %v3818, %v4145
      %v4279 = vadd.f32 %v3819, %v4147
      %v4280 = vadd.f32 %v3820, %v4149
      %v4281 = vadd.f32 %v3821, %v4153
      %v4282 = vadd.f32 %v3822, %v4155
      %v4283 = vadd.f32 %v3823, %v4157
      %v4284 = vadd.f32 %v3824, %v4159
      %v4285 = vadd.f32 %v3825, %v4163
      %v4286 = vadd.f32 %v3826, %v4165
      %v4287 = vadd.f32 %v3827, %v4167
      %v4288 = vadd.f32 %v3828, %v4169
      %v4289 = vadd.f32 %v3829, %v4173
      %v4290 = vadd.f32 %v3830, %v4175
      %v4291 = vadd.f32 %v3831, %v4177
      %v4292 = vadd.f32 %v3832, %v4179
      %v4293 = vadd.f32 %v3833, %v4183
      %v4294 = vadd.f32 %v3834, %v4185
      %v4295 = vadd.f32 %v3835, %v4187
      %v4296 = vadd.f32 %v3836, %v4189
      %v4297 = vadd.f32 %v3837, %v4193
      %v4298 = vadd.f32 %v3838, %v4195
      %v4299 = vadd.f32 %v3839, %v4197
      %v4300 = vadd.f32 %v3840, %v4199
      %v4301 = vadd.f32 %v3841, %v4203
      %v4302 = vadd.f32 %v3842, %v4205
      %v4303 = vadd.f32 %v3843, %v4207
      %v4304 = vadd.f32 %v3844, %v4209
      %v4305 = vadd.f32 %v3845, %v4213
      %v4306 = vadd.f32 %v3846, %v4215
      %v4307 = vadd.f32 %v3847, %v4217
      %v4308 = vadd.f32 %v3848, %v4219
      %v4309 = vadd.f32 %v3849, %v4223
      %v4310 = vadd.f32 %v3850, %v4225
      %v4311 = vadd.f32 %v3851, %v4227
      %v4312 = vadd.f32 %v3852, %v4229
      %v4313 = vadd.f32 %v3853, %v4233
      %v4314 = vadd.f32 %v3854, %v4235
      %v4315 = vadd.f32 %v3855, %v4237
      %v4316 = vadd.f32 %v3856, %v4239
      %v4317 = vadd.f32 %v3857, %v4243
      %v4318 = vadd.f32 %v3858, %v4245
      %v4319 = vadd.f32 %v3859, %v4247
      %v4320 = vadd.f32 %v3860, %v4249
      %v4321 = vadd.f32 %v3861, %v4253
      %v4322 = vadd.f32 %v3862, %v4255
      %v4323 = vadd.f32 %v3863, %v4257
      %v4324 = vadd.f32 %v3864, %v4259
      %v4326 = vshrl.u32 %v299, 16
      %v4328 = vrot.slane %v4326, 4
      %v4329 = vshll.u32 %v299, 16
      %v4331 = vrot.slane %v4329, 5
      %v4332 = vor.u32 %v4328, %v4331
      %v4333 = vrot.slane %v4332, 4
      %v4335 = vshll.u32 %v300, 16
      %v4337 = vrot.slane %v4335, 5
      %v4338 = vsel %vm336, %v4333, %v4337
      %v4339 = vshrl.u32 %v300, 16
      %v4341 = vrot.slane %v4339, 4
      %v4342 = vor.u32 %v4341, %v4337
      %v4343 = vrot.slane %v4342, 4
      %v4345 = vshll.u32 %v301, 16
      %v4347 = vrot.slane %v4345, 5
      %v4348 = vsel %vm336, %v4343, %v4347
      %s4349 = scalar_lea.vmem %s1, 1792
      %v4350 = vld [vmem:[%s4349] sm:$0xff]
      %v4351 = vld [vmem:[%s4349 + $0x8] sm:$0xff]
      %v4352 = vld [vmem:[%s4349 + $0x10] sm:$0xff]
      %v4353 = vld [vmem:[%s4349 + $0x18] sm:$0xff]
      %v4354 = vld [vmem:[%s4349 + $0x20] sm:$0xff]
      %v4355 = vld [vmem:[%s4349 + $0x28] sm:$0xff]
      %v4356 = vld [vmem:[%s4349 + $0x30] sm:$0xff]
      %v4357 = vld [vmem:[%s4349 + $0x38] sm:$0xff]
      %v4358 = vld [vmem:[%s4349 + $0x40] sm:$0xff]
      %v4359 = vld [vmem:[%s4349 + $0x48] sm:$0xff]
      %v4360 = vld [vmem:[%s4349 + $0x50] sm:$0xff]
      %v4361 = vld [vmem:[%s4349 + $0x58] sm:$0xff]
      %v4362 = vld [vmem:[%s4349 + $0x60] sm:$0xff]
      %v4363 = vld [vmem:[%s4349 + $0x68] sm:$0xff]
      %v4364 = vld [vmem:[%s4349 + $0x70] sm:$0xff]
      %v4365 = vld [vmem:[%s4349 + $0x78] sm:$0xff]
      %v4366 = vld [vmem:[%s4349 + $0x80] sm:$0xff]
      %v4367 = vld [vmem:[%s4349 + $0x88] sm:$0xff]
      %v4368 = vld [vmem:[%s4349 + $0x90] sm:$0xff]
      %v4369 = vld [vmem:[%s4349 + $0x98] sm:$0xff]
      %v4370 = vld [vmem:[%s4349 + $0xa0] sm:$0xff]
      %v4371 = vld [vmem:[%s4349 + $0xa8] sm:$0xff]
      %v4372 = vld [vmem:[%s4349 + $0xb0] sm:$0xff]
      %v4373 = vld [vmem:[%s4349 + $0xb8] sm:$0xff]
      %v4374 = vld [vmem:[%s4349 + $0xc0] sm:$0xff]
      %v4375 = vld [vmem:[%s4349 + $0xc8] sm:$0xff]
      %v4376 = vld [vmem:[%s4349 + $0xd0] sm:$0xff]
      %v4377 = vld [vmem:[%s4349 + $0xd8] sm:$0xff]
      %v4378 = vld [vmem:[%s4349 + $0xe0] sm:$0xff]
      %v4379 = vld [vmem:[%s4349 + $0xe8] sm:$0xff]
      %v4380 = vld [vmem:[%s4349 + $0xf0] sm:$0xff]
      %v4381 = vld [vmem:[%s4349 + $0xf8] sm:$0xff]
      %v4382 = vunpack.c.l.b16 %v4338
      %v4383 = vunpack.c.h.b16 %v4338
      %v4384 = vunpack.c.l.b16 %v4348
      %v4385 = vunpack.c.h.b16 %v4348
      %v4386 = vpack.c.b16 %v4384, %v4382
      %v4387 = vpack.c.b16 %v4385, %v4383
      %v4422 = vunpack.c.l.b16 %v4350
      %v4423 = vunpack.c.h.b16 %v4350
      %v4424 = vunpack.c.l.b16 %v4351
      %v4425 = vunpack.c.h.b16 %v4351
      %v4426 = vunpack.c.l.b16 %v4352
      %v4427 = vunpack.c.h.b16 %v4352
      %v4428 = vunpack.c.l.b16 %v4353
      %v4429 = vunpack.c.h.b16 %v4353
      %v4430 = vunpack.c.l.b16 %v4354
      %v4431 = vunpack.c.h.b16 %v4354
      %v4432 = vunpack.c.l.b16 %v4355
      %v4433 = vunpack.c.h.b16 %v4355
      %v4434 = vunpack.c.l.b16 %v4356
      %v4435 = vunpack.c.h.b16 %v4356
      %v4436 = vunpack.c.l.b16 %v4357
      %v4437 = vunpack.c.h.b16 %v4357
      %v4438 = vunpack.c.l.b16 %v4358
      %v4439 = vunpack.c.h.b16 %v4358
      %v4440 = vunpack.c.l.b16 %v4359
      %v4441 = vunpack.c.h.b16 %v4359
      %v4442 = vunpack.c.l.b16 %v4360
      %v4443 = vunpack.c.h.b16 %v4360
      %v4444 = vunpack.c.l.b16 %v4361
      %v4445 = vunpack.c.h.b16 %v4361
      %v4446 = vunpack.c.l.b16 %v4362
      %v4447 = vunpack.c.h.b16 %v4362
      %v4448 = vunpack.c.l.b16 %v4363
      %v4449 = vunpack.c.h.b16 %v4363
      %v4450 = vunpack.c.l.b16 %v4364
      %v4451 = vunpack.c.h.b16 %v4364
      %v4452 = vunpack.c.l.b16 %v4365
      %v4453 = vunpack.c.h.b16 %v4365
      %v4454 = vunpack.c.l.b16 %v4366
      %v4455 = vunpack.c.h.b16 %v4366
      %v4456 = vunpack.c.l.b16 %v4367
      %v4457 = vunpack.c.h.b16 %v4367
      %v4458 = vunpack.c.l.b16 %v4368
      %v4459 = vunpack.c.h.b16 %v4368
      %v4460 = vunpack.c.l.b16 %v4369
      %v4461 = vunpack.c.h.b16 %v4369
      %v4462 = vunpack.c.l.b16 %v4370
      %v4463 = vunpack.c.h.b16 %v4370
      %v4464 = vunpack.c.l.b16 %v4371
      %v4465 = vunpack.c.h.b16 %v4371
      %v4466 = vunpack.c.l.b16 %v4372
      %v4467 = vunpack.c.h.b16 %v4372
      %v4468 = vunpack.c.l.b16 %v4373
      %v4469 = vunpack.c.h.b16 %v4373
      %v4470 = vunpack.c.l.b16 %v4374
      %v4471 = vunpack.c.h.b16 %v4374
      %v4472 = vunpack.c.l.b16 %v4375
      %v4473 = vunpack.c.h.b16 %v4375
      %v4474 = vunpack.c.l.b16 %v4376
      %v4475 = vunpack.c.h.b16 %v4376
      %v4476 = vunpack.c.l.b16 %v4377
      %v4477 = vunpack.c.h.b16 %v4377
      %v4478 = vunpack.c.l.b16 %v4378
      %v4479 = vunpack.c.h.b16 %v4378
      %v4480 = vunpack.c.l.b16 %v4379
      %v4481 = vunpack.c.h.b16 %v4379
      %v4482 = vunpack.c.l.b16 %v4380
      %v4483 = vunpack.c.h.b16 %v4380
      %v4484 = vunpack.c.l.b16 %v4381
      %v4485 = vunpack.c.h.b16 %v4381
      %v4486 = vpack.c.b16 %v4424, %v4422
      %v4487 = vpack.c.b16 %v4425, %v4423
      %v4488 = vpack.c.b16 %v4428, %v4426
      %v4489 = vpack.c.b16 %v4429, %v4427
      %v4490 = vpack.c.b16 %v4432, %v4430
      %v4491 = vpack.c.b16 %v4433, %v4431
      %v4492 = vpack.c.b16 %v4436, %v4434
      %v4493 = vpack.c.b16 %v4437, %v4435
      %v4494 = vpack.c.b16 %v4440, %v4438
      %v4495 = vpack.c.b16 %v4441, %v4439
      %v4496 = vpack.c.b16 %v4444, %v4442
      %v4497 = vpack.c.b16 %v4445, %v4443
      %v4498 = vpack.c.b16 %v4448, %v4446
      %v4499 = vpack.c.b16 %v4449, %v4447
      %v4500 = vpack.c.b16 %v4452, %v4450
      %v4501 = vpack.c.b16 %v4453, %v4451
      %v4502 = vpack.c.b16 %v4456, %v4454
      %v4503 = vpack.c.b16 %v4457, %v4455
      %v4504 = vpack.c.b16 %v4460, %v4458
      %v4505 = vpack.c.b16 %v4461, %v4459
      %v4506 = vpack.c.b16 %v4464, %v4462
      %v4507 = vpack.c.b16 %v4465, %v4463
      %v4508 = vpack.c.b16 %v4468, %v4466
      %v4509 = vpack.c.b16 %v4469, %v4467
      %v4510 = vpack.c.b16 %v4472, %v4470
      %v4511 = vpack.c.b16 %v4473, %v4471
      %v4512 = vpack.c.b16 %v4476, %v4474
      %v4513 = vpack.c.b16 %v4477, %v4475
      %v4514 = vpack.c.b16 %v4480, %v4478
      %v4515 = vpack.c.b16 %v4481, %v4479
      %v4516 = vpack.c.b16 %v4484, %v4482
      %v4517 = vpack.c.b16 %v4485, %v4483
      %4550 = vmatprep.subr.bf16.mxu0 %v4487
      %4551 = vmatpush1.bf16.msra.mxu0 %v4486
      %4552 = vmatprep.subr.bf16.mxu0 %v4489
      %4553 = vmatpush1.bf16.msra.mxu0 %v4488
      %4554 = vmatprep.subr.bf16.mxu0 %v4491
      %4555 = vmatpush1.bf16.msra.mxu0 %v4490
      %4556 = vmatprep.subr.bf16.mxu0 %v4493
      %4557 = vmatpush1.bf16.msra.mxu0 %v4492
      %4558 = vmatprep.subr.bf16.mxu0 %v4495
      %4559 = vmatpush1.bf16.msra.mxu0 %v4494
      %4560 = vmatprep.subr.bf16.mxu0 %v4497
      %4561 = vmatpush1.bf16.msra.mxu0 %v4496
      %4562 = vmatprep.subr.bf16.mxu0 %v4499
      %4563 = vmatpush1.bf16.msra.mxu0 %v4498
      %4564 = vmatprep.subr.bf16.mxu0 %v4501
      %4565 = vmatpush1.bf16.msra.mxu0 %v4500
      %4566 = vmatprep.subr.bf16.mxu0 %v4503
      %4567 = vmatpush1.bf16.msra.mxu0 %v4502
      %4568 = vmatprep.subr.bf16.mxu0 %v4505
      %4569 = vmatpush1.bf16.msra.mxu0 %v4504
      %4570 = vmatprep.subr.bf16.mxu0 %v4507
      %4571 = vmatpush1.bf16.msra.mxu0 %v4506
      %4572 = vmatprep.subr.bf16.mxu0 %v4509
      %4573 = vmatpush1.bf16.msra.mxu0 %v4508
      %4574 = vmatprep.subr.bf16.mxu0 %v4511
      %4575 = vmatpush1.bf16.msra.mxu0 %v4510
      %4576 = vmatprep.subr.bf16.mxu0 %v4513
      %4577 = vmatpush1.bf16.msra.mxu0 %v4512
      %4578 = vmatprep.subr.bf16.mxu0 %v4515
      %4579 = vmatpush1.bf16.msra.mxu0 %v4514
      %4580 = vmatprep.subr.bf16.mxu0 %v4517
      %4581 = vmatpush1.bf16.msra.mxu0 %v4516
      %4582 = vmatprep.mubr.bf16.mxu0 %v823
      %4583 = vmatmul.mubr.bf16.gmra.mrb[0].mxu0 %v822
      %v4584 = vpop.f32.mrb[0].mxu0
      %v4585 = vadd.f32 0.0, %v4584
      %v4586 = vpop.f32.mrb[0].mxu0
      %v4587 = vadd.f32 0.0, %v4586
      %v4588 = vpop.f32.mrb[0].mxu0
      %v4589 = vadd.f32 0.0, %v4588
      %v4590 = vpop.f32.mrb[0].mxu0
      %v4591 = vadd.f32 0.0, %v4590
      %4592 = vmatprep.mubr.bf16.mxu0 %v825
      %4593 = vmatmul.mubr.bf16.gmra.mrb[0].mxu0 %v824
      %v4594 = vpop.f32.mrb[0].mxu0
      %v4595 = vadd.f32 0.0, %v4594
      %v4596 = vpop.f32.mrb[0].mxu0
      %v4597 = vadd.f32 0.0, %v4596
      %v4598 = vpop.f32.mrb[0].mxu0
      %v4599 = vadd.f32 0.0, %v4598
      %v4600 = vpop.f32.mrb[0].mxu0
      %v4601 = vadd.f32 0.0, %v4600
      %4602 = vmatprep.mubr.bf16.mxu0 %v827
      %4603 = vmatmul.mubr.bf16.gmra.mrb[0].mxu0 %v826
      %v4604 = vpop.f32.mrb[0].mxu0
      %v4605 = vadd.f32 0.0, %v4604
      %v4606 = vpop.f32.mrb[0].mxu0
      %v4607 = vadd.f32 0.0, %v4606
      %v4608 = vpop.f32.mrb[0].mxu0
      %v4609 = vadd.f32 0.0, %v4608
      %v4610 = vpop.f32.mrb[0].mxu0
      %v4611 = vadd.f32 0.0, %v4610
      %4612 = vmatprep.mubr.bf16.mxu0 %v829
      %4613 = vmatmul.mubr.bf16.gmra.mrb[0].mxu0 %v828
      %v4614 = vpop.f32.mrb[0].mxu0
      %v4615 = vadd.f32 0.0, %v4614
      %v4616 = vpop.f32.mrb[0].mxu0
      %v4617 = vadd.f32 0.0, %v4616
      %v4618 = vpop.f32.mrb[0].mxu0
      %v4619 = vadd.f32 0.0, %v4618
      %v4620 = vpop.f32.mrb[0].mxu0
      %v4621 = vadd.f32 0.0, %v4620
      %4622 = vmatprep.mubr.bf16.mxu0 %v831
      %4623 = vmatmul.mubr.bf16.gmra.mrb[0].mxu0 %v830
      %v4624 = vpop.f32.mrb[0].mxu0
      %v4625 = vadd.f32 0.0, %v4624
      %v4626 = vpop.f32.mrb[0].mxu0
      %v4627 = vadd.f32 0.0, %v4626
      %v4628 = vpop.f32.mrb[0].mxu0
      %v4629 = vadd.f32 0.0, %v4628
      %v4630 = vpop.f32.mrb[0].mxu0
      %v4631 = vadd.f32 0.0, %v4630
      %4632 = vmatprep.mubr.bf16.mxu0 %v833
      %4633 = vmatmul.mubr.bf16.gmra.mrb[0].mxu0 %v832
      %v4634 = vpop.f32.mrb[0].mxu0
      %v4635 = vadd.f32 0.0, %v4634
      %v4636 = vpop.f32.mrb[0].mxu0
      %v4637 = vadd.f32 0.0, %v4636
      %v4638 = vpop.f32.mrb[0].mxu0
      %v4639 = vadd.f32 0.0, %v4638
      %v4640 = vpop.f32.mrb[0].mxu0
      %v4641 = vadd.f32 0.0, %v4640
      %4642 = vmatprep.mubr.bf16.mxu0 %v835
      %4643 = vmatmul.mubr.bf16.gmra.mrb[0].mxu0 %v834
      %v4644 = vpop.f32.mrb[0].mxu0
      %v4645 = vadd.f32 0.0, %v4644
      %v4646 = vpop.f32.mrb[0].mxu0
      %v4647 = vadd.f32 0.0, %v4646
      %v4648 = vpop.f32.mrb[0].mxu0
      %v4649 = vadd.f32 0.0, %v4648
      %v4650 = vpop.f32.mrb[0].mxu0
      %v4651 = vadd.f32 0.0, %v4650
      %4652 = vmatprep.mubr.bf16.mxu0 %v837
      %4653 = vmatmul.mubr.bf16.gmra.mrb[0].mxu0 %v836
      %v4654 = vpop.f32.mrb[0].mxu0
      %v4655 = vadd.f32 0.0, %v4654
      %v4656 = vpop.f32.mrb[0].mxu0
      %v4657 = vadd.f32 0.0, %v4656
      %v4658 = vpop.f32.mrb[0].mxu0
      %v4659 = vadd.f32 0.0, %v4658
      %v4660 = vpop.f32.mrb[0].mxu0
      %v4661 = vadd.f32 0.0, %v4660
      %4662 = vmatprep.mubr.bf16.mxu0 %v839
      %4663 = vmatmul.mubr.bf16.gmra.mrb[0].mxu0 %v838
      %v4664 = vpop.f32.mrb[0].mxu0
      %v4665 = vadd.f32 0.0, %v4664
      %v4666 = vpop.f32.mrb[0].mxu0
      %v4667 = vadd.f32 0.0, %v4666
      %v4668 = vpop.f32.mrb[0].mxu0
      %v4669 = vadd.f32 0.0, %v4668
      %v4670 = vpop.f32.mrb[0].mxu0
      %v4671 = vadd.f32 0.0, %v4670
      %4672 = vmatprep.mubr.bf16.mxu0 %v841
      %4673 = vmatmul.mubr.bf16.gmra.mrb[0].mxu0 %v840
      %v4674 = vpop.f32.mrb[0].mxu0
      %v4675 = vadd.f32 0.0, %v4674
      %v4676 = vpop.f32.mrb[0].mxu0
      %v4677 = vadd.f32 0.0, %v4676
      %v4678 = vpop.f32.mrb[0].mxu0
      %v4679 = vadd.f32 0.0, %v4678
      %v4680 = vpop.f32.mrb[0].mxu0
      %v4681 = vadd.f32 0.0, %v4680
      %4682 = vmatprep.mubr.bf16.mxu0 %v843
      %4683 = vmatmul.mubr.bf16.gmra.mrb[0].mxu0 %v842
      %v4684 = vpop.f32.mrb[0].mxu0
      %v4685 = vadd.f32 0.0, %v4684
      %v4686 = vpop.f32.mrb[0].mxu0
      %v4687 = vadd.f32 0.0, %v4686
      %v4688 = vpop.f32.mrb[0].mxu0
      %v4689 = vadd.f32 0.0, %v4688
      %v4690 = vpop.f32.mrb[0].mxu0
      %v4691 = vadd.f32 0.0, %v4690
      %4692 = vmatprep.mubr.bf16.mxu0 %v845
      %4693 = vmatmul.mubr.bf16.gmra.mrb[0].mxu0 %v844
      %v4694 = vpop.f32.mrb[0].mxu0
      %v4695 = vadd.f32 0.0, %v4694
      %v4696 = vpop.f32.mrb[0].mxu0
      %v4697 = vadd.f32 0.0, %v4696
      %v4698 = vpop.f32.mrb[0].mxu0
      %v4699 = vadd.f32 0.0, %v4698
      %v4700 = vpop.f32.mrb[0].mxu0
      %v4701 = vadd.f32 0.0, %v4700
      %4702 = vmatprep.mubr.bf16.mxu0 %v847
      %4703 = vmatmul.mubr.bf16.gmra.mrb[0].mxu0 %v846
      %v4704 = vpop.f32.mrb[0].mxu0
      %v4705 = vadd.f32 0.0, %v4704
      %v4706 = vpop.f32.mrb[0].mxu0
      %v4707 = vadd.f32 0.0, %v4706
      %v4708 = vpop.f32.mrb[0].mxu0
      %v4709 = vadd.f32 0.0, %v4708
      %v4710 = vpop.f32.mrb[0].mxu0
      %v4711 = vadd.f32 0.0, %v4710
      %4712 = vmatprep.mubr.bf16.mxu0 %v849
      %4713 = vmatmul.mubr.bf16.gmra.mrb[0].mxu0 %v848
      %v4714 = vpop.f32.mrb[0].mxu0
      %v4715 = vadd.f32 0.0, %v4714
      %v4716 = vpop.f32.mrb[0].mxu0
      %v4717 = vadd.f32 0.0, %v4716
      %v4718 = vpop.f32.mrb[0].mxu0
      %v4719 = vadd.f32 0.0, %v4718
      %v4720 = vpop.f32.mrb[0].mxu0
      %v4721 = vadd.f32 0.0, %v4720
      %4722 = vmatprep.mubr.bf16.mxu0 %v2979
      %4723 = vmatmul.mubr.bf16.gmra.mrb[0].mxu0 %v2978
      %v4724 = vpop.f32.mrb[0].mxu0
      %v4725 = vadd.f32 0.0, %v4724
      %v4726 = vpop.f32.mrb[0].mxu0
      %v4727 = vadd.f32 0.0, %v4726
      %v4728 = vpop.f32.mrb[0].mxu0
      %v4729 = vadd.f32 0.0, %v4728
      %v4730 = vpop.f32.mrb[0].mxu0
      %v4731 = vadd.f32 0.0, %v4730
      %4732 = vmatprep.mubr.bf16.mxu0 %v4387
      %4733 = vmatmul.mubr.bf16.gmra.mrb[0].mxu0 %v4386
      %v4734 = vpop.f32.mrb[0].mxu0
      %v4735 = vadd.f32 0.0, %v4734
      %v4736 = vpop.f32.mrb[0].mxu0
      %v4737 = vadd.f32 0.0, %v4736
      %v4738 = vpop.f32.mrb[0].mxu0
      %v4739 = vadd.f32 0.0, %v4738
      %v4740 = vpop.f32.mrb[0].mxu0
      %v4741 = vadd.f32 0.0, %v4740
      %4742 = vdwg.mxu0
      %v4743 = vadd.f32 %v4261, %v4585
      %v4744 = vadd.f32 %v4262, %v4587
      %v4745 = vadd.f32 %v4263, %v4589
      %v4746 = vadd.f32 %v4264, %v4591
      %v4747 = vadd.f32 %v4265, %v4595
      %v4748 = vadd.f32 %v4266, %v4597
      %v4749 = vadd.f32 %v4267, %v4599
      %v4750 = vadd.f32 %v4268, %v4601
      %v4751 = vadd.f32 %v4269, %v4605
      %v4752 = vadd.f32 %v4270, %v4607
      %v4753 = vadd.f32 %v4271, %v4609
      %v4754 = vadd.f32 %v4272, %v4611
      %v4755 = vadd.f32 %v4273, %v4615
      %v4756 = vadd.f32 %v4274, %v4617
      %v4757 = vadd.f32 %v4275, %v4619
      %v4758 = vadd.f32 %v4276, %v4621
      %v4759 = vadd.f32 %v4277, %v4625
      %v4760 = vadd.f32 %v4278, %v4627
      %v4761 = vadd.f32 %v4279, %v4629
      %v4762 = vadd.f32 %v4280, %v4631
      %v4763 = vadd.f32 %v4281, %v4635
      %v4764 = vadd.f32 %v4282, %v4637
      %v4765 = vadd.f32 %v4283, %v4639
      %v4766 = vadd.f32 %v4284, %v4641
      %v4767 = vadd.f32 %v4285, %v4645
      %v4768 = vadd.f32 %v4286, %v4647
      %v4769 = vadd.f32 %v4287, %v4649
      %v4770 = vadd.f32 %v4288, %v4651
      %v4771 = vadd.f32 %v4289, %v4655
      %v4772 = vadd.f32 %v4290, %v4657
      %v4773 = vadd.f32 %v4291, %v4659
      %v4774 = vadd.f32 %v4292, %v4661
      %v4775 = vadd.f32 %v4293, %v4665
      %v4776 = vadd.f32 %v4294, %v4667
      %v4777 = vadd.f32 %v4295, %v4669
      %v4778 = vadd.f32 %v4296, %v4671
      %v4779 = vadd.f32 %v4297, %v4675
      %v4780 = vadd.f32 %v4298, %v4677
      %v4781 = vadd.f32 %v4299, %v4679
      %v4782 = vadd.f32 %v4300, %v4681
      %v4783 = vadd.f32 %v4301, %v4685
      %v4784 = vadd.f32 %v4302, %v4687
      %v4785 = vadd.f32 %v4303, %v4689
      %v4786 = vadd.f32 %v4304, %v4691
      %v4787 = vadd.f32 %v4305, %v4695
      %v4788 = vadd.f32 %v4306, %v4697
      %v4789 = vadd.f32 %v4307, %v4699
      %v4790 = vadd.f32 %v4308, %v4701
      %v4791 = vadd.f32 %v4309, %v4705
      %v4792 = vadd.f32 %v4310, %v4707
      %v4793 = vadd.f32 %v4311, %v4709
      %v4794 = vadd.f32 %v4312, %v4711
      %v4795 = vadd.f32 %v4313, %v4715
      %v4796 = vadd.f32 %v4314, %v4717
      %v4797 = vadd.f32 %v4315, %v4719
      %v4798 = vadd.f32 %v4316, %v4721
      %v4799 = vadd.f32 %v4317, %v4725
      %v4800 = vadd.f32 %v4318, %v4727
      %v4801 = vadd.f32 %v4319, %v4729
      %v4802 = vadd.f32 %v4320, %v4731
      %v4803 = vadd.f32 %v4321, %v4735
      %v4804 = vadd.f32 %v4322, %v4737
      %v4805 = vadd.f32 %v4323, %v4739
      %v4806 = vadd.f32 %v4324, %v4741
      %v4808 = vrot.slane %v299, 5
      %v4809 = vrot.slane %v4808, 4
      %v4810 = vrot.slane %v300, 5
      %v4811 = vsel %vm1766, %v4809, %v4810
      %v4812 = vrot.slane %v4810, 4
      %v4813 = vrot.slane %v301, 5
      %v4814 = vsel %vm1766, %v4812, %v4813
      %s4815 = scalar_lea.vmem %s1, 2048
      %v4816 = vld [vmem:[%s4815] sm:$0xff]
      %v4817 = vld [vmem:[%s4815 + $0x8] sm:$0xff]
      %v4818 = vld [vmem:[%s4815 + $0x10] sm:$0xff]
      %v4819 = vld [vmem:[%s4815 + $0x18] sm:$0xff]
      %v4820 = vld [vmem:[%s4815 + $0x20] sm:$0xff]
      %v4821 = vld [vmem:[%s4815 + $0x28] sm:$0xff]
      %v4822 = vld [vmem:[%s4815 + $0x30] sm:$0xff]
      %v4823 = vld [vmem:[%s4815 + $0x38] sm:$0xff]
      %v4824 = vld [vmem:[%s4815 + $0x40] sm:$0xff]
      %v4825 = vld [vmem:[%s4815 + $0x48] sm:$0xff]
      %v4826 = vld [vmem:[%s4815 + $0x50] sm:$0xff]
      %v4827 = vld [vmem:[%s4815 + $0x58] sm:$0xff]
      %v4828 = vld [vmem:[%s4815 + $0x60] sm:$0xff]
      %v4829 = vld [vmem:[%s4815 + $0x68] sm:$0xff]
      %v4830 = vld [vmem:[%s4815 + $0x70] sm:$0xff]
      %v4831 = vld [vmem:[%s4815 + $0x78] sm:$0xff]
      %v4832 = vld [vmem:[%s4815 + $0x80] sm:$0xff]
      %v4833 = vld [vmem:[%s4815 + $0x88] sm:$0xff]
      %v4834 = vld [vmem:[%s4815 + $0x90] sm:$0xff]
      %v4835 = vld [vmem:[%s4815 + $0x98] sm:$0xff]
      %v4836 = vld [vmem:[%s4815 + $0xa0] sm:$0xff]
      %v4837 = vld [vmem:[%s4815 + $0xa8] sm:$0xff]
      %v4838 = vld [vmem:[%s4815 + $0xb0] sm:$0xff]
      %v4839 = vld [vmem:[%s4815 + $0xb8] sm:$0xff]
      %v4840 = vld [vmem:[%s4815 + $0xc0] sm:$0xff]
      %v4841 = vld [vmem:[%s4815 + $0xc8] sm:$0xff]
      %v4842 = vld [vmem:[%s4815 + $0xd0] sm:$0xff]
      %v4843 = vld [vmem:[%s4815 + $0xd8] sm:$0xff]
      %v4844 = vld [vmem:[%s4815 + $0xe0] sm:$0xff]
      %v4845 = vld [vmem:[%s4815 + $0xe8] sm:$0xff]
      %v4846 = vld [vmem:[%s4815 + $0xf0] sm:$0xff]
      %v4847 = vld [vmem:[%s4815 + $0xf8] sm:$0xff]
      %v4848 = vunpack.c.l.b16 %v4811
      %v4849 = vunpack.c.h.b16 %v4811
      %v4850 = vunpack.c.l.b16 %v4814
      %v4851 = vunpack.c.h.b16 %v4814
      %v4852 = vpack.c.b16 %v4850, %v4848
      %v4853 = vpack.c.b16 %v4851, %v4849
      %v4888 = vunpack.c.l.b16 %v4816
      %v4889 = vunpack.c.h.b16 %v4816
      %v4890 = vunpack.c.l.b16 %v4817
      %v4891 = vunpack.c.h.b16 %v4817
      %v4892 = vunpack.c.l.b16 %v4818
      %v4893 = vunpack.c.h.b16 %v4818
      %v4894 = vunpack.c.l.b16 %v4819
      %v4895 = vunpack.c.h.b16 %v4819
      %v4896 = vunpack.c.l.b16 %v4820
      %v4897 = vunpack.c.h.b16 %v4820
      %v4898 = vunpack.c.l.b16 %v4821
      %v4899 = vunpack.c.h.b16 %v4821
      %v4900 = vunpack.c.l.b16 %v4822
      %v4901 = vunpack.c.h.b16 %v4822
      %v4902 = vunpack.c.l.b16 %v4823
      %v4903 = vunpack.c.h.b16 %v4823
      %v4904 = vunpack.c.l.b16 %v4824
      %v4905 = vunpack.c.h.b16 %v4824
      %v4906 = vunpack.c.l.b16 %v4825
      %v4907 = vunpack.c.h.b16 %v4825
      %v4908 = vunpack.c.l.b16 %v4826
      %v4909 = vunpack.c.h.b16 %v4826
      %v4910 = vunpack.c.l.b16 %v4827
      %v4911 = vunpack.c.h.b16 %v4827
      %v4912 = vunpack.c.l.b16 %v4828
      %v4913 = vunpack.c.h.b16 %v4828
      %v4914 = vunpack.c.l.b16 %v4829
      %v4915 = vunpack.c.h.b16 %v4829
      %v4916 = vunpack.c.l.b16 %v4830
      %v4917 = vunpack.c.h.b16 %v4830
      %v4918 = vunpack.c.l.b16 %v4831
      %v4919 = vunpack.c.h.b16 %v4831
      %v4920 = vunpack.c.l.b16 %v4832
      %v4921 = vunpack.c.h.b16 %v4832
      %v4922 = vunpack.c.l.b16 %v4833
      %v4923 = vunpack.c.h.b16 %v4833
      %v4924 = vunpack.c.l.b16 %v4834
      %v4925 = vunpack.c.h.b16 %v4834
      %v4926 = vunpack.c.l.b16 %v4835
      %v4927 = vunpack.c.h.b16 %v4835
      %v4928 = vunpack.c.l.b16 %v4836
      %v4929 = vunpack.c.h.b16 %v4836
      %v4930 = vunpack.c.l.b16 %v4837
      %v4931 = vunpack.c.h.b16 %v4837
      %v4932 = vunpack.c.l.b16 %v4838
      %v4933 = vunpack.c.h.b16 %v4838
      %v4934 = vunpack.c.l.b16 %v4839
      %v4935 = vunpack.c.h.b16 %v4839
      %v4936 = vunpack.c.l.b16 %v4840
      %v4937 = vunpack.c.h.b16 %v4840
      %v4938 = vunpack.c.l.b16 %v4841
      %v4939 = vunpack.c.h.b16 %v4841
      %v4940 = vunpack.c.l.b16 %v4842
      %v4941 = vunpack.c.h.b16 %v4842
      %v4942 = vunpack.c.l.b16 %v4843
      %v4943 = vunpack.c.h.b16 %v4843
      %v4944 = vunpack.c.l.b16 %v4844
      %v4945 = vunpack.c.h.b16 %v4844
      %v4946 = vunpack.c.l.b16 %v4845
      %v4947 = vunpack.c.h.b16 %v4845
      %v4948 = vunpack.c.l.b16 %v4846
      %v4949 = vunpack.c.h.b16 %v4846
      %v4950 = vunpack.c.l.b16 %v4847
      %v4951 = vunpack.c.h.b16 %v4847
      %v4952 = vpack.c.b16 %v4890, %v4888
      %v4953 = vpack.c.b16 %v4891, %v4889
      %v4954 = vpack.c.b16 %v4894, %v4892
      %v4955 = vpack.c.b16 %v4895, %v4893
      %v4956 = vpack.c.b16 %v4898, %v4896
      %v4957 = vpack.c.b16 %v4899, %v4897
      %v4958 = vpack.c.b16 %v4902, %v4900
      %v4959 = vpack.c.b16 %v4903, %v4901
      %v4960 = vpack.c.b16 %v4906, %v4904
      %v4961 = vpack.c.b16 %v4907, %v4905
      %v4962 = vpack.c.b16 %v4910, %v4908
      %v4963 = vpack.c.b16 %v4911, %v4909
      %v4964 = vpack.c.b16 %v4914, %v4912
      %v4965 = vpack.c.b16 %v4915, %v4913
      %v4966 = vpack.c.b16 %v4918, %v4916
      %v4967 = vpack.c.b16 %v4919, %v4917
      %v4968 = vpack.c.b16 %v4922, %v4920
      %v4969 = vpack.c.b16 %v4923, %v4921
      %v4970 = vpack.c.b16 %v4926, %v4924
      %v4971 = vpack.c.b16 %v4927, %v4925
      %v4972 = vpack.c.b16 %v4930, %v4928
      %v4973 = vpack.c.b16 %v4931, %v4929
      %v4974 = vpack.c.b16 %v4934, %v4932
      %v4975 = vpack.c.b16 %v4935, %v4933
      %v4976 = vpack.c.b16 %v4938, %v4936
      %v4977 = vpack.c.b16 %v4939, %v4937
      %v4978 = vpack.c.b16 %v4942, %v4940
      %v4979 = vpack.c.b16 %v4943, %v4941
      %v4980 = vpack.c.b16 %v4946, %v4944
      %v4981 = vpack.c.b16 %v4947, %v4945
      %v4982 = vpack.c.b16 %v4950, %v4948
      %v4983 = vpack.c.b16 %v4951, %v4949
      %5016 = vmatprep.subr.bf16.mxu0 %v4953
      %5017 = vmatpush1.bf16.msra.mxu0 %v4952
      %5018 = vmatprep.subr.bf16.mxu0 %v4955
      %5019 = vmatpush1.bf16.msra.mxu0 %v4954
      %5020 = vmatprep.subr.bf16.mxu0 %v4957
      %5021 = vmatpush1.bf16.msra.mxu0 %v4956
      %5022 = vmatprep.subr.bf16.mxu0 %v4959
      %5023 = vmatpush1.bf16.msra.mxu0 %v4958
      %5024 = vmatprep.subr.bf16.mxu0 %v4961
      %5025 = vmatpush1.bf16.msra.mxu0 %v4960
      %5026 = vmatprep.subr.bf16.mxu0 %v4963
      %5027 = vmatpush1.bf16.msra.mxu0 %v4962
      %5028 = vmatprep.subr.bf16.mxu0 %v4965
      %5029 = vmatpush1.bf16.msra.mxu0 %v4964
      %5030 = vmatprep.subr.bf16.mxu0 %v4967
      %5031 = vmatpush1.bf16.msra.mxu0 %v4966
      %5032 = vmatprep.subr.bf16.mxu0 %v4969
      %5033 = vmatpush1.bf16.msra.mxu0 %v4968
      %5034 = vmatprep.subr.bf16.mxu0 %v4971
      %5035 = vmatpush1.bf16.msra.mxu0 %v4970
      %5036 = vmatprep.subr.bf16.mxu0 %v4973
      %5037 = vmatpush1.bf16.msra.mxu0 %v4972
      %5038 = vmatprep.subr.bf16.mxu0 %v4975
      %5039 = vmatpush1.bf16.msra.mxu0 %v4974
      %5040 = vmatprep.subr.bf16.mxu0 %v4977
      %5041 = vmatpush1.bf16.msra.mxu0 %v4976
      %5042 = vmatprep.subr.bf16.mxu0 %v4979
      %5043 = vmatpush1.bf16.msra.mxu0 %v4978
      %5044 = vmatprep.subr.bf16.mxu0 %v4981
      %5045 = vmatpush1.bf16.msra.mxu0 %v4980
      %5046 = vmatprep.subr.bf16.mxu0 %v4983
      %5047 = vmatpush1.bf16.msra.mxu0 %v4982
      %5048 = vmatprep.mubr.bf16.mxu0 %v1981
      %5049 = vmatmul.mubr.bf16.gmra.mrb[0].mxu0 %v1980
      %v5050 = vpop.f32.mrb[0].mxu0
      %v5051 = vadd.f32 0.0, %v5050
      %v5052 = vpop.f32.mrb[0].mxu0
      %v5053 = vadd.f32 0.0, %v5052
      %v5054 = vpop.f32.mrb[0].mxu0
      %v5055 = vadd.f32 0.0, %v5054
      %v5056 = vpop.f32.mrb[0].mxu0
      %v5057 = vadd.f32 0.0, %v5056
      %5058 = vmatprep.mubr.bf16.mxu0 %v1983
      %5059 = vmatmul.mubr.bf16.gmra.mrb[0].mxu0 %v1982
      %v5060 = vpop.f32.mrb[0].mxu0
      %v5061 = vadd.f32 0.0, %v5060
      %v5062 = vpop.f32.mrb[0].mxu0
      %v5063 = vadd.f32 0.0, %v5062
      %v5064 = vpop.f32.mrb[0].mxu0
      %v5065 = vadd.f32 0.0, %v5064
      %v5066 = vpop.f32.mrb[0].mxu0
      %v5067 = vadd.f32 0.0, %v5066
      %5068 = vmatprep.mubr.bf16.mxu0 %v1985
      %5069 = vmatmul.mubr.bf16.gmra.mrb[0].mxu0 %v1984
      %v5070 = vpop.f32.mrb[0].mxu0
      %v5071 = vadd.f32 0.0, %v5070
      %v5072 = vpop.f32.mrb[0].mxu0
      %v5073 = vadd.f32 0.0, %v5072
      %v5074 = vpop.f32.mrb[0].mxu0
      %v5075 = vadd.f32 0.0, %v5074
      %v5076 = vpop.f32.mrb[0].mxu0
      %v5077 = vadd.f32 0.0, %v5076
      %5078 = vmatprep.mubr.bf16.mxu0 %v1987
      %5079 = vmatmul.mubr.bf16.gmra.mrb[0].mxu0 %v1986
      %v5080 = vpop.f32.mrb[0].mxu0
      %v5081 = vadd.f32 0.0, %v5080
      %v5082 = vpop.f32.mrb[0].mxu0
      %v5083 = vadd.f32 0.0, %v5082
      %v5084 = vpop.f32.mrb[0].mxu0
      %v5085 = vadd.f32 0.0, %v5084
      %v5086 = vpop.f32.mrb[0].mxu0
      %v5087 = vadd.f32 0.0, %v5086
      %5088 = vmatprep.mubr.bf16.mxu0 %v1989
      %5089 = vmatmul.mubr.bf16.gmra.mrb[0].mxu0 %v1988
      %v5090 = vpop.f32.mrb[0].mxu0
      %v5091 = vadd.f32 0.0, %v5090
      %v5092 = vpop.f32.mrb[0].mxu0
      %v5093 = vadd.f32 0.0, %v5092
      %v5094 = vpop.f32.mrb[0].mxu0
      %v5095 = vadd.f32 0.0, %v5094
      %v5096 = vpop.f32.mrb[0].mxu0
      %v5097 = vadd.f32 0.0, %v5096
      %5098 = vmatprep.mubr.bf16.mxu0 %v1991
      %5099 = vmatmul.mubr.bf16.gmra.mrb[0].mxu0 %v1990
      %v5100 = vpop.f32.mrb[0].mxu0
      %v5101 = vadd.f32 0.0, %v5100
      %v5102 = vpop.f32.mrb[0].mxu0
      %v5103 = vadd.f32 0.0, %v5102
      %v5104 = vpop.f32.mrb[0].mxu0
      %v5105 = vadd.f32 0.0, %v5104
      %v5106 = vpop.f32.mrb[0].mxu0
      %v5107 = vadd.f32 0.0, %v5106
      %5108 = vmatprep.mubr.bf16.mxu0 %v1993
      %5109 = vmatmul.mubr.bf16.gmra.mrb[0].mxu0 %v1992
      %v5110 = vpop.f32.mrb[0].mxu0
      %v5111 = vadd.f32 0.0, %v5110
      %v5112 = vpop.f32.mrb[0].mxu0
      %v5113 = vadd.f32 0.0, %v5112
      %v5114 = vpop.f32.mrb[0].mxu0
      %v5115 = vadd.f32 0.0, %v5114
      %v5116 = vpop.f32.mrb[0].mxu0
      %v5117 = vadd.f32 0.0, %v5116
      %5118 = vmatprep.mubr.bf16.mxu0 %v1995
      %5119 = vmatmul.mubr.bf16.gmra.mrb[0].mxu0 %v1994
      %v5120 = vpop.f32.mrb[0].mxu0
      %v5121 = vadd.f32 0.0, %v5120
      %v5122 = vpop.f32.mrb[0].mxu0
      %v5123 = vadd.f32 0.0, %v5122
      %v5124 = vpop.f32.mrb[0].mxu0
      %v5125 = vadd.f32 0.0, %v5124
      %v5126 = vpop.f32.mrb[0].mxu0
      %v5127 = vadd.f32 0.0, %v5126
      %5128 = vmatprep.mubr.bf16.mxu0 %v1997
      %5129 = vmatmul.mubr.bf16.gmra.mrb[0].mxu0 %v1996
      %v5130 = vpop.f32.mrb[0].mxu0
      %v5131 = vadd.f32 0.0, %v5130
      %v5132 = vpop.f32.mrb[0].mxu0
      %v5133 = vadd.f32 0.0, %v5132
      %v5134 = vpop.f32.mrb[0].mxu0
      %v5135 = vadd.f32 0.0, %v5134
      %v5136 = vpop.f32.mrb[0].mxu0
      %v5137 = vadd.f32 0.0, %v5136
      %5138 = vmatprep.mubr.bf16.mxu0 %v1999
      %5139 = vmatmul.mubr.bf16.gmra.mrb[0].mxu0 %v1998
      %v5140 = vpop.f32.mrb[0].mxu0
      %v5141 = vadd.f32 0.0, %v5140
      %v5142 = vpop.f32.mrb[0].mxu0
      %v5143 = vadd.f32 0.0, %v5142
      %v5144 = vpop.f32.mrb[0].mxu0
      %v5145 = vadd.f32 0.0, %v5144
      %v5146 = vpop.f32.mrb[0].mxu0
      %v5147 = vadd.f32 0.0, %v5146
      %5148 = vmatprep.mubr.bf16.mxu0 %v2001
      %5149 = vmatmul.mubr.bf16.gmra.mrb[0].mxu0 %v2000
      %v5150 = vpop.f32.mrb[0].mxu0
      %v5151 = vadd.f32 0.0, %v5150
      %v5152 = vpop.f32.mrb[0].mxu0
      %v5153 = vadd.f32 0.0, %v5152
      %v5154 = vpop.f32.mrb[0].mxu0
      %v5155 = vadd.f32 0.0, %v5154
      %v5156 = vpop.f32.mrb[0].mxu0
      %v5157 = vadd.f32 0.0, %v5156
      %5158 = vmatprep.mubr.bf16.mxu0 %v2003
      %5159 = vmatmul.mubr.bf16.gmra.mrb[0].mxu0 %v2002
      %v5160 = vpop.f32.mrb[0].mxu0
      %v5161 = vadd.f32 0.0, %v5160
      %v5162 = vpop.f32.mrb[0].mxu0
      %v5163 = vadd.f32 0.0, %v5162
      %v5164 = vpop.f32.mrb[0].mxu0
      %v5165 = vadd.f32 0.0, %v5164
      %v5166 = vpop.f32.mrb[0].mxu0
      %v5167 = vadd.f32 0.0, %v5166
      %5168 = vmatprep.mubr.bf16.mxu0 %v2005
      %5169 = vmatmul.mubr.bf16.gmra.mrb[0].mxu0 %v2004
      %v5170 = vpop.f32.mrb[0].mxu0
      %v5171 = vadd.f32 0.0, %v5170
      %v5172 = vpop.f32.mrb[0].mxu0
      %v5173 = vadd.f32 0.0, %v5172
      %v5174 = vpop.f32.mrb[0].mxu0
      %v5175 = vadd.f32 0.0, %v5174
      %v5176 = vpop.f32.mrb[0].mxu0
      %v5177 = vadd.f32 0.0, %v5176
      %5178 = vmatprep.mubr.bf16.mxu0 %v2007
      %5179 = vmatmul.mubr.bf16.gmra.mrb[0].mxu0 %v2006
      %v5180 = vpop.f32.mrb[0].mxu0
      %v5181 = vadd.f32 0.0, %v5180
      %v5182 = vpop.f32.mrb[0].mxu0
      %v5183 = vadd.f32 0.0, %v5182
      %v5184 = vpop.f32.mrb[0].mxu0
      %v5185 = vadd.f32 0.0, %v5184
      %v5186 = vpop.f32.mrb[0].mxu0
      %v5187 = vadd.f32 0.0, %v5186
      %5188 = vmatprep.mubr.bf16.mxu0 %v3445
      %5189 = vmatmul.mubr.bf16.gmra.mrb[0].mxu0 %v3444
      %v5190 = vpop.f32.mrb[0].mxu0
      %v5191 = vadd.f32 0.0, %v5190
      %v5192 = vpop.f32.mrb[0].mxu0
      %v5193 = vadd.f32 0.0, %v5192
      %v5194 = vpop.f32.mrb[0].mxu0
      %v5195 = vadd.f32 0.0, %v5194
      %v5196 = vpop.f32.mrb[0].mxu0
      %v5197 = vadd.f32 0.0, %v5196
      %5198 = vmatprep.mubr.bf16.mxu0 %v4853
      %5199 = vmatmul.mubr.bf16.gmra.mrb[0].mxu0 %v4852
      %v5200 = vpop.f32.mrb[0].mxu0
      %v5201 = vadd.f32 0.0, %v5200
      %v5202 = vpop.f32.mrb[0].mxu0
      %v5203 = vadd.f32 0.0, %v5202
      %v5204 = vpop.f32.mrb[0].mxu0
      %v5205 = vadd.f32 0.0, %v5204
      %v5206 = vpop.f32.mrb[0].mxu0
      %v5207 = vadd.f32 0.0, %v5206
      %5208 = vdwg.mxu0
      %v5209 = vadd.f32 %v4743, %v5051
      %v5210 = vadd.f32 %v4744, %v5053
      %v5211 = vadd.f32 %v4745, %v5055
      %v5212 = vadd.f32 %v4746, %v5057
      %v5213 = vadd.f32 %v4747, %v5061
      %v5214 = vadd.f32 %v4748, %v5063
      %v5215 = vadd.f32 %v4749, %v5065
      %v5216 = vadd.f32 %v4750, %v5067
      %v5217 = vadd.f32 %v4751, %v5071
      %v5218 = vadd.f32 %v4752, %v5073
      %v5219 = vadd.f32 %v4753, %v5075
      %v5220 = vadd.f32 %v4754, %v5077
      %v5221 = vadd.f32 %v4755, %v5081
      %v5222 = vadd.f32 %v4756, %v5083
      %v5223 = vadd.f32 %v4757, %v5085
      %v5224 = vadd.f32 %v4758, %v5087
      %v5225 = vadd.f32 %v4759, %v5091
      %v5226 = vadd.f32 %v4760, %v5093
      %v5227 = vadd.f32 %v4761, %v5095
      %v5228 = vadd.f32 %v4762, %v5097
      %v5229 = vadd.f32 %v4763, %v5101
      %v5230 = vadd.f32 %v4764, %v5103
      %v5231 = vadd.f32 %v4765, %v5105
      %v5232 = vadd.f32 %v4766, %v5107
      %v5233 = vadd.f32 %v4767, %v5111
      %v5234 = vadd.f32 %v4768, %v5113
      %v5235 = vadd.f32 %v4769, %v5115
      %v5236 = vadd.f32 %v4770, %v5117
      %v5237 = vadd.f32 %v4771, %v5121
      %v5238 = vadd.f32 %v4772, %v5123
      %v5239 = vadd.f32 %v4773, %v5125
      %v5240 = vadd.f32 %v4774, %v5127
      %v5241 = vadd.f32 %v4775, %v5131
      %v5242 = vadd.f32 %v4776, %v5133
      %v5243 = vadd.f32 %v4777, %v5135
      %v5244 = vadd.f32 %v4778, %v5137
      %v5245 = vadd.f32 %v4779, %v5141
      %v5246 = vadd.f32 %v4780, %v5143
      %v5247 = vadd.f32 %v4781, %v5145
      %v5248 = vadd.f32 %v4782, %v5147
      %v5249 = vadd.f32 %v4783, %v5151
      %v5250 = vadd.f32 %v4784, %v5153
      %v5251 = vadd.f32 %v4785, %v5155
      %v5252 = vadd.f32 %v4786, %v5157
      %v5253 = vadd.f32 %v4787, %v5161
      %v5254 = vadd.f32 %v4788, %v5163
      %v5255 = vadd.f32 %v4789, %v5165
      %v5256 = vadd.f32 %v4790, %v5167
      %v5257 = vadd.f32 %v4791, %v5171
      %v5258 = vadd.f32 %v4792, %v5173
      %v5259 = vadd.f32 %v4793, %v5175
      %v5260 = vadd.f32 %v4794, %v5177
      %v5261 = vadd.f32 %v4795, %v5181
      %v5262 = vadd.f32 %v4796, %v5183
      %v5263 = vadd.f32 %v4797, %v5185
      %v5264 = vadd.f32 %v4798, %v5187
      %v5265 = vadd.f32 %v4799, %v5191
      %v5266 = vadd.f32 %v4800, %v5193
      %v5267 = vadd.f32 %v4801, %v5195
      %v5268 = vadd.f32 %v4802, %v5197
      %v5269 = vadd.f32 %v4803, %v5201
      %v5270 = vadd.f32 %v4804, %v5203
      %v5271 = vadd.f32 %v4805, %v5205
      %v5272 = vadd.f32 %v4806, %v5207
      %v5273 = vadd.f32 %v5209, %v5211
      %v5274 = vadd.f32 %v5273, %v5213
      %v5275 = vadd.f32 %v5274, %v5215
      %v5276 = vadd.f32 %v5275, %v5217
      %v5277 = vadd.f32 %v5276, %v5219
      %v5278 = vadd.f32 %v5277, %v5221
      %v5279 = vadd.f32 %v5278, %v5223
      %v5280 = vadd.f32 %v5279, %v5225
      %v5281 = vadd.f32 %v5280, %v5227
      %v5282 = vadd.f32 %v5281, %v5229
      %v5283 = vadd.f32 %v5282, %v5231
      %v5284 = vadd.f32 %v5283, %v5233
      %v5285 = vadd.f32 %v5284, %v5235
      %v5286 = vadd.f32 %v5285, %v5237
      %v5287 = vadd.f32 %v5286, %v5239
      %v5288 = vadd.f32 %v5287, %v5241
      %v5289 = vadd.f32 %v5288, %v5243
      %v5290 = vadd.f32 %v5289, %v5245
      %v5291 = vadd.f32 %v5290, %v5247
      %v5292 = vadd.f32 %v5291, %v5249
      %v5293 = vadd.f32 %v5292, %v5251
      %v5294 = vadd.f32 %v5293, %v5253
      %v5295 = vadd.f32 %v5294, %v5255
      %v5296 = vadd.f32 %v5295, %v5257
      %v5297 = vadd.f32 %v5296, %v5259
      %v5298 = vadd.f32 %v5297, %v5261
      %v5299 = vadd.f32 %v5298, %v5263
      %v5300 = vadd.f32 %v5299, %v5265
      %v5301 = vadd.f32 %v5300, %v5267
      %v5302 = vadd.f32 %v5301, %v5269
      %v5303 = vadd.f32 %v5302, %v5271
      %v5304 = vrot.slane %v5303, 4
      %v5305 = vadd.f32 %v5303, %v5304
      %v5306 = vrot.slane %v5305, 2
      %v5307 = vadd.f32 %v5305, %v5306
      %v5308 = vrot.slane %v5307, 1
      %v5309 = vadd.f32 %v5307, %v5308
      %v5310 = vadd.f32 %v5210, %v5212
      %v5311 = vadd.f32 %v5310, %v5214
      %v5312 = vadd.f32 %v5311, %v5216
      %v5313 = vadd.f32 %v5312, %v5218
      %v5314 = vadd.f32 %v5313, %v5220
      %v5315 = vadd.f32 %v5314, %v5222
      %v5316 = vadd.f32 %v5315, %v5224
      %v5317 = vadd.f32 %v5316, %v5226
      %v5318 = vadd.f32 %v5317, %v5228
      %v5319 = vadd.f32 %v5318, %v5230
      %v5320 = vadd.f32 %v5319, %v5232
      %v5321 = vadd.f32 %v5320, %v5234
      %v5322 = vadd.f32 %v5321, %v5236
      %v5323 = vadd.f32 %v5322, %v5238
      %v5324 = vadd.f32 %v5323, %v5240
      %v5325 = vadd.f32 %v5324, %v5242
      %v5326 = vadd.f32 %v5325, %v5244
      %v5327 = vadd.f32 %v5326, %v5246
      %v5328 = vadd.f32 %v5327, %v5248
      %v5329 = vadd.f32 %v5328, %v5250
      %v5330 = vadd.f32 %v5329, %v5252
      %v5331 = vadd.f32 %v5330, %v5254
      %v5332 = vadd.f32 %v5331, %v5256
      %v5333 = vadd.f32 %v5332, %v5258
      %v5334 = vadd.f32 %v5333, %v5260
      %v5335 = vadd.f32 %v5334, %v5262
      %v5336 = vadd.f32 %v5335, %v5264
      %v5337 = vadd.f32 %v5336, %v5266
      %v5338 = vadd.f32 %v5337, %v5268
      %v5339 = vadd.f32 %v5338, %v5270
      %v5340 = vadd.f32 %v5339, %v5272
      %v5341 = vrot.slane %v5340, 4
      %v5342 = vadd.f32 %v5340, %v5341
      %v5343 = vrot.slane %v5342, 2
      %v5344 = vadd.f32 %v5342, %v5343
      %v5345 = vrot.slane %v5344, 1
      %v5346 = vadd.f32 %v5344, %v5345
      %v5347 = vmul.f32 %v5209, %v5209
      %v5348 = vmul.f32 %v5210, %v5210
      %v5349 = vmul.f32 %v5211, %v5211
      %v5350 = vmul.f32 %v5212, %v5212
      %v5351 = vmul.f32 %v5213, %v5213
      %v5352 = vmul.f32 %v5214, %v5214
      %v5353 = vmul.f32 %v5215, %v5215
      %v5354 = vmul.f32 %v5216, %v5216
      %v5355 = vmul.f32 %v5217, %v5217
      %v5356 = vmul.f32 %v5218, %v5218
      %v5357 = vmul.f32 %v5219, %v5219
      %v5358 = vmul.f32 %v5220, %v5220
      %v5359 = vmul.f32 %v5221, %v5221
      %v5360 = vmul.f32 %v5222, %v5222
      %v5361 = vmul.f32 %v5223, %v5223
      %v5362 = vmul.f32 %v5224, %v5224
      %v5363 = vmul.f32 %v5225, %v5225
      %v5364 = vmul.f32 %v5226, %v5226
      %v5365 = vmul.f32 %v5227, %v5227
      %v5366 = vmul.f32 %v5228, %v5228
      %v5367 = vmul.f32 %v5229, %v5229
      %v5368 = vmul.f32 %v5230, %v5230
      %v5369 = vmul.f32 %v5231, %v5231
      %v5370 = vmul.f32 %v5232, %v5232
      %v5371 = vmul.f32 %v5233, %v5233
      %v5372 = vmul.f32 %v5234, %v5234
      %v5373 = vmul.f32 %v5235, %v5235
      %v5374 = vmul.f32 %v5236, %v5236
      %v5375 = vmul.f32 %v5237, %v5237
      %v5376 = vmul.f32 %v5238, %v5238
      %v5377 = vmul.f32 %v5239, %v5239
      %v5378 = vmul.f32 %v5240, %v5240
      %v5379 = vmul.f32 %v5241, %v5241
      %v5380 = vmul.f32 %v5242, %v5242
      %v5381 = vmul.f32 %v5243, %v5243
      %v5382 = vmul.f32 %v5244, %v5244
      %v5383 = vmul.f32 %v5245, %v5245
      %v5384 = vmul.f32 %v5246, %v5246
      %v5385 = vmul.f32 %v5247, %v5247
      %v5386 = vmul.f32 %v5248, %v5248
      %v5387 = vmul.f32 %v5249, %v5249
      %v5388 = vmul.f32 %v5250, %v5250
      %v5389 = vmul.f32 %v5251, %v5251
      %v5390 = vmul.f32 %v5252, %v5252
      %v5391 = vmul.f32 %v5253, %v5253
      %v5392 = vmul.f32 %v5254, %v5254
      %v5393 = vmul.f32 %v5255, %v5255
      %v5394 = vmul.f32 %v5256, %v5256
      %v5395 = vmul.f32 %v5257, %v5257
      %v5396 = vmul.f32 %v5258, %v5258
      %v5397 = vmul.f32 %v5259, %v5259
      %v5398 = vmul.f32 %v5260, %v5260
      %v5399 = vmul.f32 %v5261, %v5261
      %v5400 = vmul.f32 %v5262, %v5262
      %v5401 = vmul.f32 %v5263, %v5263
      %v5402 = vmul.f32 %v5264, %v5264
      %v5403 = vmul.f32 %v5265, %v5265
      %v5404 = vmul.f32 %v5266, %v5266
      %v5405 = vmul.f32 %v5267, %v5267
      %v5406 = vmul.f32 %v5268, %v5268
      %v5407 = vmul.f32 %v5269, %v5269
      %v5408 = vmul.f32 %v5270, %v5270
      %v5409 = vmul.f32 %v5271, %v5271
      %v5410 = vmul.f32 %v5272, %v5272
      %v5411 = vadd.f32 %v5347, %v5349
      %v5412 = vadd.f32 %v5411, %v5351
      %v5413 = vadd.f32 %v5412, %v5353
      %v5414 = vadd.f32 %v5413, %v5355
      %v5415 = vadd.f32 %v5414, %v5357
      %v5416 = vadd.f32 %v5415, %v5359
      %v5417 = vadd.f32 %v5416, %v5361
      %v5418 = vadd.f32 %v5417, %v5363
      %v5419 = vadd.f32 %v5418, %v5365
      %v5420 = vadd.f32 %v5419, %v5367
      %v5421 = vadd.f32 %v5420, %v5369
      %v5422 = vadd.f32 %v5421, %v5371
      %v5423 = vadd.f32 %v5422, %v5373
      %v5424 = vadd.f32 %v5423, %v5375
      %v5425 = vadd.f32 %v5424, %v5377
      %v5426 = vadd.f32 %v5425, %v5379
      %v5427 = vadd.f32 %v5426, %v5381
      %v5428 = vadd.f32 %v5427, %v5383
      %v5429 = vadd.f32 %v5428, %v5385
      %v5430 = vadd.f32 %v5429, %v5387
      %v5431 = vadd.f32 %v5430, %v5389
      %v5432 = vadd.f32 %v5431, %v5391
      %v5433 = vadd.f32 %v5432, %v5393
      %v5434 = vadd.f32 %v5433, %v5395
      %v5435 = vadd.f32 %v5434, %v5397
      %v5436 = vadd.f32 %v5435, %v5399
      %v5437 = vadd.f32 %v5436, %v5401
      %v5438 = vadd.f32 %v5437, %v5403
      %v5439 = vadd.f32 %v5438, %v5405
      %v5440 = vadd.f32 %v5439, %v5407
      %v5441 = vadd.f32 %v5440, %v5409
      %v5442 = vrot.slane %v5441, 4
      %v5443 = vadd.f32 %v5441, %v5442
      %v5444 = vrot.slane %v5443, 2
      %v5445 = vadd.f32 %v5443, %v5444
      %v5446 = vrot.slane %v5445, 1
      %v5447 = vadd.f32 %v5445, %v5446
      %v5448 = vadd.f32 %v5348, %v5350
      %v5449 = vadd.f32 %v5448, %v5352
      %v5450 = vadd.f32 %v5449, %v5354
      %v5451 = vadd.f32 %v5450, %v5356
      %v5452 = vadd.f32 %v5451, %v5358
      %v5453 = vadd.f32 %v5452, %v5360
      %v5454 = vadd.f32 %v5453, %v5362
      %v5455 = vadd.f32 %v5454, %v5364
      %v5456 = vadd.f32 %v5455, %v5366
      %v5457 = vadd.f32 %v5456, %v5368
      %v5458 = vadd.f32 %v5457, %v5370
      %v5459 = vadd.f32 %v5458, %v5372
      %v5460 = vadd.f32 %v5459, %v5374
      %v5461 = vadd.f32 %v5460, %v5376
      %v5462 = vadd.f32 %v5461, %v5378
      %v5463 = vadd.f32 %v5462, %v5380
      %v5464 = vadd.f32 %v5463, %v5382
      %v5465 = vadd.f32 %v5464, %v5384
      %v5466 = vadd.f32 %v5465, %v5386
      %v5467 = vadd.f32 %v5466, %v5388
      %v5468 = vadd.f32 %v5467, %v5390
      %v5469 = vadd.f32 %v5468, %v5392
      %v5470 = vadd.f32 %v5469, %v5394
      %v5471 = vadd.f32 %v5470, %v5396
      %v5472 = vadd.f32 %v5471, %v5398
      %v5473 = vadd.f32 %v5472, %v5400
      %v5474 = vadd.f32 %v5473, %v5402
      %v5475 = vadd.f32 %v5474, %v5404
      %v5476 = vadd.f32 %v5475, %v5406
      %v5477 = vadd.f32 %v5476, %v5408
      %v5478 = vadd.f32 %v5477, %v5410
      %v5479 = vrot.slane %v5478, 4
      %v5480 = vadd.f32 %v5478, %v5479
      %v5481 = vrot.slane %v5480, 2
      %v5482 = vadd.f32 %v5480, %v5481
      %v5483 = vrot.slane %v5482, 1
      %v5484 = vadd.f32 %v5482, %v5483
      %vm5485 = vcmask 1040384
      %v5486 = vsel %vm5485, %v5309, %v5447
      %v5487 = vsel %vm5485, %v5346, %v5484
      %v5490 = vcombine.low %v5486, %v5487
      %v5492 = vunpack.c.l.s4 1983009808
      %v5493 = vunpack.c.0.s8 %v5492
      %v5494 = vlaneseq
      %v5495 = vshrl.u32 %v5494, 7
      %v5496 = vsub.s32 %v5493, %v5495
      %v5497 = vrot.slane %v5490, %v5496
      %5499 = vst [vmem:[%s246] sm:$0xf] %v5497
      %v5500 = vld [vmem:[%s2] sm:$0x3]
      %v5502 = vlaneseq
      %v5503 = vshrl.u32 %v5502, 7
      %v5504 = vsub.s32 0, %v5503
      %v5505 = vrot.slane %v5500, %v5504
      %v5506 = vlaneseq
      %v5507 = vshrl.u32 %v5506, 7
      %v5508 = vsub.s32 1, %v5507
      %v5509 = vrot.slane %v5500, %v5508
      %v5512 = vadd.f32 %v5209, %v5505
      %v5513 = vadd.f32 %v5210, %v5509
      %v5514 = vadd.f32 %v5211, %v5505
      %v5515 = vadd.f32 %v5212, %v5509
      %v5516 = vadd.f32 %v5213, %v5505
      %v5517 = vadd.f32 %v5214, %v5509
      %v5518 = vadd.f32 %v5215, %v5505
      %v5519 = vadd.f32 %v5216, %v5509
      %v5520 = vadd.f32 %v5217, %v5505
      %v5521 = vadd.f32 %v5218, %v5509
      %v5522 = vadd.f32 %v5219, %v5505
      %v5523 = vadd.f32 %v5220, %v5509
      %v5524 = vadd.f32 %v5221, %v5505
      %v5525 = vadd.f32 %v5222, %v5509
      %v5526 = vadd.f32 %v5223, %v5505
      %v5527 = vadd.f32 %v5224, %v5509
      %v5528 = vadd.f32 %v5225, %v5505
      %v5529 = vadd.f32 %v5226, %v5509
      %v5530 = vadd.f32 %v5227, %v5505
      %v5531 = vadd.f32 %v5228, %v5509
      %v5532 = vadd.f32 %v5229, %v5505
      %v5533 = vadd.f32 %v5230, %v5509
      %v5534 = vadd.f32 %v5231, %v5505
      %v5535 = vadd.f32 %v5232, %v5509
      %v5536 = vadd.f32 %v5233, %v5505
      %v5537 = vadd.f32 %v5234, %v5509
      %v5538 = vadd.f32 %v5235, %v5505
      %v5539 = vadd.f32 %v5236, %v5509
      %v5540 = vadd.f32 %v5237, %v5505
      %v5541 = vadd.f32 %v5238, %v5509
      %v5542 = vadd.f32 %v5239, %v5505
      %v5543 = vadd.f32 %v5240, %v5509
      %v5544 = vadd.f32 %v5241, %v5505
      %v5545 = vadd.f32 %v5242, %v5509
      %v5546 = vadd.f32 %v5243, %v5505
      %v5547 = vadd.f32 %v5244, %v5509
      %v5548 = vadd.f32 %v5245, %v5505
      %v5549 = vadd.f32 %v5246, %v5509
      %v5550 = vadd.f32 %v5247, %v5505
      %v5551 = vadd.f32 %v5248, %v5509
      %v5552 = vadd.f32 %v5249, %v5505
      %v5553 = vadd.f32 %v5250, %v5509
      %v5554 = vadd.f32 %v5251, %v5505
      %v5555 = vadd.f32 %v5252, %v5509
      %v5556 = vadd.f32 %v5253, %v5505
      %v5557 = vadd.f32 %v5254, %v5509
      %v5558 = vadd.f32 %v5255, %v5505
      %v5559 = vadd.f32 %v5256, %v5509
      %v5560 = vadd.f32 %v5257, %v5505
      %v5561 = vadd.f32 %v5258, %v5509
      %v5562 = vadd.f32 %v5259, %v5505
      %v5563 = vadd.f32 %v5260, %v5509
      %v5564 = vadd.f32 %v5261, %v5505
      %v5565 = vadd.f32 %v5262, %v5509
      %v5566 = vadd.f32 %v5263, %v5505
      %v5567 = vadd.f32 %v5264, %v5509
      %v5568 = vadd.f32 %v5265, %v5505
      %v5569 = vadd.f32 %v5266, %v5509
      %v5570 = vadd.f32 %v5267, %v5505
      %v5571 = vadd.f32 %v5268, %v5509
      %v5572 = vadd.f32 %v5269, %v5505
      %v5573 = vadd.f32 %v5270, %v5509
      %v5574 = vadd.f32 %v5271, %v5505
      %v5575 = vadd.f32 %v5272, %v5509
      %v5576 = vpack.c.bf16 %v5514, %v5512
      %v5577 = vpack.c.bf16 %v5515, %v5513
      %v5578 = vpack.c.bf16 %v5518, %v5516
      %v5579 = vpack.c.bf16 %v5519, %v5517
      %v5580 = vpack.c.bf16 %v5522, %v5520
      %v5581 = vpack.c.bf16 %v5523, %v5521
      %v5582 = vpack.c.bf16 %v5526, %v5524
      %v5583 = vpack.c.bf16 %v5527, %v5525
      %v5584 = vpack.c.bf16 %v5530, %v5528
      %v5585 = vpack.c.bf16 %v5531, %v5529
      %v5586 = vpack.c.bf16 %v5534, %v5532
      %v5587 = vpack.c.bf16 %v5535, %v5533
      %v5588 = vpack.c.bf16 %v5538, %v5536
      %v5589 = vpack.c.bf16 %v5539, %v5537
      %v5590 = vpack.c.bf16 %v5542, %v5540
      %v5591 = vpack.c.bf16 %v5543, %v5541
      %v5592 = vpack.c.bf16 %v5546, %v5544
      %v5593 = vpack.c.bf16 %v5547, %v5545
      %v5594 = vpack.c.bf16 %v5550, %v5548
      %v5595 = vpack.c.bf16 %v5551, %v5549
      %v5596 = vpack.c.bf16 %v5554, %v5552
      %v5597 = vpack.c.bf16 %v5555, %v5553
      %v5598 = vpack.c.bf16 %v5558, %v5556
      %v5599 = vpack.c.bf16 %v5559, %v5557
      %v5600 = vpack.c.bf16 %v5562, %v5560
      %v5601 = vpack.c.bf16 %v5563, %v5561
      %v5602 = vpack.c.bf16 %v5566, %v5564
      %v5603 = vpack.c.bf16 %v5567, %v5565
      %v5604 = vpack.c.bf16 %v5570, %v5568
      %v5605 = vpack.c.bf16 %v5571, %v5569
      %v5606 = vpack.c.bf16 %v5574, %v5572
      %v5607 = vpack.c.bf16 %v5575, %v5573
      %v5640 = vunpack.c.l.b16 %v5576
      %v5641 = vunpack.c.l.b16 %v5577
      %v5642 = vunpack.c.h.b16 %v5576
      %v5643 = vunpack.c.h.b16 %v5577
      %v5644 = vunpack.c.l.b16 %v5578
      %v5645 = vunpack.c.l.b16 %v5579
      %v5646 = vunpack.c.h.b16 %v5578
      %v5647 = vunpack.c.h.b16 %v5579
      %v5648 = vunpack.c.l.b16 %v5580
      %v5649 = vunpack.c.l.b16 %v5581
      %v5650 = vunpack.c.h.b16 %v5580
      %v5651 = vunpack.c.h.b16 %v5581
      %v5652 = vunpack.c.l.b16 %v5582
      %v5653 = vunpack.c.l.b16 %v5583
      %v5654 = vunpack.c.h.b16 %v5582
      %v5655 = vunpack.c.h.b16 %v5583
      %v5656 = vunpack.c.l.b16 %v5584
      %v5657 = vunpack.c.l.b16 %v5585
      %v5658 = vunpack.c.h.b16 %v5584
      %v5659 = vunpack.c.h.b16 %v5585
      %v5660 = vunpack.c.l.b16 %v5586
      %v5661 = vunpack.c.l.b16 %v5587
      %v5662 = vunpack.c.h.b16 %v5586
      %v5663 = vunpack.c.h.b16 %v5587
      %v5664 = vunpack.c.l.b16 %v5588
      %v5665 = vunpack.c.l.b16 %v5589
      %v5666 = vunpack.c.h.b16 %v5588
      %v5667 = vunpack.c.h.b16 %v5589
      %v5668 = vunpack.c.l.b16 %v5590
      %v5669 = vunpack.c.l.b16 %v5591
      %v5670 = vunpack.c.h.b16 %v5590
      %v5671 = vunpack.c.h.b16 %v5591
      %v5672 = vunpack.c.l.b16 %v5592
      %v5673 = vunpack.c.l.b16 %v5593
      %v5674 = vunpack.c.h.b16 %v5592
      %v5675 = vunpack.c.h.b16 %v5593
      %v5676 = vunpack.c.l.b16 %v5594
      %v5677 = vunpack.c.l.b16 %v5595
      %v5678 = vunpack.c.h.b16 %v5594
      %v5679 = vunpack.c.h.b16 %v5595
      %v5680 = vunpack.c.l.b16 %v5596
      %v5681 = vunpack.c.l.b16 %v5597
      %v5682 = vunpack.c.h.b16 %v5596
      %v5683 = vunpack.c.h.b16 %v5597
      %v5684 = vunpack.c.l.b16 %v5598
      %v5685 = vunpack.c.l.b16 %v5599
      %v5686 = vunpack.c.h.b16 %v5598
      %v5687 = vunpack.c.h.b16 %v5599
      %v5688 = vunpack.c.l.b16 %v5600
      %v5689 = vunpack.c.l.b16 %v5601
      %v5690 = vunpack.c.h.b16 %v5600
      %v5691 = vunpack.c.h.b16 %v5601
      %v5692 = vunpack.c.l.b16 %v5602
      %v5693 = vunpack.c.l.b16 %v5603
      %v5694 = vunpack.c.h.b16 %v5602
      %v5695 = vunpack.c.h.b16 %v5603
      %v5696 = vunpack.c.l.b16 %v5604
      %v5697 = vunpack.c.l.b16 %v5605
      %v5698 = vunpack.c.h.b16 %v5604
      %v5699 = vunpack.c.h.b16 %v5605
      %v5700 = vunpack.c.l.b16 %v5606
      %v5701 = vunpack.c.l.b16 %v5607
      %v5702 = vunpack.c.h.b16 %v5606
      %v5703 = vunpack.c.h.b16 %v5607
      %v5704 = vpack.c.b16 %v5641, %v5640
      %v5705 = vpack.c.b16 %v5643, %v5642
      %v5706 = vpack.c.b16 %v5645, %v5644
      %v5707 = vpack.c.b16 %v5647, %v5646
      %v5708 = vpack.c.b16 %v5649, %v5648
      %v5709 = vpack.c.b16 %v5651, %v5650
      %v5710 = vpack.c.b16 %v5653, %v5652
      %v5711 = vpack.c.b16 %v5655, %v5654
      %v5712 = vpack.c.b16 %v5657, %v5656
      %v5713 = vpack.c.b16 %v5659, %v5658
      %v5714 = vpack.c.b16 %v5661, %v5660
      %v5715 = vpack.c.b16 %v5663, %v5662
      %v5716 = vpack.c.b16 %v5665, %v5664
      %v5717 = vpack.c.b16 %v5667, %v5666
      %v5718 = vpack.c.b16 %v5669, %v5668
      %v5719 = vpack.c.b16 %v5671, %v5670
      %v5720 = vpack.c.b16 %v5673, %v5672
      %v5721 = vpack.c.b16 %v5675, %v5674
      %v5722 = vpack.c.b16 %v5677, %v5676
      %v5723 = vpack.c.b16 %v5679, %v5678
      %v5724 = vpack.c.b16 %v5681, %v5680
      %v5725 = vpack.c.b16 %v5683, %v5682
      %v5726 = vpack.c.b16 %v5685, %v5684
      %v5727 = vpack.c.b16 %v5687, %v5686
      %v5728 = vpack.c.b16 %v5689, %v5688
      %v5729 = vpack.c.b16 %v5691, %v5690
      %v5730 = vpack.c.b16 %v5693, %v5692
      %v5731 = vpack.c.b16 %v5695, %v5694
      %v5732 = vpack.c.b16 %v5697, %v5696
      %v5733 = vpack.c.b16 %v5699, %v5698
      %v5734 = vpack.c.b16 %v5701, %v5700
      %v5735 = vpack.c.b16 %v5703, %v5702
      %5768 = vst [vmem:[%s239] sm:$0xff] %v5704
      %5769 = vst [vmem:[%s239 + $0x8] sm:$0xff] %v5705
      %5770 = vst [vmem:[%s239 + $0x10] sm:$0xff] %v5706
      %5771 = vst [vmem:[%s239 + $0x18] sm:$0xff] %v5707
      %5772 = vst [vmem:[%s239 + $0x20] sm:$0xff] %v5708
      %5773 = vst [vmem:[%s239 + $0x28] sm:$0xff] %v5709
      %5774 = vst [vmem:[%s239 + $0x30] sm:$0xff] %v5710
      %5775 = vst [vmem:[%s239 + $0x38] sm:$0xff] %v5711
      %5776 = vst [vmem:[%s239 + $0x40] sm:$0xff] %v5712
      %5777 = vst [vmem:[%s239 + $0x48] sm:$0xff] %v5713
      %5778 = vst [vmem:[%s239 + $0x50] sm:$0xff] %v5714
      %5779 = vst [vmem:[%s239 + $0x58] sm:$0xff] %v5715
      %5780 = vst [vmem:[%s239 + $0x60] sm:$0xff] %v5716
      %5781 = vst [vmem:[%s239 + $0x68] sm:$0xff] %v5717
      %5782 = vst [vmem:[%s239 + $0x70] sm:$0xff] %v5718
      %5783 = vst [vmem:[%s239 + $0x78] sm:$0xff] %v5719
      %5784 = vst [vmem:[%s239 + $0x80] sm:$0xff] %v5720
      %5785 = vst [vmem:[%s239 + $0x88] sm:$0xff] %v5721
      %5786 = vst [vmem:[%s239 + $0x90] sm:$0xff] %v5722
      %5787 = vst [vmem:[%s239 + $0x98] sm:$0xff] %v5723
      %5788 = vst [vmem:[%s239 + $0xa0] sm:$0xff] %v5724
      %5789 = vst [vmem:[%s239 + $0xa8] sm:$0xff] %v5725
      %5790 = vst [vmem:[%s239 + $0xb0] sm:$0xff] %v5726
      %5791 = vst [vmem:[%s239 + $0xb8] sm:$0xff] %v5727
      %5792 = vst [vmem:[%s239 + $0xc0] sm:$0xff] %v5728
      %5793 = vst [vmem:[%s239 + $0xc8] sm:$0xff] %v5729
      %5794 = vst [vmem:[%s239 + $0xd0] sm:$0xff] %v5730
      %5795 = vst [vmem:[%s239 + $0xd8] sm:$0xff] %v5731
      %5796 = vst [vmem:[%s239 + $0xe0] sm:$0xff] %v5732
      %5797 = vst [vmem:[%s239 + $0xe8] sm:$0xff] %v5733
      %5798 = vst [vmem:[%s239 + $0xf0] sm:$0xff] %v5734
      %5799 = vst [vmem:[%s239 + $0xf8] sm:$0xff] %v5735
      %s5800 = smul.u32 16, %s21
      %p5801 = scmp.lt.s32.totalorder %s20, 1
      %s5802 = scalar_select %p5801, %s20, 1
      %p5803 = scmp.lt.s32.totalorder %s5800, 15
      %s5804 = scalar_select %p5803, %s5800, 15
      %s5805 = smul.addr %s5804, 4
      %s5806 = smul.addr %s5802, 64
      %s5807 = sadd.s32 %s5805, %s5806
      %s5808 = smul.addr %s5807, 4
      %s5809 = scalar_lea.vmem %s3, %s5808
      %s5810 = sadd.s32 %s20, %s21
      %p5811 = scmp.lt.s32.totalorder %s5810, 1
      %s5812 = scalar_select %p5811, %s5810, 1
      %s5813 = smul.addr %s5812, 2
      %s5814 = smul.addr %s5813, 2
      %s5815 = scalar_lea.vmem %s4, %s5814
      // Predicated region
      $region33: #{resnet_block.3} parent=31 // pred_check
        %p5816 = pneg %p118
      $region34: #{resnet_block.3} parent=31 // pred_check_branch
        %5818 = sbr.rel (%p5816) target = $region36
      $region35: #{resnet_block.3} parent=31 // pred_region
        %s5819 = smul.u32 16, %s21
      $region36: #{resnet_block.3} parent=31 // pred_fallthru
        _
      // Predicated region
      $region37: #{resnet_block.3} parent=31 // pred_check
        %p5820 = pneg %p146
      $region38: #{resnet_block.3} parent=31 // pred_check_branch
        %5822 = sbr.rel (%p5820) target = $region40
      $region39: #{resnet_block.3} parent=31 // pred_region
        %s5823 = sadd.s32 %s20, %s21
      $region40: #{resnet_block.3} parent=31 // pred_fallthru
        _
    $region32: #{resnet_block.3} parent=5 // pred_fallthru
      _
    %p5824 = scmp.le.s32.totalorder 2, %s11
    // Predicated region
    $region41: #{resnet_block.3} parent=5 // pred_check
      %p5825 = pneg %p5824
    $region42: #{resnet_block.3} parent=5 // pred_check_branch
      %5827 = sbr.rel (%p5825) target = $region44
    $region43: #{resnet_block.3} parent=5 // pred_region
      %s5828 = ssub.s32 %s11, 2
      // Predicated region
      $region45: #{resnet_block.3} parent=43 // pred_check
        %p5829 = pneg %p124
      $region46: #{resnet_block.3} parent=43 // pred_check_branch
        %5831 = sbr.rel (%p5829) target = $region48
      $region47: #{resnet_block.3} parent=43 // pred_region
        %s5832 = smul.u32 16, %s23
        %p5833 = scmp.lt.s32.totalorder %s22, 1
        %s5834 = scalar_select %p5833, %s22, 1
        %p5835 = scmp.lt.s32.totalorder %s5832, 15
        %s5836 = scalar_select %p5835, %s5832, 15
        %s5837 = smul.addr %s5836, 4
        %s5838 = smul.addr %s5834, 64
        %s5839 = sadd.s32 %s5837, %s5838
        %s5840 = smul.addr %s5839, 4
        %s5841 = scalar_lea.vmem %s3, %s5840
      $region48: #{resnet_block.3} parent=43 // pred_fallthru
        _
      // Predicated region
      $region49: #{resnet_block.3} parent=43 // pred_check
        %p5842 = pneg %p152
      $region50: #{resnet_block.3} parent=43 // pred_check_branch
        %5844 = sbr.rel (%p5842) target = $region52
      $region51: #{resnet_block.3} parent=43 // pred_region
        %s5845 = sadd.s32 %s22, %s23
        %p5846 = scmp.lt.s32.totalorder %s5845, 1
        %s5847 = scalar_select %p5846, %s5845, 1
        %s5848 = smul.addr %s5847, 2
        %s5849 = smul.addr %s5848, 2
        %s5850 = scalar_lea.vmem %s4, %s5849
      $region52: #{resnet_block.3} parent=43 // pred_fallthru
        _
    $region44: #{resnet_block.3} parent=5 // pred_fallthru
      _
  $region6: #{resnet_block.3} parent=0 // loop_footer
    %s15 = sadd.s32 1, %s11
  $region7: #{resnet_block.3} parent=0 // loop_footer_branch
    %10 = sbr.rel target = $region3
  $region8: #{resnet_block.3} parent=0 // loop_exit
    _

</llo_original>
